<compile_context>
chip_gen: v7x
topology: tpu7x:2x2x1
jax: 0.10.0
libtpu: 0.0.40
codegen_flags: <defaults>
</compile_context>

<pallas_src>
import jax
import jax.numpy as jnp
from jax import lax
from jax.experimental import pallas as pl
from jax.experimental.pallas import tpu as pltpu

EPS = 1e-5                      # PyTorch LayerNorm default
_H = 15                         # spatial size forced by LayerNorm([32, 13, 13])
_P = _H * _H                    # 225 positions on the flat 15x15 grid
_MAX_OFF = 2 * _H + 2           # largest im2col row shift (dy = dx = 2) -> 32
_R1 = _P + _MAX_OFF             # 257 rows carried for the conv1 output grid
_R_IN = _R1 + _MAX_OFF          # 289 zero-padded input rows
_INV_N1 = 1.0 / (13 * 13 * 32)  # LN1 normalizes over C*H*W = 5408 elements
_INV_N2 = 1.0 / (11 * 11 * 64)  # LN2 normalizes over C*H*W = 7744 elements
_OFFS = tuple(dy * _H + dx for dy in range(3) for dx in range(3))


# ----------------------------------------------------------------------------
# Pallas kernels
# ----------------------------------------------------------------------------
def _conv_tower_kernel(x_ref, w1_ref, b1_ref, g1_ref, be1_ref, m1_ref,
                       w2_ref, b2_ref, g2_ref, be2_ref, m2_ref, o_ref):
    """TB samples per grid step: conv1+LN+ReLU+conv2+LN+ReLU, all in VMEM.

    x_ref:  (TB, 289, Cin)  flat 15x15 NHWC input, rows 225.. are zero padding
    w1_ref: (9*Cin, 32)     conv1 weight, rows ordered (dy, dx, ci)
    w2_ref: (288, 64)       conv2 weight, rows ordered (dy, dx, ci)
    g*/be*: LN affine spread onto the flat grid (zero at invalid positions)
    m*:     (R, 1) 0/1 masks of valid grid positions
    o_ref:  (TB, 225, 64)   bf16 conv-tower output on the flat 15x15 grid
    """
    w1 = w1_ref[...]
    b1 = b1_ref[...]
    g1 = g1_ref[...]
    be1 = be1_ref[...]
    m1 = m1_ref[...]
    w2 = w2_ref[...]
    b2 = b2_ref[...]
    g2 = g2_ref[...]
    be2 = be2_ref[...]
    m2 = m2_ref[...]

    tb = x_ref.shape[0]
    for b in range(tb):                                     # static unroll
        x = x_ref[b]                                        # (289, Cin)

        # conv1: im2col by static row slices (lane-concat of the 9 taps),
        # then ONE MXU matmul.  Rows are positions on the 15x15 grid.
        xw1 = jnp.concatenate([x[off:off + _R1, :] for off in _OFFS], axis=1)
        y1 = (jnp.dot(xw1, w1, preferred_element_type=jnp.float32) + b1) * m1

        # LayerNorm over the 13x13x32 valid elements (two-pass, masked rows).
        mu = jnp.sum(jnp.sum(y1, 0, keepdims=True), 1, keepdims=True) * _INV_N1
        d = (y1 - mu) * m1
        var = jnp.sum(jnp.sum(d * d, 0, keepdims=True), 1, keepdims=True) * _INV_N1
        h1 = jnp.maximum((y1 - mu) * lax.rsqrt(var + EPS) * g1 + be1, 0.0)  # (257, 32)

        # conv2: same im2col-by-slices trick; h1 never leaves VMEM.
        xw2 = jnp.concatenate([h1[off:off + _P, :] for off in _OFFS], axis=1)
        y2 = (jnp.dot(xw2, w2, preferred_element_type=jnp.float32) + b2) * m2

        mu2 = jnp.sum(jnp.sum(y2, 0, keepdims=True), 1, keepdims=True) * _INV_N2
        d2 = (y2 - mu2) * m2
        var2 = jnp.sum(jnp.sum(d2 * d2, 0, keepdims=True), 1, keepdims=True) * _INV_N2
        h2 = jnp.maximum((y2 - mu2) * lax.rsqrt(var2 + EPS) * g2 + be2, 0.0)  # (225, 64)

        # Single full-view store, directly in bf16.
        o_ref[b, :, :] = h2.astype(o_ref.dtype)


def _mlp_kernel(x_ref, w1_ref, b1_ref, w2_ref, b2_ref, o_ref):
    """fc1 (bf16 weights/activations, f32 accum) + ReLU + fc2, one block."""
    h = jnp.dot(x_ref[...], w1_ref[...], preferred_element_type=jnp.float32) + b1_ref[...]
    h = jnp.maximum(h, 0.0)
    o_ref[...] = jnp.dot(h, w2_ref[...], preferred_element_type=jnp.float32) + b2_ref[...]


# ----------------------------------------------------------------------------
# Pallas wrappers
# ----------------------------------------------------------------------------
def conv_tower(x_flat, prep, *, tb=None):
    """x_flat: (B, 225, Cin) f32 -> (B, 225, 64) bf16 on the flat 15x15 grid."""
    B, P, Cin = x_flat.shape
    if tb is None:
        tb = B if B <= 8 else 8

    # Zero-pad the grid rows so every im2col tap is a plain static slice.
    x_pad = jnp.concatenate(
        [x_flat, jnp.zeros((B, _R_IN - P, Cin), x_flat.dtype)], axis=1)

    # Pad the batch to a multiple of the per-step tile.
    nb = (B + tb - 1) // tb
    Bp = nb * tb
    if Bp != B:
        x_pad = jnp.concatenate(
            [x_pad, jnp.zeros((Bp - B, _R_IN, Cin), x_pad.dtype)], axis=0)

    out = pl.pallas_call(
        _conv_tower_kernel,
        out_shape=jax.ShapeDtypeStruct((Bp, _P, 64), jnp.bfloat16),
        grid=(nb,),
        in_specs=[
            pl.BlockSpec((tb, _R_IN, Cin), lambda i: (i, 0, 0)),
            pl.BlockSpec((9 * Cin, 32), lambda i: (0, 0)),
            pl.BlockSpec((1, 32), lambda i: (0, 0)),
            pl.BlockSpec((_R1, 32), lambda i: (0, 0)),
            pl.BlockSpec((_R1, 32), lambda i: (0, 0)),
            pl.BlockSpec((_R1, 1), lambda i: (0, 0)),
            pl.BlockSpec((288, 64), lambda i: (0, 0)),
            pl.BlockSpec((1, 64), lambda i: (0, 0)),
            pl.BlockSpec((_P, 64), lambda i: (0, 0)),
            pl.BlockSpec((_P, 64), lambda i: (0, 0)),
            pl.BlockSpec((_P, 1), lambda i: (0, 0)),
        ],
        out_specs=pl.BlockSpec((tb, _P, 64), lambda i: (i, 0, 0)),
        compiler_params=pltpu.CompilerParams(dimension_semantics=("parallel",)),
    )(x_pad, prep["w1"], prep["b1"], prep["g1"], prep["be1"], prep["m1"],
      prep["w2"], prep["b2"], prep["g2"], prep["be2"], prep["m2"])

    return out[:B] if Bp != B else out


def mlp_head(feat, wf1, bf1, wf2, bf2):
    """feat: (B, 7744) bf16 -> (B, O) f32.  Single-step kernel (no K tiling)."""
    B, K = feat.shape
    F = wf1.shape[1]
    O = wf2.shape[1]
    return pl.pallas_call(
        _mlp_kernel,
        out_shape=jax.ShapeDtypeStruct((B, O), jnp.float32),
        grid=(1,),
        in_specs=[
            pl.BlockSpec((B, K), lambda i: (0, 0)),
            pl.BlockSpec((K, F), lambda i: (0, 0)),
            pl.BlockSpec((1, F), lambda i: (0, 0)),
            pl.BlockSpec((F, O), lambda i: (0, 0)),
            pl.BlockSpec((1, O), lambda i: (0, 0)),
        ],
        out_specs=pl.BlockSpec((B, O), lambda i: (0, 0)),
        compiler_params=pltpu.CompilerParams(dimension_semantics=("arbitrary",)),
    )(feat, wf1, bf1, wf2, bf2)


# ----------------------------------------------------------------------------
# One-time parameter preprocessing (hoisted out of the forward pass)
# ----------------------------------------------------------------------------
def _to_grid(a_chw, h, w, rows):
    """(C, h, w) affine param -> (rows, C) on the flat 15x15 grid, zero elsewhere."""
    C = a_chw.shape[0]
    g = jnp.zeros((_H, _H, C), jnp.float32).at[:h, :w, :].set(
        jnp.transpose(a_chw, (1, 2, 0))).reshape(_P, C)
    if rows > _P:
        g = jnp.concatenate([g, jnp.zeros((rows - _P, C), jnp.float32)], axis=0)
    return g


def _grid_mask(h, w, rows):
    m = jnp.zeros((_H, _H, 1), jnp.float32).at[:h, :w, :].set(1.0).reshape(_P, 1)
    if rows > _P:
        m = jnp.concatenate([m, jnp.zeros((rows - _P, 1), jnp.float32)], axis=0)
    return m


def prepare_params(params):
    Cin = params["conv1_w"].shape[1]
    out_size = params["fc2_w"].shape[0]

    # conv weights (Cout, Cin, kh, kw) -> (kh*kw*Cin, Cout), rows ordered (dy, dx, ci)
    w1 = jnp.transpose(params["conv1_w"], (2, 3, 1, 0)).reshape(9 * Cin, 32)
    w2 = jnp.transpose(params["conv2_w"], (2, 3, 1, 0)).reshape(9 * 32, 64)

    # fc1: torch flattens (c, h, w); kernel feat order is (h, w, c) over 11x11x64.
    wf1 = (params["fc1_w"].reshape(128, 64, 11, 11)
           .transpose(2, 3, 1, 0).reshape(11 * 11 * 64, 128).astype(jnp.bfloat16))

    return dict(
        w1=w1, b1=params["conv1_b"].reshape(1, 32),
        g1=_to_grid(params["ln1_g"], 13, 13, _R1),
        be1=_to_grid(params["ln1_b"], 13, 13, _R1),
        m1=_grid_mask(13, 13, _R1),
        w2=w2, b2=params["conv2_b"].reshape(1, 64),
        g2=_to_grid(params["ln2_g"], 11, 11, _P),
        be2=_to_grid(params["ln2_b"], 11, 11, _P),
        m2=_grid_mask(11, 11, _P),
        wf1=wf1, bf1=params["fc1_b"].reshape(1, 128),
        wf2=params["fc2_w"].T.astype(jnp.float32),
        bf2=params["fc2_b"].reshape(1, out_size),
    )


@jax.jit
def dqn_forward(x_nchw, prep):
    """Pallas implementation of DQN.forward. x_nchw: (B, C_in, 15, 15) float32."""
    B, Cin, H, W = x_nchw.shape
    x_flat = jnp.transpose(x_nchw, (0, 2, 3, 1)).reshape(B, H * W, Cin)
    grid_out = conv_tower(x_flat, prep)                     # (B, 225, 64) bf16
    # Extract the 11x11 valid positions (tiny bf16 array; layout plumbing only).
    feat = grid_out.reshape(B, _H, _H, 64)[:, :11, :11, :].reshape(B, 11 * 11 * 64)
    return mlp_head(feat, prep["wf1"], prep["bf1"], prep["wf2"], prep["bf2"])


# ----------------------------------------------------------------------------
# Pure-JAX reference (mirrors PyTorch NCHW semantics) for validation
# ----------------------------------------------------------------------------
def _layernorm_ref(x, g, b):
    mu = jnp.mean(x, axis=(1, 2, 3), keepdims=True)
    var = jnp.mean((x - mu) ** 2, axis=(1, 2, 3), keepdims=True)
    return (x - mu) / jnp.sqrt(var + EPS) * g[None] + b[None]


def dqn_reference(x, params):
    dn = ("NCHW", "OIHW", "NCHW")
    hp = lax.Precision.HIGHEST
    y = lax.conv_general_dilated(x, params["conv1_w"], (1, 1), "VALID",
                                 dimension_numbers=dn, precision=hp)
    y = y + params["conv1_b"][None, :, None, None]
    y = jnp.maximum(_layernorm_ref(y, params["ln1_g"], params["ln1_b"]), 0.0)
    y = lax.conv_general_dilated(y, params["conv2_w"], (1, 1), "VALID",
                                 dimension_numbers=dn, precision=hp)
    y = y + params["conv2_b"][None, :, None, None]
    y = jnp.maximum(_layernorm_ref(y, params["ln2_g"], params["ln2_b"]), 0.0)
    y = y.reshape(y.shape[0], -1)
    y = jnp.maximum(jnp.dot(y, params["fc1_w"].T, precision=hp) + params["fc1_b"], 0.0)
    return jnp.dot(y, params["fc2_w"].T, precision=hp) + params["fc2_b"]


# ----------------------------------------------------------------------------
# Deterministic parameter init (PyTorch shapes)
# ----------------------------------------------------------------------------
def init_params(key, in_channels, output_size):
    ks = jax.random.split(key, 12)

    def nrm(k, shape, scale):
        return (scale * jax.random.normal(k, shape)).astype(jnp.float32)

    return dict(
        conv1_w=nrm(ks[0], (32, in_channels, 3, 3), 0.1),
        conv1_b=nrm(ks[1], (32,), 0.1),
        ln1_g=(jnp.ones((32, 13, 13), jnp.float32) + nrm(ks[2], (32, 13, 13), 0.05)),
        ln1_b=nrm(ks[3], (32, 13, 13), 0.05),
        conv2_w=nrm(ks[4], (64, 32, 3, 3), 0.05),
        conv2_b=nrm(ks[5], (64,), 0.05),
        ln2_g=(jnp.ones((64, 11, 11), jnp.float32) + nrm(ks[6], (64, 11, 11), 0.05)),
        ln2_b=nrm(ks[7], (64, 11, 11), 0.05),
        fc1_w=nrm(ks[8], (128, 64 * 11 * 11), 0.02),
        fc1_b=nrm(ks[9], (128,), 0.02),
        fc2_w=nrm(ks[10], (output_size, 128), 0.05),
        fc2_b=nrm(ks[11], (output_size,), 0.05),
    )


if __name__ == "__main__":
    key = jax.random.PRNGKey(0)
    kx, kp = jax.random.split(key)

    # LayerNorm([32, 13, 13]) after a 3x3 VALID conv forces a 15x15 spatial input.
    B, Cin, H, W = 2, 4, 15, 15
    output_size = 6

    x = jax.random.normal(kx, (B, Cin, H, W), dtype=jnp.float32)
    params = init_params(kp, Cin, output_size)
    prep = prepare_params(params)   # one-time weight re-layout / bf16 cast

    out = jax.block_until_ready(dqn_forward(x, prep))
    ref = jax.block_until_ready(dqn_reference(x, params))

    assert out.shape == (B, output_size), out.shape
    if not jnp.allclose(out, ref, atol=5e-2, rtol=5e-2):
        raise AssertionError(f"mismatch: max abs err {jnp.max(jnp.abs(out - ref))}")

    print("KERNEL_OK")
</pallas_src>

<mosaic_0001>
module attributes {stable_mosaic.version = 11 : i64} {
  func.func @_conv_tower_kernel(%arg0: i32, %arg1: memref<2x289x4xf32, #tpu.memory_space<vmem>>, %arg2: memref<36x32xf32, #tpu.memory_space<vmem>>, %arg3: memref<1x32xf32, #tpu.memory_space<vmem>>, %arg4: memref<257x32xf32, #tpu.memory_space<vmem>>, %arg5: memref<257x32xf32, #tpu.memory_space<vmem>>, %arg6: memref<257x1xf32, #tpu.memory_space<vmem>>, %arg7: memref<288x64xf32, #tpu.memory_space<vmem>>, %arg8: memref<1x64xf32, #tpu.memory_space<vmem>>, %arg9: memref<225x64xf32, #tpu.memory_space<vmem>>, %arg10: memref<225x64xf32, #tpu.memory_space<vmem>>, %arg11: memref<225x1xf32, #tpu.memory_space<vmem>>, %arg12: memref<2x225x64xbf16, #tpu.memory_space<vmem>>) attributes {dimension_semantics = [#tpu.dimension_semantics<parallel>], iteration_bounds = array<i64: 1>, scalar_prefetch = 0 : i64, scratch_operands = 0 : i64, tpu.core_type = #tpu.core_type<tc>, window_params = [{transform_indices = @transform_0, window_bounds = array<i64: 2, 289, 4>}, {pipeline_mode = #tpu.pipeline_mode<synchronous>, transform_indices = @transform_1, window_bounds = array<i64: 36, 32>}, {pipeline_mode = #tpu.pipeline_mode<synchronous>, transform_indices = @transform_2, window_bounds = array<i64: 1, 32>}, {pipeline_mode = #tpu.pipeline_mode<synchronous>, transform_indices = @transform_3, window_bounds = array<i64: 257, 32>}, {pipeline_mode = #tpu.pipeline_mode<synchronous>, transform_indices = @transform_4, window_bounds = array<i64: 257, 32>}, {pipeline_mode = #tpu.pipeline_mode<synchronous>, transform_indices = @transform_5, window_bounds = array<i64: 257, 1>}, {pipeline_mode = #tpu.pipeline_mode<synchronous>, transform_indices = @transform_6, window_bounds = array<i64: 288, 64>}, {pipeline_mode = #tpu.pipeline_mode<synchronous>, transform_indices = @transform_7, window_bounds = array<i64: 1, 64>}, {pipeline_mode = #tpu.pipeline_mode<synchronous>, transform_indices = @transform_8, window_bounds = array<i64: 225, 64>}, {pipeline_mode = #tpu.pipeline_mode<synchronous>, transform_indices = @transform_9, window_bounds = array<i64: 225, 64>}, {pipeline_mode = #tpu.pipeline_mode<synchronous>, transform_indices = @transform_10, window_bounds = array<i64: 225, 1>}, {transform_indices = @transform_11, window_bounds = array<i64: 2, 225, 64>}]} {
    %c0 = arith.constant 0 : index
    %c0_0 = arith.constant 0 : index
    %0 = vector.load %arg2[%c0, %c0_0] : memref<36x32xf32, #tpu.memory_space<vmem>>, vector<36x32xf32>
    %c0_1 = arith.constant 0 : index
    %c0_2 = arith.constant 0 : index
    %1 = vector.load %arg3[%c0_1, %c0_2] : memref<1x32xf32, #tpu.memory_space<vmem>>, vector<1x32xf32>
    %c0_3 = arith.constant 0 : index
    %c0_4 = arith.constant 0 : index
    %2 = vector.load %arg4[%c0_3, %c0_4] : memref<257x32xf32, #tpu.memory_space<vmem>>, vector<257x32xf32>
    %c0_5 = arith.constant 0 : index
    %c0_6 = arith.constant 0 : index
    %3 = vector.load %arg5[%c0_5, %c0_6] : memref<257x32xf32, #tpu.memory_space<vmem>>, vector<257x32xf32>
    %c0_7 = arith.constant 0 : index
    %c0_8 = arith.constant 0 : index
    %4 = vector.load %arg6[%c0_7, %c0_8] : memref<257x1xf32, #tpu.memory_space<vmem>>, vector<257x1xf32>
    %c0_9 = arith.constant 0 : index
    %c0_10 = arith.constant 0 : index
    %5 = vector.load %arg7[%c0_9, %c0_10] : memref<288x64xf32, #tpu.memory_space<vmem>>, vector<288x64xf32>
    %c0_11 = arith.constant 0 : index
    %c0_12 = arith.constant 0 : index
    %6 = vector.load %arg8[%c0_11, %c0_12] : memref<1x64xf32, #tpu.memory_space<vmem>>, vector<1x64xf32>
    %c0_13 = arith.constant 0 : index
    %c0_14 = arith.constant 0 : index
    %7 = vector.load %arg9[%c0_13, %c0_14] : memref<225x64xf32, #tpu.memory_space<vmem>>, vector<225x64xf32>
    %c0_15 = arith.constant 0 : index
    %c0_16 = arith.constant 0 : index
    %8 = vector.load %arg10[%c0_15, %c0_16] : memref<225x64xf32, #tpu.memory_space<vmem>>, vector<225x64xf32>
    %c0_17 = arith.constant 0 : index
    %c0_18 = arith.constant 0 : index
    %9 = vector.load %arg11[%c0_17, %c0_18] : memref<225x1xf32, #tpu.memory_space<vmem>>, vector<225x1xf32>
    %c0_19 = arith.constant 0 : index
    %c0_20 = arith.constant 0 : index
    %c0_21 = arith.constant 0 : index
    %10 = vector.load %arg1[%c0_19, %c0_20, %c0_21] : memref<2x289x4xf32, #tpu.memory_space<vmem>>, vector<1x289x4xf32>
    %11 = vector.shape_cast %10 : vector<1x289x4xf32> to vector<289x4xf32>
    %12 = vector.extract_strided_slice %11 {offsets = [0, 0], sizes = [257, 4], strides = [1, 1]} : vector<289x4xf32> to vector<257x4xf32>
    %13 = vector.extract_strided_slice %11 {offsets = [1, 0], sizes = [257, 4], strides = [1, 1]} : vector<289x4xf32> to vector<257x4xf32>
    %14 = vector.extract_strided_slice %11 {offsets = [2, 0], sizes = [257, 4], strides = [1, 1]} : vector<289x4xf32> to vector<257x4xf32>
    %15 = vector.extract_strided_slice %11 {offsets = [15, 0], sizes = [257, 4], strides = [1, 1]} : vector<289x4xf32> to vector<257x4xf32>
    %16 = vector.extract_strided_slice %11 {offsets = [16, 0], sizes = [257, 4], strides = [1, 1]} : vector<289x4xf32> to vector<257x4xf32>
    %17 = vector.extract_strided_slice %11 {offsets = [17, 0], sizes = [257, 4], strides = [1, 1]} : vector<289x4xf32> to vector<257x4xf32>
    %18 = vector.extract_strided_slice %11 {offsets = [30, 0], sizes = [257, 4], strides = [1, 1]} : vector<289x4xf32> to vector<257x4xf32>
    %19 = vector.extract_strided_slice %11 {offsets = [31, 0], sizes = [257, 4], strides = [1, 1]} : vector<289x4xf32> to vector<257x4xf32>
    %20 = vector.extract_strided_slice %11 {offsets = [32, 0], sizes = [257, 4], strides = [1, 1]} : vector<289x4xf32> to vector<257x4xf32>
    %21 = tpu.concatenate %12, %13, %14, %15, %16, %17, %18, %19, %20 in 1 : vector<257x4xf32>, vector<257x4xf32>, vector<257x4xf32>, vector<257x4xf32>, vector<257x4xf32>, vector<257x4xf32>, vector<257x4xf32>, vector<257x4xf32>, vector<257x4xf32> -> vector<257x36xf32>
    %cst = arith.constant dense<0.000000e+00> : vector<257x32xf32>
    %22 = tpu.matmul %21, %0, %cst {dimension_numbers = #tpu.dot_dimension_numbers<[1], [0], [0], [1], [0, 0, 1, 1], [], []>} : vector<257x36xf32>, vector<36x32xf32>, vector<257x32xf32> -> vector<257x32xf32>
    %23 = vector.broadcast %1 : vector<1x32xf32> to vector<257x32xf32>
    %24 = arith.addf %22, %23 : vector<257x32xf32>
    %25 = vector.broadcast %4 : vector<257x1xf32> to vector<257x32xf32>
    %26 = arith.mulf %24, %25 : vector<257x32xf32>
    %cst_22 = arith.constant dense<0.000000e+00> : vector<32xf32>
    %27 = vector.multi_reduction <add>, %26, %cst_22 [0] : vector<257x32xf32> to vector<32xf32>
    %28 = vector.shape_cast %27 : vector<32xf32> to vector<1x32xf32>
    %cst_23 = arith.constant dense<0.000000e+00> : vector<1xf32>
    %29 = vector.multi_reduction <add>, %28, %cst_23 [1] : vector<1x32xf32> to vector<1xf32>
    %30 = vector.shape_cast %29 : vector<1xf32> to vector<1x1xf32>
    %cst_24 = arith.constant 1.84911245E-4 : f32
    %31 = vector.broadcast %cst_24 : f32 to vector<1x1xf32>
    %32 = arith.mulf %30, %31 : vector<1x1xf32>
    %33 = vector.broadcast %32 : vector<1x1xf32> to vector<257x32xf32>
    %34 = arith.subf %26, %33 : vector<257x32xf32>
    %35 = vector.broadcast %4 : vector<257x1xf32> to vector<257x32xf32>
    %36 = arith.mulf %34, %35 : vector<257x32xf32>
    %37 = arith.mulf %36, %36 : vector<257x32xf32>
    %cst_25 = arith.constant dense<0.000000e+00> : vector<32xf32>
    %38 = vector.multi_reduction <add>, %37, %cst_25 [0] : vector<257x32xf32> to vector<32xf32>
    %39 = vector.shape_cast %38 : vector<32xf32> to vector<1x32xf32>
    %cst_26 = arith.constant dense<0.000000e+00> : vector<1xf32>
    %40 = vector.multi_reduction <add>, %39, %cst_26 [1] : vector<1x32xf32> to vector<1xf32>
    %41 = vector.shape_cast %40 : vector<1xf32> to vector<1x1xf32>
    %cst_27 = arith.constant 1.84911245E-4 : f32
    %42 = vector.broadcast %cst_27 : f32 to vector<1x1xf32>
    %43 = arith.mulf %41, %42 : vector<1x1xf32>
    %44 = vector.broadcast %32 : vector<1x1xf32> to vector<257x32xf32>
    %45 = arith.subf %26, %44 : vector<257x32xf32>
    %cst_28 = arith.constant 9.99999974E-6 : f32
    %46 = vector.broadcast %cst_28 : f32 to vector<1x1xf32>
    %47 = arith.addf %43, %46 : vector<1x1xf32>
    %48 = math.rsqrt %47 : vector<1x1xf32>
    %49 = vector.broadcast %48 : vector<1x1xf32> to vector<257x32xf32>
    %50 = arith.mulf %45, %49 : vector<257x32xf32>
    %51 = arith.mulf %50, %2 : vector<257x32xf32>
    %52 = arith.addf %51, %3 : vector<257x32xf32>
    %cst_29 = arith.constant 0.000000e+00 : f32
    %53 = vector.broadcast %cst_29 : f32 to vector<257x32xf32>
    %54 = arith.maximumf %52, %53 : vector<257x32xf32>
    %55 = vector.extract_strided_slice %54 {offsets = [0, 0], sizes = [225, 32], strides = [1, 1]} : vector<257x32xf32> to vector<225x32xf32>
    %56 = vector.extract_strided_slice %54 {offsets = [1, 0], sizes = [225, 32], strides = [1, 1]} : vector<257x32xf32> to vector<225x32xf32>
    %57 = vector.extract_strided_slice %54 {offsets = [2, 0], sizes = [225, 32], strides = [1, 1]} : vector<257x32xf32> to vector<225x32xf32>
    %58 = vector.extract_strided_slice %54 {offsets = [15, 0], sizes = [225, 32], strides = [1, 1]} : vector<257x32xf32> to vector<225x32xf32>
    %59 = vector.extract_strided_slice %54 {offsets = [16, 0], sizes = [225, 32], strides = [1, 1]} : vector<257x32xf32> to vector<225x32xf32>
    %60 = vector.extract_strided_slice %54 {offsets = [17, 0], sizes = [225, 32], strides = [1, 1]} : vector<257x32xf32> to vector<225x32xf32>
    %61 = vector.extract_strided_slice %54 {offsets = [30, 0], sizes = [225, 32], strides = [1, 1]} : vector<257x32xf32> to vector<225x32xf32>
    %62 = vector.extract_strided_slice %54 {offsets = [31, 0], sizes = [225, 32], strides = [1, 1]} : vector<257x32xf32> to vector<225x32xf32>
    %63 = vector.extract_strided_slice %54 {offsets = [32, 0], sizes = [225, 32], strides = [1, 1]} : vector<257x32xf32> to vector<225x32xf32>
    %64 = tpu.concatenate %55, %56, %57, %58, %59, %60, %61, %62, %63 in 1 : vector<225x32xf32>, vector<225x32xf32>, vector<225x32xf32>, vector<225x32xf32>, vector<225x32xf32>, vector<225x32xf32>, vector<225x32xf32>, vector<225x32xf32>, vector<225x32xf32> -> vector<225x288xf32>
    %cst_30 = arith.constant dense<0.000000e+00> : vector<225x64xf32>
    %65 = tpu.matmul %64, %5, %cst_30 {dimension_numbers = #tpu.dot_dimension_numbers<[1], [0], [0], [1], [0, 0, 1, 1], [], []>} : vector<225x288xf32>, vector<288x64xf32>, vector<225x64xf32> -> vector<225x64xf32>
    %66 = vector.broadcast %6 : vector<1x64xf32> to vector<225x64xf32>
    %67 = arith.addf %65, %66 : vector<225x64xf32>
    %68 = vector.broadcast %9 : vector<225x1xf32> to vector<225x64xf32>
    %69 = arith.mulf %67, %68 : vector<225x64xf32>
    %cst_31 = arith.constant dense<0.000000e+00> : vector<64xf32>
    %70 = vector.multi_reduction <add>, %69, %cst_31 [0] : vector<225x64xf32> to vector<64xf32>
    %71 = vector.shape_cast %70 : vector<64xf32> to vector<1x64xf32>
    %cst_32 = arith.constant dense<0.000000e+00> : vector<1xf32>
    %72 = vector.multi_reduction <add>, %71, %cst_32 [1] : vector<1x64xf32> to vector<1xf32>
    %73 = vector.shape_cast %72 : vector<1xf32> to vector<1x1xf32>
    %cst_33 = arith.constant 1.29132226E-4 : f32
    %74 = vector.broadcast %cst_33 : f32 to vector<1x1xf32>
    %75 = arith.mulf %73, %74 : vector<1x1xf32>
    %76 = vector.broadcast %75 : vector<1x1xf32> to vector<225x64xf32>
    %77 = arith.subf %69, %76 : vector<225x64xf32>
    %78 = vector.broadcast %9 : vector<225x1xf32> to vector<225x64xf32>
    %79 = arith.mulf %77, %78 : vector<225x64xf32>
    %80 = arith.mulf %79, %79 : vector<225x64xf32>
    %cst_34 = arith.constant dense<0.000000e+00> : vector<64xf32>
    %81 = vector.multi_reduction <add>, %80, %cst_34 [0] : vector<225x64xf32> to vector<64xf32>
    %82 = vector.shape_cast %81 : vector<64xf32> to vector<1x64xf32>
    %cst_35 = arith.constant dense<0.000000e+00> : vector<1xf32>
    %83 = vector.multi_reduction <add>, %82, %cst_35 [1] : vector<1x64xf32> to vector<1xf32>
    %84 = vector.shape_cast %83 : vector<1xf32> to vector<1x1xf32>
    %cst_36 = arith.constant 1.29132226E-4 : f32
    %85 = vector.broadcast %cst_36 : f32 to vector<1x1xf32>
    %86 = arith.mulf %84, %85 : vector<1x1xf32>
    %87 = vector.broadcast %75 : vector<1x1xf32> to vector<225x64xf32>
    %88 = arith.subf %69, %87 : vector<225x64xf32>
    %cst_37 = arith.constant 9.99999974E-6 : f32
    %89 = vector.broadcast %cst_37 : f32 to vector<1x1xf32>
    %90 = arith.addf %86, %89 : vector<1x1xf32>
    %91 = math.rsqrt %90 : vector<1x1xf32>
    %92 = vector.broadcast %91 : vector<1x1xf32> to vector<225x64xf32>
    %93 = arith.mulf %88, %92 : vector<225x64xf32>
    %94 = arith.mulf %93, %7 : vector<225x64xf32>
    %95 = arith.addf %94, %8 : vector<225x64xf32>
    %cst_38 = arith.constant 0.000000e+00 : f32
    %96 = vector.broadcast %cst_38 : f32 to vector<225x64xf32>
    %97 = arith.maximumf %95, %96 : vector<225x64xf32>
    %98 = arith.truncf %97 : vector<225x64xf32> to vector<225x64xbf16>
    %c0_39 = arith.constant 0 : index
    %c0_40 = arith.constant 0 : index
    %c0_41 = arith.constant 0 : index
    %99 = vector.load %arg12[%c0_39, %c0_40, %c0_41] : memref<2x225x64xbf16, #tpu.memory_space<vmem>>, vector<1x225x64xbf16>
    %100 = vector.shape_cast %99 : vector<1x225x64xbf16> to vector<225x64xbf16>
    %101 = vector.shape_cast %98 : vector<225x64xbf16> to vector<1x225x64xbf16>
    tpu.vector_store %arg12[%c0_39, %c0_40, %c0_41], %101 {strides = array<i32>} : memref<2x225x64xbf16, #tpu.memory_space<vmem>>, vector<1x225x64xbf16>,
    %c1 = arith.constant 1 : index
    %c0_42 = arith.constant 0 : index
    %c0_43 = arith.constant 0 : index
    %102 = vector.load %arg1[%c1, %c0_42, %c0_43] : memref<2x289x4xf32, #tpu.memory_space<vmem>>, vector<1x289x4xf32>
    %103 = vector.shape_cast %102 : vector<1x289x4xf32> to vector<289x4xf32>
    %104 = vector.extract_strided_slice %103 {offsets = [0, 0], sizes = [257, 4], strides = [1, 1]} : vector<289x4xf32> to vector<257x4xf32>
    %105 = vector.extract_strided_slice %103 {offsets = [1, 0], sizes = [257, 4], strides = [1, 1]} : vector<289x4xf32> to vector<257x4xf32>
    %106 = vector.extract_strided_slice %103 {offsets = [2, 0], sizes = [257, 4], strides = [1, 1]} : vector<289x4xf32> to vector<257x4xf32>
    %107 = vector.extract_strided_slice %103 {offsets = [15, 0], sizes = [257, 4], strides = [1, 1]} : vector<289x4xf32> to vector<257x4xf32>
    %108 = vector.extract_strided_slice %103 {offsets = [16, 0], sizes = [257, 4], strides = [1, 1]} : vector<289x4xf32> to vector<257x4xf32>
    %109 = vector.extract_strided_slice %103 {offsets = [17, 0], sizes = [257, 4], strides = [1, 1]} : vector<289x4xf32> to vector<257x4xf32>
    %110 = vector.extract_strided_slice %103 {offsets = [30, 0], sizes = [257, 4], strides = [1, 1]} : vector<289x4xf32> to vector<257x4xf32>
    %111 = vector.extract_strided_slice %103 {offsets = [31, 0], sizes = [257, 4], strides = [1, 1]} : vector<289x4xf32> to vector<257x4xf32>
    %112 = vector.extract_strided_slice %103 {offsets = [32, 0], sizes = [257, 4], strides = [1, 1]} : vector<289x4xf32> to vector<257x4xf32>
    %113 = tpu.concatenate %104, %105, %106, %107, %108, %109, %110, %111, %112 in 1 : vector<257x4xf32>, vector<257x4xf32>, vector<257x4xf32>, vector<257x4xf32>, vector<257x4xf32>, vector<257x4xf32>, vector<257x4xf32>, vector<257x4xf32>, vector<257x4xf32> -> vector<257x36xf32>
    %cst_44 = arith.constant dense<0.000000e+00> : vector<257x32xf32>
    %114 = tpu.matmul %113, %0, %cst_44 {dimension_numbers = #tpu.dot_dimension_numbers<[1], [0], [0], [1], [0, 0, 1, 1], [], []>} : vector<257x36xf32>, vector<36x32xf32>, vector<257x32xf32> -> vector<257x32xf32>
    %115 = vector.broadcast %1 : vector<1x32xf32> to vector<257x32xf32>
    %116 = arith.addf %114, %115 : vector<257x32xf32>
    %117 = vector.broadcast %4 : vector<257x1xf32> to vector<257x32xf32>
    %118 = arith.mulf %116, %117 : vector<257x32xf32>
    %cst_45 = arith.constant dense<0.000000e+00> : vector<32xf32>
    %119 = vector.multi_reduction <add>, %118, %cst_45 [0] : vector<257x32xf32> to vector<32xf32>
    %120 = vector.shape_cast %119 : vector<32xf32> to vector<1x32xf32>
    %cst_46 = arith.constant dense<0.000000e+00> : vector<1xf32>
    %121 = vector.multi_reduction <add>, %120, %cst_46 [1] : vector<1x32xf32> to vector<1xf32>
    %122 = vector.shape_cast %121 : vector<1xf32> to vector<1x1xf32>
    %cst_47 = arith.constant 1.84911245E-4 : f32
    %123 = vector.broadcast %cst_47 : f32 to vector<1x1xf32>
    %124 = arith.mulf %122, %123 : vector<1x1xf32>
    %125 = vector.broadcast %124 : vector<1x1xf32> to vector<257x32xf32>
    %126 = arith.subf %118, %125 : vector<257x32xf32>
    %127 = vector.broadcast %4 : vector<257x1xf32> to vector<257x32xf32>
    %128 = arith.mulf %126, %127 : vector<257x32xf32>
    %129 = arith.mulf %128, %128 : vector<257x32xf32>
    %cst_48 = arith.constant dense<0.000000e+00> : vector<32xf32>
    %130 = vector.multi_reduction <add>, %129, %cst_48 [0] : vector<257x32xf32> to vector<32xf32>
    %131 = vector.shape_cast %130 : vector<32xf32> to vector<1x32xf32>
    %cst_49 = arith.constant dense<0.000000e+00> : vector<1xf32>
    %132 = vector.multi_reduction <add>, %131, %cst_49 [1] : vector<1x32xf32> to vector<1xf32>
    %133 = vector.shape_cast %132 : vector<1xf32> to vector<1x1xf32>
    %cst_50 = arith.constant 1.84911245E-4 : f32
    %134 = vector.broadcast %cst_50 : f32 to vector<1x1xf32>
    %135 = arith.mulf %133, %134 : vector<1x1xf32>
    %136 = vector.broadcast %124 : vector<1x1xf32> to vector<257x32xf32>
    %137 = arith.subf %118, %136 : vector<257x32xf32>
    %cst_51 = arith.constant 9.99999974E-6 : f32
    %138 = vector.broadcast %cst_51 : f32 to vector<1x1xf32>
    %139 = arith.addf %135, %138 : vector<1x1xf32>
    %140 = math.rsqrt %139 : vector<1x1xf32>
    %141 = vector.broadcast %140 : vector<1x1xf32> to vector<257x32xf32>
    %142 = arith.mulf %137, %141 : vector<257x32xf32>
    %143 = arith.mulf %142, %2 : vector<257x32xf32>
    %144 = arith.addf %143, %3 : vector<257x32xf32>
    %cst_52 = arith.constant 0.000000e+00 : f32
    %145 = vector.broadcast %cst_52 : f32 to vector<257x32xf32>
    %146 = arith.maximumf %144, %145 : vector<257x32xf32>
    %147 = vector.extract_strided_slice %146 {offsets = [0, 0], sizes = [225, 32], strides = [1, 1]} : vector<257x32xf32> to vector<225x32xf32>
    %148 = vector.extract_strided_slice %146 {offsets = [1, 0], sizes = [225, 32], strides = [1, 1]} : vector<257x32xf32> to vector<225x32xf32>
    %149 = vector.extract_strided_slice %146 {offsets = [2, 0], sizes = [225, 32], strides = [1, 1]} : vector<257x32xf32> to vector<225x32xf32>
    %150 = vector.extract_strided_slice %146 {offsets = [15, 0], sizes = [225, 32], strides = [1, 1]} : vector<257x32xf32> to vector<225x32xf32>
    %151 = vector.extract_strided_slice %146 {offsets = [16, 0], sizes = [225, 32], strides = [1, 1]} : vector<257x32xf32> to vector<225x32xf32>
    %152 = vector.extract_strided_slice %146 {offsets = [17, 0], sizes = [225, 32], strides = [1, 1]} : vector<257x32xf32> to vector<225x32xf32>
    %153 = vector.extract_strided_slice %146 {offsets = [30, 0], sizes = [225, 32], strides = [1, 1]} : vector<257x32xf32> to vector<225x32xf32>
    %154 = vector.extract_strided_slice %146 {offsets = [31, 0], sizes = [225, 32], strides = [1, 1]} : vector<257x32xf32> to vector<225x32xf32>
    %155 = vector.extract_strided_slice %146 {offsets = [32, 0], sizes = [225, 32], strides = [1, 1]} : vector<257x32xf32> to vector<225x32xf32>
    %156 = tpu.concatenate %147, %148, %149, %150, %151, %152, %153, %154, %155 in 1 : vector<225x32xf32>, vector<225x32xf32>, vector<225x32xf32>, vector<225x32xf32>, vector<225x32xf32>, vector<225x32xf32>, vector<225x32xf32>, vector<225x32xf32>, vector<225x32xf32> -> vector<225x288xf32>
    %cst_53 = arith.constant dense<0.000000e+00> : vector<225x64xf32>
    %157 = tpu.matmul %156, %5, %cst_53 {dimension_numbers = #tpu.dot_dimension_numbers<[1], [0], [0], [1], [0, 0, 1, 1], [], []>} : vector<225x288xf32>, vector<288x64xf32>, vector<225x64xf32> -> vector<225x64xf32>
    %158 = vector.broadcast %6 : vector<1x64xf32> to vector<225x64xf32>
    %159 = arith.addf %157, %158 : vector<225x64xf32>
    %160 = vector.broadcast %9 : vector<225x1xf32> to vector<225x64xf32>
    %161 = arith.mulf %159, %160 : vector<225x64xf32>
    %cst_54 = arith.constant dense<0.000000e+00> : vector<64xf32>
    %162 = vector.multi_reduction <add>, %161, %cst_54 [0] : vector<225x64xf32> to vector<64xf32>
    %163 = vector.shape_cast %162 : vector<64xf32> to vector<1x64xf32>
    %cst_55 = arith.constant dense<0.000000e+00> : vector<1xf32>
    %164 = vector.multi_reduction <add>, %163, %cst_55 [1] : vector<1x64xf32> to vector<1xf32>
    %165 = vector.shape_cast %164 : vector<1xf32> to vector<1x1xf32>
    %cst_56 = arith.constant 1.29132226E-4 : f32
    %166 = vector.broadcast %cst_56 : f32 to vector<1x1xf32>
    %167 = arith.mulf %165, %166 : vector<1x1xf32>
    %168 = vector.broadcast %167 : vector<1x1xf32> to vector<225x64xf32>
    %169 = arith.subf %161, %168 : vector<225x64xf32>
    %170 = vector.broadcast %9 : vector<225x1xf32> to vector<225x64xf32>
    %171 = arith.mulf %169, %170 : vector<225x64xf32>
    %172 = arith.mulf %171, %171 : vector<225x64xf32>
    %cst_57 = arith.constant dense<0.000000e+00> : vector<64xf32>
    %173 = vector.multi_reduction <add>, %172, %cst_57 [0] : vector<225x64xf32> to vector<64xf32>
    %174 = vector.shape_cast %173 : vector<64xf32> to vector<1x64xf32>
    %cst_58 = arith.constant dense<0.000000e+00> : vector<1xf32>
    %175 = vector.multi_reduction <add>, %174, %cst_58 [1] : vector<1x64xf32> to vector<1xf32>
    %176 = vector.shape_cast %175 : vector<1xf32> to vector<1x1xf32>
    %cst_59 = arith.constant 1.29132226E-4 : f32
    %177 = vector.broadcast %cst_59 : f32 to vector<1x1xf32>
    %178 = arith.mulf %176, %177 : vector<1x1xf32>
    %179 = vector.broadcast %167 : vector<1x1xf32> to vector<225x64xf32>
    %180 = arith.subf %161, %179 : vector<225x64xf32>
    %cst_60 = arith.constant 9.99999974E-6 : f32
    %181 = vector.broadcast %cst_60 : f32 to vector<1x1xf32>
    %182 = arith.addf %178, %181 : vector<1x1xf32>
    %183 = math.rsqrt %182 : vector<1x1xf32>
    %184 = vector.broadcast %183 : vector<1x1xf32> to vector<225x64xf32>
    %185 = arith.mulf %180, %184 : vector<225x64xf32>
    %186 = arith.mulf %185, %7 : vector<225x64xf32>
    %187 = arith.addf %186, %8 : vector<225x64xf32>
    %cst_61 = arith.constant 0.000000e+00 : f32
    %188 = vector.broadcast %cst_61 : f32 to vector<225x64xf32>
    %189 = arith.maximumf %187, %188 : vector<225x64xf32>
    %190 = arith.truncf %189 : vector<225x64xf32> to vector<225x64xbf16>
    %c1_62 = arith.constant 1 : index
    %c0_63 = arith.constant 0 : index
    %c0_64 = arith.constant 0 : index
    %191 = vector.load %arg12[%c1_62, %c0_63, %c0_64] : memref<2x225x64xbf16, #tpu.memory_space<vmem>>, vector<1x225x64xbf16>
    %192 = vector.shape_cast %191 : vector<1x225x64xbf16> to vector<225x64xbf16>
    %193 = vector.shape_cast %190 : vector<225x64xbf16> to vector<1x225x64xbf16>
    tpu.vector_store %arg12[%c1_62, %c0_63, %c0_64], %193 {strides = array<i32>} : memref<2x225x64xbf16, #tpu.memory_space<vmem>>, vector<1x225x64xbf16>,
    return
  }
  func.func @transform_0(%arg0: i32) -> (i32, i32, i32) {
    %c0_i32 = arith.constant 0 : i32
    %c0_i32_0 = arith.constant 0 : i32
    %c0_i32_1 = arith.constant 0 : i32
    return %arg0, %c0_i32, %c0_i32_0 : i32, i32, i32
  }
  func.func @transform_1(%arg0: i32) -> (i32, i32) {
    %c0_i32 = arith.constant 0 : i32
    %c0_i32_0 = arith.constant 0 : i32
    %c0_i32_1 = arith.constant 0 : i32
    return %c0_i32, %c0_i32_0 : i32, i32
  }
  func.func @transform_2(%arg0: i32) -> (i32, i32) {
    %c0_i32 = arith.constant 0 : i32
    %c0_i32_0 = arith.constant 0 : i32
    %c0_i32_1 = arith.constant 0 : i32
    return %c0_i32, %c0_i32_0 : i32, i32
  }
  func.func @transform_3(%arg0: i32) -> (i32, i32) {
    %c0_i32 = arith.constant 0 : i32
    %c0_i32_0 = arith.constant 0 : i32
    %c0_i32_1 = arith.constant 0 : i32
    return %c0_i32, %c0_i32_0 : i32, i32
  }
  func.func @transform_4(%arg0: i32) -> (i32, i32) {
    %c0_i32 = arith.constant 0 : i32
    %c0_i32_0 = arith.constant 0 : i32
    %c0_i32_1 = arith.constant 0 : i32
    return %c0_i32, %c0_i32_0 : i32, i32
  }
  func.func @transform_5(%arg0: i32) -> (i32, i32) {
    %c0_i32 = arith.constant 0 : i32
    %c0_i32_0 = arith.constant 0 : i32
    %c0_i32_1 = arith.constant 0 : i32
    return %c0_i32, %c0_i32_0 : i32, i32
  }
  func.func @transform_6(%arg0: i32) -> (i32, i32) {
    %c0_i32 = arith.constant 0 : i32
    %c0_i32_0 = arith.constant 0 : i32
    %c0_i32_1 = arith.constant 0 : i32
    return %c0_i32, %c0_i32_0 : i32, i32
  }
  func.func @transform_7(%arg0: i32) -> (i32, i32) {
    %c0_i32 = arith.constant 0 : i32
    %c0_i32_0 = arith.constant 0 : i32
    %c0_i32_1 = arith.constant 0 : i32
    return %c0_i32, %c0_i32_0 : i32, i32
  }
  func.func @transform_8(%arg0: i32) -> (i32, i32) {
    %c0_i32 = arith.constant 0 : i32
    %c0_i32_0 = arith.constant 0 : i32
    %c0_i32_1 = arith.constant 0 : i32
    return %c0_i32, %c0_i32_0 : i32, i32
  }
  func.func @transform_9(%arg0: i32) -> (i32, i32) {
    %c0_i32 = arith.constant 0 : i32
    %c0_i32_0 = arith.constant 0 : i32
    %c0_i32_1 = arith.constant 0 : i32
    return %c0_i32, %c0_i32_0 : i32, i32
  }
  func.func @transform_10(%arg0: i32) -> (i32, i32) {
    %c0_i32 = arith.constant 0 : i32
    %c0_i32_0 = arith.constant 0 : i32
    %c0_i32_1 = arith.constant 0 : i32
    return %c0_i32, %c0_i32_0 : i32, i32
  }
  func.func @transform_11(%arg0: i32) -> (i32, i32, i32) {
    %c0_i32 = arith.constant 0 : i32
    %c0_i32_0 = arith.constant 0 : i32
    %c0_i32_1 = arith.constant 0 : i32
    return %arg0, %c0_i32, %c0_i32_0 : i32, i32, i32
  }
}

module attributes {stable_mosaic.version = 11 : i64} {
  func.func @_mlp_kernel(%arg0: i32, %arg1: memref<2x7744xbf16, #tpu.memory_space<vmem>>, %arg2: memref<7744x128xbf16, #tpu.memory_space<vmem>>, %arg3: memref<1x128xf32, #tpu.memory_space<vmem>>, %arg4: memref<128x6xf32, #tpu.memory_space<vmem>>, %arg5: memref<1x6xf32, #tpu.memory_space<vmem>>, %arg6: memref<2x6xf32, #tpu.memory_space<vmem>>) attributes {dimension_semantics = [#tpu.dimension_semantics<arbitrary>], iteration_bounds = array<i64: 1>, scalar_prefetch = 0 : i64, scratch_operands = 0 : i64, tpu.core_type = #tpu.core_type<tc>, window_params = [{pipeline_mode = #tpu.pipeline_mode<synchronous>, transform_indices = @transform_0, window_bounds = array<i64: 2, 7744>}, {pipeline_mode = #tpu.pipeline_mode<synchronous>, transform_indices = @transform_1, window_bounds = array<i64: 7744, 128>}, {pipeline_mode = #tpu.pipeline_mode<synchronous>, transform_indices = @transform_2, window_bounds = array<i64: 1, 128>}, {pipeline_mode = #tpu.pipeline_mode<synchronous>, transform_indices = @transform_3, window_bounds = array<i64: 128, 6>}, {pipeline_mode = #tpu.pipeline_mode<synchronous>, transform_indices = @transform_4, window_bounds = array<i64: 1, 6>}, {pipeline_mode = #tpu.pipeline_mode<synchronous>, transform_indices = @transform_5, window_bounds = array<i64: 2, 6>}]} {
    %c0 = arith.constant 0 : index
    %c0_0 = arith.constant 0 : index
    %0 = vector.load %arg1[%c0, %c0_0] : memref<2x7744xbf16, #tpu.memory_space<vmem>>, vector<2x7744xbf16>
    %c0_1 = arith.constant 0 : index
    %c0_2 = arith.constant 0 : index
    %1 = vector.load %arg2[%c0_1, %c0_2] : memref<7744x128xbf16, #tpu.memory_space<vmem>>, vector<7744x128xbf16>
    %cst = arith.constant dense<0.000000e+00> : vector<2x128xf32>
    %2 = tpu.matmul %0, %1, %cst {dimension_numbers = #tpu.dot_dimension_numbers<[1], [0], [0], [1], [0, 0, 1, 1], [], []>} : vector<2x7744xbf16>, vector<7744x128xbf16>, vector<2x128xf32> -> vector<2x128xf32>
    %c0_3 = arith.constant 0 : index
    %c0_4 = arith.constant 0 : index
    %3 = vector.load %arg3[%c0_3, %c0_4] : memref<1x128xf32, #tpu.memory_space<vmem>>, vector<1x128xf32>
    %4 = vector.broadcast %3 : vector<1x128xf32> to vector<2x128xf32>
    %5 = arith.addf %2, %4 : vector<2x128xf32>
    %cst_5 = arith.constant 0.000000e+00 : f32
    %6 = vector.broadcast %cst_5 : f32 to vector<2x128xf32>
    %7 = arith.maximumf %5, %6 : vector<2x128xf32>
    %c0_6 = arith.constant 0 : index
    %c0_7 = arith.constant 0 : index
    %8 = vector.load %arg4[%c0_6, %c0_7] : memref<128x6xf32, #tpu.memory_space<vmem>>, vector<128x6xf32>
    %cst_8 = arith.constant dense<0.000000e+00> : vector<2x6xf32>
    %9 = tpu.matmul %7, %8, %cst_8 {dimension_numbers = #tpu.dot_dimension_numbers<[1], [0], [0], [1], [0, 0, 1, 1], [], []>} : vector<2x128xf32>, vector<128x6xf32>, vector<2x6xf32> -> vector<2x6xf32>
    %c0_9 = arith.constant 0 : index
    %c0_10 = arith.constant 0 : index
    %10 = vector.load %arg5[%c0_9, %c0_10] : memref<1x6xf32, #tpu.memory_space<vmem>>, vector<1x6xf32>
    %11 = vector.broadcast %10 : vector<1x6xf32> to vector<2x6xf32>
    %12 = arith.addf %9, %11 : vector<2x6xf32>
    %c0_11 = arith.constant 0 : index
    %c0_12 = arith.constant 0 : index
    %13 = vector.load %arg6[%c0_11, %c0_12] : memref<2x6xf32, #tpu.memory_space<vmem>>, vector<2x6xf32>
    tpu.vector_store %arg6[%c0_11, %c0_12], %12 {strides = array<i32>} : memref<2x6xf32, #tpu.memory_space<vmem>>, vector<2x6xf32>,
    return
  }
  func.func @transform_0(%arg0: i32) -> (i32, i32) {
    %c0_i32 = arith.constant 0 : i32
    %c0_i32_0 = arith.constant 0 : i32
    %c0_i32_1 = arith.constant 0 : i32
    return %c0_i32, %c0_i32_0 : i32, i32
  }
  func.func @transform_1(%arg0: i32) -> (i32, i32) {
    %c0_i32 = arith.constant 0 : i32
    %c0_i32_0 = arith.constant 0 : i32
    %c0_i32_1 = arith.constant 0 : i32
    return %c0_i32, %c0_i32_0 : i32, i32
  }
  func.func @transform_2(%arg0: i32) -> (i32, i32) {
    %c0_i32 = arith.constant 0 : i32
    %c0_i32_0 = arith.constant 0 : i32
    %c0_i32_1 = arith.constant 0 : i32
    return %c0_i32, %c0_i32_0 : i32, i32
  }
  func.func @transform_3(%arg0: i32) -> (i32, i32) {
    %c0_i32 = arith.constant 0 : i32
    %c0_i32_0 = arith.constant 0 : i32
    %c0_i32_1 = arith.constant 0 : i32
    return %c0_i32, %c0_i32_0 : i32, i32
  }
  func.func @transform_4(%arg0: i32) -> (i32, i32) {
    %c0_i32 = arith.constant 0 : i32
    %c0_i32_0 = arith.constant 0 : i32
    %c0_i32_1 = arith.constant 0 : i32
    return %c0_i32, %c0_i32_0 : i32, i32
  }
  func.func @transform_5(%arg0: i32) -> (i32, i32) {
    %c0_i32 = arith.constant 0 : i32
    %c0_i32_0 = arith.constant 0 : i32
    %c0_i32_1 = arith.constant 0 : i32
    return %c0_i32, %c0_i32_0 : i32, i32
  }
}

</mosaic_0001>

<llo_original>
// kernel: dqn_forward.2
$region0: #{dqn_forward.2}
  #allocation0 [shape = 'u32[]', space=smem, size = 0x4, offset = 0x4, fixed_abs, tag = 'smem constant byte address 0x4 - core index']
  #allocation1 [shape = 'u32[144,128]{1,0:T(1,128)}', space=vmem, size = 0x12000, scoped, tag = 'internal scratch']
  %s0 = inlined_call_operand.vmem [shape: f32[2,289,4], index: 0, kind: input, shape index: {}]
  %s1 = inlined_call_operand.vmem [shape: f32[36,32], index: 1, kind: input, shape index: {}]
  %s2 = inlined_call_operand.vmem [shape: f32[1,32], index: 2, kind: input, shape index: {}]
  %s3 = inlined_call_operand.vmem [shape: f32[257,32], index: 3, kind: input, shape index: {}]
  %s4 = inlined_call_operand.vmem [shape: f32[257,32], index: 4, kind: input, shape index: {}]
  %s5 = inlined_call_operand.vmem [shape: f32[257,1], index: 5, kind: input, shape index: {}]
  %s6 = inlined_call_operand.vmem [shape: f32[288,64], index: 6, kind: input, shape index: {}]
  %s7 = inlined_call_operand.vmem [shape: f32[1,64], index: 7, kind: input, shape index: {}]
  %s8 = inlined_call_operand.vmem [shape: f32[225,64], index: 8, kind: input, shape index: {}]
  %s9 = inlined_call_operand.vmem [shape: f32[225,64], index: 9, kind: input, shape index: {}]
  %s10 = inlined_call_operand.vmem [shape: f32[225,1], index: 10, kind: input, shape index: {}]
  %s11 = inlined_call_operand.vmem [shape: bf16[2,225,64], index: 11, kind: output, shape index: {}]
  %s12 = sld [smem:[#allocation0]]
  $region54: #{dqn_forward.2} parent=0
    _
  %s14 = ssub.s32 1, %s12
  %s15 = scalar_select 0, %s14, %s12
  // Predicated region
  $region2: #{dqn_forward.2} parent=0 // pred_check
    _
  $region3: #{dqn_forward.2} parent=0 // pred_check_branch
    %17 = sbr.rel (0) target = $region5
  $region4: #{dqn_forward.2} parent=0 // pred_region
    _
  $region5: #{dqn_forward.2} parent=0 // pred_fallthru
    _
  // Predicated region
  $region6: #{dqn_forward.2} parent=0 // pred_check
    _
  $region7: #{dqn_forward.2} parent=0 // pred_check_branch
    %19 = sbr.rel (0) target = $region9
  $region8: #{dqn_forward.2} parent=0 // pred_region
    _
  $region9: #{dqn_forward.2} parent=0 // pred_fallthru
    _
  // Predicated region
  $region10: #{dqn_forward.2} parent=0 // pred_check
    _
  $region11: #{dqn_forward.2} parent=0 // pred_check_branch
    %21 = sbr.rel (0) target = $region13
  $region12: #{dqn_forward.2} parent=0 // pred_region
    _
  $region13: #{dqn_forward.2} parent=0 // pred_fallthru
    _
  // Predicated region
  $region14: #{dqn_forward.2} parent=0 // pred_check
    _
  $region15: #{dqn_forward.2} parent=0 // pred_check_branch
    %23 = sbr.rel (0) target = $region17
  $region16: #{dqn_forward.2} parent=0 // pred_region
    _
  $region17: #{dqn_forward.2} parent=0 // pred_fallthru
    _
  // Predicated region
  $region18: #{dqn_forward.2} parent=0 // pred_check
    _
  $region19: #{dqn_forward.2} parent=0 // pred_check_branch
    %25 = sbr.rel (0) target = $region21
  $region20: #{dqn_forward.2} parent=0 // pred_region
    _
  $region21: #{dqn_forward.2} parent=0 // pred_fallthru
    _
  // Predicated region
  $region22: #{dqn_forward.2} parent=0 // pred_check
    _
  $region23: #{dqn_forward.2} parent=0 // pred_check_branch
    %27 = sbr.rel (0) target = $region25
  $region24: #{dqn_forward.2} parent=0 // pred_region
    _
  $region25: #{dqn_forward.2} parent=0 // pred_fallthru
    _
  // Predicated region
  $region26: #{dqn_forward.2} parent=0 // pred_check
    _
  $region27: #{dqn_forward.2} parent=0 // pred_check_branch
    %29 = sbr.rel (0) target = $region29
  $region28: #{dqn_forward.2} parent=0 // pred_region
    _
  $region29: #{dqn_forward.2} parent=0 // pred_fallthru
    _
  // Predicated region
  $region30: #{dqn_forward.2} parent=0 // pred_check
    _
  $region31: #{dqn_forward.2} parent=0 // pred_check_branch
    %31 = sbr.rel (0) target = $region33
  $region32: #{dqn_forward.2} parent=0 // pred_region
    _
  $region33: #{dqn_forward.2} parent=0 // pred_fallthru
    _
  // Predicated region
  $region34: #{dqn_forward.2} parent=0 // pred_check
    _
  $region35: #{dqn_forward.2} parent=0 // pred_check_branch
    %33 = sbr.rel (0) target = $region37
  $region36: #{dqn_forward.2} parent=0 // pred_region
    _
  $region37: #{dqn_forward.2} parent=0 // pred_fallthru
    _
  // Predicated region
  $region38: #{dqn_forward.2} parent=0 // pred_check
    _
  $region39: #{dqn_forward.2} parent=0 // pred_check_branch
    %35 = sbr.rel (0) target = $region41
  $region40: #{dqn_forward.2} parent=0 // pred_region
    _
  $region41: #{dqn_forward.2} parent=0 // pred_fallthru
    _
  // Predicated region
  $region42: #{dqn_forward.2} parent=0 // pred_check
    _
  $region43: #{dqn_forward.2} parent=0 // pred_check_branch
    %37 = sbr.rel (0) target = $region45
  $region44: #{dqn_forward.2} parent=0 // pred_region
    _
  $region45: #{dqn_forward.2} parent=0 // pred_fallthru
    _
  %v38 = vld [vmem:[%s1] sm:$0xff]
  %v39 = vld [vmem:[%s1 + $0x8] sm:$0xff]
  %v40 = vld [vmem:[%s1 + $0x10] sm:$0xff]
  %v41 = vld [vmem:[%s1 + $0x18] sm:$0xff]
  %v42 = vld [vmem:[%s1 + $0x20] sm:$0xf]
  %v43 = vld [vmem:[%s2] sm:$0x1]
  %v44 = vld [vmem:[%s3] sm:$0xff]
  %v45 = vld [vmem:[%s3 + $0x8] sm:$0xff]
  %v46 = vld [vmem:[%s3 + $0x10] sm:$0xff]
  %v47 = vld [vmem:[%s3 + $0x18] sm:$0xff]
  %v48 = vld [vmem:[%s3 + $0x20] sm:$0xff]
  %v49 = vld [vmem:[%s3 + $0x28] sm:$0xff]
  %v50 = vld [vmem:[%s3 + $0x30] sm:$0xff]
  %v51 = vld [vmem:[%s3 + $0x38] sm:$0xff]
  %v52 = vld [vmem:[%s3 + $0x40] sm:$0xff]
  %v53 = vld [vmem:[%s3 + $0x48] sm:$0xff]
  %v54 = vld [vmem:[%s3 + $0x50] sm:$0xff]
  %v55 = vld [vmem:[%s3 + $0x58] sm:$0xff]
  %v56 = vld [vmem:[%s3 + $0x60] sm:$0xff]
  %v57 = vld [vmem:[%s3 + $0x68] sm:$0xff]
  %v58 = vld [vmem:[%s3 + $0x70] sm:$0xff]
  %v59 = vld [vmem:[%s3 + $0x78] sm:$0xff]
  %v60 = vld [vmem:[%s3 + $0x80] sm:$0xff]
  %v61 = vld [vmem:[%s3 + $0x88] sm:$0xff]
  %v62 = vld [vmem:[%s3 + $0x90] sm:$0xff]
  %v63 = vld [vmem:[%s3 + $0x98] sm:$0xff]
  %v64 = vld [vmem:[%s3 + $0xa0] sm:$0xff]
  %v65 = vld [vmem:[%s3 + $0xa8] sm:$0xff]
  %v66 = vld [vmem:[%s3 + $0xb0] sm:$0xff]
  %v67 = vld [vmem:[%s3 + $0xb8] sm:$0xff]
  %v68 = vld [vmem:[%s3 + $0xc0] sm:$0xff]
  %v69 = vld [vmem:[%s3 + $0xc8] sm:$0xff]
  %v70 = vld [vmem:[%s3 + $0xd0] sm:$0xff]
  %v71 = vld [vmem:[%s3 + $0xd8] sm:$0xff]
  %v72 = vld [vmem:[%s3 + $0xe0] sm:$0xff]
  %v73 = vld [vmem:[%s3 + $0xe8] sm:$0xff]
  %v74 = vld [vmem:[%s3 + $0xf0] sm:$0xff]
  %v75 = vld [vmem:[%s3 + $0xf8] sm:$0xff]
  %v76 = vld [vmem:[%s3 + $0x100] sm:$0x1]
  %v77 = vld [vmem:[%s4] sm:$0xff]
  %v78 = vld [vmem:[%s4 + $0x8] sm:$0xff]
  %v79 = vld [vmem:[%s4 + $0x10] sm:$0xff]
  %v80 = vld [vmem:[%s4 + $0x18] sm:$0xff]
  %v81 = vld [vmem:[%s4 + $0x20] sm:$0xff]
  %v82 = vld [vmem:[%s4 + $0x28] sm:$0xff]
  %v83 = vld [vmem:[%s4 + $0x30] sm:$0xff]
  %v84 = vld [vmem:[%s4 + $0x38] sm:$0xff]
  %v85 = vld [vmem:[%s4 + $0x40] sm:$0xff]
  %v86 = vld [vmem:[%s4 + $0x48] sm:$0xff]
  %v87 = vld [vmem:[%s4 + $0x50] sm:$0xff]
  %v88 = vld [vmem:[%s4 + $0x58] sm:$0xff]
  %v89 = vld [vmem:[%s4 + $0x60] sm:$0xff]
  %v90 = vld [vmem:[%s4 + $0x68] sm:$0xff]
  %v91 = vld [vmem:[%s4 + $0x70] sm:$0xff]
  %v92 = vld [vmem:[%s4 + $0x78] sm:$0xff]
  %v93 = vld [vmem:[%s4 + $0x80] sm:$0xff]
  %v94 = vld [vmem:[%s4 + $0x88] sm:$0xff]
  %v95 = vld [vmem:[%s4 + $0x90] sm:$0xff]
  %v96 = vld [vmem:[%s4 + $0x98] sm:$0xff]
  %v97 = vld [vmem:[%s4 + $0xa0] sm:$0xff]
  %v98 = vld [vmem:[%s4 + $0xa8] sm:$0xff]
  %v99 = vld [vmem:[%s4 + $0xb0] sm:$0xff]
  %v100 = vld [vmem:[%s4 + $0xb8] sm:$0xff]
  %v101 = vld [vmem:[%s4 + $0xc0] sm:$0xff]
  %v102 = vld [vmem:[%s4 + $0xc8] sm:$0xff]
  %v103 = vld [vmem:[%s4 + $0xd0] sm:$0xff]
  %v104 = vld [vmem:[%s4 + $0xd8] sm:$0xff]
  %v105 = vld [vmem:[%s4 + $0xe0] sm:$0xff]
  %v106 = vld [vmem:[%s4 + $0xe8] sm:$0xff]
  %v107 = vld [vmem:[%s4 + $0xf0] sm:$0xff]
  %v108 = vld [vmem:[%s4 + $0xf8] sm:$0xff]
  %v109 = vld [vmem:[%s4 + $0x100] sm:$0x1]
  %v110 = vld [vmem:[%s5] sm:$0xff]
  %v111 = vld [vmem:[%s5 + $0x8] sm:$0xff]
  %v112 = vld [vmem:[%s5 + $0x10] sm:$0xff]
  %v113 = vld [vmem:[%s5 + $0x18] sm:$0xff]
  %v114 = vld [vmem:[%s5 + $0x20] sm:$0xff]
  %v115 = vld [vmem:[%s5 + $0x28] sm:$0xff]
  %v116 = vld [vmem:[%s5 + $0x30] sm:$0xff]
  %v117 = vld [vmem:[%s5 + $0x38] sm:$0xff]
  %v118 = vld [vmem:[%s5 + $0x40] sm:$0xff]
  %v119 = vld [vmem:[%s5 + $0x48] sm:$0xff]
  %v120 = vld [vmem:[%s5 + $0x50] sm:$0xff]
  %v121 = vld [vmem:[%s5 + $0x58] sm:$0xff]
  %v122 = vld [vmem:[%s5 + $0x60] sm:$0xff]
  %v123 = vld [vmem:[%s5 + $0x68] sm:$0xff]
  %v124 = vld [vmem:[%s5 + $0x70] sm:$0xff]
  %v125 = vld [vmem:[%s5 + $0x78] sm:$0xff]
  %v126 = vld [vmem:[%s5 + $0x80] sm:$0xff]
  %v127 = vld [vmem:[%s5 + $0x88] sm:$0xff]
  %v128 = vld [vmem:[%s5 + $0x90] sm:$0xff]
  %v129 = vld [vmem:[%s5 + $0x98] sm:$0xff]
  %v130 = vld [vmem:[%s5 + $0xa0] sm:$0xff]
  %v131 = vld [vmem:[%s5 + $0xa8] sm:$0xff]
  %v132 = vld [vmem:[%s5 + $0xb0] sm:$0xff]
  %v133 = vld [vmem:[%s5 + $0xb8] sm:$0xff]
  %v134 = vld [vmem:[%s5 + $0xc0] sm:$0xff]
  %v135 = vld [vmem:[%s5 + $0xc8] sm:$0xff]
  %v136 = vld [vmem:[%s5 + $0xd0] sm:$0xff]
  %v137 = vld [vmem:[%s5 + $0xd8] sm:$0xff]
  %v138 = vld [vmem:[%s5 + $0xe0] sm:$0xff]
  %v139 = vld [vmem:[%s5 + $0xe8] sm:$0xff]
  %v140 = vld [vmem:[%s5 + $0xf0] sm:$0xff]
  %v141 = vld [vmem:[%s5 + $0xf8] sm:$0xff]
  %v142 = vld [vmem:[%s5 + $0x100] sm:$0x1]
  %v143 = vld [vmem:[%s6] sm:$0xff]
  %v144 = vld [vmem:[%s6 + $0x8] sm:$0xff]
  %v145 = vld [vmem:[%s6 + $0x10] sm:$0xff]
  %v146 = vld [vmem:[%s6 + $0x18] sm:$0xff]
  %v147 = vld [vmem:[%s6 + $0x20] sm:$0xff]
  %v148 = vld [vmem:[%s6 + $0x28] sm:$0xff]
  %v149 = vld [vmem:[%s6 + $0x30] sm:$0xff]
  %v150 = vld [vmem:[%s6 + $0x38] sm:$0xff]
  %v151 = vld [vmem:[%s6 + $0x40] sm:$0xff]
  %v152 = vld [vmem:[%s6 + $0x48] sm:$0xff]
  %v153 = vld [vmem:[%s6 + $0x50] sm:$0xff]
  %v154 = vld [vmem:[%s6 + $0x58] sm:$0xff]
  %v155 = vld [vmem:[%s6 + $0x60] sm:$0xff]
  %v156 = vld [vmem:[%s6 + $0x68] sm:$0xff]
  %v157 = vld [vmem:[%s6 + $0x70] sm:$0xff]
  %v158 = vld [vmem:[%s6 + $0x78] sm:$0xff]
  %v159 = vld [vmem:[%s6 + $0x80] sm:$0xff]
  %v160 = vld [vmem:[%s6 + $0x88] sm:$0xff]
  %v161 = vld [vmem:[%s6 + $0x90] sm:$0xff]
  %v162 = vld [vmem:[%s6 + $0x98] sm:$0xff]
  %v163 = vld [vmem:[%s6 + $0xa0] sm:$0xff]
  %v164 = vld [vmem:[%s6 + $0xa8] sm:$0xff]
  %v165 = vld [vmem:[%s6 + $0xb0] sm:$0xff]
  %v166 = vld [vmem:[%s6 + $0xb8] sm:$0xff]
  %v167 = vld [vmem:[%s6 + $0xc0] sm:$0xff]
  %v168 = vld [vmem:[%s6 + $0xc8] sm:$0xff]
  %v169 = vld [vmem:[%s6 + $0xd0] sm:$0xff]
  %v170 = vld [vmem:[%s6 + $0xd8] sm:$0xff]
  %v171 = vld [vmem:[%s6 + $0xe0] sm:$0xff]
  %v172 = vld [vmem:[%s6 + $0xe8] sm:$0xff]
  %v173 = vld [vmem:[%s6 + $0xf0] sm:$0xff]
  %v174 = vld [vmem:[%s6 + $0xf8] sm:$0xff]
  %v175 = vld [vmem:[%s6 + $0x100] sm:$0xff]
  %v176 = vld [vmem:[%s6 + $0x108] sm:$0xff]
  %v177 = vld [vmem:[%s6 + $0x110] sm:$0xff]
  %v178 = vld [vmem:[%s6 + $0x118] sm:$0xff]
  %v179 = vld [vmem:[%s7] sm:$0x1]
  %v180 = vld [vmem:[%s8] sm:$0xff]
  %v181 = vld [vmem:[%s8 + $0x8] sm:$0xff]
  %v182 = vld [vmem:[%s8 + $0x10] sm:$0xff]
  %v183 = vld [vmem:[%s8 + $0x18] sm:$0xff]
  %v184 = vld [vmem:[%s8 + $0x20] sm:$0xff]
  %v185 = vld [vmem:[%s8 + $0x28] sm:$0xff]
  %v186 = vld [vmem:[%s8 + $0x30] sm:$0xff]
  %v187 = vld [vmem:[%s8 + $0x38] sm:$0xff]
  %v188 = vld [vmem:[%s8 + $0x40] sm:$0xff]
  %v189 = vld [vmem:[%s8 + $0x48] sm:$0xff]
  %v190 = vld [vmem:[%s8 + $0x50] sm:$0xff]
  %v191 = vld [vmem:[%s8 + $0x58] sm:$0xff]
  %v192 = vld [vmem:[%s8 + $0x60] sm:$0xff]
  %v193 = vld [vmem:[%s8 + $0x68] sm:$0xff]
  %v194 = vld [vmem:[%s8 + $0x70] sm:$0xff]
  %v195 = vld [vmem:[%s8 + $0x78] sm:$0xff]
  %v196 = vld [vmem:[%s8 + $0x80] sm:$0xff]
  %v197 = vld [vmem:[%s8 + $0x88] sm:$0xff]
  %v198 = vld [vmem:[%s8 + $0x90] sm:$0xff]
  %v199 = vld [vmem:[%s8 + $0x98] sm:$0xff]
  %v200 = vld [vmem:[%s8 + $0xa0] sm:$0xff]
  %v201 = vld [vmem:[%s8 + $0xa8] sm:$0xff]
  %v202 = vld [vmem:[%s8 + $0xb0] sm:$0xff]
  %v203 = vld [vmem:[%s8 + $0xb8] sm:$0xff]
  %v204 = vld [vmem:[%s8 + $0xc0] sm:$0xff]
  %v205 = vld [vmem:[%s8 + $0xc8] sm:$0xff]
  %v206 = vld [vmem:[%s8 + $0xd0] sm:$0xff]
  %v207 = vld [vmem:[%s8 + $0xd8] sm:$0xff]
  %v208 = vld [vmem:[%s8 + $0xe0] sm:$0x1]
  %v209 = vld [vmem:[%s9] sm:$0xff]
  %v210 = vld [vmem:[%s9 + $0x8] sm:$0xff]
  %v211 = vld [vmem:[%s9 + $0x10] sm:$0xff]
  %v212 = vld [vmem:[%s9 + $0x18] sm:$0xff]
  %v213 = vld [vmem:[%s9 + $0x20] sm:$0xff]
  %v214 = vld [vmem:[%s9 + $0x28] sm:$0xff]
  %v215 = vld [vmem:[%s9 + $0x30] sm:$0xff]
  %v216 = vld [vmem:[%s9 + $0x38] sm:$0xff]
  %v217 = vld [vmem:[%s9 + $0x40] sm:$0xff]
  %v218 = vld [vmem:[%s9 + $0x48] sm:$0xff]
  %v219 = vld [vmem:[%s9 + $0x50] sm:$0xff]
  %v220 = vld [vmem:[%s9 + $0x58] sm:$0xff]
  %v221 = vld [vmem:[%s9 + $0x60] sm:$0xff]
  %v222 = vld [vmem:[%s9 + $0x68] sm:$0xff]
  %v223 = vld [vmem:[%s9 + $0x70] sm:$0xff]
  %v224 = vld [vmem:[%s9 + $0x78] sm:$0xff]
  %v225 = vld [vmem:[%s9 + $0x80] sm:$0xff]
  %v226 = vld [vmem:[%s9 + $0x88] sm:$0xff]
  %v227 = vld [vmem:[%s9 + $0x90] sm:$0xff]
  %v228 = vld [vmem:[%s9 + $0x98] sm:$0xff]
  %v229 = vld [vmem:[%s9 + $0xa0] sm:$0xff]
  %v230 = vld [vmem:[%s9 + $0xa8] sm:$0xff]
  %v231 = vld [vmem:[%s9 + $0xb0] sm:$0xff]
  %v232 = vld [vmem:[%s9 + $0xb8] sm:$0xff]
  %v233 = vld [vmem:[%s9 + $0xc0] sm:$0xff]
  %v234 = vld [vmem:[%s9 + $0xc8] sm:$0xff]
  %v235 = vld [vmem:[%s9 + $0xd0] sm:$0xff]
  %v236 = vld [vmem:[%s9 + $0xd8] sm:$0xff]
  %v237 = vld [vmem:[%s9 + $0xe0] sm:$0x1]
  %v238 = vld [vmem:[%s10] sm:$0xff]
  %v239 = vld [vmem:[%s10 + $0x8] sm:$0xff]
  %v240 = vld [vmem:[%s10 + $0x10] sm:$0xff]
  %v241 = vld [vmem:[%s10 + $0x18] sm:$0xff]
  %v242 = vld [vmem:[%s10 + $0x20] sm:$0xff]
  %v243 = vld [vmem:[%s10 + $0x28] sm:$0xff]
  %v244 = vld [vmem:[%s10 + $0x30] sm:$0xff]
  %v245 = vld [vmem:[%s10 + $0x38] sm:$0xff]
  %v246 = vld [vmem:[%s10 + $0x40] sm:$0xff]
  %v247 = vld [vmem:[%s10 + $0x48] sm:$0xff]
  %v248 = vld [vmem:[%s10 + $0x50] sm:$0xff]
  %v249 = vld [vmem:[%s10 + $0x58] sm:$0xff]
  %v250 = vld [vmem:[%s10 + $0x60] sm:$0xff]
  %v251 = vld [vmem:[%s10 + $0x68] sm:$0xff]
  %v252 = vld [vmem:[%s10 + $0x70] sm:$0xff]
  %v253 = vld [vmem:[%s10 + $0x78] sm:$0xff]
  %v254 = vld [vmem:[%s10 + $0x80] sm:$0xff]
  %v255 = vld [vmem:[%s10 + $0x88] sm:$0xff]
  %v256 = vld [vmem:[%s10 + $0x90] sm:$0xff]
  %v257 = vld [vmem:[%s10 + $0x98] sm:$0xff]
  %v258 = vld [vmem:[%s10 + $0xa0] sm:$0xff]
  %v259 = vld [vmem:[%s10 + $0xa8] sm:$0xff]
  %v260 = vld [vmem:[%s10 + $0xb0] sm:$0xff]
  %v261 = vld [vmem:[%s10 + $0xb8] sm:$0xff]
  %v262 = vld [vmem:[%s10 + $0xc0] sm:$0xff]
  %v263 = vld [vmem:[%s10 + $0xc8] sm:$0xff]
  %v264 = vld [vmem:[%s10 + $0xd0] sm:$0xff]
  %v265 = vld [vmem:[%s10 + $0xd8] sm:$0xff]
  %v266 = vld [vmem:[%s10 + $0xe0] sm:$0x1]
  %v267 = vld [vmem:[%s0] sm:$0xff]
  %v268 = vld [vmem:[%s0 + $0x8] sm:$0xff]
  %v269 = vld [vmem:[%s0 + $0x10] sm:$0xff]
  %v270 = vld [vmem:[%s0 + $0x18] sm:$0xff]
  %v271 = vld [vmem:[%s0 + $0x20] sm:$0xff]
  %v272 = vld [vmem:[%s0 + $0x28] sm:$0xff]
  %v273 = vld [vmem:[%s0 + $0x30] sm:$0xff]
  %v274 = vld [vmem:[%s0 + $0x38] sm:$0xff]
  %v275 = vld [vmem:[%s0 + $0x40] sm:$0xff]
  %v276 = vld [vmem:[%s0 + $0x48] sm:$0xff]
  %v277 = vld [vmem:[%s0 + $0x50] sm:$0xff]
  %v278 = vld [vmem:[%s0 + $0x58] sm:$0xff]
  %v279 = vld [vmem:[%s0 + $0x60] sm:$0xff]
  %v280 = vld [vmem:[%s0 + $0x68] sm:$0xff]
  %v281 = vld [vmem:[%s0 + $0x70] sm:$0xff]
  %v282 = vld [vmem:[%s0 + $0x78] sm:$0xff]
  %v283 = vld [vmem:[%s0 + $0x80] sm:$0xff]
  %v284 = vld [vmem:[%s0 + $0x88] sm:$0xff]
  %v285 = vld [vmem:[%s0 + $0x90] sm:$0xff]
  %v286 = vld [vmem:[%s0 + $0x98] sm:$0xff]
  %v287 = vld [vmem:[%s0 + $0xa0] sm:$0xff]
  %v288 = vld [vmem:[%s0 + $0xa8] sm:$0xff]
  %v289 = vld [vmem:[%s0 + $0xb0] sm:$0xff]
  %v290 = vld [vmem:[%s0 + $0xb8] sm:$0xff]
  %v291 = vld [vmem:[%s0 + $0xc0] sm:$0xff]
  %v292 = vld [vmem:[%s0 + $0xc8] sm:$0xff]
  %v293 = vld [vmem:[%s0 + $0xd0] sm:$0xff]
  %v294 = vld [vmem:[%s0 + $0xd8] sm:$0xff]
  %v295 = vld [vmem:[%s0 + $0xe0] sm:$0xff]
  %v296 = vld [vmem:[%s0 + $0xe8] sm:$0xff]
  %v297 = vld [vmem:[%s0 + $0xf0] sm:$0xff]
  %v298 = vld [vmem:[%s0 + $0xf8] sm:$0xff]
  %v299 = vld [vmem:[%s0 + $0x100] sm:$0xff]
  %v300 = vld [vmem:[%s0 + $0x108] sm:$0xff]
  %v301 = vld [vmem:[%s0 + $0x110] sm:$0xff]
  %v302 = vld [vmem:[%s0 + $0x118] sm:$0xff]
  %v303 = vld [vmem:[%s0 + $0x120] sm:$0x1]
  %vm337 = vcmask 1046528
  %v338 = vrot.slane %v267, 1
  %v339 = vrot.slane %v268, 1
  %v340 = vsel %vm337, %v338, %v339
  %v341 = vrot.slane %v269, 1
  %v342 = vsel %vm337, %v339, %v341
  %v343 = vrot.slane %v270, 1
  %v344 = vsel %vm337, %v341, %v343
  %v345 = vrot.slane %v271, 1
  %v346 = vsel %vm337, %v343, %v345
  %v347 = vrot.slane %v272, 1
  %v348 = vsel %vm337, %v345, %v347
  %v349 = vrot.slane %v273, 1
  %v350 = vsel %vm337, %v347, %v349
  %v351 = vrot.slane %v274, 1
  %v352 = vsel %vm337, %v349, %v351
  %v353 = vrot.slane %v275, 1
  %v354 = vsel %vm337, %v351, %v353
  %v355 = vrot.slane %v276, 1
  %v356 = vsel %vm337, %v353, %v355
  %v357 = vrot.slane %v277, 1
  %v358 = vsel %vm337, %v355, %v357
  %v359 = vrot.slane %v278, 1
  %v360 = vsel %vm337, %v357, %v359
  %v361 = vrot.slane %v279, 1
  %v362 = vsel %vm337, %v359, %v361
  %v363 = vrot.slane %v280, 1
  %v364 = vsel %vm337, %v361, %v363
  %v365 = vrot.slane %v281, 1
  %v366 = vsel %vm337, %v363, %v365
  %v367 = vrot.slane %v282, 1
  %v368 = vsel %vm337, %v365, %v367
  %v369 = vrot.slane %v283, 1
  %v370 = vsel %vm337, %v367, %v369
  %v371 = vrot.slane %v284, 1
  %v372 = vsel %vm337, %v369, %v371
  %v373 = vrot.slane %v285, 1
  %v374 = vsel %vm337, %v371, %v373
  %v375 = vrot.slane %v286, 1
  %v376 = vsel %vm337, %v373, %v375
  %v377 = vrot.slane %v287, 1
  %v378 = vsel %vm337, %v375, %v377
  %v379 = vrot.slane %v288, 1
  %v380 = vsel %vm337, %v377, %v379
  %v381 = vrot.slane %v289, 1
  %v382 = vsel %vm337, %v379, %v381
  %v383 = vrot.slane %v290, 1
  %v384 = vsel %vm337, %v381, %v383
  %v385 = vrot.slane %v291, 1
  %v386 = vsel %vm337, %v383, %v385
  %v387 = vrot.slane %v292, 1
  %v388 = vsel %vm337, %v385, %v387
  %v389 = vrot.slane %v293, 1
  %v390 = vsel %vm337, %v387, %v389
  %v391 = vrot.slane %v294, 1
  %v392 = vsel %vm337, %v389, %v391
  %v393 = vrot.slane %v295, 1
  %v394 = vsel %vm337, %v391, %v393
  %v395 = vrot.slane %v296, 1
  %v396 = vsel %vm337, %v393, %v395
  %v397 = vrot.slane %v297, 1
  %v398 = vsel %vm337, %v395, %v397
  %v399 = vrot.slane %v298, 1
  %v400 = vsel %vm337, %v397, %v399
  %v401 = vrot.slane %v299, 1
  %v402 = vsel %vm337, %v399, %v401
  %403 = vrot.lane.b32.xlu0 %v340, 4
  %v404 = vpop.permute.xlu0 %403
  %405 = vrot.lane.b32.xlu0 %v342, 4
  %v406 = vpop.permute.xlu0 %405
  %407 = vrot.lane.b32.xlu0 %v344, 4
  %v408 = vpop.permute.xlu0 %407
  %409 = vrot.lane.b32.xlu0 %v346, 4
  %v410 = vpop.permute.xlu0 %409
  %411 = vrot.lane.b32.xlu0 %v348, 4
  %v412 = vpop.permute.xlu0 %411
  %413 = vrot.lane.b32.xlu0 %v350, 4
  %v414 = vpop.permute.xlu0 %413
  %415 = vrot.lane.b32.xlu0 %v352, 4
  %v416 = vpop.permute.xlu0 %415
  %417 = vrot.lane.b32.xlu0 %v354, 4
  %v418 = vpop.permute.xlu0 %417
  %419 = vrot.lane.b32.xlu0 %v356, 4
  %v420 = vpop.permute.xlu0 %419
  %421 = vrot.lane.b32.xlu0 %v358, 4
  %v422 = vpop.permute.xlu0 %421
  %423 = vrot.lane.b32.xlu0 %v360, 4
  %v424 = vpop.permute.xlu0 %423
  %425 = vrot.lane.b32.xlu0 %v362, 4
  %v426 = vpop.permute.xlu0 %425
  %427 = vrot.lane.b32.xlu0 %v364, 4
  %v428 = vpop.permute.xlu0 %427
  %429 = vrot.lane.b32.xlu0 %v366, 4
  %v430 = vpop.permute.xlu0 %429
  %431 = vrot.lane.b32.xlu0 %v368, 4
  %v432 = vpop.permute.xlu0 %431
  %433 = vrot.lane.b32.xlu0 %v370, 4
  %v434 = vpop.permute.xlu0 %433
  %435 = vrot.lane.b32.xlu0 %v372, 4
  %v436 = vpop.permute.xlu0 %435
  %437 = vrot.lane.b32.xlu0 %v374, 4
  %v438 = vpop.permute.xlu0 %437
  %439 = vrot.lane.b32.xlu0 %v376, 4
  %v440 = vpop.permute.xlu0 %439
  %441 = vrot.lane.b32.xlu0 %v378, 4
  %v442 = vpop.permute.xlu0 %441
  %443 = vrot.lane.b32.xlu0 %v380, 4
  %v444 = vpop.permute.xlu0 %443
  %445 = vrot.lane.b32.xlu0 %v382, 4
  %v446 = vpop.permute.xlu0 %445
  %447 = vrot.lane.b32.xlu0 %v384, 4
  %v448 = vpop.permute.xlu0 %447
  %449 = vrot.lane.b32.xlu0 %v386, 4
  %v450 = vpop.permute.xlu0 %449
  %451 = vrot.lane.b32.xlu0 %v388, 4
  %v452 = vpop.permute.xlu0 %451
  %453 = vrot.lane.b32.xlu0 %v390, 4
  %v454 = vpop.permute.xlu0 %453
  %455 = vrot.lane.b32.xlu0 %v392, 4
  %v456 = vpop.permute.xlu0 %455
  %457 = vrot.lane.b32.xlu0 %v394, 4
  %v458 = vpop.permute.xlu0 %457
  %459 = vrot.lane.b32.xlu0 %v396, 4
  %v460 = vpop.permute.xlu0 %459
  %461 = vrot.lane.b32.xlu0 %v398, 4
  %v462 = vpop.permute.xlu0 %461
  %463 = vrot.lane.b32.xlu0 %v400, 4
  %v464 = vpop.permute.xlu0 %463
  %465 = vrot.lane.b32.xlu0 %v402, 4
  %v466 = vpop.permute.xlu0 %465
  %467 = vrot.lane.b32.xlu0 %v401, 4
  %v468 = vpop.permute.xlu0 %467
  %vm502 = vcmask 1045504
  %v503 = vrot.slane %v267, 2
  %v504 = vrot.slane %v268, 2
  %v505 = vsel %vm502, %v503, %v504
  %v506 = vrot.slane %v269, 2
  %v507 = vsel %vm502, %v504, %v506
  %v508 = vrot.slane %v270, 2
  %v509 = vsel %vm502, %v506, %v508
  %v510 = vrot.slane %v271, 2
  %v511 = vsel %vm502, %v508, %v510
  %v512 = vrot.slane %v272, 2
  %v513 = vsel %vm502, %v510, %v512
  %v514 = vrot.slane %v273, 2
  %v515 = vsel %vm502, %v512, %v514
  %v516 = vrot.slane %v274, 2
  %v517 = vsel %vm502, %v514, %v516
  %v518 = vrot.slane %v275, 2
  %v519 = vsel %vm502, %v516, %v518
  %v520 = vrot.slane %v276, 2
  %v521 = vsel %vm502, %v518, %v520
  %v522 = vrot.slane %v277, 2
  %v523 = vsel %vm502, %v520, %v522
  %v524 = vrot.slane %v278, 2
  %v525 = vsel %vm502, %v522, %v524
  %v526 = vrot.slane %v279, 2
  %v527 = vsel %vm502, %v524, %v526
  %v528 = vrot.slane %v280, 2
  %v529 = vsel %vm502, %v526, %v528
  %v530 = vrot.slane %v281, 2
  %v531 = vsel %vm502, %v528, %v530
  %v532 = vrot.slane %v282, 2
  %v533 = vsel %vm502, %v530, %v532
  %v534 = vrot.slane %v283, 2
  %v535 = vsel %vm502, %v532, %v534
  %v536 = vrot.slane %v284, 2
  %v537 = vsel %vm502, %v534, %v536
  %v538 = vrot.slane %v285, 2
  %v539 = vsel %vm502, %v536, %v538
  %v540 = vrot.slane %v286, 2
  %v541 = vsel %vm502, %v538, %v540
  %v542 = vrot.slane %v287, 2
  %v543 = vsel %vm502, %v540, %v542
  %v544 = vrot.slane %v288, 2
  %v545 = vsel %vm502, %v542, %v544
  %v546 = vrot.slane %v289, 2
  %v547 = vsel %vm502, %v544, %v546
  %v548 = vrot.slane %v290, 2
  %v549 = vsel %vm502, %v546, %v548
  %v550 = vrot.slane %v291, 2
  %v551 = vsel %vm502, %v548, %v550
  %v552 = vrot.slane %v292, 2
  %v553 = vsel %vm502, %v550, %v552
  %v554 = vrot.slane %v293, 2
  %v555 = vsel %vm502, %v552, %v554
  %v556 = vrot.slane %v294, 2
  %v557 = vsel %vm502, %v554, %v556
  %v558 = vrot.slane %v295, 2
  %v559 = vsel %vm502, %v556, %v558
  %v560 = vrot.slane %v296, 2
  %v561 = vsel %vm502, %v558, %v560
  %v562 = vrot.slane %v297, 2
  %v563 = vsel %vm502, %v560, %v562
  %v564 = vrot.slane %v298, 2
  %v565 = vsel %vm502, %v562, %v564
  %v566 = vrot.slane %v299, 2
  %v567 = vsel %vm502, %v564, %v566
  %568 = vrot.lane.b32.xlu0 %v505, 8
  %v569 = vpop.permute.xlu0 %568
  %570 = vrot.lane.b32.xlu0 %v507, 8
  %v571 = vpop.permute.xlu0 %570
  %572 = vrot.lane.b32.xlu0 %v509, 8
  %v573 = vpop.permute.xlu0 %572
  %574 = vrot.lane.b32.xlu0 %v511, 8
  %v575 = vpop.permute.xlu0 %574
  %576 = vrot.lane.b32.xlu0 %v513, 8
  %v577 = vpop.permute.xlu0 %576
  %578 = vrot.lane.b32.xlu0 %v515, 8
  %v579 = vpop.permute.xlu0 %578
  %580 = vrot.lane.b32.xlu0 %v517, 8
  %v581 = vpop.permute.xlu0 %580
  %582 = vrot.lane.b32.xlu0 %v519, 8
  %v583 = vpop.permute.xlu0 %582
  %584 = vrot.lane.b32.xlu0 %v521, 8
  %v585 = vpop.permute.xlu0 %584
  %586 = vrot.lane.b32.xlu0 %v523, 8
  %v587 = vpop.permute.xlu0 %586
  %588 = vrot.lane.b32.xlu0 %v525, 8
  %v589 = vpop.permute.xlu0 %588
  %590 = vrot.lane.b32.xlu0 %v527, 8
  %v591 = vpop.permute.xlu0 %590
  %592 = vrot.lane.b32.xlu0 %v529, 8
  %v593 = vpop.permute.xlu0 %592
  %594 = vrot.lane.b32.xlu0 %v531, 8
  %v595 = vpop.permute.xlu0 %594
  %596 = vrot.lane.b32.xlu0 %v533, 8
  %v597 = vpop.permute.xlu0 %596
  %598 = vrot.lane.b32.xlu0 %v535, 8
  %v599 = vpop.permute.xlu0 %598
  %600 = vrot.lane.b32.xlu0 %v537, 8
  %v601 = vpop.permute.xlu0 %600
  %602 = vrot.lane.b32.xlu0 %v539, 8
  %v603 = vpop.permute.xlu0 %602
  %604 = vrot.lane.b32.xlu0 %v541, 8
  %v605 = vpop.permute.xlu0 %604
  %606 = vrot.lane.b32.xlu0 %v543, 8
  %v607 = vpop.permute.xlu0 %606
  %608 = vrot.lane.b32.xlu0 %v545, 8
  %v609 = vpop.permute.xlu0 %608
  %610 = vrot.lane.b32.xlu0 %v547, 8
  %v611 = vpop.permute.xlu0 %610
  %612 = vrot.lane.b32.xlu0 %v549, 8
  %v613 = vpop.permute.xlu0 %612
  %614 = vrot.lane.b32.xlu0 %v551, 8
  %v615 = vpop.permute.xlu0 %614
  %616 = vrot.lane.b32.xlu0 %v553, 8
  %v617 = vpop.permute.xlu0 %616
  %618 = vrot.lane.b32.xlu0 %v555, 8
  %v619 = vpop.permute.xlu0 %618
  %620 = vrot.lane.b32.xlu0 %v557, 8
  %v621 = vpop.permute.xlu0 %620
  %622 = vrot.lane.b32.xlu0 %v559, 8
  %v623 = vpop.permute.xlu0 %622
  %624 = vrot.lane.b32.xlu0 %v561, 8
  %v625 = vpop.permute.xlu0 %624
  %626 = vrot.lane.b32.xlu0 %v563, 8
  %v627 = vpop.permute.xlu0 %626
  %628 = vrot.lane.b32.xlu0 %v565, 8
  %v629 = vpop.permute.xlu0 %628
  %630 = vrot.lane.b32.xlu0 %v567, 8
  %v631 = vpop.permute.xlu0 %630
  %632 = vrot.lane.b32.xlu0 %v566, 8
  %v633 = vpop.permute.xlu0 %632
  %vm668 = vcmask 1040384
  %v669 = vrot.slane %v268, 7
  %v670 = vrot.slane %v269, 7
  %v671 = vsel %vm668, %v669, %v670
  %v672 = vrot.slane %v270, 7
  %v673 = vsel %vm668, %v670, %v672
  %v674 = vrot.slane %v271, 7
  %v675 = vsel %vm668, %v672, %v674
  %v676 = vrot.slane %v272, 7
  %v677 = vsel %vm668, %v674, %v676
  %v678 = vrot.slane %v273, 7
  %v679 = vsel %vm668, %v676, %v678
  %v680 = vrot.slane %v274, 7
  %v681 = vsel %vm668, %v678, %v680
  %v682 = vrot.slane %v275, 7
  %v683 = vsel %vm668, %v680, %v682
  %v684 = vrot.slane %v276, 7
  %v685 = vsel %vm668, %v682, %v684
  %v686 = vrot.slane %v277, 7
  %v687 = vsel %vm668, %v684, %v686
  %v688 = vrot.slane %v278, 7
  %v689 = vsel %vm668, %v686, %v688
  %v690 = vrot.slane %v279, 7
  %v691 = vsel %vm668, %v688, %v690
  %v692 = vrot.slane %v280, 7
  %v693 = vsel %vm668, %v690, %v692
  %v694 = vrot.slane %v281, 7
  %v695 = vsel %vm668, %v692, %v694
  %v696 = vrot.slane %v282, 7
  %v697 = vsel %vm668, %v694, %v696
  %v698 = vrot.slane %v283, 7
  %v699 = vsel %vm668, %v696, %v698
  %v700 = vrot.slane %v284, 7
  %v701 = vsel %vm668, %v698, %v700
  %v702 = vrot.slane %v285, 7
  %v703 = vsel %vm668, %v700, %v702
  %v704 = vrot.slane %v286, 7
  %v705 = vsel %vm668, %v702, %v704
  %v706 = vrot.slane %v287, 7
  %v707 = vsel %vm668, %v704, %v706
  %v708 = vrot.slane %v288, 7
  %v709 = vsel %vm668, %v706, %v708
  %v710 = vrot.slane %v289, 7
  %v711 = vsel %vm668, %v708, %v710
  %v712 = vrot.slane %v290, 7
  %v713 = vsel %vm668, %v710, %v712
  %v714 = vrot.slane %v291, 7
  %v715 = vsel %vm668, %v712, %v714
  %v716 = vrot.slane %v292, 7
  %v717 = vsel %vm668, %v714, %v716
  %v718 = vrot.slane %v293, 7
  %v719 = vsel %vm668, %v716, %v718
  %v720 = vrot.slane %v294, 7
  %v721 = vsel %vm668, %v718, %v720
  %v722 = vrot.slane %v295, 7
  %v723 = vsel %vm668, %v720, %v722
  %v724 = vrot.slane %v296, 7
  %v725 = vsel %vm668, %v722, %v724
  %v726 = vrot.slane %v297, 7
  %v727 = vsel %vm668, %v724, %v726
  %v728 = vrot.slane %v298, 7
  %v729 = vsel %vm668, %v726, %v728
  %v730 = vrot.slane %v299, 7
  %v731 = vsel %vm668, %v728, %v730
  %v732 = vrot.slane %v300, 7
  %v733 = vsel %vm668, %v730, %v732
  %734 = vrot.lane.b32.xlu0 %v671, 12
  %v735 = vpop.permute.xlu0 %734
  %736 = vrot.lane.b32.xlu0 %v673, 12
  %v737 = vpop.permute.xlu0 %736
  %738 = vrot.lane.b32.xlu0 %v675, 12
  %v739 = vpop.permute.xlu0 %738
  %740 = vrot.lane.b32.xlu0 %v677, 12
  %v741 = vpop.permute.xlu0 %740
  %742 = vrot.lane.b32.xlu0 %v679, 12
  %v743 = vpop.permute.xlu0 %742
  %744 = vrot.lane.b32.xlu0 %v681, 12
  %v745 = vpop.permute.xlu0 %744
  %746 = vrot.lane.b32.xlu0 %v683, 12
  %v747 = vpop.permute.xlu0 %746
  %748 = vrot.lane.b32.xlu0 %v685, 12
  %v749 = vpop.permute.xlu0 %748
  %750 = vrot.lane.b32.xlu0 %v687, 12
  %v751 = vpop.permute.xlu0 %750
  %752 = vrot.lane.b32.xlu0 %v689, 12
  %v753 = vpop.permute.xlu0 %752
  %754 = vrot.lane.b32.xlu0 %v691, 12
  %v755 = vpop.permute.xlu0 %754
  %756 = vrot.lane.b32.xlu0 %v693, 12
  %v757 = vpop.permute.xlu0 %756
  %758 = vrot.lane.b32.xlu0 %v695, 12
  %v759 = vpop.permute.xlu0 %758
  %760 = vrot.lane.b32.xlu0 %v697, 12
  %v761 = vpop.permute.xlu0 %760
  %762 = vrot.lane.b32.xlu0 %v699, 12
  %v763 = vpop.permute.xlu0 %762
  %764 = vrot.lane.b32.xlu0 %v701, 12
  %v765 = vpop.permute.xlu0 %764
  %766 = vrot.lane.b32.xlu0 %v703, 12
  %v767 = vpop.permute.xlu0 %766
  %768 = vrot.lane.b32.xlu0 %v705, 12
  %v769 = vpop.permute.xlu0 %768
  %770 = vrot.lane.b32.xlu0 %v707, 12
  %v771 = vpop.permute.xlu0 %770
  %772 = vrot.lane.b32.xlu0 %v709, 12
  %v773 = vpop.permute.xlu0 %772
  %774 = vrot.lane.b32.xlu0 %v711, 12
  %v775 = vpop.permute.xlu0 %774
  %776 = vrot.lane.b32.xlu0 %v713, 12
  %v777 = vpop.permute.xlu0 %776
  %778 = vrot.lane.b32.xlu0 %v715, 12
  %v779 = vpop.permute.xlu0 %778
  %780 = vrot.lane.b32.xlu0 %v717, 12
  %v781 = vpop.permute.xlu0 %780
  %782 = vrot.lane.b32.xlu0 %v719, 12
  %v783 = vpop.permute.xlu0 %782
  %784 = vrot.lane.b32.xlu0 %v721, 12
  %v785 = vpop.permute.xlu0 %784
  %786 = vrot.lane.b32.xlu0 %v723, 12
  %v787 = vpop.permute.xlu0 %786
  %788 = vrot.lane.b32.xlu0 %v725, 12
  %v789 = vpop.permute.xlu0 %788
  %790 = vrot.lane.b32.xlu0 %v727, 12
  %v791 = vpop.permute.xlu0 %790
  %792 = vrot.lane.b32.xlu0 %v729, 12
  %v793 = vpop.permute.xlu0 %792
  %794 = vrot.lane.b32.xlu0 %v731, 12
  %v795 = vpop.permute.xlu0 %794
  %796 = vrot.lane.b32.xlu0 %v733, 12
  %v797 = vpop.permute.xlu0 %796
  %798 = vrot.lane.b32.xlu0 %v732, 12
  %v799 = vpop.permute.xlu0 %798
  %834 = vrot.lane.b32.xlu0 %v269, 16
  %v835 = vpop.permute.xlu0 %834
  %836 = vrot.lane.b32.xlu0 %v270, 16
  %v837 = vpop.permute.xlu0 %836
  %838 = vrot.lane.b32.xlu0 %v271, 16
  %v839 = vpop.permute.xlu0 %838
  %840 = vrot.lane.b32.xlu0 %v272, 16
  %v841 = vpop.permute.xlu0 %840
  %842 = vrot.lane.b32.xlu0 %v273, 16
  %v843 = vpop.permute.xlu0 %842
  %844 = vrot.lane.b32.xlu0 %v274, 16
  %v845 = vpop.permute.xlu0 %844
  %846 = vrot.lane.b32.xlu0 %v275, 16
  %v847 = vpop.permute.xlu0 %846
  %848 = vrot.lane.b32.xlu0 %v276, 16
  %v849 = vpop.permute.xlu0 %848
  %850 = vrot.lane.b32.xlu0 %v277, 16
  %v851 = vpop.permute.xlu0 %850
  %852 = vrot.lane.b32.xlu0 %v278, 16
  %v853 = vpop.permute.xlu0 %852
  %854 = vrot.lane.b32.xlu0 %v279, 16
  %v855 = vpop.permute.xlu0 %854
  %856 = vrot.lane.b32.xlu0 %v280, 16
  %v857 = vpop.permute.xlu0 %856
  %858 = vrot.lane.b32.xlu0 %v281, 16
  %v859 = vpop.permute.xlu0 %858
  %860 = vrot.lane.b32.xlu0 %v282, 16
  %v861 = vpop.permute.xlu0 %860
  %862 = vrot.lane.b32.xlu0 %v283, 16
  %v863 = vpop.permute.xlu0 %862
  %864 = vrot.lane.b32.xlu0 %v284, 16
  %v865 = vpop.permute.xlu0 %864
  %866 = vrot.lane.b32.xlu0 %v285, 16
  %v867 = vpop.permute.xlu0 %866
  %868 = vrot.lane.b32.xlu0 %v286, 16
  %v869 = vpop.permute.xlu0 %868
  %870 = vrot.lane.b32.xlu0 %v287, 16
  %v871 = vpop.permute.xlu0 %870
  %872 = vrot.lane.b32.xlu0 %v288, 16
  %v873 = vpop.permute.xlu0 %872
  %874 = vrot.lane.b32.xlu0 %v289, 16
  %v875 = vpop.permute.xlu0 %874
  %876 = vrot.lane.b32.xlu0 %v290, 16
  %v877 = vpop.permute.xlu0 %876
  %878 = vrot.lane.b32.xlu0 %v291, 16
  %v879 = vpop.permute.xlu0 %878
  %880 = vrot.lane.b32.xlu0 %v292, 16
  %v881 = vpop.permute.xlu0 %880
  %882 = vrot.lane.b32.xlu0 %v293, 16
  %v883 = vpop.permute.xlu0 %882
  %884 = vrot.lane.b32.xlu0 %v294, 16
  %v885 = vpop.permute.xlu0 %884
  %886 = vrot.lane.b32.xlu0 %v295, 16
  %v887 = vpop.permute.xlu0 %886
  %888 = vrot.lane.b32.xlu0 %v296, 16
  %v889 = vpop.permute.xlu0 %888
  %890 = vrot.lane.b32.xlu0 %v297, 16
  %v891 = vpop.permute.xlu0 %890
  %892 = vrot.lane.b32.xlu0 %v298, 16
  %v893 = vpop.permute.xlu0 %892
  %894 = vrot.lane.b32.xlu0 %v299, 16
  %v895 = vpop.permute.xlu0 %894
  %896 = vrot.lane.b32.xlu0 %v300, 16
  %v897 = vpop.permute.xlu0 %896
  %898 = vrot.lane.b32.xlu0 %v301, 16
  %v899 = vpop.permute.xlu0 %898
  %v933 = vrot.slane %v300, 1
  %v934 = vsel %vm337, %v401, %v933
  %v935 = vrot.slane %v301, 1
  %v936 = vsel %vm337, %v933, %v935
  %937 = vrot.lane.b32.xlu0 %v344, 20
  %v938 = vpop.permute.xlu0 %937
  %939 = vrot.lane.b32.xlu0 %v346, 20
  %v940 = vpop.permute.xlu0 %939
  %941 = vrot.lane.b32.xlu0 %v348, 20
  %v942 = vpop.permute.xlu0 %941
  %943 = vrot.lane.b32.xlu0 %v350, 20
  %v944 = vpop.permute.xlu0 %943
  %945 = vrot.lane.b32.xlu0 %v352, 20
  %v946 = vpop.permute.xlu0 %945
  %947 = vrot.lane.b32.xlu0 %v354, 20
  %v948 = vpop.permute.xlu0 %947
  %949 = vrot.lane.b32.xlu0 %v356, 20
  %v950 = vpop.permute.xlu0 %949
  %951 = vrot.lane.b32.xlu0 %v358, 20
  %v952 = vpop.permute.xlu0 %951
  %953 = vrot.lane.b32.xlu0 %v360, 20
  %v954 = vpop.permute.xlu0 %953
  %955 = vrot.lane.b32.xlu0 %v362, 20
  %v956 = vpop.permute.xlu0 %955
  %957 = vrot.lane.b32.xlu0 %v364, 20
  %v958 = vpop.permute.xlu0 %957
  %959 = vrot.lane.b32.xlu0 %v366, 20
  %v960 = vpop.permute.xlu0 %959
  %961 = vrot.lane.b32.xlu0 %v368, 20
  %v962 = vpop.permute.xlu0 %961
  %963 = vrot.lane.b32.xlu0 %v370, 20
  %v964 = vpop.permute.xlu0 %963
  %965 = vrot.lane.b32.xlu0 %v372, 20
  %v966 = vpop.permute.xlu0 %965
  %967 = vrot.lane.b32.xlu0 %v374, 20
  %v968 = vpop.permute.xlu0 %967
  %969 = vrot.lane.b32.xlu0 %v376, 20
  %v970 = vpop.permute.xlu0 %969
  %971 = vrot.lane.b32.xlu0 %v378, 20
  %v972 = vpop.permute.xlu0 %971
  %973 = vrot.lane.b32.xlu0 %v380, 20
  %v974 = vpop.permute.xlu0 %973
  %975 = vrot.lane.b32.xlu0 %v382, 20
  %v976 = vpop.permute.xlu0 %975
  %977 = vrot.lane.b32.xlu0 %v384, 20
  %v978 = vpop.permute.xlu0 %977
  %979 = vrot.lane.b32.xlu0 %v386, 20
  %v980 = vpop.permute.xlu0 %979
  %981 = vrot.lane.b32.xlu0 %v388, 20
  %v982 = vpop.permute.xlu0 %981
  %983 = vrot.lane.b32.xlu0 %v390, 20
  %v984 = vpop.permute.xlu0 %983
  %985 = vrot.lane.b32.xlu0 %v392, 20
  %v986 = vpop.permute.xlu0 %985
  %987 = vrot.lane.b32.xlu0 %v394, 20
  %v988 = vpop.permute.xlu0 %987
  %989 = vrot.lane.b32.xlu0 %v396, 20
  %v990 = vpop.permute.xlu0 %989
  %991 = vrot.lane.b32.xlu0 %v398, 20
  %v992 = vpop.permute.xlu0 %991
  %993 = vrot.lane.b32.xlu0 %v400, 20
  %v994 = vpop.permute.xlu0 %993
  %995 = vrot.lane.b32.xlu0 %v402, 20
  %v996 = vpop.permute.xlu0 %995
  %997 = vrot.lane.b32.xlu0 %v934, 20
  %v998 = vpop.permute.xlu0 %997
  %999 = vrot.lane.b32.xlu0 %v936, 20
  %v1000 = vpop.permute.xlu0 %999
  %1001 = vrot.lane.b32.xlu0 %v935, 20
  %v1002 = vpop.permute.xlu0 %1001
  %vm1037 = vcmask 1041408
  %v1038 = vrot.slane %v270, 6
  %v1039 = vrot.slane %v271, 6
  %v1040 = vsel %vm1037, %v1038, %v1039
  %v1041 = vrot.slane %v272, 6
  %v1042 = vsel %vm1037, %v1039, %v1041
  %v1043 = vrot.slane %v273, 6
  %v1044 = vsel %vm1037, %v1041, %v1043
  %v1045 = vrot.slane %v274, 6
  %v1046 = vsel %vm1037, %v1043, %v1045
  %v1047 = vrot.slane %v275, 6
  %v1048 = vsel %vm1037, %v1045, %v1047
  %v1049 = vrot.slane %v276, 6
  %v1050 = vsel %vm1037, %v1047, %v1049
  %v1051 = vrot.slane %v277, 6
  %v1052 = vsel %vm1037, %v1049, %v1051
  %v1053 = vrot.slane %v278, 6
  %v1054 = vsel %vm1037, %v1051, %v1053
  %v1055 = vrot.slane %v279, 6
  %v1056 = vsel %vm1037, %v1053, %v1055
  %v1057 = vrot.slane %v280, 6
  %v1058 = vsel %vm1037, %v1055, %v1057
  %v1059 = vrot.slane %v281, 6
  %v1060 = vsel %vm1037, %v1057, %v1059
  %v1061 = vrot.slane %v282, 6
  %v1062 = vsel %vm1037, %v1059, %v1061
  %v1063 = vrot.slane %v283, 6
  %v1064 = vsel %vm1037, %v1061, %v1063
  %v1065 = vrot.slane %v284, 6
  %v1066 = vsel %vm1037, %v1063, %v1065
  %v1067 = vrot.slane %v285, 6
  %v1068 = vsel %vm1037, %v1065, %v1067
  %v1069 = vrot.slane %v286, 6
  %v1070 = vsel %vm1037, %v1067, %v1069
  %v1071 = vrot.slane %v287, 6
  %v1072 = vsel %vm1037, %v1069, %v1071
  %v1073 = vrot.slane %v288, 6
  %v1074 = vsel %vm1037, %v1071, %v1073
  %v1075 = vrot.slane %v289, 6
  %v1076 = vsel %vm1037, %v1073, %v1075
  %v1077 = vrot.slane %v290, 6
  %v1078 = vsel %vm1037, %v1075, %v1077
  %v1079 = vrot.slane %v291, 6
  %v1080 = vsel %vm1037, %v1077, %v1079
  %v1081 = vrot.slane %v292, 6
  %v1082 = vsel %vm1037, %v1079, %v1081
  %v1083 = vrot.slane %v293, 6
  %v1084 = vsel %vm1037, %v1081, %v1083
  %v1085 = vrot.slane %v294, 6
  %v1086 = vsel %vm1037, %v1083, %v1085
  %v1087 = vrot.slane %v295, 6
  %v1088 = vsel %vm1037, %v1085, %v1087
  %v1089 = vrot.slane %v296, 6
  %v1090 = vsel %vm1037, %v1087, %v1089
  %v1091 = vrot.slane %v297, 6
  %v1092 = vsel %vm1037, %v1089, %v1091
  %v1093 = vrot.slane %v298, 6
  %v1094 = vsel %vm1037, %v1091, %v1093
  %v1095 = vrot.slane %v299, 6
  %v1096 = vsel %vm1037, %v1093, %v1095
  %v1097 = vrot.slane %v300, 6
  %v1098 = vsel %vm1037, %v1095, %v1097
  %v1099 = vrot.slane %v301, 6
  %v1100 = vsel %vm1037, %v1097, %v1099
  %v1101 = vrot.slane %v302, 6
  %v1102 = vsel %vm1037, %v1099, %v1101
  %1103 = vrot.lane.b32.xlu0 %v1040, 24
  %v1104 = vpop.permute.xlu0 %1103
  %1105 = vrot.lane.b32.xlu0 %v1042, 24
  %v1106 = vpop.permute.xlu0 %1105
  %1107 = vrot.lane.b32.xlu0 %v1044, 24
  %v1108 = vpop.permute.xlu0 %1107
  %1109 = vrot.lane.b32.xlu0 %v1046, 24
  %v1110 = vpop.permute.xlu0 %1109
  %1111 = vrot.lane.b32.xlu0 %v1048, 24
  %v1112 = vpop.permute.xlu0 %1111
  %1113 = vrot.lane.b32.xlu0 %v1050, 24
  %v1114 = vpop.permute.xlu0 %1113
  %1115 = vrot.lane.b32.xlu0 %v1052, 24
  %v1116 = vpop.permute.xlu0 %1115
  %1117 = vrot.lane.b32.xlu0 %v1054, 24
  %v1118 = vpop.permute.xlu0 %1117
  %1119 = vrot.lane.b32.xlu0 %v1056, 24
  %v1120 = vpop.permute.xlu0 %1119
  %1121 = vrot.lane.b32.xlu0 %v1058, 24
  %v1122 = vpop.permute.xlu0 %1121
  %1123 = vrot.lane.b32.xlu0 %v1060, 24
  %v1124 = vpop.permute.xlu0 %1123
  %1125 = vrot.lane.b32.xlu0 %v1062, 24
  %v1126 = vpop.permute.xlu0 %1125
  %1127 = vrot.lane.b32.xlu0 %v1064, 24
  %v1128 = vpop.permute.xlu0 %1127
  %1129 = vrot.lane.b32.xlu0 %v1066, 24
  %v1130 = vpop.permute.xlu0 %1129
  %1131 = vrot.lane.b32.xlu0 %v1068, 24
  %v1132 = vpop.permute.xlu0 %1131
  %1133 = vrot.lane.b32.xlu0 %v1070, 24
  %v1134 = vpop.permute.xlu0 %1133
  %1135 = vrot.lane.b32.xlu0 %v1072, 24
  %v1136 = vpop.permute.xlu0 %1135
  %1137 = vrot.lane.b32.xlu0 %v1074, 24
  %v1138 = vpop.permute.xlu0 %1137
  %1139 = vrot.lane.b32.xlu0 %v1076, 24
  %v1140 = vpop.permute.xlu0 %1139
  %1141 = vrot.lane.b32.xlu0 %v1078, 24
  %v1142 = vpop.permute.xlu0 %1141
  %1143 = vrot.lane.b32.xlu0 %v1080, 24
  %v1144 = vpop.permute.xlu0 %1143
  %1145 = vrot.lane.b32.xlu0 %v1082, 24
  %v1146 = vpop.permute.xlu0 %1145
  %1147 = vrot.lane.b32.xlu0 %v1084, 24
  %v1148 = vpop.permute.xlu0 %1147
  %1149 = vrot.lane.b32.xlu0 %v1086, 24
  %v1150 = vpop.permute.xlu0 %1149
  %1151 = vrot.lane.b32.xlu0 %v1088, 24
  %v1152 = vpop.permute.xlu0 %1151
  %1153 = vrot.lane.b32.xlu0 %v1090, 24
  %v1154 = vpop.permute.xlu0 %1153
  %1155 = vrot.lane.b32.xlu0 %v1092, 24
  %v1156 = vpop.permute.xlu0 %1155
  %1157 = vrot.lane.b32.xlu0 %v1094, 24
  %v1158 = vpop.permute.xlu0 %1157
  %1159 = vrot.lane.b32.xlu0 %v1096, 24
  %v1160 = vpop.permute.xlu0 %1159
  %1161 = vrot.lane.b32.xlu0 %v1098, 24
  %v1162 = vpop.permute.xlu0 %1161
  %1163 = vrot.lane.b32.xlu0 %v1100, 24
  %v1164 = vpop.permute.xlu0 %1163
  %1165 = vrot.lane.b32.xlu0 %v1102, 24
  %v1166 = vpop.permute.xlu0 %1165
  %1167 = vrot.lane.b32.xlu0 %v1101, 24
  %v1168 = vpop.permute.xlu0 %1167
  %v1202 = vrot.slane %v301, 7
  %v1203 = vsel %vm668, %v732, %v1202
  %v1204 = vrot.slane %v302, 7
  %v1205 = vsel %vm668, %v1202, %v1204
  %1206 = vrot.lane.b32.xlu0 %v675, 28
  %v1207 = vpop.permute.xlu0 %1206
  %1208 = vrot.lane.b32.xlu0 %v677, 28
  %v1209 = vpop.permute.xlu0 %1208
  %1210 = vrot.lane.b32.xlu0 %v679, 28
  %v1211 = vpop.permute.xlu0 %1210
  %1212 = vrot.lane.b32.xlu0 %v681, 28
  %v1213 = vpop.permute.xlu0 %1212
  %1214 = vrot.lane.b32.xlu0 %v683, 28
  %v1215 = vpop.permute.xlu0 %1214
  %1216 = vrot.lane.b32.xlu0 %v685, 28
  %v1217 = vpop.permute.xlu0 %1216
  %1218 = vrot.lane.b32.xlu0 %v687, 28
  %v1219 = vpop.permute.xlu0 %1218
  %1220 = vrot.lane.b32.xlu0 %v689, 28
  %v1221 = vpop.permute.xlu0 %1220
  %1222 = vrot.lane.b32.xlu0 %v691, 28
  %v1223 = vpop.permute.xlu0 %1222
  %1224 = vrot.lane.b32.xlu0 %v693, 28
  %v1225 = vpop.permute.xlu0 %1224
  %1226 = vrot.lane.b32.xlu0 %v695, 28
  %v1227 = vpop.permute.xlu0 %1226
  %1228 = vrot.lane.b32.xlu0 %v697, 28
  %v1229 = vpop.permute.xlu0 %1228
  %1230 = vrot.lane.b32.xlu0 %v699, 28
  %v1231 = vpop.permute.xlu0 %1230
  %1232 = vrot.lane.b32.xlu0 %v701, 28
  %v1233 = vpop.permute.xlu0 %1232
  %1234 = vrot.lane.b32.xlu0 %v703, 28
  %v1235 = vpop.permute.xlu0 %1234
  %1236 = vrot.lane.b32.xlu0 %v705, 28
  %v1237 = vpop.permute.xlu0 %1236
  %1238 = vrot.lane.b32.xlu0 %v707, 28
  %v1239 = vpop.permute.xlu0 %1238
  %1240 = vrot.lane.b32.xlu0 %v709, 28
  %v1241 = vpop.permute.xlu0 %1240
  %1242 = vrot.lane.b32.xlu0 %v711, 28
  %v1243 = vpop.permute.xlu0 %1242
  %1244 = vrot.lane.b32.xlu0 %v713, 28
  %v1245 = vpop.permute.xlu0 %1244
  %1246 = vrot.lane.b32.xlu0 %v715, 28
  %v1247 = vpop.permute.xlu0 %1246
  %1248 = vrot.lane.b32.xlu0 %v717, 28
  %v1249 = vpop.permute.xlu0 %1248
  %1250 = vrot.lane.b32.xlu0 %v719, 28
  %v1251 = vpop.permute.xlu0 %1250
  %1252 = vrot.lane.b32.xlu0 %v721, 28
  %v1253 = vpop.permute.xlu0 %1252
  %1254 = vrot.lane.b32.xlu0 %v723, 28
  %v1255 = vpop.permute.xlu0 %1254
  %1256 = vrot.lane.b32.xlu0 %v725, 28
  %v1257 = vpop.permute.xlu0 %1256
  %1258 = vrot.lane.b32.xlu0 %v727, 28
  %v1259 = vpop.permute.xlu0 %1258
  %1260 = vrot.lane.b32.xlu0 %v729, 28
  %v1261 = vpop.permute.xlu0 %1260
  %1262 = vrot.lane.b32.xlu0 %v731, 28
  %v1263 = vpop.permute.xlu0 %1262
  %1264 = vrot.lane.b32.xlu0 %v733, 28
  %v1265 = vpop.permute.xlu0 %1264
  %1266 = vrot.lane.b32.xlu0 %v1203, 28
  %v1267 = vpop.permute.xlu0 %1266
  %1268 = vrot.lane.b32.xlu0 %v1205, 28
  %v1269 = vpop.permute.xlu0 %1268
  %1270 = vrot.lane.b32.xlu0 %v1204, 28
  %v1271 = vpop.permute.xlu0 %1270
  %1306 = vrot.lane.b32.xlu0 %v271, 32
  %v1307 = vpop.permute.xlu0 %1306
  %1308 = vrot.lane.b32.xlu0 %v272, 32
  %v1309 = vpop.permute.xlu0 %1308
  %1310 = vrot.lane.b32.xlu0 %v273, 32
  %v1311 = vpop.permute.xlu0 %1310
  %1312 = vrot.lane.b32.xlu0 %v274, 32
  %v1313 = vpop.permute.xlu0 %1312
  %1314 = vrot.lane.b32.xlu0 %v275, 32
  %v1315 = vpop.permute.xlu0 %1314
  %1316 = vrot.lane.b32.xlu0 %v276, 32
  %v1317 = vpop.permute.xlu0 %1316
  %1318 = vrot.lane.b32.xlu0 %v277, 32
  %v1319 = vpop.permute.xlu0 %1318
  %1320 = vrot.lane.b32.xlu0 %v278, 32
  %v1321 = vpop.permute.xlu0 %1320
  %1322 = vrot.lane.b32.xlu0 %v279, 32
  %v1323 = vpop.permute.xlu0 %1322
  %1324 = vrot.lane.b32.xlu0 %v280, 32
  %v1325 = vpop.permute.xlu0 %1324
  %1326 = vrot.lane.b32.xlu0 %v281, 32
  %v1327 = vpop.permute.xlu0 %1326
  %1328 = vrot.lane.b32.xlu0 %v282, 32
  %v1329 = vpop.permute.xlu0 %1328
  %1330 = vrot.lane.b32.xlu0 %v283, 32
  %v1331 = vpop.permute.xlu0 %1330
  %1332 = vrot.lane.b32.xlu0 %v284, 32
  %v1333 = vpop.permute.xlu0 %1332
  %1334 = vrot.lane.b32.xlu0 %v285, 32
  %v1335 = vpop.permute.xlu0 %1334
  %1336 = vrot.lane.b32.xlu0 %v286, 32
  %v1337 = vpop.permute.xlu0 %1336
  %1338 = vrot.lane.b32.xlu0 %v287, 32
  %v1339 = vpop.permute.xlu0 %1338
  %1340 = vrot.lane.b32.xlu0 %v288, 32
  %v1341 = vpop.permute.xlu0 %1340
  %1342 = vrot.lane.b32.xlu0 %v289, 32
  %v1343 = vpop.permute.xlu0 %1342
  %1344 = vrot.lane.b32.xlu0 %v290, 32
  %v1345 = vpop.permute.xlu0 %1344
  %1346 = vrot.lane.b32.xlu0 %v291, 32
  %v1347 = vpop.permute.xlu0 %1346
  %1348 = vrot.lane.b32.xlu0 %v292, 32
  %v1349 = vpop.permute.xlu0 %1348
  %1350 = vrot.lane.b32.xlu0 %v293, 32
  %v1351 = vpop.permute.xlu0 %1350
  %1352 = vrot.lane.b32.xlu0 %v294, 32
  %v1353 = vpop.permute.xlu0 %1352
  %1354 = vrot.lane.b32.xlu0 %v295, 32
  %v1355 = vpop.permute.xlu0 %1354
  %1356 = vrot.lane.b32.xlu0 %v296, 32
  %v1357 = vpop.permute.xlu0 %1356
  %1358 = vrot.lane.b32.xlu0 %v297, 32
  %v1359 = vpop.permute.xlu0 %1358
  %1360 = vrot.lane.b32.xlu0 %v298, 32
  %v1361 = vpop.permute.xlu0 %1360
  %1362 = vrot.lane.b32.xlu0 %v299, 32
  %v1363 = vpop.permute.xlu0 %1362
  %1364 = vrot.lane.b32.xlu0 %v300, 32
  %v1365 = vpop.permute.xlu0 %1364
  %1366 = vrot.lane.b32.xlu0 %v301, 32
  %v1367 = vpop.permute.xlu0 %1366
  %1368 = vrot.lane.b32.xlu0 %v302, 32
  %v1369 = vpop.permute.xlu0 %1368
  %1370 = vrot.lane.b32.xlu0 %v303, 32
  %v1371 = vpop.permute.xlu0 %1370
  %vm1405 = vcmask 31744
  %v1406 = vsel %vm1405, %v267, %v404
  %v1407 = vsel %vm1405, %v268, %v406
  %v1408 = vsel %vm1405, %v269, %v408
  %v1409 = vsel %vm1405, %v270, %v410
  %v1410 = vsel %vm1405, %v271, %v412
  %v1411 = vsel %vm1405, %v272, %v414
  %v1412 = vsel %vm1405, %v273, %v416
  %v1413 = vsel %vm1405, %v274, %v418
  %v1414 = vsel %vm1405, %v275, %v420
  %v1415 = vsel %vm1405, %v276, %v422
  %v1416 = vsel %vm1405, %v277, %v424
  %v1417 = vsel %vm1405, %v278, %v426
  %v1418 = vsel %vm1405, %v279, %v428
  %v1419 = vsel %vm1405, %v280, %v430
  %v1420 = vsel %vm1405, %v281, %v432
  %v1421 = vsel %vm1405, %v282, %v434
  %v1422 = vsel %vm1405, %v283, %v436
  %v1423 = vsel %vm1405, %v284, %v438
  %v1424 = vsel %vm1405, %v285, %v440
  %v1425 = vsel %vm1405, %v286, %v442
  %v1426 = vsel %vm1405, %v287, %v444
  %v1427 = vsel %vm1405, %v288, %v446
  %v1428 = vsel %vm1405, %v289, %v448
  %v1429 = vsel %vm1405, %v290, %v450
  %v1430 = vsel %vm1405, %v291, %v452
  %v1431 = vsel %vm1405, %v292, %v454
  %v1432 = vsel %vm1405, %v293, %v456
  %v1433 = vsel %vm1405, %v294, %v458
  %v1434 = vsel %vm1405, %v295, %v460
  %v1435 = vsel %vm1405, %v296, %v462
  %v1436 = vsel %vm1405, %v297, %v464
  %v1437 = vsel %vm1405, %v298, %v466
  %v1438 = vsel %vm1405, %v299, %v468
  %vm1439 = vcmask 64512
  %v1440 = vsel %vm1439, %v1406, %v569
  %v1441 = vsel %vm1439, %v1407, %v571
  %v1442 = vsel %vm1439, %v1408, %v573
  %v1443 = vsel %vm1439, %v1409, %v575
  %v1444 = vsel %vm1439, %v1410, %v577
  %v1445 = vsel %vm1439, %v1411, %v579
  %v1446 = vsel %vm1439, %v1412, %v581
  %v1447 = vsel %vm1439, %v1413, %v583
  %v1448 = vsel %vm1439, %v1414, %v585
  %v1449 = vsel %vm1439, %v1415, %v587
  %v1450 = vsel %vm1439, %v1416, %v589
  %v1451 = vsel %vm1439, %v1417, %v591
  %v1452 = vsel %vm1439, %v1418, %v593
  %v1453 = vsel %vm1439, %v1419, %v595
  %v1454 = vsel %vm1439, %v1420, %v597
  %v1455 = vsel %vm1439, %v1421, %v599
  %v1456 = vsel %vm1439, %v1422, %v601
  %v1457 = vsel %vm1439, %v1423, %v603
  %v1458 = vsel %vm1439, %v1424, %v605
  %v1459 = vsel %vm1439, %v1425, %v607
  %v1460 = vsel %vm1439, %v1426, %v609
  %v1461 = vsel %vm1439, %v1427, %v611
  %v1462 = vsel %vm1439, %v1428, %v613
  %v1463 = vsel %vm1439, %v1429, %v615
  %v1464 = vsel %vm1439, %v1430, %v617
  %v1465 = vsel %vm1439, %v1431, %v619
  %v1466 = vsel %vm1439, %v1432, %v621
  %v1467 = vsel %vm1439, %v1433, %v623
  %v1468 = vsel %vm1439, %v1434, %v625
  %v1469 = vsel %vm1439, %v1435, %v627
  %v1470 = vsel %vm1439, %v1436, %v629
  %v1471 = vsel %vm1439, %v1437, %v631
  %v1472 = vsel %vm1439, %v1438, %v633
  %vm1473 = vcmask 97280
  %v1474 = vsel %vm1473, %v1440, %v735
  %v1475 = vsel %vm1473, %v1441, %v737
  %v1476 = vsel %vm1473, %v1442, %v739
  %v1477 = vsel %vm1473, %v1443, %v741
  %v1478 = vsel %vm1473, %v1444, %v743
  %v1479 = vsel %vm1473, %v1445, %v745
  %v1480 = vsel %vm1473, %v1446, %v747
  %v1481 = vsel %vm1473, %v1447, %v749
  %v1482 = vsel %vm1473, %v1448, %v751
  %v1483 = vsel %vm1473, %v1449, %v753
  %v1484 = vsel %vm1473, %v1450, %v755
  %v1485 = vsel %vm1473, %v1451, %v757
  %v1486 = vsel %vm1473, %v1452, %v759
  %v1487 = vsel %vm1473, %v1453, %v761
  %v1488 = vsel %vm1473, %v1454, %v763
  %v1489 = vsel %vm1473, %v1455, %v765
  %v1490 = vsel %vm1473, %v1456, %v767
  %v1491 = vsel %vm1473, %v1457, %v769
  %v1492 = vsel %vm1473, %v1458, %v771
  %v1493 = vsel %vm1473, %v1459, %v773
  %v1494 = vsel %vm1473, %v1460, %v775
  %v1495 = vsel %vm1473, %v1461, %v777
  %v1496 = vsel %vm1473, %v1462, %v779
  %v1497 = vsel %vm1473, %v1463, %v781
  %v1498 = vsel %vm1473, %v1464, %v783
  %v1499 = vsel %vm1473, %v1465, %v785
  %v1500 = vsel %vm1473, %v1466, %v787
  %v1501 = vsel %vm1473, %v1467, %v789
  %v1502 = vsel %vm1473, %v1468, %v791
  %v1503 = vsel %vm1473, %v1469, %v793
  %v1504 = vsel %vm1473, %v1470, %v795
  %v1505 = vsel %vm1473, %v1471, %v797
  %v1506 = vsel %vm1473, %v1472, %v799
  %vm1507 = vcmask 130048
  %v1508 = vsel %vm1507, %v1474, %v835
  %v1509 = vsel %vm1507, %v1475, %v837
  %v1510 = vsel %vm1507, %v1476, %v839
  %v1511 = vsel %vm1507, %v1477, %v841
  %v1512 = vsel %vm1507, %v1478, %v843
  %v1513 = vsel %vm1507, %v1479, %v845
  %v1514 = vsel %vm1507, %v1480, %v847
  %v1515 = vsel %vm1507, %v1481, %v849
  %v1516 = vsel %vm1507, %v1482, %v851
  %v1517 = vsel %vm1507, %v1483, %v853
  %v1518 = vsel %vm1507, %v1484, %v855
  %v1519 = vsel %vm1507, %v1485, %v857
  %v1520 = vsel %vm1507, %v1486, %v859
  %v1521 = vsel %vm1507, %v1487, %v861
  %v1522 = vsel %vm1507, %v1488, %v863
  %v1523 = vsel %vm1507, %v1489, %v865
  %v1524 = vsel %vm1507, %v1490, %v867
  %v1525 = vsel %vm1507, %v1491, %v869
  %v1526 = vsel %vm1507, %v1492, %v871
  %v1527 = vsel %vm1507, %v1493, %v873
  %v1528 = vsel %vm1507, %v1494, %v875
  %v1529 = vsel %vm1507, %v1495, %v877
  %v1530 = vsel %vm1507, %v1496, %v879
  %v1531 = vsel %vm1507, %v1497, %v881
  %v1532 = vsel %vm1507, %v1498, %v883
  %v1533 = vsel %vm1507, %v1499, %v885
  %v1534 = vsel %vm1507, %v1500, %v887
  %v1535 = vsel %vm1507, %v1501, %v889
  %v1536 = vsel %vm1507, %v1502, %v891
  %v1537 = vsel %vm1507, %v1503, %v893
  %v1538 = vsel %vm1507, %v1504, %v895
  %v1539 = vsel %vm1507, %v1505, %v897
  %v1540 = vsel %vm1507, %v1506, %v899
  %vm1541 = vcmask 162816
  %v1542 = vsel %vm1541, %v1508, %v938
  %v1543 = vsel %vm1541, %v1509, %v940
  %v1544 = vsel %vm1541, %v1510, %v942
  %v1545 = vsel %vm1541, %v1511, %v944
  %v1546 = vsel %vm1541, %v1512, %v946
  %v1547 = vsel %vm1541, %v1513, %v948
  %v1548 = vsel %vm1541, %v1514, %v950
  %v1549 = vsel %vm1541, %v1515, %v952
  %v1550 = vsel %vm1541, %v1516, %v954
  %v1551 = vsel %vm1541, %v1517, %v956
  %v1552 = vsel %vm1541, %v1518, %v958
  %v1553 = vsel %vm1541, %v1519, %v960
  %v1554 = vsel %vm1541, %v1520, %v962
  %v1555 = vsel %vm1541, %v1521, %v964
  %v1556 = vsel %vm1541, %v1522, %v966
  %v1557 = vsel %vm1541, %v1523, %v968
  %v1558 = vsel %vm1541, %v1524, %v970
  %v1559 = vsel %vm1541, %v1525, %v972
  %v1560 = vsel %vm1541, %v1526, %v974
  %v1561 = vsel %vm1541, %v1527, %v976
  %v1562 = vsel %vm1541, %v1528, %v978
  %v1563 = vsel %vm1541, %v1529, %v980
  %v1564 = vsel %vm1541, %v1530, %v982
  %v1565 = vsel %vm1541, %v1531, %v984
  %v1566 = vsel %vm1541, %v1532, %v986
  %v1567 = vsel %vm1541, %v1533, %v988
  %v1568 = vsel %vm1541, %v1534, %v990
  %v1569 = vsel %vm1541, %v1535, %v992
  %v1570 = vsel %vm1541, %v1536, %v994
  %v1571 = vsel %vm1541, %v1537, %v996
  %v1572 = vsel %vm1541, %v1538, %v998
  %v1573 = vsel %vm1541, %v1539, %v1000
  %v1574 = vsel %vm1541, %v1540, %v1002
  %vm1575 = vcmask 195584
  %v1576 = vsel %vm1575, %v1542, %v1104
  %v1577 = vsel %vm1575, %v1543, %v1106
  %v1578 = vsel %vm1575, %v1544, %v1108
  %v1579 = vsel %vm1575, %v1545, %v1110
  %v1580 = vsel %vm1575, %v1546, %v1112
  %v1581 = vsel %vm1575, %v1547, %v1114
  %v1582 = vsel %vm1575, %v1548, %v1116
  %v1583 = vsel %vm1575, %v1549, %v1118
  %v1584 = vsel %vm1575, %v1550, %v1120
  %v1585 = vsel %vm1575, %v1551, %v1122
  %v1586 = vsel %vm1575, %v1552, %v1124
  %v1587 = vsel %vm1575, %v1553, %v1126
  %v1588 = vsel %vm1575, %v1554, %v1128
  %v1589 = vsel %vm1575, %v1555, %v1130
  %v1590 = vsel %vm1575, %v1556, %v1132
  %v1591 = vsel %vm1575, %v1557, %v1134
  %v1592 = vsel %vm1575, %v1558, %v1136
  %v1593 = vsel %vm1575, %v1559, %v1138
  %v1594 = vsel %vm1575, %v1560, %v1140
  %v1595 = vsel %vm1575, %v1561, %v1142
  %v1596 = vsel %vm1575, %v1562, %v1144
  %v1597 = vsel %vm1575, %v1563, %v1146
  %v1598 = vsel %vm1575, %v1564, %v1148
  %v1599 = vsel %vm1575, %v1565, %v1150
  %v1600 = vsel %vm1575, %v1566, %v1152
  %v1601 = vsel %vm1575, %v1567, %v1154
  %v1602 = vsel %vm1575, %v1568, %v1156
  %v1603 = vsel %vm1575, %v1569, %v1158
  %v1604 = vsel %vm1575, %v1570, %v1160
  %v1605 = vsel %vm1575, %v1571, %v1162
  %v1606 = vsel %vm1575, %v1572, %v1164
  %v1607 = vsel %vm1575, %v1573, %v1166
  %v1608 = vsel %vm1575, %v1574, %v1168
  %vm1609 = vcmask 228352
  %v1610 = vsel %vm1609, %v1576, %v1207
  %v1611 = vsel %vm1609, %v1577, %v1209
  %v1612 = vsel %vm1609, %v1578, %v1211
  %v1613 = vsel %vm1609, %v1579, %v1213
  %v1614 = vsel %vm1609, %v1580, %v1215
  %v1615 = vsel %vm1609, %v1581, %v1217
  %v1616 = vsel %vm1609, %v1582, %v1219
  %v1617 = vsel %vm1609, %v1583, %v1221
  %v1618 = vsel %vm1609, %v1584, %v1223
  %v1619 = vsel %vm1609, %v1585, %v1225
  %v1620 = vsel %vm1609, %v1586, %v1227
  %v1621 = vsel %vm1609, %v1587, %v1229
  %v1622 = vsel %vm1609, %v1588, %v1231
  %v1623 = vsel %vm1609, %v1589, %v1233
  %v1624 = vsel %vm1609, %v1590, %v1235
  %v1625 = vsel %vm1609, %v1591, %v1237
  %v1626 = vsel %vm1609, %v1592, %v1239
  %v1627 = vsel %vm1609, %v1593, %v1241
  %v1628 = vsel %vm1609, %v1594, %v1243
  %v1629 = vsel %vm1609, %v1595, %v1245
  %v1630 = vsel %vm1609, %v1596, %v1247
  %v1631 = vsel %vm1609, %v1597, %v1249
  %v1632 = vsel %vm1609, %v1598, %v1251
  %v1633 = vsel %vm1609, %v1599, %v1253
  %v1634 = vsel %vm1609, %v1600, %v1255
  %v1635 = vsel %vm1609, %v1601, %v1257
  %v1636 = vsel %vm1609, %v1602, %v1259
  %v1637 = vsel %vm1609, %v1603, %v1261
  %v1638 = vsel %vm1609, %v1604, %v1263
  %v1639 = vsel %vm1609, %v1605, %v1265
  %v1640 = vsel %vm1609, %v1606, %v1267
  %v1641 = vsel %vm1609, %v1607, %v1269
  %v1642 = vsel %vm1609, %v1608, %v1271
  %vm1643 = vcmask 261120
  %v1644 = vsel %vm1643, %v1610, %v1307
  %v1645 = vsel %vm1643, %v1611, %v1309
  %v1646 = vsel %vm1643, %v1612, %v1311
  %v1647 = vsel %vm1643, %v1613, %v1313
  %v1648 = vsel %vm1643, %v1614, %v1315
  %v1649 = vsel %vm1643, %v1615, %v1317
  %v1650 = vsel %vm1643, %v1616, %v1319
  %v1651 = vsel %vm1643, %v1617, %v1321
  %v1652 = vsel %vm1643, %v1618, %v1323
  %v1653 = vsel %vm1643, %v1619, %v1325
  %v1654 = vsel %vm1643, %v1620, %v1327
  %v1655 = vsel %vm1643, %v1621, %v1329
  %v1656 = vsel %vm1643, %v1622, %v1331
  %v1657 = vsel %vm1643, %v1623, %v1333
  %v1658 = vsel %vm1643, %v1624, %v1335
  %v1659 = vsel %vm1643, %v1625, %v1337
  %v1660 = vsel %vm1643, %v1626, %v1339
  %v1661 = vsel %vm1643, %v1627, %v1341
  %v1662 = vsel %vm1643, %v1628, %v1343
  %v1663 = vsel %vm1643, %v1629, %v1345
  %v1664 = vsel %vm1643, %v1630, %v1347
  %v1665 = vsel %vm1643, %v1631, %v1349
  %v1666 = vsel %vm1643, %v1632, %v1351
  %v1667 = vsel %vm1643, %v1633, %v1353
  %v1668 = vsel %vm1643, %v1634, %v1355
  %v1669 = vsel %vm1643, %v1635, %v1357
  %v1670 = vsel %vm1643, %v1636, %v1359
  %v1671 = vsel %vm1643, %v1637, %v1361
  %v1672 = vsel %vm1643, %v1638, %v1363
  %v1673 = vsel %vm1643, %v1639, %v1365
  %v1674 = vsel %vm1643, %v1640, %v1367
  %v1675 = vsel %vm1643, %v1641, %v1369
  %v1676 = vsel %vm1643, %v1642, %v1371
  %v1678 = vlaneseq
  %v1679 = vshrl.u32 %v1678, 7
  %v1680 = vsub.s32 0, %v1679
  %v1681 = vrot.slane %v43, %v1680
  %vm1683 = vcmask 293888
  %v1685 = vsel %vm1683, %v1644, 0
  %v1688 = vsel %vm1683, %v1645, 0
  %v1691 = vsel %vm1683, %v1646, 0
  %v1694 = vsel %vm1683, %v1647, 0
  %v1697 = vsel %vm1683, %v1648, 0
  %v1700 = vsel %vm1683, %v1649, 0
  %v1703 = vsel %vm1683, %v1650, 0
  %v1706 = vsel %vm1683, %v1651, 0
  %v1709 = vsel %vm1683, %v1652, 0
  %v1712 = vsel %vm1683, %v1653, 0
  %v1715 = vsel %vm1683, %v1654, 0
  %v1718 = vsel %vm1683, %v1655, 0
  %v1721 = vsel %vm1683, %v1656, 0
  %v1724 = vsel %vm1683, %v1657, 0
  %v1727 = vsel %vm1683, %v1658, 0
  %v1730 = vsel %vm1683, %v1659, 0
  %v1733 = vsel %vm1683, %v1660, 0
  %v1736 = vsel %vm1683, %v1661, 0
  %v1739 = vsel %vm1683, %v1662, 0
  %v1742 = vsel %vm1683, %v1663, 0
  %v1745 = vsel %vm1683, %v1664, 0
  %v1748 = vsel %vm1683, %v1665, 0
  %v1751 = vsel %vm1683, %v1666, 0
  %v1754 = vsel %vm1683, %v1667, 0
  %v1757 = vsel %vm1683, %v1668, 0
  %v1760 = vsel %vm1683, %v1669, 0
  %v1763 = vsel %vm1683, %v1670, 0
  %v1766 = vsel %vm1683, %v1671, 0
  %v1769 = vsel %vm1683, %v1672, 0
  %v1772 = vsel %vm1683, %v1673, 0
  %v1775 = vsel %vm1683, %v1674, 0
  %v1778 = vsel %vm1683, %v1675, 0
  %v1781 = vsel %vm1683, %v1676, 0
  %vm1783 = vcmask 1043456
  %v1785 = vsel %vm1783, %v42, 0
  %1787 = vmatprep.subr.mxu0 0.0
  %1788 = vmatpush1.msra.mxu0 %v38
  %1789 = vmatprep.subr.mxu0 0.0
  %1790 = vmatpush1.msra.mxu0 %v39
  %1791 = vmatprep.subr.mxu0 0.0
  %1792 = vmatpush1.msra.mxu0 %v40
  %1793 = vmatprep.subr.mxu0 0.0
  %1794 = vmatpush1.msra.mxu0 %v41
  %1795 = vmatprep.subr.mxu0 0.0
  %1796 = vmatpush1.msra.mxu0 %v1785
  %1797 = vmatprep.subr.mxu0 0.0
  %1798 = vmatpush1.msra.mxu0 0.0
  %1799 = vmatprep.subr.mxu0 0.0
  %1800 = vmatpush1.msra.mxu0 0.0
  %1801 = vmatprep.subr.mxu0 0.0
  %1802 = vmatpush1.msra.mxu0 0.0
  %1803 = vmatprep.subr.mxu0 0.0
  %1804 = vmatpush1.msra.mxu0 0.0
  %1805 = vmatprep.subr.mxu0 0.0
  %1806 = vmatpush1.msra.mxu0 0.0
  %1807 = vmatprep.subr.mxu0 0.0
  %1808 = vmatpush1.msra.mxu0 0.0
  %1809 = vmatprep.subr.mxu0 0.0
  %1810 = vmatpush1.msra.mxu0 0.0
  %1811 = vmatprep.subr.mxu0 0.0
  %1812 = vmatpush1.msra.mxu0 0.0
  %1813 = vmatprep.subr.mxu0 0.0
  %1814 = vmatpush1.msra.mxu0 0.0
  %1815 = vmatprep.subr.mxu0 0.0
  %1816 = vmatpush1.msra.mxu0 0.0
  %1817 = vmatprep.subr.mxu0 0.0
  %1818 = vmatpush1.msra.mxu0 0.0
  %1819 = vmatprep.subr.mxu0 0.0
  %1820 = vmatpush1.msra.mxu0 0.0
  %1821 = vmatprep.subr.mxu0 0.0
  %1822 = vmatpush1.msra.mxu0 0.0
  %1823 = vmatprep.subr.mxu0 0.0
  %1824 = vmatpush1.msra.mxu0 0.0
  %1825 = vmatprep.subr.mxu0 0.0
  %1826 = vmatpush1.msra.mxu0 0.0
  %1827 = vmatprep.subr.mxu0 0.0
  %1828 = vmatpush1.msra.mxu0 0.0
  %1829 = vmatprep.subr.mxu0 0.0
  %1830 = vmatpush1.msra.mxu0 0.0
  %1831 = vmatprep.subr.mxu0 0.0
  %1832 = vmatpush1.msra.mxu0 0.0
  %1833 = vmatprep.subr.mxu0 0.0
  %1834 = vmatpush1.msra.mxu0 0.0
  %1835 = vmatprep.subr.mxu0 0.0
  %1836 = vmatpush1.msra.mxu0 0.0
  %1837 = vmatprep.subr.mxu0 0.0
  %1838 = vmatpush1.msra.mxu0 0.0
  %1839 = vmatprep.subr.mxu0 0.0
  %1840 = vmatpush1.msra.mxu0 0.0
  %1841 = vmatprep.subr.mxu0 0.0
  %1842 = vmatpush1.msra.mxu0 0.0
  %1843 = vmatprep.subr.mxu0 0.0
  %1844 = vmatpush1.msra.mxu0 0.0
  %1845 = vmatprep.subr.mxu0 0.0
  %1846 = vmatpush1.msra.mxu0 0.0
  %1847 = vmatprep.subr.mxu0 0.0
  %1848 = vmatpush1.msra.mxu0 0.0
  %1849 = vmatprep.subr.mxu0 0.0
  %1850 = vmatpush1.msra.mxu0 0.0
  %1851 = vmatprep.mubr.f32.mxu0 0.0
  %1852 = vmatmul.mubr.f32.gmra.mrb[0].mxu0 %v1685
  %v1853 = vpop.f32.mrb[0].mxu0
  %v1854 = vadd.f32 %v1681, %v1853
  %v1855 = vpop.f32.mrb[0].mxu0
  %1856 = vmatprep.mubr.f32.mxu0 0.0
  %1857 = vmatmul.mubr.f32.gmra.mrb[0].mxu0 %v1688
  %v1858 = vpop.f32.mrb[0].mxu0
  %v1859 = vadd.f32 %v1681, %v1858
  %v1860 = vpop.f32.mrb[0].mxu0
  %1861 = vmatprep.mubr.f32.mxu0 0.0
  %1862 = vmatmul.mubr.f32.gmra.mrb[0].mxu0 %v1691
  %v1863 = vpop.f32.mrb[0].mxu0
  %v1864 = vadd.f32 %v1681, %v1863
  %v1865 = vpop.f32.mrb[0].mxu0
  %1866 = vmatprep.mubr.f32.mxu0 0.0
  %1867 = vmatmul.mubr.f32.gmra.mrb[0].mxu0 %v1694
  %v1868 = vpop.f32.mrb[0].mxu0
  %v1869 = vadd.f32 %v1681, %v1868
  %v1870 = vpop.f32.mrb[0].mxu0
  %1871 = vmatprep.mubr.f32.mxu0 0.0
  %1872 = vmatmul.mubr.f32.gmra.mrb[0].mxu0 %v1697
  %v1873 = vpop.f32.mrb[0].mxu0
  %v1874 = vadd.f32 %v1681, %v1873
  %v1875 = vpop.f32.mrb[0].mxu0
  %1876 = vmatprep.mubr.f32.mxu0 0.0
  %1877 = vmatmul.mubr.f32.gmra.mrb[0].mxu0 %v1700
  %v1878 = vpop.f32.mrb[0].mxu0
  %v1879 = vadd.f32 %v1681, %v1878
  %v1880 = vpop.f32.mrb[0].mxu0
  %1881 = vmatprep.mubr.f32.mxu0 0.0
  %1882 = vmatmul.mubr.f32.gmra.mrb[0].mxu0 %v1703
  %v1883 = vpop.f32.mrb[0].mxu0
  %v1884 = vadd.f32 %v1681, %v1883
  %v1885 = vpop.f32.mrb[0].mxu0
  %1886 = vmatprep.mubr.f32.mxu0 0.0
  %1887 = vmatmul.mubr.f32.gmra.mrb[0].mxu0 %v1706
  %v1888 = vpop.f32.mrb[0].mxu0
  %v1889 = vadd.f32 %v1681, %v1888
  %v1890 = vpop.f32.mrb[0].mxu0
  %1891 = vmatprep.mubr.f32.mxu0 0.0
  %1892 = vmatmul.mubr.f32.gmra.mrb[0].mxu0 %v1709
  %v1893 = vpop.f32.mrb[0].mxu0
  %v1894 = vadd.f32 %v1681, %v1893
  %v1895 = vpop.f32.mrb[0].mxu0
  %1896 = vmatprep.mubr.f32.mxu0 0.0
  %1897 = vmatmul.mubr.f32.gmra.mrb[0].mxu0 %v1712
  %v1898 = vpop.f32.mrb[0].mxu0
  %v1899 = vadd.f32 %v1681, %v1898
  %v1900 = vpop.f32.mrb[0].mxu0
  %1901 = vmatprep.mubr.f32.mxu0 0.0
  %1902 = vmatmul.mubr.f32.gmra.mrb[0].mxu0 %v1715
  %v1903 = vpop.f32.mrb[0].mxu0
  %v1904 = vadd.f32 %v1681, %v1903
  %v1905 = vpop.f32.mrb[0].mxu0
  %1906 = vmatprep.mubr.f32.mxu0 0.0
  %1907 = vmatmul.mubr.f32.gmra.mrb[0].mxu0 %v1718
  %v1908 = vpop.f32.mrb[0].mxu0
  %v1909 = vadd.f32 %v1681, %v1908
  %v1910 = vpop.f32.mrb[0].mxu0
  %1911 = vmatprep.mubr.f32.mxu0 0.0
  %1912 = vmatmul.mubr.f32.gmra.mrb[0].mxu0 %v1721
  %v1913 = vpop.f32.mrb[0].mxu0
  %v1914 = vadd.f32 %v1681, %v1913
  %v1915 = vpop.f32.mrb[0].mxu0
  %1916 = vmatprep.mubr.f32.mxu0 0.0
  %1917 = vmatmul.mubr.f32.gmra.mrb[0].mxu0 %v1724
  %v1918 = vpop.f32.mrb[0].mxu0
  %v1919 = vadd.f32 %v1681, %v1918
  %v1920 = vpop.f32.mrb[0].mxu0
  %1921 = vmatprep.mubr.f32.mxu0 0.0
  %1922 = vmatmul.mubr.f32.gmra.mrb[0].mxu0 %v1727
  %v1923 = vpop.f32.mrb[0].mxu0
  %v1924 = vadd.f32 %v1681, %v1923
  %v1925 = vpop.f32.mrb[0].mxu0
  %1926 = vmatprep.mubr.f32.mxu0 0.0
  %1927 = vmatmul.mubr.f32.gmra.mrb[0].mxu0 %v1730
  %v1928 = vpop.f32.mrb[0].mxu0
  %v1929 = vadd.f32 %v1681, %v1928
  %v1930 = vpop.f32.mrb[0].mxu0
  %1931 = vmatprep.mubr.f32.mxu0 0.0
  %1932 = vmatmul.mubr.f32.gmra.mrb[0].mxu0 %v1733
  %v1933 = vpop.f32.mrb[0].mxu0
  %v1934 = vadd.f32 %v1681, %v1933
  %v1935 = vpop.f32.mrb[0].mxu0
  %1936 = vmatprep.mubr.f32.mxu0 0.0
  %1937 = vmatmul.mubr.f32.gmra.mrb[0].mxu0 %v1736
  %v1938 = vpop.f32.mrb[0].mxu0
  %v1939 = vadd.f32 %v1681, %v1938
  %v1940 = vpop.f32.mrb[0].mxu0
  %1941 = vmatprep.mubr.f32.mxu0 0.0
  %1942 = vmatmul.mubr.f32.gmra.mrb[0].mxu0 %v1739
  %v1943 = vpop.f32.mrb[0].mxu0
  %v1944 = vadd.f32 %v1681, %v1943
  %v1945 = vpop.f32.mrb[0].mxu0
  %1946 = vmatprep.mubr.f32.mxu0 0.0
  %1947 = vmatmul.mubr.f32.gmra.mrb[0].mxu0 %v1742
  %v1948 = vpop.f32.mrb[0].mxu0
  %v1949 = vadd.f32 %v1681, %v1948
  %v1950 = vpop.f32.mrb[0].mxu0
  %1951 = vmatprep.mubr.f32.mxu0 0.0
  %1952 = vmatmul.mubr.f32.gmra.mrb[0].mxu0 %v1745
  %v1953 = vpop.f32.mrb[0].mxu0
  %v1954 = vadd.f32 %v1681, %v1953
  %v1955 = vpop.f32.mrb[0].mxu0
  %1956 = vmatprep.mubr.f32.mxu0 0.0
  %1957 = vmatmul.mubr.f32.gmra.mrb[0].mxu0 %v1748
  %v1958 = vpop.f32.mrb[0].mxu0
  %v1959 = vadd.f32 %v1681, %v1958
  %v1960 = vpop.f32.mrb[0].mxu0
  %1961 = vmatprep.mubr.f32.mxu0 0.0
  %1962 = vmatmul.mubr.f32.gmra.mrb[0].mxu0 %v1751
  %v1963 = vpop.f32.mrb[0].mxu0
  %v1964 = vadd.f32 %v1681, %v1963
  %v1965 = vpop.f32.mrb[0].mxu0
  %1966 = vmatprep.mubr.f32.mxu0 0.0
  %1967 = vmatmul.mubr.f32.gmra.mrb[0].mxu0 %v1754
  %v1968 = vpop.f32.mrb[0].mxu0
  %v1969 = vadd.f32 %v1681, %v1968
  %v1970 = vpop.f32.mrb[0].mxu0
  %1971 = vmatprep.mubr.f32.mxu0 0.0
  %1972 = vmatmul.mubr.f32.gmra.mrb[0].mxu0 %v1757
  %v1973 = vpop.f32.mrb[0].mxu0
  %v1974 = vadd.f32 %v1681, %v1973
  %v1975 = vpop.f32.mrb[0].mxu0
  %1976 = vmatprep.mubr.f32.mxu0 0.0
  %1977 = vmatmul.mubr.f32.gmra.mrb[0].mxu0 %v1760
  %v1978 = vpop.f32.mrb[0].mxu0
  %v1979 = vadd.f32 %v1681, %v1978
  %v1980 = vpop.f32.mrb[0].mxu0
  %1981 = vmatprep.mubr.f32.mxu0 0.0
  %1982 = vmatmul.mubr.f32.gmra.mrb[0].mxu0 %v1763
  %v1983 = vpop.f32.mrb[0].mxu0
  %v1984 = vadd.f32 %v1681, %v1983
  %v1985 = vpop.f32.mrb[0].mxu0
  %1986 = vmatprep.mubr.f32.mxu0 0.0
  %1987 = vmatmul.mubr.f32.gmra.mrb[0].mxu0 %v1766
  %v1988 = vpop.f32.mrb[0].mxu0
  %v1989 = vadd.f32 %v1681, %v1988
  %v1990 = vpop.f32.mrb[0].mxu0
  %1991 = vmatprep.mubr.f32.mxu0 0.0
  %1992 = vmatmul.mubr.f32.gmra.mrb[0].mxu0 %v1769
  %v1993 = vpop.f32.mrb[0].mxu0
  %v1994 = vadd.f32 %v1681, %v1993
  %v1995 = vpop.f32.mrb[0].mxu0
  %1996 = vmatprep.mubr.f32.mxu0 0.0
  %1997 = vmatmul.mubr.f32.gmra.mrb[0].mxu0 %v1772
  %v1998 = vpop.f32.mrb[0].mxu0
  %v1999 = vadd.f32 %v1681, %v1998
  %v2000 = vpop.f32.mrb[0].mxu0
  %2001 = vmatprep.mubr.f32.mxu0 0.0
  %2002 = vmatmul.mubr.f32.gmra.mrb[0].mxu0 %v1775
  %v2003 = vpop.f32.mrb[0].mxu0
  %v2004 = vadd.f32 %v1681, %v2003
  %v2005 = vpop.f32.mrb[0].mxu0
  %2006 = vmatprep.mubr.f32.mxu0 0.0
  %2007 = vmatmul.mubr.f32.gmra.mrb[0].mxu0 %v1778
  %v2008 = vpop.f32.mrb[0].mxu0
  %v2009 = vadd.f32 %v1681, %v2008
  %v2010 = vpop.f32.mrb[0].mxu0
  %2011 = vmatprep.mubr.f32.mxu0 0.0
  %2012 = vmatmul.mubr.f32.gmra.mrb[0].mxu0 %v1781
  %v2013 = vpop.f32.mrb[0].mxu0
  %v2014 = vadd.f32 %v1681, %v2013
  %v2015 = vpop.f32.mrb[0].mxu0
  %2016 = vdwg.mxu0
  %2018 = vset.pattern.permute.xlu0 0
  %2019 = vperm.xlu0 %2018, %v110
  %v2020 = vpop.permute.xlu0 %2019
  %2023 = vset.pattern.permute.xlu0 0
  %2024 = vperm.xlu0 %2023, %v111
  %v2025 = vpop.permute.xlu0 %2024
  %2028 = vset.pattern.permute.xlu0 0
  %2029 = vperm.xlu0 %2028, %v112
  %v2030 = vpop.permute.xlu0 %2029
  %2033 = vset.pattern.permute.xlu0 0
  %2034 = vperm.xlu0 %2033, %v113
  %v2035 = vpop.permute.xlu0 %2034
  %2038 = vset.pattern.permute.xlu0 0
  %2039 = vperm.xlu0 %2038, %v114
  %v2040 = vpop.permute.xlu0 %2039
  %2043 = vset.pattern.permute.xlu0 0
  %2044 = vperm.xlu0 %2043, %v115
  %v2045 = vpop.permute.xlu0 %2044
  %2048 = vset.pattern.permute.xlu0 0
  %2049 = vperm.xlu0 %2048, %v116
  %v2050 = vpop.permute.xlu0 %2049
  %2053 = vset.pattern.permute.xlu0 0
  %2054 = vperm.xlu0 %2053, %v117
  %v2055 = vpop.permute.xlu0 %2054
  %2058 = vset.pattern.permute.xlu0 0
  %2059 = vperm.xlu0 %2058, %v118
  %v2060 = vpop.permute.xlu0 %2059
  %2063 = vset.pattern.permute.xlu0 0
  %2064 = vperm.xlu0 %2063, %v119
  %v2065 = vpop.permute.xlu0 %2064
  %2068 = vset.pattern.permute.xlu0 0
  %2069 = vperm.xlu0 %2068, %v120
  %v2070 = vpop.permute.xlu0 %2069
  %2073 = vset.pattern.permute.xlu0 0
  %2074 = vperm.xlu0 %2073, %v121
  %v2075 = vpop.permute.xlu0 %2074
  %2078 = vset.pattern.permute.xlu0 0
  %2079 = vperm.xlu0 %2078, %v122
  %v2080 = vpop.permute.xlu0 %2079
  %2083 = vset.pattern.permute.xlu0 0
  %2084 = vperm.xlu0 %2083, %v123
  %v2085 = vpop.permute.xlu0 %2084
  %2088 = vset.pattern.permute.xlu0 0
  %2089 = vperm.xlu0 %2088, %v124
  %v2090 = vpop.permute.xlu0 %2089
  %2093 = vset.pattern.permute.xlu0 0
  %2094 = vperm.xlu0 %2093, %v125
  %v2095 = vpop.permute.xlu0 %2094
  %2098 = vset.pattern.permute.xlu0 0
  %2099 = vperm.xlu0 %2098, %v126
  %v2100 = vpop.permute.xlu0 %2099
  %2103 = vset.pattern.permute.xlu0 0
  %2104 = vperm.xlu0 %2103, %v127
  %v2105 = vpop.permute.xlu0 %2104
  %2108 = vset.pattern.permute.xlu0 0
  %2109 = vperm.xlu0 %2108, %v128
  %v2110 = vpop.permute.xlu0 %2109
  %2113 = vset.pattern.permute.xlu0 0
  %2114 = vperm.xlu0 %2113, %v129
  %v2115 = vpop.permute.xlu0 %2114
  %2118 = vset.pattern.permute.xlu0 0
  %2119 = vperm.xlu0 %2118, %v130
  %v2120 = vpop.permute.xlu0 %2119
  %2123 = vset.pattern.permute.xlu0 0
  %2124 = vperm.xlu0 %2123, %v131
  %v2125 = vpop.permute.xlu0 %2124
  %2128 = vset.pattern.permute.xlu0 0
  %2129 = vperm.xlu0 %2128, %v132
  %v2130 = vpop.permute.xlu0 %2129
  %2133 = vset.pattern.permute.xlu0 0
  %2134 = vperm.xlu0 %2133, %v133
  %v2135 = vpop.permute.xlu0 %2134
  %2138 = vset.pattern.permute.xlu0 0
  %2139 = vperm.xlu0 %2138, %v134
  %v2140 = vpop.permute.xlu0 %2139
  %2143 = vset.pattern.permute.xlu0 0
  %2144 = vperm.xlu0 %2143, %v135
  %v2145 = vpop.permute.xlu0 %2144
  %2148 = vset.pattern.permute.xlu0 0
  %2149 = vperm.xlu0 %2148, %v136
  %v2150 = vpop.permute.xlu0 %2149
  %2153 = vset.pattern.permute.xlu0 0
  %2154 = vperm.xlu0 %2153, %v137
  %v2155 = vpop.permute.xlu0 %2154
  %2158 = vset.pattern.permute.xlu0 0
  %2159 = vperm.xlu0 %2158, %v138
  %v2160 = vpop.permute.xlu0 %2159
  %2163 = vset.pattern.permute.xlu0 0
  %2164 = vperm.xlu0 %2163, %v139
  %v2165 = vpop.permute.xlu0 %2164
  %2168 = vset.pattern.permute.xlu0 0
  %2169 = vperm.xlu0 %2168, %v140
  %v2170 = vpop.permute.xlu0 %2169
  %2173 = vset.pattern.permute.xlu0 0
  %2174 = vperm.xlu0 %2173, %v141
  %v2175 = vpop.permute.xlu0 %2174
  %2178 = vset.pattern.permute.xlu0 0
  %2179 = vperm.xlu0 %2178, %v142
  %v2180 = vpop.permute.xlu0 %2179
  %v2182 = vmul.f32 %v1854, %v2020
  %v2183 = vmul.f32 %v1859, %v2025
  %v2184 = vmul.f32 %v1864, %v2030
  %v2185 = vmul.f32 %v1869, %v2035
  %v2186 = vmul.f32 %v1874, %v2040
  %v2187 = vmul.f32 %v1879, %v2045
  %v2188 = vmul.f32 %v1884, %v2050
  %v2189 = vmul.f32 %v1889, %v2055
  %v2190 = vmul.f32 %v1894, %v2060
  %v2191 = vmul.f32 %v1899, %v2065
  %v2192 = vmul.f32 %v1904, %v2070
  %v2193 = vmul.f32 %v1909, %v2075
  %v2194 = vmul.f32 %v1914, %v2080
  %v2195 = vmul.f32 %v1919, %v2085
  %v2196 = vmul.f32 %v1924, %v2090
  %v2197 = vmul.f32 %v1929, %v2095
  %v2198 = vmul.f32 %v1934, %v2100
  %v2199 = vmul.f32 %v1939, %v2105
  %v2200 = vmul.f32 %v1944, %v2110
  %v2201 = vmul.f32 %v1949, %v2115
  %v2202 = vmul.f32 %v1954, %v2120
  %v2203 = vmul.f32 %v1959, %v2125
  %v2204 = vmul.f32 %v1964, %v2130
  %v2205 = vmul.f32 %v1969, %v2135
  %v2206 = vmul.f32 %v1974, %v2140
  %v2207 = vmul.f32 %v1979, %v2145
  %v2208 = vmul.f32 %v1984, %v2150
  %v2209 = vmul.f32 %v1989, %v2155
  %v2210 = vmul.f32 %v1994, %v2160
  %v2211 = vmul.f32 %v1999, %v2165
  %v2212 = vmul.f32 %v2004, %v2170
  %v2213 = vmul.f32 %v2009, %v2175
  %v2214 = vmul.f32 %v2014, %v2180
  %v2215 = vsel %vm1643, %v2182, 0.0
  %v2216 = vsel %vm1643, %v2183, 0.0
  %v2217 = vadd.f32 %v2215, %v2216
  %v2218 = vsel %vm1643, %v2184, 0.0
  %v2219 = vadd.f32 %v2217, %v2218
  %v2220 = vsel %vm1643, %v2185, 0.0
  %v2221 = vadd.f32 %v2219, %v2220
  %v2222 = vsel %vm1643, %v2186, 0.0
  %v2223 = vadd.f32 %v2221, %v2222
  %v2224 = vsel %vm1643, %v2187, 0.0
  %v2225 = vadd.f32 %v2223, %v2224
  %v2226 = vsel %vm1643, %v2188, 0.0
  %v2227 = vadd.f32 %v2225, %v2226
  %v2228 = vsel %vm1643, %v2189, 0.0
  %v2229 = vadd.f32 %v2227, %v2228
  %v2230 = vsel %vm1643, %v2190, 0.0
  %v2231 = vadd.f32 %v2229, %v2230
  %v2232 = vsel %vm1643, %v2191, 0.0
  %v2233 = vadd.f32 %v2231, %v2232
  %v2234 = vsel %vm1643, %v2192, 0.0
  %v2235 = vadd.f32 %v2233, %v2234
  %v2236 = vsel %vm1643, %v2193, 0.0
  %v2237 = vadd.f32 %v2235, %v2236
  %v2238 = vsel %vm1643, %v2194, 0.0
  %v2239 = vadd.f32 %v2237, %v2238
  %v2240 = vsel %vm1643, %v2195, 0.0
  %v2241 = vadd.f32 %v2239, %v2240
  %v2242 = vsel %vm1643, %v2196, 0.0
  %v2243 = vadd.f32 %v2241, %v2242
  %v2244 = vsel %vm1643, %v2197, 0.0
  %v2245 = vadd.f32 %v2243, %v2244
  %v2246 = vsel %vm1643, %v2198, 0.0
  %v2247 = vadd.f32 %v2245, %v2246
  %v2248 = vsel %vm1643, %v2199, 0.0
  %v2249 = vadd.f32 %v2247, %v2248
  %v2250 = vsel %vm1643, %v2200, 0.0
  %v2251 = vadd.f32 %v2249, %v2250
  %v2252 = vsel %vm1643, %v2201, 0.0
  %v2253 = vadd.f32 %v2251, %v2252
  %v2254 = vsel %vm1643, %v2202, 0.0
  %v2255 = vadd.f32 %v2253, %v2254
  %v2256 = vsel %vm1643, %v2203, 0.0
  %v2257 = vadd.f32 %v2255, %v2256
  %v2258 = vsel %vm1643, %v2204, 0.0
  %v2259 = vadd.f32 %v2257, %v2258
  %v2260 = vsel %vm1643, %v2205, 0.0
  %v2261 = vadd.f32 %v2259, %v2260
  %v2262 = vsel %vm1643, %v2206, 0.0
  %v2263 = vadd.f32 %v2261, %v2262
  %v2264 = vsel %vm1643, %v2207, 0.0
  %v2265 = vadd.f32 %v2263, %v2264
  %v2266 = vsel %vm1643, %v2208, 0.0
  %v2267 = vadd.f32 %v2265, %v2266
  %v2268 = vsel %vm1643, %v2209, 0.0
  %v2269 = vadd.f32 %v2267, %v2268
  %v2270 = vsel %vm1643, %v2210, 0.0
  %v2271 = vadd.f32 %v2269, %v2270
  %v2272 = vsel %vm1643, %v2211, 0.0
  %v2273 = vadd.f32 %v2271, %v2272
  %v2274 = vsel %vm1643, %v2212, 0.0
  %v2275 = vadd.f32 %v2273, %v2274
  %v2276 = vsel %vm1643, %v2213, 0.0
  %v2277 = vadd.f32 %v2275, %v2276
  %vm2278 = vcmask 253952
  %v2279 = vsel %vm2278, %v2214, 0.0
  %v2280 = vadd.f32 %v2277, %v2279
  %v2281 = vrot.slane %v2280, 4
  %v2282 = vadd.f32 %v2280, %v2281
  %v2283 = vrot.slane %v2282, 2
  %v2284 = vadd.f32 %v2282, %v2283
  %v2285 = vrot.slane %v2284, 1
  %v2286 = vadd.f32 %v2284, %v2285
  %v2287 = vsel %vm1643, %v2286, 0.0
  %2288 = vadd.xlane.f32.xlu0 %v2287
  %v2289 = vpop.xlane.xlu0 %2288
  %v2290 = vmul.f32 %v2289, 0.00018491125
  %v2291 = vsub.f32 %v2182, %v2290
  %v2292 = vsub.f32 %v2183, %v2290
  %v2293 = vsub.f32 %v2184, %v2290
  %v2294 = vsub.f32 %v2185, %v2290
  %v2295 = vsub.f32 %v2186, %v2290
  %v2296 = vsub.f32 %v2187, %v2290
  %v2297 = vsub.f32 %v2188, %v2290
  %v2298 = vsub.f32 %v2189, %v2290
  %v2299 = vsub.f32 %v2190, %v2290
  %v2300 = vsub.f32 %v2191, %v2290
  %v2301 = vsub.f32 %v2192, %v2290
  %v2302 = vsub.f32 %v2193, %v2290
  %v2303 = vsub.f32 %v2194, %v2290
  %v2304 = vsub.f32 %v2195, %v2290
  %v2305 = vsub.f32 %v2196, %v2290
  %v2306 = vsub.f32 %v2197, %v2290
  %v2307 = vsub.f32 %v2198, %v2290
  %v2308 = vsub.f32 %v2199, %v2290
  %v2309 = vsub.f32 %v2200, %v2290
  %v2310 = vsub.f32 %v2201, %v2290
  %v2311 = vsub.f32 %v2202, %v2290
  %v2312 = vsub.f32 %v2203, %v2290
  %v2313 = vsub.f32 %v2204, %v2290
  %v2314 = vsub.f32 %v2205, %v2290
  %v2315 = vsub.f32 %v2206, %v2290
  %v2316 = vsub.f32 %v2207, %v2290
  %v2317 = vsub.f32 %v2208, %v2290
  %v2318 = vsub.f32 %v2209, %v2290
  %v2319 = vsub.f32 %v2210, %v2290
  %v2320 = vsub.f32 %v2211, %v2290
  %v2321 = vsub.f32 %v2212, %v2290
  %v2322 = vsub.f32 %v2213, %v2290
  %v2323 = vsub.f32 %v2214, %v2290
  %v2324 = vmul.f32 %v2291, %v2020
  %v2325 = vmul.f32 %v2292, %v2025
  %v2326 = vmul.f32 %v2293, %v2030
  %v2327 = vmul.f32 %v2294, %v2035
  %v2328 = vmul.f32 %v2295, %v2040
  %v2329 = vmul.f32 %v2296, %v2045
  %v2330 = vmul.f32 %v2297, %v2050
  %v2331 = vmul.f32 %v2298, %v2055
  %v2332 = vmul.f32 %v2299, %v2060
  %v2333 = vmul.f32 %v2300, %v2065
  %v2334 = vmul.f32 %v2301, %v2070
  %v2335 = vmul.f32 %v2302, %v2075
  %v2336 = vmul.f32 %v2303, %v2080
  %v2337 = vmul.f32 %v2304, %v2085
  %v2338 = vmul.f32 %v2305, %v2090
  %v2339 = vmul.f32 %v2306, %v2095
  %v2340 = vmul.f32 %v2307, %v2100
  %v2341 = vmul.f32 %v2308, %v2105
  %v2342 = vmul.f32 %v2309, %v2110
  %v2343 = vmul.f32 %v2310, %v2115
  %v2344 = vmul.f32 %v2311, %v2120
  %v2345 = vmul.f32 %v2312, %v2125
  %v2346 = vmul.f32 %v2313, %v2130
  %v2347 = vmul.f32 %v2314, %v2135
  %v2348 = vmul.f32 %v2315, %v2140
  %v2349 = vmul.f32 %v2316, %v2145
  %v2350 = vmul.f32 %v2317, %v2150
  %v2351 = vmul.f32 %v2318, %v2155
  %v2352 = vmul.f32 %v2319, %v2160
  %v2353 = vmul.f32 %v2320, %v2165
  %v2354 = vmul.f32 %v2321, %v2170
  %v2355 = vmul.f32 %v2322, %v2175
  %v2356 = vmul.f32 %v2323, %v2180
  %v2357 = vmul.f32 %v2324, %v2324
  %v2358 = vmul.f32 %v2325, %v2325
  %v2359 = vmul.f32 %v2326, %v2326
  %v2360 = vmul.f32 %v2327, %v2327
  %v2361 = vmul.f32 %v2328, %v2328
  %v2362 = vmul.f32 %v2329, %v2329
  %v2363 = vmul.f32 %v2330, %v2330
  %v2364 = vmul.f32 %v2331, %v2331
  %v2365 = vmul.f32 %v2332, %v2332
  %v2366 = vmul.f32 %v2333, %v2333
  %v2367 = vmul.f32 %v2334, %v2334
  %v2368 = vmul.f32 %v2335, %v2335
  %v2369 = vmul.f32 %v2336, %v2336
  %v2370 = vmul.f32 %v2337, %v2337
  %v2371 = vmul.f32 %v2338, %v2338
  %v2372 = vmul.f32 %v2339, %v2339
  %v2373 = vmul.f32 %v2340, %v2340
  %v2374 = vmul.f32 %v2341, %v2341
  %v2375 = vmul.f32 %v2342, %v2342
  %v2376 = vmul.f32 %v2343, %v2343
  %v2377 = vmul.f32 %v2344, %v2344
  %v2378 = vmul.f32 %v2345, %v2345
  %v2379 = vmul.f32 %v2346, %v2346
  %v2380 = vmul.f32 %v2347, %v2347
  %v2381 = vmul.f32 %v2348, %v2348
  %v2382 = vmul.f32 %v2349, %v2349
  %v2383 = vmul.f32 %v2350, %v2350
  %v2384 = vmul.f32 %v2351, %v2351
  %v2385 = vmul.f32 %v2352, %v2352
  %v2386 = vmul.f32 %v2353, %v2353
  %v2387 = vmul.f32 %v2354, %v2354
  %v2388 = vmul.f32 %v2355, %v2355
  %v2389 = vmul.f32 %v2356, %v2356
  %v2390 = vsel %vm1643, %v2357, 0.0
  %v2391 = vsel %vm1643, %v2358, 0.0
  %v2392 = vadd.f32 %v2390, %v2391
  %v2393 = vsel %vm1643, %v2359, 0.0
  %v2394 = vadd.f32 %v2392, %v2393
  %v2395 = vsel %vm1643, %v2360, 0.0
  %v2396 = vadd.f32 %v2394, %v2395
  %v2397 = vsel %vm1643, %v2361, 0.0
  %v2398 = vadd.f32 %v2396, %v2397
  %v2399 = vsel %vm1643, %v2362, 0.0
  %v2400 = vadd.f32 %v2398, %v2399
  %v2401 = vsel %vm1643, %v2363, 0.0
  %v2402 = vadd.f32 %v2400, %v2401
  %v2403 = vsel %vm1643, %v2364, 0.0
  %v2404 = vadd.f32 %v2402, %v2403
  %v2405 = vsel %vm1643, %v2365, 0.0
  %v2406 = vadd.f32 %v2404, %v2405
  %v2407 = vsel %vm1643, %v2366, 0.0
  %v2408 = vadd.f32 %v2406, %v2407
  %v2409 = vsel %vm1643, %v2367, 0.0
  %v2410 = vadd.f32 %v2408, %v2409
  %v2411 = vsel %vm1643, %v2368, 0.0
  %v2412 = vadd.f32 %v2410, %v2411
  %v2413 = vsel %vm1643, %v2369, 0.0
  %v2414 = vadd.f32 %v2412, %v2413
  %v2415 = vsel %vm1643, %v2370, 0.0
  %v2416 = vadd.f32 %v2414, %v2415
  %v2417 = vsel %vm1643, %v2371, 0.0
  %v2418 = vadd.f32 %v2416, %v2417
  %v2419 = vsel %vm1643, %v2372, 0.0
  %v2420 = vadd.f32 %v2418, %v2419
  %v2421 = vsel %vm1643, %v2373, 0.0
  %v2422 = vadd.f32 %v2420, %v2421
  %v2423 = vsel %vm1643, %v2374, 0.0
  %v2424 = vadd.f32 %v2422, %v2423
  %v2425 = vsel %vm1643, %v2375, 0.0
  %v2426 = vadd.f32 %v2424, %v2425
  %v2427 = vsel %vm1643, %v2376, 0.0
  %v2428 = vadd.f32 %v2426, %v2427
  %v2429 = vsel %vm1643, %v2377, 0.0
  %v2430 = vadd.f32 %v2428, %v2429
  %v2431 = vsel %vm1643, %v2378, 0.0
  %v2432 = vadd.f32 %v2430, %v2431
  %v2433 = vsel %vm1643, %v2379, 0.0
  %v2434 = vadd.f32 %v2432, %v2433
  %v2435 = vsel %vm1643, %v2380, 0.0
  %v2436 = vadd.f32 %v2434, %v2435
  %v2437 = vsel %vm1643, %v2381, 0.0
  %v2438 = vadd.f32 %v2436, %v2437
  %v2439 = vsel %vm1643, %v2382, 0.0
  %v2440 = vadd.f32 %v2438, %v2439
  %v2441 = vsel %vm1643, %v2383, 0.0
  %v2442 = vadd.f32 %v2440, %v2441
  %v2443 = vsel %vm1643, %v2384, 0.0
  %v2444 = vadd.f32 %v2442, %v2443
  %v2445 = vsel %vm1643, %v2385, 0.0
  %v2446 = vadd.f32 %v2444, %v2445
  %v2447 = vsel %vm1643, %v2386, 0.0
  %v2448 = vadd.f32 %v2446, %v2447
  %v2449 = vsel %vm1643, %v2387, 0.0
  %v2450 = vadd.f32 %v2448, %v2449
  %v2451 = vsel %vm1643, %v2388, 0.0
  %v2452 = vadd.f32 %v2450, %v2451
  %v2453 = vsel %vm2278, %v2389, 0.0
  %v2454 = vadd.f32 %v2452, %v2453
  %v2455 = vrot.slane %v2454, 4
  %v2456 = vadd.f32 %v2454, %v2455
  %v2457 = vrot.slane %v2456, 2
  %v2458 = vadd.f32 %v2456, %v2457
  %v2459 = vrot.slane %v2458, 1
  %v2460 = vadd.f32 %v2458, %v2459
  %v2461 = vsel %vm1643, %v2460, 0.0
  %2462 = vadd.xlane.f32.xlu0 %v2461
  %v2463 = vpop.xlane.xlu0 %2462
  %v2464 = vmul.f32 %v2463, 0.00018491125
  %v2465 = vadd.f32 %v2464, 1e-05
  %v2466 = vrsqrt.pop %v2465
  %v2467 = vmul.f32 %v2291, %v2466
  %v2468 = vmul.f32 %v2292, %v2466
  %v2469 = vmul.f32 %v2293, %v2466
  %v2470 = vmul.f32 %v2294, %v2466
  %v2471 = vmul.f32 %v2295, %v2466
  %v2472 = vmul.f32 %v2296, %v2466
  %v2473 = vmul.f32 %v2297, %v2466
  %v2474 = vmul.f32 %v2298, %v2466
  %v2475 = vmul.f32 %v2299, %v2466
  %v2476 = vmul.f32 %v2300, %v2466
  %v2477 = vmul.f32 %v2301, %v2466
  %v2478 = vmul.f32 %v2302, %v2466
  %v2479 = vmul.f32 %v2303, %v2466
  %v2480 = vmul.f32 %v2304, %v2466
  %v2481 = vmul.f32 %v2305, %v2466
  %v2482 = vmul.f32 %v2306, %v2466
  %v2483 = vmul.f32 %v2307, %v2466
  %v2484 = vmul.f32 %v2308, %v2466
  %v2485 = vmul.f32 %v2309, %v2466
  %v2486 = vmul.f32 %v2310, %v2466
  %v2487 = vmul.f32 %v2311, %v2466
  %v2488 = vmul.f32 %v2312, %v2466
  %v2489 = vmul.f32 %v2313, %v2466
  %v2490 = vmul.f32 %v2314, %v2466
  %v2491 = vmul.f32 %v2315, %v2466
  %v2492 = vmul.f32 %v2316, %v2466
  %v2493 = vmul.f32 %v2317, %v2466
  %v2494 = vmul.f32 %v2318, %v2466
  %v2495 = vmul.f32 %v2319, %v2466
  %v2496 = vmul.f32 %v2320, %v2466
  %v2497 = vmul.f32 %v2321, %v2466
  %v2498 = vmul.f32 %v2322, %v2466
  %v2499 = vmul.f32 %v2323, %v2466
  %v2500 = vmul.f32 %v2467, %v44
  %v2501 = vmul.f32 %v2468, %v45
  %v2502 = vmul.f32 %v2469, %v46
  %v2503 = vmul.f32 %v2470, %v47
  %v2504 = vmul.f32 %v2471, %v48
  %v2505 = vmul.f32 %v2472, %v49
  %v2506 = vmul.f32 %v2473, %v50
  %v2507 = vmul.f32 %v2474, %v51
  %v2508 = vmul.f32 %v2475, %v52
  %v2509 = vmul.f32 %v2476, %v53
  %v2510 = vmul.f32 %v2477, %v54
  %v2511 = vmul.f32 %v2478, %v55
  %v2512 = vmul.f32 %v2479, %v56
  %v2513 = vmul.f32 %v2480, %v57
  %v2514 = vmul.f32 %v2481, %v58
  %v2515 = vmul.f32 %v2482, %v59
  %v2516 = vmul.f32 %v2483, %v60
  %v2517 = vmul.f32 %v2484, %v61
  %v2518 = vmul.f32 %v2485, %v62
  %v2519 = vmul.f32 %v2486, %v63
  %v2520 = vmul.f32 %v2487, %v64
  %v2521 = vmul.f32 %v2488, %v65
  %v2522 = vmul.f32 %v2489, %v66
  %v2523 = vmul.f32 %v2490, %v67
  %v2524 = vmul.f32 %v2491, %v68
  %v2525 = vmul.f32 %v2492, %v69
  %v2526 = vmul.f32 %v2493, %v70
  %v2527 = vmul.f32 %v2494, %v71
  %v2528 = vmul.f32 %v2495, %v72
  %v2529 = vmul.f32 %v2496, %v73
  %v2530 = vmul.f32 %v2497, %v74
  %v2531 = vmul.f32 %v2498, %v75
  %v2532 = vmul.f32 %v2499, %v76
  %v2533 = vadd.f32 %v2500, %v77
  %v2534 = vadd.f32 %v2501, %v78
  %v2535 = vadd.f32 %v2502, %v79
  %v2536 = vadd.f32 %v2503, %v80
  %v2537 = vadd.f32 %v2504, %v81
  %v2538 = vadd.f32 %v2505, %v82
  %v2539 = vadd.f32 %v2506, %v83
  %v2540 = vadd.f32 %v2507, %v84
  %v2541 = vadd.f32 %v2508, %v85
  %v2542 = vadd.f32 %v2509, %v86
  %v2543 = vadd.f32 %v2510, %v87
  %v2544 = vadd.f32 %v2511, %v88
  %v2545 = vadd.f32 %v2512, %v89
  %v2546 = vadd.f32 %v2513, %v90
  %v2547 = vadd.f32 %v2514, %v91
  %v2548 = vadd.f32 %v2515, %v92
  %v2549 = vadd.f32 %v2516, %v93
  %v2550 = vadd.f32 %v2517, %v94
  %v2551 = vadd.f32 %v2518, %v95
  %v2552 = vadd.f32 %v2519, %v96
  %v2553 = vadd.f32 %v2520, %v97
  %v2554 = vadd.f32 %v2521, %v98
  %v2555 = vadd.f32 %v2522, %v99
  %v2556 = vadd.f32 %v2523, %v100
  %v2557 = vadd.f32 %v2524, %v101
  %v2558 = vadd.f32 %v2525, %v102
  %v2559 = vadd.f32 %v2526, %v103
  %v2560 = vadd.f32 %v2527, %v104
  %v2561 = vadd.f32 %v2528, %v105
  %v2562 = vadd.f32 %v2529, %v106
  %v2563 = vadd.f32 %v2530, %v107
  %v2564 = vadd.f32 %v2531, %v108
  %v2565 = vadd.f32 %v2532, %v109
  %v2566 = vmax.f32 %v2533, 0.0
  %v2567 = vmax.f32 %v2534, 0.0
  %v2568 = vmax.f32 %v2535, 0.0
  %v2569 = vmax.f32 %v2536, 0.0
  %v2570 = vmax.f32 %v2537, 0.0
  %v2571 = vmax.f32 %v2538, 0.0
  %v2572 = vmax.f32 %v2539, 0.0
  %v2573 = vmax.f32 %v2540, 0.0
  %v2574 = vmax.f32 %v2541, 0.0
  %v2575 = vmax.f32 %v2542, 0.0
  %v2576 = vmax.f32 %v2543, 0.0
  %v2577 = vmax.f32 %v2544, 0.0
  %v2578 = vmax.f32 %v2545, 0.0
  %v2579 = vmax.f32 %v2546, 0.0
  %v2580 = vmax.f32 %v2547, 0.0
  %v2581 = vmax.f32 %v2548, 0.0
  %v2582 = vmax.f32 %v2549, 0.0
  %v2583 = vmax.f32 %v2550, 0.0
  %v2584 = vmax.f32 %v2551, 0.0
  %v2585 = vmax.f32 %v2552, 0.0
  %v2586 = vmax.f32 %v2553, 0.0
  %v2587 = vmax.f32 %v2554, 0.0
  %v2588 = vmax.f32 %v2555, 0.0
  %v2589 = vmax.f32 %v2556, 0.0
  %v2590 = vmax.f32 %v2557, 0.0
  %v2591 = vmax.f32 %v2558, 0.0
  %v2592 = vmax.f32 %v2559, 0.0
  %v2593 = vmax.f32 %v2560, 0.0
  %v2594 = vmax.f32 %v2561, 0.0
  %v2595 = vmax.f32 %v2562, 0.0
  %v2596 = vmax.f32 %v2563, 0.0
  %v2597 = vmax.f32 %v2564, 0.0
  %v2598 = vmax.f32 %v2565, 0.0
  %v2628 = vrot.slane %v2566, 1
  %v2629 = vrot.slane %v2567, 1
  %v2630 = vsel %vm337, %v2628, %v2629
  %v2631 = vrot.slane %v2568, 1
  %v2632 = vsel %vm337, %v2629, %v2631
  %v2633 = vrot.slane %v2569, 1
  %v2634 = vsel %vm337, %v2631, %v2633
  %v2635 = vrot.slane %v2570, 1
  %v2636 = vsel %vm337, %v2633, %v2635
  %v2637 = vrot.slane %v2571, 1
  %v2638 = vsel %vm337, %v2635, %v2637
  %v2639 = vrot.slane %v2572, 1
  %v2640 = vsel %vm337, %v2637, %v2639
  %v2641 = vrot.slane %v2573, 1
  %v2642 = vsel %vm337, %v2639, %v2641
  %v2643 = vrot.slane %v2574, 1
  %v2644 = vsel %vm337, %v2641, %v2643
  %v2645 = vrot.slane %v2575, 1
  %v2646 = vsel %vm337, %v2643, %v2645
  %v2647 = vrot.slane %v2576, 1
  %v2648 = vsel %vm337, %v2645, %v2647
  %v2649 = vrot.slane %v2577, 1
  %v2650 = vsel %vm337, %v2647, %v2649
  %v2651 = vrot.slane %v2578, 1
  %v2652 = vsel %vm337, %v2649, %v2651
  %v2653 = vrot.slane %v2579, 1
  %v2654 = vsel %vm337, %v2651, %v2653
  %v2655 = vrot.slane %v2580, 1
  %v2656 = vsel %vm337, %v2653, %v2655
  %v2657 = vrot.slane %v2581, 1
  %v2658 = vsel %vm337, %v2655, %v2657
  %v2659 = vrot.slane %v2582, 1
  %v2660 = vsel %vm337, %v2657, %v2659
  %v2661 = vrot.slane %v2583, 1
  %v2662 = vsel %vm337, %v2659, %v2661
  %v2663 = vrot.slane %v2584, 1
  %v2664 = vsel %vm337, %v2661, %v2663
  %v2665 = vrot.slane %v2585, 1
  %v2666 = vsel %vm337, %v2663, %v2665
  %v2667 = vrot.slane %v2586, 1
  %v2668 = vsel %vm337, %v2665, %v2667
  %v2669 = vrot.slane %v2587, 1
  %v2670 = vsel %vm337, %v2667, %v2669
  %v2671 = vrot.slane %v2588, 1
  %v2672 = vsel %vm337, %v2669, %v2671
  %v2673 = vrot.slane %v2589, 1
  %v2674 = vsel %vm337, %v2671, %v2673
  %v2675 = vrot.slane %v2590, 1
  %v2676 = vsel %vm337, %v2673, %v2675
  %v2677 = vrot.slane %v2591, 1
  %v2678 = vsel %vm337, %v2675, %v2677
  %v2679 = vrot.slane %v2592, 1
  %v2680 = vsel %vm337, %v2677, %v2679
  %v2681 = vrot.slane %v2593, 1
  %v2682 = vsel %vm337, %v2679, %v2681
  %v2683 = vrot.slane %v2594, 1
  %v2684 = vsel %vm337, %v2681, %v2683
  %2685 = vrot.lane.b32.xlu0 %v2630, 32
  %v2686 = vpop.permute.xlu0 %2685
  %2687 = vrot.lane.b32.xlu0 %v2632, 32
  %v2688 = vpop.permute.xlu0 %2687
  %2689 = vrot.lane.b32.xlu0 %v2634, 32
  %v2690 = vpop.permute.xlu0 %2689
  %2691 = vrot.lane.b32.xlu0 %v2636, 32
  %v2692 = vpop.permute.xlu0 %2691
  %2693 = vrot.lane.b32.xlu0 %v2638, 32
  %v2694 = vpop.permute.xlu0 %2693
  %2695 = vrot.lane.b32.xlu0 %v2640, 32
  %v2696 = vpop.permute.xlu0 %2695
  %2697 = vrot.lane.b32.xlu0 %v2642, 32
  %v2698 = vpop.permute.xlu0 %2697
  %2699 = vrot.lane.b32.xlu0 %v2644, 32
  %v2700 = vpop.permute.xlu0 %2699
  %2701 = vrot.lane.b32.xlu0 %v2646, 32
  %v2702 = vpop.permute.xlu0 %2701
  %2703 = vrot.lane.b32.xlu0 %v2648, 32
  %v2704 = vpop.permute.xlu0 %2703
  %2705 = vrot.lane.b32.xlu0 %v2650, 32
  %v2706 = vpop.permute.xlu0 %2705
  %2707 = vrot.lane.b32.xlu0 %v2652, 32
  %v2708 = vpop.permute.xlu0 %2707
  %2709 = vrot.lane.b32.xlu0 %v2654, 32
  %v2710 = vpop.permute.xlu0 %2709
  %2711 = vrot.lane.b32.xlu0 %v2656, 32
  %v2712 = vpop.permute.xlu0 %2711
  %2713 = vrot.lane.b32.xlu0 %v2658, 32
  %v2714 = vpop.permute.xlu0 %2713
  %2715 = vrot.lane.b32.xlu0 %v2660, 32
  %v2716 = vpop.permute.xlu0 %2715
  %2717 = vrot.lane.b32.xlu0 %v2662, 32
  %v2718 = vpop.permute.xlu0 %2717
  %2719 = vrot.lane.b32.xlu0 %v2664, 32
  %v2720 = vpop.permute.xlu0 %2719
  %2721 = vrot.lane.b32.xlu0 %v2666, 32
  %v2722 = vpop.permute.xlu0 %2721
  %2723 = vrot.lane.b32.xlu0 %v2668, 32
  %v2724 = vpop.permute.xlu0 %2723
  %2725 = vrot.lane.b32.xlu0 %v2670, 32
  %v2726 = vpop.permute.xlu0 %2725
  %2727 = vrot.lane.b32.xlu0 %v2672, 32
  %v2728 = vpop.permute.xlu0 %2727
  %2729 = vrot.lane.b32.xlu0 %v2674, 32
  %v2730 = vpop.permute.xlu0 %2729
  %2731 = vrot.lane.b32.xlu0 %v2676, 32
  %v2732 = vpop.permute.xlu0 %2731
  %2733 = vrot.lane.b32.xlu0 %v2678, 32
  %v2734 = vpop.permute.xlu0 %2733
  %2735 = vrot.lane.b32.xlu0 %v2680, 32
  %v2736 = vpop.permute.xlu0 %2735
  %2737 = vrot.lane.b32.xlu0 %v2682, 32
  %v2738 = vpop.permute.xlu0 %2737
  %2739 = vrot.lane.b32.xlu0 %v2684, 32
  %v2740 = vpop.permute.xlu0 %2739
  %2741 = vrot.lane.b32.xlu0 %v2683, 32
  %v2742 = vpop.permute.xlu0 %2741
  %v2772 = vrot.slane %v2566, 2
  %v2773 = vrot.slane %v2567, 2
  %v2774 = vsel %vm502, %v2772, %v2773
  %v2775 = vrot.slane %v2568, 2
  %v2776 = vsel %vm502, %v2773, %v2775
  %v2777 = vrot.slane %v2569, 2
  %v2778 = vsel %vm502, %v2775, %v2777
  %v2779 = vrot.slane %v2570, 2
  %v2780 = vsel %vm502, %v2777, %v2779
  %v2781 = vrot.slane %v2571, 2
  %v2782 = vsel %vm502, %v2779, %v2781
  %v2783 = vrot.slane %v2572, 2
  %v2784 = vsel %vm502, %v2781, %v2783
  %v2785 = vrot.slane %v2573, 2
  %v2786 = vsel %vm502, %v2783, %v2785
  %v2787 = vrot.slane %v2574, 2
  %v2788 = vsel %vm502, %v2785, %v2787
  %v2789 = vrot.slane %v2575, 2
  %v2790 = vsel %vm502, %v2787, %v2789
  %v2791 = vrot.slane %v2576, 2
  %v2792 = vsel %vm502, %v2789, %v2791
  %v2793 = vrot.slane %v2577, 2
  %v2794 = vsel %vm502, %v2791, %v2793
  %v2795 = vrot.slane %v2578, 2
  %v2796 = vsel %vm502, %v2793, %v2795
  %v2797 = vrot.slane %v2579, 2
  %v2798 = vsel %vm502, %v2795, %v2797
  %v2799 = vrot.slane %v2580, 2
  %v2800 = vsel %vm502, %v2797, %v2799
  %v2801 = vrot.slane %v2581, 2
  %v2802 = vsel %vm502, %v2799, %v2801
  %v2803 = vrot.slane %v2582, 2
  %v2804 = vsel %vm502, %v2801, %v2803
  %v2805 = vrot.slane %v2583, 2
  %v2806 = vsel %vm502, %v2803, %v2805
  %v2807 = vrot.slane %v2584, 2
  %v2808 = vsel %vm502, %v2805, %v2807
  %v2809 = vrot.slane %v2585, 2
  %v2810 = vsel %vm502, %v2807, %v2809
  %v2811 = vrot.slane %v2586, 2
  %v2812 = vsel %vm502, %v2809, %v2811
  %v2813 = vrot.slane %v2587, 2
  %v2814 = vsel %vm502, %v2811, %v2813
  %v2815 = vrot.slane %v2588, 2
  %v2816 = vsel %vm502, %v2813, %v2815
  %v2817 = vrot.slane %v2589, 2
  %v2818 = vsel %vm502, %v2815, %v2817
  %v2819 = vrot.slane %v2590, 2
  %v2820 = vsel %vm502, %v2817, %v2819
  %v2821 = vrot.slane %v2591, 2
  %v2822 = vsel %vm502, %v2819, %v2821
  %v2823 = vrot.slane %v2592, 2
  %v2824 = vsel %vm502, %v2821, %v2823
  %v2825 = vrot.slane %v2593, 2
  %v2826 = vsel %vm502, %v2823, %v2825
  %v2827 = vrot.slane %v2594, 2
  %v2828 = vsel %vm502, %v2825, %v2827
  %2829 = vrot.lane.b32.xlu0 %v2774, 64
  %v2830 = vpop.permute.xlu0 %2829
  %2831 = vrot.lane.b32.xlu0 %v2776, 64
  %v2832 = vpop.permute.xlu0 %2831
  %2833 = vrot.lane.b32.xlu0 %v2778, 64
  %v2834 = vpop.permute.xlu0 %2833
  %2835 = vrot.lane.b32.xlu0 %v2780, 64
  %v2836 = vpop.permute.xlu0 %2835
  %2837 = vrot.lane.b32.xlu0 %v2782, 64
  %v2838 = vpop.permute.xlu0 %2837
  %2839 = vrot.lane.b32.xlu0 %v2784, 64
  %v2840 = vpop.permute.xlu0 %2839
  %2841 = vrot.lane.b32.xlu0 %v2786, 64
  %v2842 = vpop.permute.xlu0 %2841
  %2843 = vrot.lane.b32.xlu0 %v2788, 64
  %v2844 = vpop.permute.xlu0 %2843
  %2845 = vrot.lane.b32.xlu0 %v2790, 64
  %v2846 = vpop.permute.xlu0 %2845
  %2847 = vrot.lane.b32.xlu0 %v2792, 64
  %v2848 = vpop.permute.xlu0 %2847
  %2849 = vrot.lane.b32.xlu0 %v2794, 64
  %v2850 = vpop.permute.xlu0 %2849
  %2851 = vrot.lane.b32.xlu0 %v2796, 64
  %v2852 = vpop.permute.xlu0 %2851
  %2853 = vrot.lane.b32.xlu0 %v2798, 64
  %v2854 = vpop.permute.xlu0 %2853
  %2855 = vrot.lane.b32.xlu0 %v2800, 64
  %v2856 = vpop.permute.xlu0 %2855
  %2857 = vrot.lane.b32.xlu0 %v2802, 64
  %v2858 = vpop.permute.xlu0 %2857
  %2859 = vrot.lane.b32.xlu0 %v2804, 64
  %v2860 = vpop.permute.xlu0 %2859
  %2861 = vrot.lane.b32.xlu0 %v2806, 64
  %v2862 = vpop.permute.xlu0 %2861
  %2863 = vrot.lane.b32.xlu0 %v2808, 64
  %v2864 = vpop.permute.xlu0 %2863
  %2865 = vrot.lane.b32.xlu0 %v2810, 64
  %v2866 = vpop.permute.xlu0 %2865
  %2867 = vrot.lane.b32.xlu0 %v2812, 64
  %v2868 = vpop.permute.xlu0 %2867
  %2869 = vrot.lane.b32.xlu0 %v2814, 64
  %v2870 = vpop.permute.xlu0 %2869
  %2871 = vrot.lane.b32.xlu0 %v2816, 64
  %v2872 = vpop.permute.xlu0 %2871
  %2873 = vrot.lane.b32.xlu0 %v2818, 64
  %v2874 = vpop.permute.xlu0 %2873
  %2875 = vrot.lane.b32.xlu0 %v2820, 64
  %v2876 = vpop.permute.xlu0 %2875
  %2877 = vrot.lane.b32.xlu0 %v2822, 64
  %v2878 = vpop.permute.xlu0 %2877
  %2879 = vrot.lane.b32.xlu0 %v2824, 64
  %v2880 = vpop.permute.xlu0 %2879
  %2881 = vrot.lane.b32.xlu0 %v2826, 64
  %v2882 = vpop.permute.xlu0 %2881
  %2883 = vrot.lane.b32.xlu0 %v2828, 64
  %v2884 = vpop.permute.xlu0 %2883
  %2885 = vrot.lane.b32.xlu0 %v2827, 64
  %v2886 = vpop.permute.xlu0 %2885
  %v2917 = vrot.slane %v2567, 7
  %v2918 = vrot.slane %v2568, 7
  %v2919 = vsel %vm668, %v2917, %v2918
  %v2920 = vrot.slane %v2569, 7
  %v2921 = vsel %vm668, %v2918, %v2920
  %v2922 = vrot.slane %v2570, 7
  %v2923 = vsel %vm668, %v2920, %v2922
  %v2924 = vrot.slane %v2571, 7
  %v2925 = vsel %vm668, %v2922, %v2924
  %v2926 = vrot.slane %v2572, 7
  %v2927 = vsel %vm668, %v2924, %v2926
  %v2928 = vrot.slane %v2573, 7
  %v2929 = vsel %vm668, %v2926, %v2928
  %v2930 = vrot.slane %v2574, 7
  %v2931 = vsel %vm668, %v2928, %v2930
  %v2932 = vrot.slane %v2575, 7
  %v2933 = vsel %vm668, %v2930, %v2932
  %v2934 = vrot.slane %v2576, 7
  %v2935 = vsel %vm668, %v2932, %v2934
  %v2936 = vrot.slane %v2577, 7
  %v2937 = vsel %vm668, %v2934, %v2936
  %v2938 = vrot.slane %v2578, 7
  %v2939 = vsel %vm668, %v2936, %v2938
  %v2940 = vrot.slane %v2579, 7
  %v2941 = vsel %vm668, %v2938, %v2940
  %v2942 = vrot.slane %v2580, 7
  %v2943 = vsel %vm668, %v2940, %v2942
  %v2944 = vrot.slane %v2581, 7
  %v2945 = vsel %vm668, %v2942, %v2944
  %v2946 = vrot.slane %v2582, 7
  %v2947 = vsel %vm668, %v2944, %v2946
  %v2948 = vrot.slane %v2583, 7
  %v2949 = vsel %vm668, %v2946, %v2948
  %v2950 = vrot.slane %v2584, 7
  %v2951 = vsel %vm668, %v2948, %v2950
  %v2952 = vrot.slane %v2585, 7
  %v2953 = vsel %vm668, %v2950, %v2952
  %v2954 = vrot.slane %v2586, 7
  %v2955 = vsel %vm668, %v2952, %v2954
  %v2956 = vrot.slane %v2587, 7
  %v2957 = vsel %vm668, %v2954, %v2956
  %v2958 = vrot.slane %v2588, 7
  %v2959 = vsel %vm668, %v2956, %v2958
  %v2960 = vrot.slane %v2589, 7
  %v2961 = vsel %vm668, %v2958, %v2960
  %v2962 = vrot.slane %v2590, 7
  %v2963 = vsel %vm668, %v2960, %v2962
  %v2964 = vrot.slane %v2591, 7
  %v2965 = vsel %vm668, %v2962, %v2964
  %v2966 = vrot.slane %v2592, 7
  %v2967 = vsel %vm668, %v2964, %v2966
  %v2968 = vrot.slane %v2593, 7
  %v2969 = vsel %vm668, %v2966, %v2968
  %v2970 = vrot.slane %v2594, 7
  %v2971 = vsel %vm668, %v2968, %v2970
  %v2972 = vrot.slane %v2595, 7
  %v2973 = vsel %vm668, %v2970, %v2972
  %2974 = vrot.lane.b32.xlu0 %v2919, 96
  %v2975 = vpop.permute.xlu0 %2974
  %2976 = vrot.lane.b32.xlu0 %v2921, 96
  %v2977 = vpop.permute.xlu0 %2976
  %2978 = vrot.lane.b32.xlu0 %v2923, 96
  %v2979 = vpop.permute.xlu0 %2978
  %2980 = vrot.lane.b32.xlu0 %v2925, 96
  %v2981 = vpop.permute.xlu0 %2980
  %2982 = vrot.lane.b32.xlu0 %v2927, 96
  %v2983 = vpop.permute.xlu0 %2982
  %2984 = vrot.lane.b32.xlu0 %v2929, 96
  %v2985 = vpop.permute.xlu0 %2984
  %2986 = vrot.lane.b32.xlu0 %v2931, 96
  %v2987 = vpop.permute.xlu0 %2986
  %2988 = vrot.lane.b32.xlu0 %v2933, 96
  %v2989 = vpop.permute.xlu0 %2988
  %2990 = vrot.lane.b32.xlu0 %v2935, 96
  %v2991 = vpop.permute.xlu0 %2990
  %2992 = vrot.lane.b32.xlu0 %v2937, 96
  %v2993 = vpop.permute.xlu0 %2992
  %2994 = vrot.lane.b32.xlu0 %v2939, 96
  %v2995 = vpop.permute.xlu0 %2994
  %2996 = vrot.lane.b32.xlu0 %v2941, 96
  %v2997 = vpop.permute.xlu0 %2996
  %2998 = vrot.lane.b32.xlu0 %v2943, 96
  %v2999 = vpop.permute.xlu0 %2998
  %3000 = vrot.lane.b32.xlu0 %v2945, 96
  %v3001 = vpop.permute.xlu0 %3000
  %3002 = vrot.lane.b32.xlu0 %v2947, 96
  %v3003 = vpop.permute.xlu0 %3002
  %3004 = vrot.lane.b32.xlu0 %v2949, 96
  %v3005 = vpop.permute.xlu0 %3004
  %3006 = vrot.lane.b32.xlu0 %v2951, 96
  %v3007 = vpop.permute.xlu0 %3006
  %3008 = vrot.lane.b32.xlu0 %v2953, 96
  %v3009 = vpop.permute.xlu0 %3008
  %3010 = vrot.lane.b32.xlu0 %v2955, 96
  %v3011 = vpop.permute.xlu0 %3010
  %3012 = vrot.lane.b32.xlu0 %v2957, 96
  %v3013 = vpop.permute.xlu0 %3012
  %3014 = vrot.lane.b32.xlu0 %v2959, 96
  %v3015 = vpop.permute.xlu0 %3014
  %3016 = vrot.lane.b32.xlu0 %v2961, 96
  %v3017 = vpop.permute.xlu0 %3016
  %3018 = vrot.lane.b32.xlu0 %v2963, 96
  %v3019 = vpop.permute.xlu0 %3018
  %3020 = vrot.lane.b32.xlu0 %v2965, 96
  %v3021 = vpop.permute.xlu0 %3020
  %3022 = vrot.lane.b32.xlu0 %v2967, 96
  %v3023 = vpop.permute.xlu0 %3022
  %3024 = vrot.lane.b32.xlu0 %v2969, 96
  %v3025 = vpop.permute.xlu0 %3024
  %3026 = vrot.lane.b32.xlu0 %v2971, 96
  %v3027 = vpop.permute.xlu0 %3026
  %3028 = vrot.lane.b32.xlu0 %v2973, 96
  %v3029 = vpop.permute.xlu0 %3028
  %3030 = vrot.lane.b32.xlu0 %v2972, 96
  %v3031 = vpop.permute.xlu0 %3030
  %v3062 = vrot.slane %v2595, 1
  %v3063 = vsel %vm337, %v2683, %v3062
  %v3064 = vrot.slane %v2596, 1
  %v3065 = vsel %vm337, %v3062, %v3064
  %3066 = vrot.lane.b32.xlu0 %v3063, 32
  %v3067 = vpop.permute.xlu0 %3066
  %3068 = vrot.lane.b32.xlu0 %v3065, 32
  %v3069 = vpop.permute.xlu0 %3068
  %3070 = vrot.lane.b32.xlu0 %v3064, 32
  %v3071 = vpop.permute.xlu0 %3070
  %v3076 = vrot.slane %v2569, 6
  %v3077 = vrot.slane %v2570, 6
  %v3078 = vsel %vm1037, %v3076, %v3077
  %v3079 = vrot.slane %v2571, 6
  %v3080 = vsel %vm1037, %v3077, %v3079
  %v3081 = vrot.slane %v2572, 6
  %v3082 = vsel %vm1037, %v3079, %v3081
  %v3083 = vrot.slane %v2573, 6
  %v3084 = vsel %vm1037, %v3081, %v3083
  %v3085 = vrot.slane %v2574, 6
  %v3086 = vsel %vm1037, %v3083, %v3085
  %v3087 = vrot.slane %v2575, 6
  %v3088 = vsel %vm1037, %v3085, %v3087
  %v3089 = vrot.slane %v2576, 6
  %v3090 = vsel %vm1037, %v3087, %v3089
  %v3091 = vrot.slane %v2577, 6
  %v3092 = vsel %vm1037, %v3089, %v3091
  %v3093 = vrot.slane %v2578, 6
  %v3094 = vsel %vm1037, %v3091, %v3093
  %v3095 = vrot.slane %v2579, 6
  %v3096 = vsel %vm1037, %v3093, %v3095
  %v3097 = vrot.slane %v2580, 6
  %v3098 = vsel %vm1037, %v3095, %v3097
  %v3099 = vrot.slane %v2581, 6
  %v3100 = vsel %vm1037, %v3097, %v3099
  %v3101 = vrot.slane %v2582, 6
  %v3102 = vsel %vm1037, %v3099, %v3101
  %v3103 = vrot.slane %v2583, 6
  %v3104 = vsel %vm1037, %v3101, %v3103
  %v3105 = vrot.slane %v2584, 6
  %v3106 = vsel %vm1037, %v3103, %v3105
  %v3107 = vrot.slane %v2585, 6
  %v3108 = vsel %vm1037, %v3105, %v3107
  %v3109 = vrot.slane %v2586, 6
  %v3110 = vsel %vm1037, %v3107, %v3109
  %v3111 = vrot.slane %v2587, 6
  %v3112 = vsel %vm1037, %v3109, %v3111
  %v3113 = vrot.slane %v2588, 6
  %v3114 = vsel %vm1037, %v3111, %v3113
  %v3115 = vrot.slane %v2589, 6
  %v3116 = vsel %vm1037, %v3113, %v3115
  %v3117 = vrot.slane %v2590, 6
  %v3118 = vsel %vm1037, %v3115, %v3117
  %v3119 = vrot.slane %v2591, 6
  %v3120 = vsel %vm1037, %v3117, %v3119
  %v3121 = vrot.slane %v2592, 6
  %v3122 = vsel %vm1037, %v3119, %v3121
  %v3123 = vrot.slane %v2593, 6
  %v3124 = vsel %vm1037, %v3121, %v3123
  %v3125 = vrot.slane %v2594, 6
  %v3126 = vsel %vm1037, %v3123, %v3125
  %v3127 = vrot.slane %v2595, 6
  %v3128 = vsel %vm1037, %v3125, %v3127
  %v3129 = vrot.slane %v2596, 6
  %v3130 = vsel %vm1037, %v3127, %v3129
  %v3131 = vrot.slane %v2597, 6
  %v3132 = vsel %vm1037, %v3129, %v3131
  %3133 = vrot.lane.b32.xlu0 %v3078, 64
  %v3134 = vpop.permute.xlu0 %3133
  %3135 = vrot.lane.b32.xlu0 %v3080, 64
  %v3136 = vpop.permute.xlu0 %3135
  %3137 = vrot.lane.b32.xlu0 %v3082, 64
  %v3138 = vpop.permute.xlu0 %3137
  %3139 = vrot.lane.b32.xlu0 %v3084, 64
  %v3140 = vpop.permute.xlu0 %3139
  %3141 = vrot.lane.b32.xlu0 %v3086, 64
  %v3142 = vpop.permute.xlu0 %3141
  %3143 = vrot.lane.b32.xlu0 %v3088, 64
  %v3144 = vpop.permute.xlu0 %3143
  %3145 = vrot.lane.b32.xlu0 %v3090, 64
  %v3146 = vpop.permute.xlu0 %3145
  %3147 = vrot.lane.b32.xlu0 %v3092, 64
  %v3148 = vpop.permute.xlu0 %3147
  %3149 = vrot.lane.b32.xlu0 %v3094, 64
  %v3150 = vpop.permute.xlu0 %3149
  %3151 = vrot.lane.b32.xlu0 %v3096, 64
  %v3152 = vpop.permute.xlu0 %3151
  %3153 = vrot.lane.b32.xlu0 %v3098, 64
  %v3154 = vpop.permute.xlu0 %3153
  %3155 = vrot.lane.b32.xlu0 %v3100, 64
  %v3156 = vpop.permute.xlu0 %3155
  %3157 = vrot.lane.b32.xlu0 %v3102, 64
  %v3158 = vpop.permute.xlu0 %3157
  %3159 = vrot.lane.b32.xlu0 %v3104, 64
  %v3160 = vpop.permute.xlu0 %3159
  %3161 = vrot.lane.b32.xlu0 %v3106, 64
  %v3162 = vpop.permute.xlu0 %3161
  %3163 = vrot.lane.b32.xlu0 %v3108, 64
  %v3164 = vpop.permute.xlu0 %3163
  %3165 = vrot.lane.b32.xlu0 %v3110, 64
  %v3166 = vpop.permute.xlu0 %3165
  %3167 = vrot.lane.b32.xlu0 %v3112, 64
  %v3168 = vpop.permute.xlu0 %3167
  %3169 = vrot.lane.b32.xlu0 %v3114, 64
  %v3170 = vpop.permute.xlu0 %3169
  %3171 = vrot.lane.b32.xlu0 %v3116, 64
  %v3172 = vpop.permute.xlu0 %3171
  %3173 = vrot.lane.b32.xlu0 %v3118, 64
  %v3174 = vpop.permute.xlu0 %3173
  %3175 = vrot.lane.b32.xlu0 %v3120, 64
  %v3176 = vpop.permute.xlu0 %3175
  %3177 = vrot.lane.b32.xlu0 %v3122, 64
  %v3178 = vpop.permute.xlu0 %3177
  %3179 = vrot.lane.b32.xlu0 %v3124, 64
  %v3180 = vpop.permute.xlu0 %3179
  %3181 = vrot.lane.b32.xlu0 %v3126, 64
  %v3182 = vpop.permute.xlu0 %3181
  %3183 = vrot.lane.b32.xlu0 %v3128, 64
  %v3184 = vpop.permute.xlu0 %3183
  %3185 = vrot.lane.b32.xlu0 %v3130, 64
  %v3186 = vpop.permute.xlu0 %3185
  %3187 = vrot.lane.b32.xlu0 %v3132, 64
  %v3188 = vpop.permute.xlu0 %3187
  %3189 = vrot.lane.b32.xlu0 %v3131, 64
  %v3190 = vpop.permute.xlu0 %3189
  %v3220 = vrot.slane %v2596, 7
  %v3221 = vsel %vm668, %v2972, %v3220
  %v3222 = vrot.slane %v2597, 7
  %v3223 = vsel %vm668, %v3220, %v3222
  %3224 = vrot.lane.b32.xlu0 %v3221, 96
  %v3225 = vpop.permute.xlu0 %3224
  %3226 = vrot.lane.b32.xlu0 %v3223, 96
  %v3227 = vpop.permute.xlu0 %3226
  %3228 = vrot.lane.b32.xlu0 %v3222, 96
  %v3229 = vpop.permute.xlu0 %3228
  %v3233 = vsel %vm1643, %v2566, %v2686
  %v3234 = vsel %vm1643, %v2567, %v2688
  %v3235 = vsel %vm1643, %v2568, %v2690
  %v3236 = vsel %vm1643, %v2569, %v2692
  %v3237 = vsel %vm1643, %v2570, %v2694
  %v3238 = vsel %vm1643, %v2571, %v2696
  %v3239 = vsel %vm1643, %v2572, %v2698
  %v3240 = vsel %vm1643, %v2573, %v2700
  %v3241 = vsel %vm1643, %v2574, %v2702
  %v3242 = vsel %vm1643, %v2575, %v2704
  %v3243 = vsel %vm1643, %v2576, %v2706
  %v3244 = vsel %vm1643, %v2577, %v2708
  %v3245 = vsel %vm1643, %v2578, %v2710
  %v3246 = vsel %vm1643, %v2579, %v2712
  %v3247 = vsel %vm1643, %v2580, %v2714
  %v3248 = vsel %vm1643, %v2581, %v2716
  %v3249 = vsel %vm1643, %v2582, %v2718
  %v3250 = vsel %vm1643, %v2583, %v2720
  %v3251 = vsel %vm1643, %v2584, %v2722
  %v3252 = vsel %vm1643, %v2585, %v2724
  %v3253 = vsel %vm1643, %v2586, %v2726
  %v3254 = vsel %vm1643, %v2587, %v2728
  %v3255 = vsel %vm1643, %v2588, %v2730
  %v3256 = vsel %vm1643, %v2589, %v2732
  %v3257 = vsel %vm1643, %v2590, %v2734
  %v3258 = vsel %vm1643, %v2591, %v2736
  %v3259 = vsel %vm1643, %v2592, %v2738
  %v3260 = vsel %vm1643, %v2593, %v2740
  %v3261 = vsel %vm1643, %v2594, %v2742
  %vm3262 = vcmask 523264
  %v3263 = vsel %vm3262, %v3233, %v2830
  %v3264 = vsel %vm3262, %v3234, %v2832
  %v3265 = vsel %vm3262, %v3235, %v2834
  %v3266 = vsel %vm3262, %v3236, %v2836
  %v3267 = vsel %vm3262, %v3237, %v2838
  %v3268 = vsel %vm3262, %v3238, %v2840
  %v3269 = vsel %vm3262, %v3239, %v2842
  %v3270 = vsel %vm3262, %v3240, %v2844
  %v3271 = vsel %vm3262, %v3241, %v2846
  %v3272 = vsel %vm3262, %v3242, %v2848
  %v3273 = vsel %vm3262, %v3243, %v2850
  %v3274 = vsel %vm3262, %v3244, %v2852
  %v3275 = vsel %vm3262, %v3245, %v2854
  %v3276 = vsel %vm3262, %v3246, %v2856
  %v3277 = vsel %vm3262, %v3247, %v2858
  %v3278 = vsel %vm3262, %v3248, %v2860
  %v3279 = vsel %vm3262, %v3249, %v2862
  %v3280 = vsel %vm3262, %v3250, %v2864
  %v3281 = vsel %vm3262, %v3251, %v2866
  %v3282 = vsel %vm3262, %v3252, %v2868
  %v3283 = vsel %vm3262, %v3253, %v2870
  %v3284 = vsel %vm3262, %v3254, %v2872
  %v3285 = vsel %vm3262, %v3255, %v2874
  %v3286 = vsel %vm3262, %v3256, %v2876
  %v3287 = vsel %vm3262, %v3257, %v2878
  %v3288 = vsel %vm3262, %v3258, %v2880
  %v3289 = vsel %vm3262, %v3259, %v2882
  %v3290 = vsel %vm3262, %v3260, %v2884
  %v3291 = vsel %vm3262, %v3261, %v2886
  %vm3292 = vcmask 785408
  %v3293 = vsel %vm3292, %v3263, %v2975
  %v3294 = vsel %vm3292, %v3264, %v2977
  %v3295 = vsel %vm3292, %v3265, %v2979
  %v3296 = vsel %vm3292, %v3266, %v2981
  %v3297 = vsel %vm3292, %v3267, %v2983
  %v3298 = vsel %vm3292, %v3268, %v2985
  %v3299 = vsel %vm3292, %v3269, %v2987
  %v3300 = vsel %vm3292, %v3270, %v2989
  %v3301 = vsel %vm3292, %v3271, %v2991
  %v3302 = vsel %vm3292, %v3272, %v2993
  %v3303 = vsel %vm3292, %v3273, %v2995
  %v3304 = vsel %vm3292, %v3274, %v2997
  %v3305 = vsel %vm3292, %v3275, %v2999
  %v3306 = vsel %vm3292, %v3276, %v3001
  %v3307 = vsel %vm3292, %v3277, %v3003
  %v3308 = vsel %vm3292, %v3278, %v3005
  %v3309 = vsel %vm3292, %v3279, %v3007
  %v3310 = vsel %vm3292, %v3280, %v3009
  %v3311 = vsel %vm3292, %v3281, %v3011
  %v3312 = vsel %vm3292, %v3282, %v3013
  %v3313 = vsel %vm3292, %v3283, %v3015
  %v3314 = vsel %vm3292, %v3284, %v3017
  %v3315 = vsel %vm3292, %v3285, %v3019
  %v3316 = vsel %vm3292, %v3286, %v3021
  %v3317 = vsel %vm3292, %v3287, %v3023
  %v3318 = vsel %vm3292, %v3288, %v3025
  %v3319 = vsel %vm3292, %v3289, %v3027
  %v3320 = vsel %vm3292, %v3290, %v3029
  %v3321 = vsel %vm3292, %v3291, %v3031
  %v3322 = vsel %vm1643, %v2594, %v3067
  %v3323 = vsel %vm1643, %v2595, %v3069
  %v3324 = vsel %vm1643, %v2596, %v3071
  %v3325 = vsel %vm3262, %v3235, %v3134
  %v3326 = vsel %vm3262, %v3236, %v3136
  %v3327 = vsel %vm3262, %v3237, %v3138
  %v3328 = vsel %vm3262, %v3238, %v3140
  %v3329 = vsel %vm3262, %v3239, %v3142
  %v3330 = vsel %vm3262, %v3240, %v3144
  %v3331 = vsel %vm3262, %v3241, %v3146
  %v3332 = vsel %vm3262, %v3242, %v3148
  %v3333 = vsel %vm3262, %v3243, %v3150
  %v3334 = vsel %vm3262, %v3244, %v3152
  %v3335 = vsel %vm3262, %v3245, %v3154
  %v3336 = vsel %vm3262, %v3246, %v3156
  %v3337 = vsel %vm3262, %v3247, %v3158
  %v3338 = vsel %vm3262, %v3248, %v3160
  %v3339 = vsel %vm3262, %v3249, %v3162
  %v3340 = vsel %vm3262, %v3250, %v3164
  %v3341 = vsel %vm3262, %v3251, %v3166
  %v3342 = vsel %vm3262, %v3252, %v3168
  %v3343 = vsel %vm3262, %v3253, %v3170
  %v3344 = vsel %vm3262, %v3254, %v3172
  %v3345 = vsel %vm3262, %v3255, %v3174
  %v3346 = vsel %vm3262, %v3256, %v3176
  %v3347 = vsel %vm3262, %v3257, %v3178
  %v3348 = vsel %vm3262, %v3258, %v3180
  %v3349 = vsel %vm3262, %v3259, %v3182
  %v3350 = vsel %vm3262, %v3260, %v3184
  %v3351 = vsel %vm3262, %v3322, %v3186
  %v3352 = vsel %vm3262, %v3323, %v3188
  %v3353 = vsel %vm3262, %v3324, %v3190
  %v3354 = vsel %vm3292, %v3325, %v2979
  %v3355 = vsel %vm3292, %v3326, %v2981
  %v3356 = vsel %vm3292, %v3327, %v2983
  %v3357 = vsel %vm3292, %v3328, %v2985
  %v3358 = vsel %vm3292, %v3329, %v2987
  %v3359 = vsel %vm3292, %v3330, %v2989
  %v3360 = vsel %vm3292, %v3331, %v2991
  %v3361 = vsel %vm3292, %v3332, %v2993
  %v3362 = vsel %vm3292, %v3333, %v2995
  %v3363 = vsel %vm3292, %v3334, %v2997
  %v3364 = vsel %vm3292, %v3335, %v2999
  %v3365 = vsel %vm3292, %v3336, %v3001
  %v3366 = vsel %vm3292, %v3337, %v3003
  %v3367 = vsel %vm3292, %v3338, %v3005
  %v3368 = vsel %vm3292, %v3339, %v3007
  %v3369 = vsel %vm3292, %v3340, %v3009
  %v3370 = vsel %vm3292, %v3341, %v3011
  %v3371 = vsel %vm3292, %v3342, %v3013
  %v3372 = vsel %vm3292, %v3343, %v3015
  %v3373 = vsel %vm3292, %v3344, %v3017
  %v3374 = vsel %vm3292, %v3345, %v3019
  %v3375 = vsel %vm3292, %v3346, %v3021
  %v3376 = vsel %vm3292, %v3347, %v3023
  %v3377 = vsel %vm3292, %v3348, %v3025
  %v3378 = vsel %vm3292, %v3349, %v3027
  %v3379 = vsel %vm3292, %v3350, %v3029
  %v3380 = vsel %vm3292, %v3351, %v3225
  %v3381 = vsel %vm3292, %v3352, %v3227
  %v3382 = vsel %vm3292, %v3353, %v3229
  %v3384 = vlaneseq
  %v3385 = vshrl.u32 %v3384, 7
  %v3386 = vsub.s32 0, %v3385
  %v3387 = vrot.slane %v179, %v3386
  %v3389 = vsel %vm1643, %v2570, 0
  %v3391 = vsel %vm1643, %v2571, 0
  %v3393 = vsel %vm1643, %v2572, 0
  %v3395 = vsel %vm1643, %v2573, 0
  %v3397 = vsel %vm1643, %v2574, 0
  %v3399 = vsel %vm1643, %v2575, 0
  %v3401 = vsel %vm1643, %v2576, 0
  %v3403 = vsel %vm1643, %v2577, 0
  %v3405 = vsel %vm1643, %v2578, 0
  %v3407 = vsel %vm1643, %v2579, 0
  %v3409 = vsel %vm1643, %v2580, 0
  %v3411 = vsel %vm1643, %v2581, 0
  %v3413 = vsel %vm1643, %v2582, 0
  %v3415 = vsel %vm1643, %v2583, 0
  %v3417 = vsel %vm1643, %v2584, 0
  %v3419 = vsel %vm1643, %v2585, 0
  %v3421 = vsel %vm1643, %v2586, 0
  %v3423 = vsel %vm1643, %v2587, 0
  %v3425 = vsel %vm1643, %v2588, 0
  %v3427 = vsel %vm1643, %v2589, 0
  %v3429 = vsel %vm1643, %v2590, 0
  %v3431 = vsel %vm1643, %v2591, 0
  %v3433 = vsel %vm1643, %v2592, 0
  %v3435 = vsel %vm1643, %v2593, 0
  %v3437 = vsel %vm1643, %v2594, 0
  %v3439 = vsel %vm1643, %v2595, 0
  %v3441 = vsel %vm1643, %v2596, 0
  %v3443 = vsel %vm1643, %v2597, 0
  %v3446 = vsel %vm1643, %v2598, 0
  %3448 = vmatprep.subr.mxu0 0.0
  %3449 = vmatpush1.msra.mxu0 %v143
  %3450 = vmatprep.subr.mxu0 0.0
  %3451 = vmatpush1.msra.mxu0 %v144
  %3452 = vmatprep.subr.mxu0 0.0
  %3453 = vmatpush1.msra.mxu0 %v145
  %3454 = vmatprep.subr.mxu0 0.0
  %3455 = vmatpush1.msra.mxu0 %v146
  %3456 = vmatprep.subr.mxu0 0.0
  %3457 = vmatpush1.msra.mxu0 %v147
  %3458 = vmatprep.subr.mxu0 0.0
  %3459 = vmatpush1.msra.mxu0 %v148
  %3460 = vmatprep.subr.mxu0 0.0
  %3461 = vmatpush1.msra.mxu0 %v149
  %3462 = vmatprep.subr.mxu0 0.0
  %3463 = vmatpush1.msra.mxu0 %v150
  %3464 = vmatprep.subr.mxu0 0.0
  %3465 = vmatpush1.msra.mxu0 %v151
  %3466 = vmatprep.subr.mxu0 0.0
  %3467 = vmatpush1.msra.mxu0 %v152
  %3468 = vmatprep.subr.mxu0 0.0
  %3469 = vmatpush1.msra.mxu0 %v153
  %3470 = vmatprep.subr.mxu0 0.0
  %3471 = vmatpush1.msra.mxu0 %v154
  %3472 = vmatprep.subr.mxu0 0.0
  %3473 = vmatpush1.msra.mxu0 %v155
  %3474 = vmatprep.subr.mxu0 0.0
  %3475 = vmatpush1.msra.mxu0 %v156
  %3476 = vmatprep.subr.mxu0 0.0
  %3477 = vmatpush1.msra.mxu0 %v157
  %3478 = vmatprep.subr.mxu0 0.0
  %3479 = vmatpush1.msra.mxu0 %v158
  %3480 = vmatprep.subr.mxu0 0.0
  %3481 = vmatpush1.msra.mxu0 %v159
  %3482 = vmatprep.subr.mxu0 0.0
  %3483 = vmatpush1.msra.mxu0 %v160
  %3484 = vmatprep.subr.mxu0 0.0
  %3485 = vmatpush1.msra.mxu0 %v161
  %3486 = vmatprep.subr.mxu0 0.0
  %3487 = vmatpush1.msra.mxu0 %v162
  %3488 = vmatprep.subr.mxu0 0.0
  %3489 = vmatpush1.msra.mxu0 %v163
  %3490 = vmatprep.subr.mxu0 0.0
  %3491 = vmatpush1.msra.mxu0 %v164
  %3492 = vmatprep.subr.mxu0 0.0
  %3493 = vmatpush1.msra.mxu0 %v165
  %3494 = vmatprep.subr.mxu0 0.0
  %3495 = vmatpush1.msra.mxu0 %v166
  %3496 = vmatprep.subr.mxu0 0.0
  %3497 = vmatpush1.msra.mxu0 %v167
  %3498 = vmatprep.subr.mxu0 0.0
  %3499 = vmatpush1.msra.mxu0 %v168
  %3500 = vmatprep.subr.mxu0 0.0
  %3501 = vmatpush1.msra.mxu0 %v169
  %3502 = vmatprep.subr.mxu0 0.0
  %3503 = vmatpush1.msra.mxu0 %v170
  %3504 = vmatprep.subr.mxu0 0.0
  %3505 = vmatpush1.msra.mxu0 %v171
  %3506 = vmatprep.subr.mxu0 0.0
  %3507 = vmatpush1.msra.mxu0 %v172
  %3508 = vmatprep.subr.mxu0 0.0
  %3509 = vmatpush1.msra.mxu0 %v173
  %3510 = vmatprep.subr.mxu0 0.0
  %3511 = vmatpush1.msra.mxu0 %v174
  %3512 = vmatprep.mubr.f32.mxu0 %v3354
  %3513 = vmatmul.mubr.f32.gmra.mrb[0].mxu0 %v3293
  %v3514 = vpop.f32.mrb[0].mxu0
  %v3515 = vadd.f32 %v3387, %v3514
  %v3516 = vpop.f32.mrb[0].mxu0
  %3517 = vmatprep.mubr.f32.mxu0 %v3355
  %3518 = vmatmul.mubr.f32.gmra.mrb[0].mxu0 %v3294
  %v3519 = vpop.f32.mrb[0].mxu0
  %v3520 = vadd.f32 %v3387, %v3519
  %v3521 = vpop.f32.mrb[0].mxu0
  %3522 = vmatprep.mubr.f32.mxu0 %v3356
  %3523 = vmatmul.mubr.f32.gmra.mrb[0].mxu0 %v3295
  %v3524 = vpop.f32.mrb[0].mxu0
  %v3525 = vadd.f32 %v3387, %v3524
  %v3526 = vpop.f32.mrb[0].mxu0
  %3527 = vmatprep.mubr.f32.mxu0 %v3357
  %3528 = vmatmul.mubr.f32.gmra.mrb[0].mxu0 %v3296
  %v3529 = vpop.f32.mrb[0].mxu0
  %v3530 = vadd.f32 %v3387, %v3529
  %v3531 = vpop.f32.mrb[0].mxu0
  %3532 = vmatprep.mubr.f32.mxu0 %v3358
  %3533 = vmatmul.mubr.f32.gmra.mrb[0].mxu0 %v3297
  %v3534 = vpop.f32.mrb[0].mxu0
  %v3535 = vadd.f32 %v3387, %v3534
  %v3536 = vpop.f32.mrb[0].mxu0
  %3537 = vmatprep.mubr.f32.mxu0 %v3359
  %3538 = vmatmul.mubr.f32.gmra.mrb[0].mxu0 %v3298
  %v3539 = vpop.f32.mrb[0].mxu0
  %v3540 = vadd.f32 %v3387, %v3539
  %v3541 = vpop.f32.mrb[0].mxu0
  %3542 = vmatprep.mubr.f32.mxu0 %v3360
  %3543 = vmatmul.mubr.f32.gmra.mrb[0].mxu0 %v3299
  %v3544 = vpop.f32.mrb[0].mxu0
  %v3545 = vadd.f32 %v3387, %v3544
  %v3546 = vpop.f32.mrb[0].mxu0
  %3547 = vmatprep.mubr.f32.mxu0 %v3361
  %3548 = vmatmul.mubr.f32.gmra.mrb[0].mxu0 %v3300
  %v3549 = vpop.f32.mrb[0].mxu0
  %v3550 = vadd.f32 %v3387, %v3549
  %v3551 = vpop.f32.mrb[0].mxu0
  %3552 = vmatprep.mubr.f32.mxu0 %v3362
  %3553 = vmatmul.mubr.f32.gmra.mrb[0].mxu0 %v3301
  %v3554 = vpop.f32.mrb[0].mxu0
  %v3555 = vadd.f32 %v3387, %v3554
  %v3556 = vpop.f32.mrb[0].mxu0
  %3557 = vmatprep.mubr.f32.mxu0 %v3363
  %3558 = vmatmul.mubr.f32.gmra.mrb[0].mxu0 %v3302
  %v3559 = vpop.f32.mrb[0].mxu0
  %v3560 = vadd.f32 %v3387, %v3559
  %v3561 = vpop.f32.mrb[0].mxu0
  %3562 = vmatprep.mubr.f32.mxu0 %v3364
  %3563 = vmatmul.mubr.f32.gmra.mrb[0].mxu0 %v3303
  %v3564 = vpop.f32.mrb[0].mxu0
  %v3565 = vadd.f32 %v3387, %v3564
  %v3566 = vpop.f32.mrb[0].mxu0
  %3567 = vmatprep.mubr.f32.mxu0 %v3365
  %3568 = vmatmul.mubr.f32.gmra.mrb[0].mxu0 %v3304
  %v3569 = vpop.f32.mrb[0].mxu0
  %v3570 = vadd.f32 %v3387, %v3569
  %v3571 = vpop.f32.mrb[0].mxu0
  %3572 = vmatprep.mubr.f32.mxu0 %v3366
  %3573 = vmatmul.mubr.f32.gmra.mrb[0].mxu0 %v3305
  %v3574 = vpop.f32.mrb[0].mxu0
  %v3575 = vadd.f32 %v3387, %v3574
  %v3576 = vpop.f32.mrb[0].mxu0
  %3577 = vmatprep.mubr.f32.mxu0 %v3367
  %3578 = vmatmul.mubr.f32.gmra.mrb[0].mxu0 %v3306
  %v3579 = vpop.f32.mrb[0].mxu0
  %v3580 = vadd.f32 %v3387, %v3579
  %v3581 = vpop.f32.mrb[0].mxu0
  %3582 = vmatprep.mubr.f32.mxu0 %v3368
  %3583 = vmatmul.mubr.f32.gmra.mrb[0].mxu0 %v3307
  %v3584 = vpop.f32.mrb[0].mxu0
  %v3585 = vadd.f32 %v3387, %v3584
  %v3586 = vpop.f32.mrb[0].mxu0
  %3587 = vmatprep.mubr.f32.mxu0 %v3369
  %3588 = vmatmul.mubr.f32.gmra.mrb[0].mxu0 %v3308
  %v3589 = vpop.f32.mrb[0].mxu0
  %v3590 = vadd.f32 %v3387, %v3589
  %v3591 = vpop.f32.mrb[0].mxu0
  %3592 = vmatprep.mubr.f32.mxu0 %v3370
  %3593 = vmatmul.mubr.f32.gmra.mrb[0].mxu0 %v3309
  %v3594 = vpop.f32.mrb[0].mxu0
  %v3595 = vadd.f32 %v3387, %v3594
  %v3596 = vpop.f32.mrb[0].mxu0
  %3597 = vmatprep.mubr.f32.mxu0 %v3371
  %3598 = vmatmul.mubr.f32.gmra.mrb[0].mxu0 %v3310
  %v3599 = vpop.f32.mrb[0].mxu0
  %v3600 = vadd.f32 %v3387, %v3599
  %v3601 = vpop.f32.mrb[0].mxu0
  %3602 = vmatprep.mubr.f32.mxu0 %v3372
  %3603 = vmatmul.mubr.f32.gmra.mrb[0].mxu0 %v3311
  %v3604 = vpop.f32.mrb[0].mxu0
  %v3605 = vadd.f32 %v3387, %v3604
  %v3606 = vpop.f32.mrb[0].mxu0
  %3607 = vmatprep.mubr.f32.mxu0 %v3373
  %3608 = vmatmul.mubr.f32.gmra.mrb[0].mxu0 %v3312
  %v3609 = vpop.f32.mrb[0].mxu0
  %v3610 = vadd.f32 %v3387, %v3609
  %v3611 = vpop.f32.mrb[0].mxu0
  %3612 = vmatprep.mubr.f32.mxu0 %v3374
  %3613 = vmatmul.mubr.f32.gmra.mrb[0].mxu0 %v3313
  %v3614 = vpop.f32.mrb[0].mxu0
  %v3615 = vadd.f32 %v3387, %v3614
  %v3616 = vpop.f32.mrb[0].mxu0
  %3617 = vmatprep.mubr.f32.mxu0 %v3375
  %3618 = vmatmul.mubr.f32.gmra.mrb[0].mxu0 %v3314
  %v3619 = vpop.f32.mrb[0].mxu0
  %v3620 = vadd.f32 %v3387, %v3619
  %v3621 = vpop.f32.mrb[0].mxu0
  %3622 = vmatprep.mubr.f32.mxu0 %v3376
  %3623 = vmatmul.mubr.f32.gmra.mrb[0].mxu0 %v3315
  %v3624 = vpop.f32.mrb[0].mxu0
  %v3625 = vadd.f32 %v3387, %v3624
  %v3626 = vpop.f32.mrb[0].mxu0
  %3627 = vmatprep.mubr.f32.mxu0 %v3377
  %3628 = vmatmul.mubr.f32.gmra.mrb[0].mxu0 %v3316
  %v3629 = vpop.f32.mrb[0].mxu0
  %v3630 = vadd.f32 %v3387, %v3629
  %v3631 = vpop.f32.mrb[0].mxu0
  %3632 = vmatprep.mubr.f32.mxu0 %v3378
  %3633 = vmatmul.mubr.f32.gmra.mrb[0].mxu0 %v3317
  %v3634 = vpop.f32.mrb[0].mxu0
  %v3635 = vadd.f32 %v3387, %v3634
  %v3636 = vpop.f32.mrb[0].mxu0
  %3637 = vmatprep.mubr.f32.mxu0 %v3379
  %3638 = vmatmul.mubr.f32.gmra.mrb[0].mxu0 %v3318
  %v3639 = vpop.f32.mrb[0].mxu0
  %v3640 = vadd.f32 %v3387, %v3639
  %v3641 = vpop.f32.mrb[0].mxu0
  %3642 = vmatprep.mubr.f32.mxu0 %v3380
  %3643 = vmatmul.mubr.f32.gmra.mrb[0].mxu0 %v3319
  %v3644 = vpop.f32.mrb[0].mxu0
  %v3645 = vadd.f32 %v3387, %v3644
  %v3646 = vpop.f32.mrb[0].mxu0
  %3647 = vmatprep.mubr.f32.mxu0 %v3381
  %3648 = vmatmul.mubr.f32.gmra.mrb[0].mxu0 %v3320
  %v3649 = vpop.f32.mrb[0].mxu0
  %v3650 = vadd.f32 %v3387, %v3649
  %v3651 = vpop.f32.mrb[0].mxu0
  %3652 = vmatprep.mubr.f32.mxu0 %v3382
  %3653 = vmatmul.mubr.f32.gmra.mrb[0].mxu0 %v3321
  %v3654 = vpop.f32.mrb[0].mxu0
  %v3655 = vadd.f32 %v3387, %v3654
  %v3656 = vpop.f32.mrb[0].mxu0
  %3657 = vdwg.mxu0
  %3658 = vmatprep.subr.mxu0 0.0
  %3659 = vmatpush1.msra.mxu0 %v175
  %3660 = vmatprep.subr.mxu0 0.0
  %3661 = vmatpush1.msra.mxu0 %v176
  %3662 = vmatprep.subr.mxu0 0.0
  %3663 = vmatpush1.msra.mxu0 %v177
  %3664 = vmatprep.subr.mxu0 0.0
  %3665 = vmatpush1.msra.mxu0 %v178
  %3666 = vmatprep.subr.mxu0 0.0
  %3667 = vmatpush1.msra.mxu0 0.0
  %3668 = vmatprep.subr.mxu0 0.0
  %3669 = vmatpush1.msra.mxu0 0.0
  %3670 = vmatprep.subr.mxu0 0.0
  %3671 = vmatpush1.msra.mxu0 0.0
  %3672 = vmatprep.subr.mxu0 0.0
  %3673 = vmatpush1.msra.mxu0 0.0
  %3674 = vmatprep.subr.mxu0 0.0
  %3675 = vmatpush1.msra.mxu0 0.0
  %3676 = vmatprep.subr.mxu0 0.0
  %3677 = vmatpush1.msra.mxu0 0.0
  %3678 = vmatprep.subr.mxu0 0.0
  %3679 = vmatpush1.msra.mxu0 0.0
  %3680 = vmatprep.subr.mxu0 0.0
  %3681 = vmatpush1.msra.mxu0 0.0
  %3682 = vmatprep.subr.mxu0 0.0
  %3683 = vmatpush1.msra.mxu0 0.0
  %3684 = vmatprep.subr.mxu0 0.0
  %3685 = vmatpush1.msra.mxu0 0.0
  %3686 = vmatprep.subr.mxu0 0.0
  %3687 = vmatpush1.msra.mxu0 0.0
  %3688 = vmatprep.subr.mxu0 0.0
  %3689 = vmatpush1.msra.mxu0 0.0
  %3690 = vmatprep.subr.mxu0 0.0
  %3691 = vmatpush1.msra.mxu0 0.0
  %3692 = vmatprep.subr.mxu0 0.0
  %3693 = vmatpush1.msra.mxu0 0.0
  %3694 = vmatprep.subr.mxu0 0.0
  %3695 = vmatpush1.msra.mxu0 0.0
  %3696 = vmatprep.subr.mxu0 0.0
  %3697 = vmatpush1.msra.mxu0 0.0
  %3698 = vmatprep.subr.mxu0 0.0
  %3699 = vmatpush1.msra.mxu0 0.0
  %3700 = vmatprep.subr.mxu0 0.0
  %3701 = vmatpush1.msra.mxu0 0.0
  %3702 = vmatprep.subr.mxu0 0.0
  %3703 = vmatpush1.msra.mxu0 0.0
  %3704 = vmatprep.subr.mxu0 0.0
  %3705 = vmatpush1.msra.mxu0 0.0
  %3706 = vmatprep.subr.mxu0 0.0
  %3707 = vmatpush1.msra.mxu0 0.0
  %3708 = vmatprep.subr.mxu0 0.0
  %3709 = vmatpush1.msra.mxu0 0.0
  %3710 = vmatprep.subr.mxu0 0.0
  %3711 = vmatpush1.msra.mxu0 0.0
  %3712 = vmatprep.subr.mxu0 0.0
  %3713 = vmatpush1.msra.mxu0 0.0
  %3714 = vmatprep.subr.mxu0 0.0
  %3715 = vmatpush1.msra.mxu0 0.0
  %3716 = vmatprep.subr.mxu0 0.0
  %3717 = vmatpush1.msra.mxu0 0.0
  %3718 = vmatprep.subr.mxu0 0.0
  %3719 = vmatpush1.msra.mxu0 0.0
  %3720 = vmatprep.subr.mxu0 0.0
  %3721 = vmatpush1.msra.mxu0 0.0
  %3722 = vmatprep.mubr.f32.mxu0 0.0
  %3723 = vmatmul.mubr.f32.gmra.mrb[0].mxu0 %v3389
  %v3724 = vpop.f32.mrb[0].mxu0
  %v3725 = vadd.f32 %v3515, %v3724
  %v3726 = vpop.f32.mrb[0].mxu0
  %3727 = vmatprep.mubr.f32.mxu0 0.0
  %3728 = vmatmul.mubr.f32.gmra.mrb[0].mxu0 %v3391
  %v3729 = vpop.f32.mrb[0].mxu0
  %v3730 = vadd.f32 %v3520, %v3729
  %v3731 = vpop.f32.mrb[0].mxu0
  %3732 = vmatprep.mubr.f32.mxu0 0.0
  %3733 = vmatmul.mubr.f32.gmra.mrb[0].mxu0 %v3393
  %v3734 = vpop.f32.mrb[0].mxu0
  %v3735 = vadd.f32 %v3525, %v3734
  %v3736 = vpop.f32.mrb[0].mxu0
  %3737 = vmatprep.mubr.f32.mxu0 0.0
  %3738 = vmatmul.mubr.f32.gmra.mrb[0].mxu0 %v3395
  %v3739 = vpop.f32.mrb[0].mxu0
  %v3740 = vadd.f32 %v3530, %v3739
  %v3741 = vpop.f32.mrb[0].mxu0
  %3742 = vmatprep.mubr.f32.mxu0 0.0
  %3743 = vmatmul.mubr.f32.gmra.mrb[0].mxu0 %v3397
  %v3744 = vpop.f32.mrb[0].mxu0
  %v3745 = vadd.f32 %v3535, %v3744
  %v3746 = vpop.f32.mrb[0].mxu0
  %3747 = vmatprep.mubr.f32.mxu0 0.0
  %3748 = vmatmul.mubr.f32.gmra.mrb[0].mxu0 %v3399
  %v3749 = vpop.f32.mrb[0].mxu0
  %v3750 = vadd.f32 %v3540, %v3749
  %v3751 = vpop.f32.mrb[0].mxu0
  %3752 = vmatprep.mubr.f32.mxu0 0.0
  %3753 = vmatmul.mubr.f32.gmra.mrb[0].mxu0 %v3401
  %v3754 = vpop.f32.mrb[0].mxu0
  %v3755 = vadd.f32 %v3545, %v3754
  %v3756 = vpop.f32.mrb[0].mxu0
  %3757 = vmatprep.mubr.f32.mxu0 0.0
  %3758 = vmatmul.mubr.f32.gmra.mrb[0].mxu0 %v3403
  %v3759 = vpop.f32.mrb[0].mxu0
  %v3760 = vadd.f32 %v3550, %v3759
  %v3761 = vpop.f32.mrb[0].mxu0
  %3762 = vmatprep.mubr.f32.mxu0 0.0
  %3763 = vmatmul.mubr.f32.gmra.mrb[0].mxu0 %v3405
  %v3764 = vpop.f32.mrb[0].mxu0
  %v3765 = vadd.f32 %v3555, %v3764
  %v3766 = vpop.f32.mrb[0].mxu0
  %3767 = vmatprep.mubr.f32.mxu0 0.0
  %3768 = vmatmul.mubr.f32.gmra.mrb[0].mxu0 %v3407
  %v3769 = vpop.f32.mrb[0].mxu0
  %v3770 = vadd.f32 %v3560, %v3769
  %v3771 = vpop.f32.mrb[0].mxu0
  %3772 = vmatprep.mubr.f32.mxu0 0.0
  %3773 = vmatmul.mubr.f32.gmra.mrb[0].mxu0 %v3409
  %v3774 = vpop.f32.mrb[0].mxu0
  %v3775 = vadd.f32 %v3565, %v3774
  %v3776 = vpop.f32.mrb[0].mxu0
  %3777 = vmatprep.mubr.f32.mxu0 0.0
  %3778 = vmatmul.mubr.f32.gmra.mrb[0].mxu0 %v3411
  %v3779 = vpop.f32.mrb[0].mxu0
  %v3780 = vadd.f32 %v3570, %v3779
  %v3781 = vpop.f32.mrb[0].mxu0
  %3782 = vmatprep.mubr.f32.mxu0 0.0
  %3783 = vmatmul.mubr.f32.gmra.mrb[0].mxu0 %v3413
  %v3784 = vpop.f32.mrb[0].mxu0
  %v3785 = vadd.f32 %v3575, %v3784
  %v3786 = vpop.f32.mrb[0].mxu0
  %3787 = vmatprep.mubr.f32.mxu0 0.0
  %3788 = vmatmul.mubr.f32.gmra.mrb[0].mxu0 %v3415
  %v3789 = vpop.f32.mrb[0].mxu0
  %v3790 = vadd.f32 %v3580, %v3789
  %v3791 = vpop.f32.mrb[0].mxu0
  %3792 = vmatprep.mubr.f32.mxu0 0.0
  %3793 = vmatmul.mubr.f32.gmra.mrb[0].mxu0 %v3417
  %v3794 = vpop.f32.mrb[0].mxu0
  %v3795 = vadd.f32 %v3585, %v3794
  %v3796 = vpop.f32.mrb[0].mxu0
  %3797 = vmatprep.mubr.f32.mxu0 0.0
  %3798 = vmatmul.mubr.f32.gmra.mrb[0].mxu0 %v3419
  %v3799 = vpop.f32.mrb[0].mxu0
  %v3800 = vadd.f32 %v3590, %v3799
  %v3801 = vpop.f32.mrb[0].mxu0
  %3802 = vmatprep.mubr.f32.mxu0 0.0
  %3803 = vmatmul.mubr.f32.gmra.mrb[0].mxu0 %v3421
  %v3804 = vpop.f32.mrb[0].mxu0
  %v3805 = vadd.f32 %v3595, %v3804
  %v3806 = vpop.f32.mrb[0].mxu0
  %3807 = vmatprep.mubr.f32.mxu0 0.0
  %3808 = vmatmul.mubr.f32.gmra.mrb[0].mxu0 %v3423
  %v3809 = vpop.f32.mrb[0].mxu0
  %v3810 = vadd.f32 %v3600, %v3809
  %v3811 = vpop.f32.mrb[0].mxu0
  %3812 = vmatprep.mubr.f32.mxu0 0.0
  %3813 = vmatmul.mubr.f32.gmra.mrb[0].mxu0 %v3425
  %v3814 = vpop.f32.mrb[0].mxu0
  %v3815 = vadd.f32 %v3605, %v3814
  %v3816 = vpop.f32.mrb[0].mxu0
  %3817 = vmatprep.mubr.f32.mxu0 0.0
  %3818 = vmatmul.mubr.f32.gmra.mrb[0].mxu0 %v3427
  %v3819 = vpop.f32.mrb[0].mxu0
  %v3820 = vadd.f32 %v3610, %v3819
  %v3821 = vpop.f32.mrb[0].mxu0
  %3822 = vmatprep.mubr.f32.mxu0 0.0
  %3823 = vmatmul.mubr.f32.gmra.mrb[0].mxu0 %v3429
  %v3824 = vpop.f32.mrb[0].mxu0
  %v3825 = vadd.f32 %v3615, %v3824
  %v3826 = vpop.f32.mrb[0].mxu0
  %3827 = vmatprep.mubr.f32.mxu0 0.0
  %3828 = vmatmul.mubr.f32.gmra.mrb[0].mxu0 %v3431
  %v3829 = vpop.f32.mrb[0].mxu0
  %v3830 = vadd.f32 %v3620, %v3829
  %v3831 = vpop.f32.mrb[0].mxu0
  %3832 = vmatprep.mubr.f32.mxu0 0.0
  %3833 = vmatmul.mubr.f32.gmra.mrb[0].mxu0 %v3433
  %v3834 = vpop.f32.mrb[0].mxu0
  %v3835 = vadd.f32 %v3625, %v3834
  %v3836 = vpop.f32.mrb[0].mxu0
  %3837 = vmatprep.mubr.f32.mxu0 0.0
  %3838 = vmatmul.mubr.f32.gmra.mrb[0].mxu0 %v3435
  %v3839 = vpop.f32.mrb[0].mxu0
  %v3840 = vadd.f32 %v3630, %v3839
  %v3841 = vpop.f32.mrb[0].mxu0
  %3842 = vmatprep.mubr.f32.mxu0 0.0
  %3843 = vmatmul.mubr.f32.gmra.mrb[0].mxu0 %v3437
  %v3844 = vpop.f32.mrb[0].mxu0
  %v3845 = vadd.f32 %v3635, %v3844
  %v3846 = vpop.f32.mrb[0].mxu0
  %3847 = vmatprep.mubr.f32.mxu0 0.0
  %3848 = vmatmul.mubr.f32.gmra.mrb[0].mxu0 %v3439
  %v3849 = vpop.f32.mrb[0].mxu0
  %v3850 = vadd.f32 %v3640, %v3849
  %v3851 = vpop.f32.mrb[0].mxu0
  %3852 = vmatprep.mubr.f32.mxu0 0.0
  %3853 = vmatmul.mubr.f32.gmra.mrb[0].mxu0 %v3441
  %v3854 = vpop.f32.mrb[0].mxu0
  %v3855 = vadd.f32 %v3645, %v3854
  %v3856 = vpop.f32.mrb[0].mxu0
  %3857 = vmatprep.mubr.f32.mxu0 0.0
  %3858 = vmatmul.mubr.f32.gmra.mrb[0].mxu0 %v3443
  %v3859 = vpop.f32.mrb[0].mxu0
  %v3860 = vadd.f32 %v3650, %v3859
  %v3861 = vpop.f32.mrb[0].mxu0
  %3862 = vmatprep.mubr.f32.mxu0 0.0
  %3863 = vmatmul.mubr.f32.gmra.mrb[0].mxu0 %v3446
  %v3864 = vpop.f32.mrb[0].mxu0
  %v3865 = vadd.f32 %v3655, %v3864
  %v3866 = vpop.f32.mrb[0].mxu0
  %3867 = vdwg.mxu0
  %3869 = vset.pattern.permute.xlu0 0
  %3870 = vperm.xlu0 %3869, %v238
  %v3871 = vpop.permute.xlu0 %3870
  %3874 = vset.pattern.permute.xlu0 0
  %3875 = vperm.xlu0 %3874, %v239
  %v3876 = vpop.permute.xlu0 %3875
  %3879 = vset.pattern.permute.xlu0 0
  %3880 = vperm.xlu0 %3879, %v240
  %v3881 = vpop.permute.xlu0 %3880
  %3884 = vset.pattern.permute.xlu0 0
  %3885 = vperm.xlu0 %3884, %v241
  %v3886 = vpop.permute.xlu0 %3885
  %3889 = vset.pattern.permute.xlu0 0
  %3890 = vperm.xlu0 %3889, %v242
  %v3891 = vpop.permute.xlu0 %3890
  %3894 = vset.pattern.permute.xlu0 0
  %3895 = vperm.xlu0 %3894, %v243
  %v3896 = vpop.permute.xlu0 %3895
  %3899 = vset.pattern.permute.xlu0 0
  %3900 = vperm.xlu0 %3899, %v244
  %v3901 = vpop.permute.xlu0 %3900
  %3904 = vset.pattern.permute.xlu0 0
  %3905 = vperm.xlu0 %3904, %v245
  %v3906 = vpop.permute.xlu0 %3905
  %3909 = vset.pattern.permute.xlu0 0
  %3910 = vperm.xlu0 %3909, %v246
  %v3911 = vpop.permute.xlu0 %3910
  %3914 = vset.pattern.permute.xlu0 0
  %3915 = vperm.xlu0 %3914, %v247
  %v3916 = vpop.permute.xlu0 %3915
  %3919 = vset.pattern.permute.xlu0 0
  %3920 = vperm.xlu0 %3919, %v248
  %v3921 = vpop.permute.xlu0 %3920
  %3924 = vset.pattern.permute.xlu0 0
  %3925 = vperm.xlu0 %3924, %v249
  %v3926 = vpop.permute.xlu0 %3925
  %3929 = vset.pattern.permute.xlu0 0
  %3930 = vperm.xlu0 %3929, %v250
  %v3931 = vpop.permute.xlu0 %3930
  %3934 = vset.pattern.permute.xlu0 0
  %3935 = vperm.xlu0 %3934, %v251
  %v3936 = vpop.permute.xlu0 %3935
  %3939 = vset.pattern.permute.xlu0 0
  %3940 = vperm.xlu0 %3939, %v252
  %v3941 = vpop.permute.xlu0 %3940
  %3944 = vset.pattern.permute.xlu0 0
  %3945 = vperm.xlu0 %3944, %v253
  %v3946 = vpop.permute.xlu0 %3945
  %3949 = vset.pattern.permute.xlu0 0
  %3950 = vperm.xlu0 %3949, %v254
  %v3951 = vpop.permute.xlu0 %3950
  %3954 = vset.pattern.permute.xlu0 0
  %3955 = vperm.xlu0 %3954, %v255
  %v3956 = vpop.permute.xlu0 %3955
  %3959 = vset.pattern.permute.xlu0 0
  %3960 = vperm.xlu0 %3959, %v256
  %v3961 = vpop.permute.xlu0 %3960
  %3964 = vset.pattern.permute.xlu0 0
  %3965 = vperm.xlu0 %3964, %v257
  %v3966 = vpop.permute.xlu0 %3965
  %3969 = vset.pattern.permute.xlu0 0
  %3970 = vperm.xlu0 %3969, %v258
  %v3971 = vpop.permute.xlu0 %3970
  %3974 = vset.pattern.permute.xlu0 0
  %3975 = vperm.xlu0 %3974, %v259
  %v3976 = vpop.permute.xlu0 %3975
  %3979 = vset.pattern.permute.xlu0 0
  %3980 = vperm.xlu0 %3979, %v260
  %v3981 = vpop.permute.xlu0 %3980
  %3984 = vset.pattern.permute.xlu0 0
  %3985 = vperm.xlu0 %3984, %v261
  %v3986 = vpop.permute.xlu0 %3985
  %3989 = vset.pattern.permute.xlu0 0
  %3990 = vperm.xlu0 %3989, %v262
  %v3991 = vpop.permute.xlu0 %3990
  %3994 = vset.pattern.permute.xlu0 0
  %3995 = vperm.xlu0 %3994, %v263
  %v3996 = vpop.permute.xlu0 %3995
  %3999 = vset.pattern.permute.xlu0 0
  %4000 = vperm.xlu0 %3999, %v264
  %v4001 = vpop.permute.xlu0 %4000
  %4004 = vset.pattern.permute.xlu0 0
  %4005 = vperm.xlu0 %4004, %v265
  %v4006 = vpop.permute.xlu0 %4005
  %4009 = vset.pattern.permute.xlu0 0
  %4010 = vperm.xlu0 %4009, %v266
  %v4011 = vpop.permute.xlu0 %4010
  %v4013 = vmul.f32 %v3725, %v3871
  %v4014 = vmul.f32 %v3730, %v3876
  %v4015 = vmul.f32 %v3735, %v3881
  %v4016 = vmul.f32 %v3740, %v3886
  %v4017 = vmul.f32 %v3745, %v3891
  %v4018 = vmul.f32 %v3750, %v3896
  %v4019 = vmul.f32 %v3755, %v3901
  %v4020 = vmul.f32 %v3760, %v3906
  %v4021 = vmul.f32 %v3765, %v3911
  %v4022 = vmul.f32 %v3770, %v3916
  %v4023 = vmul.f32 %v3775, %v3921
  %v4024 = vmul.f32 %v3780, %v3926
  %v4025 = vmul.f32 %v3785, %v3931
  %v4026 = vmul.f32 %v3790, %v3936
  %v4027 = vmul.f32 %v3795, %v3941
  %v4028 = vmul.f32 %v3800, %v3946
  %v4029 = vmul.f32 %v3805, %v3951
  %v4030 = vmul.f32 %v3810, %v3956
  %v4031 = vmul.f32 %v3815, %v3961
  %v4032 = vmul.f32 %v3820, %v3966
  %v4033 = vmul.f32 %v3825, %v3971
  %v4034 = vmul.f32 %v3830, %v3976
  %v4035 = vmul.f32 %v3835, %v3981
  %v4036 = vmul.f32 %v3840, %v3986
  %v4037 = vmul.f32 %v3845, %v3991
  %v4038 = vmul.f32 %v3850, %v3996
  %v4039 = vmul.f32 %v3855, %v4001
  %v4040 = vmul.f32 %v3860, %v4006
  %v4041 = vmul.f32 %v3865, %v4011
  %v4042 = vsel %vm3262, %v4013, 0.0
  %v4043 = vsel %vm3262, %v4014, 0.0
  %v4044 = vadd.f32 %v4042, %v4043
  %v4045 = vsel %vm3262, %v4015, 0.0
  %v4046 = vadd.f32 %v4044, %v4045
  %v4047 = vsel %vm3262, %v4016, 0.0
  %v4048 = vadd.f32 %v4046, %v4047
  %v4049 = vsel %vm3262, %v4017, 0.0
  %v4050 = vadd.f32 %v4048, %v4049
  %v4051 = vsel %vm3262, %v4018, 0.0
  %v4052 = vadd.f32 %v4050, %v4051
  %v4053 = vsel %vm3262, %v4019, 0.0
  %v4054 = vadd.f32 %v4052, %v4053
  %v4055 = vsel %vm3262, %v4020, 0.0
  %v4056 = vadd.f32 %v4054, %v4055
  %v4057 = vsel %vm3262, %v4021, 0.0
  %v4058 = vadd.f32 %v4056, %v4057
  %v4059 = vsel %vm3262, %v4022, 0.0
  %v4060 = vadd.f32 %v4058, %v4059
  %v4061 = vsel %vm3262, %v4023, 0.0
  %v4062 = vadd.f32 %v4060, %v4061
  %v4063 = vsel %vm3262, %v4024, 0.0
  %v4064 = vadd.f32 %v4062, %v4063
  %v4065 = vsel %vm3262, %v4025, 0.0
  %v4066 = vadd.f32 %v4064, %v4065
  %v4067 = vsel %vm3262, %v4026, 0.0
  %v4068 = vadd.f32 %v4066, %v4067
  %v4069 = vsel %vm3262, %v4027, 0.0
  %v4070 = vadd.f32 %v4068, %v4069
  %v4071 = vsel %vm3262, %v4028, 0.0
  %v4072 = vadd.f32 %v4070, %v4071
  %v4073 = vsel %vm3262, %v4029, 0.0
  %v4074 = vadd.f32 %v4072, %v4073
  %v4075 = vsel %vm3262, %v4030, 0.0
  %v4076 = vadd.f32 %v4074, %v4075
  %v4077 = vsel %vm3262, %v4031, 0.0
  %v4078 = vadd.f32 %v4076, %v4077
  %v4079 = vsel %vm3262, %v4032, 0.0
  %v4080 = vadd.f32 %v4078, %v4079
  %v4081 = vsel %vm3262, %v4033, 0.0
  %v4082 = vadd.f32 %v4080, %v4081
  %v4083 = vsel %vm3262, %v4034, 0.0
  %v4084 = vadd.f32 %v4082, %v4083
  %v4085 = vsel %vm3262, %v4035, 0.0
  %v4086 = vadd.f32 %v4084, %v4085
  %v4087 = vsel %vm3262, %v4036, 0.0
  %v4088 = vadd.f32 %v4086, %v4087
  %v4089 = vsel %vm3262, %v4037, 0.0
  %v4090 = vadd.f32 %v4088, %v4089
  %v4091 = vsel %vm3262, %v4038, 0.0
  %v4092 = vadd.f32 %v4090, %v4091
  %v4093 = vsel %vm3262, %v4039, 0.0
  %v4094 = vadd.f32 %v4092, %v4093
  %v4095 = vsel %vm3262, %v4040, 0.0
  %v4096 = vadd.f32 %v4094, %v4095
  %vm4097 = vcmask 516096
  %v4098 = vsel %vm4097, %v4041, 0.0
  %v4099 = vadd.f32 %v4096, %v4098
  %v4100 = vrot.slane %v4099, 4
  %v4101 = vadd.f32 %v4099, %v4100
  %v4102 = vrot.slane %v4101, 2
  %v4103 = vadd.f32 %v4101, %v4102
  %v4104 = vrot.slane %v4103, 1
  %v4105 = vadd.f32 %v4103, %v4104
  %v4106 = vsel %vm3262, %v4105, 0.0
  %4107 = vadd.xlane.f32.xlu0 %v4106
  %v4108 = vpop.xlane.xlu0 %4107
  %v4109 = vmul.f32 %v4108, 0.00012913223
  %v4110 = vsub.f32 %v4013, %v4109
  %v4111 = vsub.f32 %v4014, %v4109
  %v4112 = vsub.f32 %v4015, %v4109
  %v4113 = vsub.f32 %v4016, %v4109
  %v4114 = vsub.f32 %v4017, %v4109
  %v4115 = vsub.f32 %v4018, %v4109
  %v4116 = vsub.f32 %v4019, %v4109
  %v4117 = vsub.f32 %v4020, %v4109
  %v4118 = vsub.f32 %v4021, %v4109
  %v4119 = vsub.f32 %v4022, %v4109
  %v4120 = vsub.f32 %v4023, %v4109
  %v4121 = vsub.f32 %v4024, %v4109
  %v4122 = vsub.f32 %v4025, %v4109
  %v4123 = vsub.f32 %v4026, %v4109
  %v4124 = vsub.f32 %v4027, %v4109
  %v4125 = vsub.f32 %v4028, %v4109
  %v4126 = vsub.f32 %v4029, %v4109
  %v4127 = vsub.f32 %v4030, %v4109
  %v4128 = vsub.f32 %v4031, %v4109
  %v4129 = vsub.f32 %v4032, %v4109
  %v4130 = vsub.f32 %v4033, %v4109
  %v4131 = vsub.f32 %v4034, %v4109
  %v4132 = vsub.f32 %v4035, %v4109
  %v4133 = vsub.f32 %v4036, %v4109
  %v4134 = vsub.f32 %v4037, %v4109
  %v4135 = vsub.f32 %v4038, %v4109
  %v4136 = vsub.f32 %v4039, %v4109
  %v4137 = vsub.f32 %v4040, %v4109
  %v4138 = vsub.f32 %v4041, %v4109
  %v4139 = vmul.f32 %v4110, %v3871
  %v4140 = vmul.f32 %v4111, %v3876
  %v4141 = vmul.f32 %v4112, %v3881
  %v4142 = vmul.f32 %v4113, %v3886
  %v4143 = vmul.f32 %v4114, %v3891
  %v4144 = vmul.f32 %v4115, %v3896
  %v4145 = vmul.f32 %v4116, %v3901
  %v4146 = vmul.f32 %v4117, %v3906
  %v4147 = vmul.f32 %v4118, %v3911
  %v4148 = vmul.f32 %v4119, %v3916
  %v4149 = vmul.f32 %v4120, %v3921
  %v4150 = vmul.f32 %v4121, %v3926
  %v4151 = vmul.f32 %v4122, %v3931
  %v4152 = vmul.f32 %v4123, %v3936
  %v4153 = vmul.f32 %v4124, %v3941
  %v4154 = vmul.f32 %v4125, %v3946
  %v4155 = vmul.f32 %v4126, %v3951
  %v4156 = vmul.f32 %v4127, %v3956
  %v4157 = vmul.f32 %v4128, %v3961
  %v4158 = vmul.f32 %v4129, %v3966
  %v4159 = vmul.f32 %v4130, %v3971
  %v4160 = vmul.f32 %v4131, %v3976
  %v4161 = vmul.f32 %v4132, %v3981
  %v4162 = vmul.f32 %v4133, %v3986
  %v4163 = vmul.f32 %v4134, %v3991
  %v4164 = vmul.f32 %v4135, %v3996
  %v4165 = vmul.f32 %v4136, %v4001
  %v4166 = vmul.f32 %v4137, %v4006
  %v4167 = vmul.f32 %v4138, %v4011
  %v4168 = vmul.f32 %v4139, %v4139
  %v4169 = vmul.f32 %v4140, %v4140
  %v4170 = vmul.f32 %v4141, %v4141
  %v4171 = vmul.f32 %v4142, %v4142
  %v4172 = vmul.f32 %v4143, %v4143
  %v4173 = vmul.f32 %v4144, %v4144
  %v4174 = vmul.f32 %v4145, %v4145
  %v4175 = vmul.f32 %v4146, %v4146
  %v4176 = vmul.f32 %v4147, %v4147
  %v4177 = vmul.f32 %v4148, %v4148
  %v4178 = vmul.f32 %v4149, %v4149
  %v4179 = vmul.f32 %v4150, %v4150
  %v4180 = vmul.f32 %v4151, %v4151
  %v4181 = vmul.f32 %v4152, %v4152
  %v4182 = vmul.f32 %v4153, %v4153
  %v4183 = vmul.f32 %v4154, %v4154
  %v4184 = vmul.f32 %v4155, %v4155
  %v4185 = vmul.f32 %v4156, %v4156
  %v4186 = vmul.f32 %v4157, %v4157
  %v4187 = vmul.f32 %v4158, %v4158
  %v4188 = vmul.f32 %v4159, %v4159
  %v4189 = vmul.f32 %v4160, %v4160
  %v4190 = vmul.f32 %v4161, %v4161
  %v4191 = vmul.f32 %v4162, %v4162
  %v4192 = vmul.f32 %v4163, %v4163
  %v4193 = vmul.f32 %v4164, %v4164
  %v4194 = vmul.f32 %v4165, %v4165
  %v4195 = vmul.f32 %v4166, %v4166
  %v4196 = vmul.f32 %v4167, %v4167
  %v4197 = vsel %vm3262, %v4168, 0.0
  %v4198 = vsel %vm3262, %v4169, 0.0
  %v4199 = vadd.f32 %v4197, %v4198
  %v4200 = vsel %vm3262, %v4170, 0.0
  %v4201 = vadd.f32 %v4199, %v4200
  %v4202 = vsel %vm3262, %v4171, 0.0
  %v4203 = vadd.f32 %v4201, %v4202
  %v4204 = vsel %vm3262, %v4172, 0.0
  %v4205 = vadd.f32 %v4203, %v4204
  %v4206 = vsel %vm3262, %v4173, 0.0
  %v4207 = vadd.f32 %v4205, %v4206
  %v4208 = vsel %vm3262, %v4174, 0.0
  %v4209 = vadd.f32 %v4207, %v4208
  %v4210 = vsel %vm3262, %v4175, 0.0
  %v4211 = vadd.f32 %v4209, %v4210
  %v4212 = vsel %vm3262, %v4176, 0.0
  %v4213 = vadd.f32 %v4211, %v4212
  %v4214 = vsel %vm3262, %v4177, 0.0
  %v4215 = vadd.f32 %v4213, %v4214
  %v4216 = vsel %vm3262, %v4178, 0.0
  %v4217 = vadd.f32 %v4215, %v4216
  %v4218 = vsel %vm3262, %v4179, 0.0
  %v4219 = vadd.f32 %v4217, %v4218
  %v4220 = vsel %vm3262, %v4180, 0.0
  %v4221 = vadd.f32 %v4219, %v4220
  %v4222 = vsel %vm3262, %v4181, 0.0
  %v4223 = vadd.f32 %v4221, %v4222
  %v4224 = vsel %vm3262, %v4182, 0.0
  %v4225 = vadd.f32 %v4223, %v4224
  %v4226 = vsel %vm3262, %v4183, 0.0
  %v4227 = vadd.f32 %v4225, %v4226
  %v4228 = vsel %vm3262, %v4184, 0.0
  %v4229 = vadd.f32 %v4227, %v4228
  %v4230 = vsel %vm3262, %v4185, 0.0
  %v4231 = vadd.f32 %v4229, %v4230
  %v4232 = vsel %vm3262, %v4186, 0.0
  %v4233 = vadd.f32 %v4231, %v4232
  %v4234 = vsel %vm3262, %v4187, 0.0
  %v4235 = vadd.f32 %v4233, %v4234
  %v4236 = vsel %vm3262, %v4188, 0.0
  %v4237 = vadd.f32 %v4235, %v4236
  %v4238 = vsel %vm3262, %v4189, 0.0
  %v4239 = vadd.f32 %v4237, %v4238
  %v4240 = vsel %vm3262, %v4190, 0.0
  %v4241 = vadd.f32 %v4239, %v4240
  %v4242 = vsel %vm3262, %v4191, 0.0
  %v4243 = vadd.f32 %v4241, %v4242
  %v4244 = vsel %vm3262, %v4192, 0.0
  %v4245 = vadd.f32 %v4243, %v4244
  %v4246 = vsel %vm3262, %v4193, 0.0
  %v4247 = vadd.f32 %v4245, %v4246
  %v4248 = vsel %vm3262, %v4194, 0.0
  %v4249 = vadd.f32 %v4247, %v4248
  %v4250 = vsel %vm3262, %v4195, 0.0
  %v4251 = vadd.f32 %v4249, %v4250
  %v4252 = vsel %vm4097, %v4196, 0.0
  %v4253 = vadd.f32 %v4251, %v4252
  %v4254 = vrot.slane %v4253, 4
  %v4255 = vadd.f32 %v4253, %v4254
  %v4256 = vrot.slane %v4255, 2
  %v4257 = vadd.f32 %v4255, %v4256
  %v4258 = vrot.slane %v4257, 1
  %v4259 = vadd.f32 %v4257, %v4258
  %v4260 = vsel %vm3262, %v4259, 0.0
  %4261 = vadd.xlane.f32.xlu0 %v4260
  %v4262 = vpop.xlane.xlu0 %4261
  %v4263 = vmul.f32 %v4262, 0.00012913223
  %v4264 = vadd.f32 %v4263, 1e-05
  %v4265 = vrsqrt.pop %v4264
  %v4266 = vmul.f32 %v4110, %v4265
  %v4267 = vmul.f32 %v4111, %v4265
  %v4268 = vmul.f32 %v4112, %v4265
  %v4269 = vmul.f32 %v4113, %v4265
  %v4270 = vmul.f32 %v4114, %v4265
  %v4271 = vmul.f32 %v4115, %v4265
  %v4272 = vmul.f32 %v4116, %v4265
  %v4273 = vmul.f32 %v4117, %v4265
  %v4274 = vmul.f32 %v4118, %v4265
  %v4275 = vmul.f32 %v4119, %v4265
  %v4276 = vmul.f32 %v4120, %v4265
  %v4277 = vmul.f32 %v4121, %v4265
  %v4278 = vmul.f32 %v4122, %v4265
  %v4279 = vmul.f32 %v4123, %v4265
  %v4280 = vmul.f32 %v4124, %v4265
  %v4281 = vmul.f32 %v4125, %v4265
  %v4282 = vmul.f32 %v4126, %v4265
  %v4283 = vmul.f32 %v4127, %v4265
  %v4284 = vmul.f32 %v4128, %v4265
  %v4285 = vmul.f32 %v4129, %v4265
  %v4286 = vmul.f32 %v4130, %v4265
  %v4287 = vmul.f32 %v4131, %v4265
  %v4288 = vmul.f32 %v4132, %v4265
  %v4289 = vmul.f32 %v4133, %v4265
  %v4290 = vmul.f32 %v4134, %v4265
  %v4291 = vmul.f32 %v4135, %v4265
  %v4292 = vmul.f32 %v4136, %v4265
  %v4293 = vmul.f32 %v4137, %v4265
  %v4294 = vmul.f32 %v4138, %v4265
  %v4295 = vmul.f32 %v4266, %v180
  %v4296 = vmul.f32 %v4267, %v181
  %v4297 = vmul.f32 %v4268, %v182
  %v4298 = vmul.f32 %v4269, %v183
  %v4299 = vmul.f32 %v4270, %v184
  %v4300 = vmul.f32 %v4271, %v185
  %v4301 = vmul.f32 %v4272, %v186
  %v4302 = vmul.f32 %v4273, %v187
  %v4303 = vmul.f32 %v4274, %v188
  %v4304 = vmul.f32 %v4275, %v189
  %v4305 = vmul.f32 %v4276, %v190
  %v4306 = vmul.f32 %v4277, %v191
  %v4307 = vmul.f32 %v4278, %v192
  %v4308 = vmul.f32 %v4279, %v193
  %v4309 = vmul.f32 %v4280, %v194
  %v4310 = vmul.f32 %v4281, %v195
  %v4311 = vmul.f32 %v4282, %v196
  %v4312 = vmul.f32 %v4283, %v197
  %v4313 = vmul.f32 %v4284, %v198
  %v4314 = vmul.f32 %v4285, %v199
  %v4315 = vmul.f32 %v4286, %v200
  %v4316 = vmul.f32 %v4287, %v201
  %v4317 = vmul.f32 %v4288, %v202
  %v4318 = vmul.f32 %v4289, %v203
  %v4319 = vmul.f32 %v4290, %v204
  %v4320 = vmul.f32 %v4291, %v205
  %v4321 = vmul.f32 %v4292, %v206
  %v4322 = vmul.f32 %v4293, %v207
  %v4323 = vmul.f32 %v4294, %v208
  %v4324 = vadd.f32 %v4295, %v209
  %v4325 = vadd.f32 %v4296, %v210
  %v4326 = vadd.f32 %v4297, %v211
  %v4327 = vadd.f32 %v4298, %v212
  %v4328 = vadd.f32 %v4299, %v213
  %v4329 = vadd.f32 %v4300, %v214
  %v4330 = vadd.f32 %v4301, %v215
  %v4331 = vadd.f32 %v4302, %v216
  %v4332 = vadd.f32 %v4303, %v217
  %v4333 = vadd.f32 %v4304, %v218
  %v4334 = vadd.f32 %v4305, %v219
  %v4335 = vadd.f32 %v4306, %v220
  %v4336 = vadd.f32 %v4307, %v221
  %v4337 = vadd.f32 %v4308, %v222
  %v4338 = vadd.f32 %v4309, %v223
  %v4339 = vadd.f32 %v4310, %v224
  %v4340 = vadd.f32 %v4311, %v225
  %v4341 = vadd.f32 %v4312, %v226
  %v4342 = vadd.f32 %v4313, %v227
  %v4343 = vadd.f32 %v4314, %v228
  %v4344 = vadd.f32 %v4315, %v229
  %v4345 = vadd.f32 %v4316, %v230
  %v4346 = vadd.f32 %v4317, %v231
  %v4347 = vadd.f32 %v4318, %v232
  %v4348 = vadd.f32 %v4319, %v233
  %v4349 = vadd.f32 %v4320, %v234
  %v4350 = vadd.f32 %v4321, %v235
  %v4351 = vadd.f32 %v4322, %v236
  %v4352 = vadd.f32 %v4323, %v237
  %v4353 = vmax.f32 %v4324, 0.0
  %v4354 = vmax.f32 %v4325, 0.0
  %v4355 = vmax.f32 %v4326, 0.0
  %v4356 = vmax.f32 %v4327, 0.0
  %v4357 = vmax.f32 %v4328, 0.0
  %v4358 = vmax.f32 %v4329, 0.0
  %v4359 = vmax.f32 %v4330, 0.0
  %v4360 = vmax.f32 %v4331, 0.0
  %v4361 = vmax.f32 %v4332, 0.0
  %v4362 = vmax.f32 %v4333, 0.0
  %v4363 = vmax.f32 %v4334, 0.0
  %v4364 = vmax.f32 %v4335, 0.0
  %v4365 = vmax.f32 %v4336, 0.0
  %v4366 = vmax.f32 %v4337, 0.0
  %v4367 = vmax.f32 %v4338, 0.0
  %v4368 = vmax.f32 %v4339, 0.0
  %v4369 = vmax.f32 %v4340, 0.0
  %v4370 = vmax.f32 %v4341, 0.0
  %v4371 = vmax.f32 %v4342, 0.0
  %v4372 = vmax.f32 %v4343, 0.0
  %v4373 = vmax.f32 %v4344, 0.0
  %v4374 = vmax.f32 %v4345, 0.0
  %v4375 = vmax.f32 %v4346, 0.0
  %v4376 = vmax.f32 %v4347, 0.0
  %v4377 = vmax.f32 %v4348, 0.0
  %v4378 = vmax.f32 %v4349, 0.0
  %v4379 = vmax.f32 %v4350, 0.0
  %v4380 = vmax.f32 %v4351, 0.0
  %v4381 = vmax.f32 %v4352, 0.0
  %v4382 = vpack.c.bf16 %v4354, %v4353
  %v4383 = vpack.c.bf16 %v4356, %v4355
  %v4384 = vpack.c.bf16 %v4358, %v4357
  %v4385 = vpack.c.bf16 %v4360, %v4359
  %v4386 = vpack.c.bf16 %v4362, %v4361
  %v4387 = vpack.c.bf16 %v4364, %v4363
  %v4388 = vpack.c.bf16 %v4366, %v4365
  %v4389 = vpack.c.bf16 %v4368, %v4367
  %v4390 = vpack.c.bf16 %v4370, %v4369
  %v4391 = vpack.c.bf16 %v4372, %v4371
  %v4392 = vpack.c.bf16 %v4374, %v4373
  %v4393 = vpack.c.bf16 %v4376, %v4375
  %v4394 = vpack.c.bf16 %v4378, %v4377
  %v4395 = vpack.c.bf16 %v4380, %v4379
  %v4396 = vpack.c.bf16 %v4381, %v4381
  %v4412 = vunpack.c.l.b16 %v4382
  %v4413 = vunpack.c.h.b16 %v4382
  %v4414 = vunpack.c.l.b16 %v4383
  %v4415 = vunpack.c.h.b16 %v4383
  %v4416 = vunpack.c.l.b16 %v4384
  %v4417 = vunpack.c.h.b16 %v4384
  %v4418 = vunpack.c.l.b16 %v4385
  %v4419 = vunpack.c.h.b16 %v4385
  %v4420 = vunpack.c.l.b16 %v4386
  %v4421 = vunpack.c.h.b16 %v4386
  %v4422 = vunpack.c.l.b16 %v4387
  %v4423 = vunpack.c.h.b16 %v4387
  %v4424 = vunpack.c.l.b16 %v4388
  %v4425 = vunpack.c.h.b16 %v4388
  %v4426 = vunpack.c.l.b16 %v4389
  %v4427 = vunpack.c.h.b16 %v4389
  %v4428 = vunpack.c.l.b16 %v4390
  %v4429 = vunpack.c.h.b16 %v4390
  %v4430 = vunpack.c.l.b16 %v4391
  %v4431 = vunpack.c.h.b16 %v4391
  %v4432 = vunpack.c.l.b16 %v4392
  %v4433 = vunpack.c.h.b16 %v4392
  %v4434 = vunpack.c.l.b16 %v4393
  %v4435 = vunpack.c.h.b16 %v4393
  %v4436 = vunpack.c.l.b16 %v4394
  %v4437 = vunpack.c.h.b16 %v4394
  %v4438 = vunpack.c.l.b16 %v4395
  %v4439 = vunpack.c.h.b16 %v4395
  %v4440 = vunpack.c.l.b16 %v4396
  %v4441 = vpack.c.b16 %v4412, %v4412
  %v4442 = vpack.c.b16 %v4413, %v4413
  %v4443 = vpack.c.b16 %v4414, %v4414
  %v4444 = vpack.c.b16 %v4415, %v4415
  %v4445 = vpack.c.b16 %v4416, %v4416
  %v4446 = vpack.c.b16 %v4417, %v4417
  %v4447 = vpack.c.b16 %v4418, %v4418
  %v4448 = vpack.c.b16 %v4419, %v4419
  %v4449 = vpack.c.b16 %v4420, %v4420
  %v4450 = vpack.c.b16 %v4421, %v4421
  %v4451 = vpack.c.b16 %v4422, %v4422
  %v4452 = vpack.c.b16 %v4423, %v4423
  %v4453 = vpack.c.b16 %v4424, %v4424
  %v4454 = vpack.c.b16 %v4425, %v4425
  %v4455 = vpack.c.b16 %v4426, %v4426
  %v4456 = vpack.c.b16 %v4427, %v4427
  %v4457 = vpack.c.b16 %v4428, %v4428
  %v4458 = vpack.c.b16 %v4429, %v4429
  %v4459 = vpack.c.b16 %v4430, %v4430
  %v4460 = vpack.c.b16 %v4431, %v4431
  %v4461 = vpack.c.b16 %v4432, %v4432
  %v4462 = vpack.c.b16 %v4433, %v4433
  %v4463 = vpack.c.b16 %v4434, %v4434
  %v4464 = vpack.c.b16 %v4435, %v4435
  %v4465 = vpack.c.b16 %v4436, %v4436
  %v4466 = vpack.c.b16 %v4437, %v4437
  %v4467 = vpack.c.b16 %v4438, %v4438
  %v4468 = vpack.c.b16 %v4439, %v4439
  %v4469 = vpack.c.b16 %v4440, %v4440
  %vm4499 = vcmask 519168
  %4500 = vst.msk [vmem:[%s11] sm:$0xf] %vm4499, %v4441
  %4501 = vst.msk [vmem:[%s11 + $0x4] sm:$0xf] %vm4499, %v4442
  %4502 = vst.msk [vmem:[%s11 + $0x8] sm:$0xf] %vm4499, %v4443
  %4503 = vst.msk [vmem:[%s11 + $0xc] sm:$0xf] %vm4499, %v4444
  %4504 = vst.msk [vmem:[%s11 + $0x10] sm:$0xf] %vm4499, %v4445
  %4505 = vst.msk [vmem:[%s11 + $0x14] sm:$0xf] %vm4499, %v4446
  %4506 = vst.msk [vmem:[%s11 + $0x18] sm:$0xf] %vm4499, %v4447
  %4507 = vst.msk [vmem:[%s11 + $0x1c] sm:$0xf] %vm4499, %v4448
  %4508 = vst.msk [vmem:[%s11 + $0x20] sm:$0xf] %vm4499, %v4449
  %4509 = vst.msk [vmem:[%s11 + $0x24] sm:$0xf] %vm4499, %v4450
  %4510 = vst.msk [vmem:[%s11 + $0x28] sm:$0xf] %vm4499, %v4451
  %4511 = vst.msk [vmem:[%s11 + $0x2c] sm:$0xf] %vm4499, %v4452
  %4512 = vst.msk [vmem:[%s11 + $0x30] sm:$0xf] %vm4499, %v4453
  %4513 = vst.msk [vmem:[%s11 + $0x34] sm:$0xf] %vm4499, %v4454
  %4514 = vst.msk [vmem:[%s11 + $0x38] sm:$0xf] %vm4499, %v4455
  %4515 = vst.msk [vmem:[%s11 + $0x3c] sm:$0xf] %vm4499, %v4456
  %4516 = vst.msk [vmem:[%s11 + $0x40] sm:$0xf] %vm4499, %v4457
  %4517 = vst.msk [vmem:[%s11 + $0x44] sm:$0xf] %vm4499, %v4458
  %4518 = vst.msk [vmem:[%s11 + $0x48] sm:$0xf] %vm4499, %v4459
  %4519 = vst.msk [vmem:[%s11 + $0x4c] sm:$0xf] %vm4499, %v4460
  %4520 = vst.msk [vmem:[%s11 + $0x50] sm:$0xf] %vm4499, %v4461
  %4521 = vst.msk [vmem:[%s11 + $0x54] sm:$0xf] %vm4499, %v4462
  %4522 = vst.msk [vmem:[%s11 + $0x58] sm:$0xf] %vm4499, %v4463
  %4523 = vst.msk [vmem:[%s11 + $0x5c] sm:$0xf] %vm4499, %v4464
  %4524 = vst.msk [vmem:[%s11 + $0x60] sm:$0xf] %vm4499, %v4465
  %4525 = vst.msk [vmem:[%s11 + $0x64] sm:$0xf] %vm4499, %v4466
  %4526 = vst.msk [vmem:[%s11 + $0x68] sm:$0xf] %vm4499, %v4467
  %4527 = vst.msk [vmem:[%s11 + $0x6c] sm:$0xf] %vm4499, %v4468
  %vm4528 = vcmask 516096
  %vm4529 = vsmask.f32 256
  %vm4530 = vmand %vm4528, %vm4529
  %v4531 = vld [vmem:[%s11 + $0x70] sm:$0x1]
  %v4532 = vsel %vm4530, %v4469, %v4531
  %4533 = vst [vmem:[%s11 + $0x70] sm:$0x1] %v4532
  %s4534 = scalar_lea.vmem %s0, 296
  %v4535 = vld [vmem:[%s4534] sm:$0xff]
  %v4536 = vld [vmem:[%s4534 + $0x8] sm:$0xff]
  %v4537 = vld [vmem:[%s4534 + $0x10] sm:$0xff]
  %v4538 = vld [vmem:[%s4534 + $0x18] sm:$0xff]
  %v4539 = vld [vmem:[%s4534 + $0x20] sm:$0xff]
  %v4540 = vld [vmem:[%s4534 + $0x28] sm:$0xff]
  %v4541 = vld [vmem:[%s4534 + $0x30] sm:$0xff]
  %v4542 = vld [vmem:[%s4534 + $0x38] sm:$0xff]
  %v4543 = vld [vmem:[%s4534 + $0x40] sm:$0xff]
  %v4544 = vld [vmem:[%s4534 + $0x48] sm:$0xff]
  %v4545 = vld [vmem:[%s4534 + $0x50] sm:$0xff]
  %v4546 = vld [vmem:[%s4534 + $0x58] sm:$0xff]
  %v4547 = vld [vmem:[%s4534 + $0x60] sm:$0xff]
  %v4548 = vld [vmem:[%s4534 + $0x68] sm:$0xff]
  %v4549 = vld [vmem:[%s4534 + $0x70] sm:$0xff]
  %v4550 = vld [vmem:[%s4534 + $0x78] sm:$0xff]
  %v4551 = vld [vmem:[%s4534 + $0x80] sm:$0xff]
  %v4552 = vld [vmem:[%s4534 + $0x88] sm:$0xff]
  %v4553 = vld [vmem:[%s4534 + $0x90] sm:$0xff]
  %v4554 = vld [vmem:[%s4534 + $0x98] sm:$0xff]
  %v4555 = vld [vmem:[%s4534 + $0xa0] sm:$0xff]
  %v4556 = vld [vmem:[%s4534 + $0xa8] sm:$0xff]
  %v4557 = vld [vmem:[%s4534 + $0xb0] sm:$0xff]
  %v4558 = vld [vmem:[%s4534 + $0xb8] sm:$0xff]
  %v4559 = vld [vmem:[%s4534 + $0xc0] sm:$0xff]
  %v4560 = vld [vmem:[%s4534 + $0xc8] sm:$0xff]
  %v4561 = vld [vmem:[%s4534 + $0xd0] sm:$0xff]
  %v4562 = vld [vmem:[%s4534 + $0xd8] sm:$0xff]
  %v4563 = vld [vmem:[%s4534 + $0xe0] sm:$0xff]
  %v4564 = vld [vmem:[%s4534 + $0xe8] sm:$0xff]
  %v4565 = vld [vmem:[%s4534 + $0xf0] sm:$0xff]
  %v4566 = vld [vmem:[%s4534 + $0xf8] sm:$0xff]
  %v4567 = vld [vmem:[%s4534 + $0x100] sm:$0xff]
  %v4568 = vld [vmem:[%s4534 + $0x108] sm:$0xff]
  %v4569 = vld [vmem:[%s4534 + $0x110] sm:$0xff]
  %v4570 = vld [vmem:[%s4534 + $0x118] sm:$0xff]
  %v4571 = vld [vmem:[%s4534 + $0x120] sm:$0x1]
  %v4605 = vrot.slane %v4535, 1
  %v4606 = vrot.slane %v4536, 1
  %v4607 = vsel %vm337, %v4605, %v4606
  %v4608 = vrot.slane %v4537, 1
  %v4609 = vsel %vm337, %v4606, %v4608
  %v4610 = vrot.slane %v4538, 1
  %v4611 = vsel %vm337, %v4608, %v4610
  %v4612 = vrot.slane %v4539, 1
  %v4613 = vsel %vm337, %v4610, %v4612
  %v4614 = vrot.slane %v4540, 1
  %v4615 = vsel %vm337, %v4612, %v4614
  %v4616 = vrot.slane %v4541, 1
  %v4617 = vsel %vm337, %v4614, %v4616
  %v4618 = vrot.slane %v4542, 1
  %v4619 = vsel %vm337, %v4616, %v4618
  %v4620 = vrot.slane %v4543, 1
  %v4621 = vsel %vm337, %v4618, %v4620
  %v4622 = vrot.slane %v4544, 1
  %v4623 = vsel %vm337, %v4620, %v4622
  %v4624 = vrot.slane %v4545, 1
  %v4625 = vsel %vm337, %v4622, %v4624
  %v4626 = vrot.slane %v4546, 1
  %v4627 = vsel %vm337, %v4624, %v4626
  %v4628 = vrot.slane %v4547, 1
  %v4629 = vsel %vm337, %v4626, %v4628
  %v4630 = vrot.slane %v4548, 1
  %v4631 = vsel %vm337, %v4628, %v4630
  %v4632 = vrot.slane %v4549, 1
  %v4633 = vsel %vm337, %v4630, %v4632
  %v4634 = vrot.slane %v4550, 1
  %v4635 = vsel %vm337, %v4632, %v4634
  %v4636 = vrot.slane %v4551, 1
  %v4637 = vsel %vm337, %v4634, %v4636
  %v4638 = vrot.slane %v4552, 1
  %v4639 = vsel %vm337, %v4636, %v4638
  %v4640 = vrot.slane %v4553, 1
  %v4641 = vsel %vm337, %v4638, %v4640
  %v4642 = vrot.slane %v4554, 1
  %v4643 = vsel %vm337, %v4640, %v4642
  %v4644 = vrot.slane %v4555, 1
  %v4645 = vsel %vm337, %v4642, %v4644
  %v4646 = vrot.slane %v4556, 1
  %v4647 = vsel %vm337, %v4644, %v4646
  %v4648 = vrot.slane %v4557, 1
  %v4649 = vsel %vm337, %v4646, %v4648
  %v4650 = vrot.slane %v4558, 1
  %v4651 = vsel %vm337, %v4648, %v4650
  %v4652 = vrot.slane %v4559, 1
  %v4653 = vsel %vm337, %v4650, %v4652
  %v4654 = vrot.slane %v4560, 1
  %v4655 = vsel %vm337, %v4652, %v4654
  %v4656 = vrot.slane %v4561, 1
  %v4657 = vsel %vm337, %v4654, %v4656
  %v4658 = vrot.slane %v4562, 1
  %v4659 = vsel %vm337, %v4656, %v4658
  %v4660 = vrot.slane %v4563, 1
  %v4661 = vsel %vm337, %v4658, %v4660
  %v4662 = vrot.slane %v4564, 1
  %v4663 = vsel %vm337, %v4660, %v4662
  %v4664 = vrot.slane %v4565, 1
  %v4665 = vsel %vm337, %v4662, %v4664
  %v4666 = vrot.slane %v4566, 1
  %v4667 = vsel %vm337, %v4664, %v4666
  %v4668 = vrot.slane %v4567, 1
  %v4669 = vsel %vm337, %v4666, %v4668
  %4670 = vrot.lane.b32.xlu0 %v4607, 4
  %v4671 = vpop.permute.xlu0 %4670
  %4672 = vrot.lane.b32.xlu0 %v4609, 4
  %v4673 = vpop.permute.xlu0 %4672
  %4674 = vrot.lane.b32.xlu0 %v4611, 4
  %v4675 = vpop.permute.xlu0 %4674
  %4676 = vrot.lane.b32.xlu0 %v4613, 4
  %v4677 = vpop.permute.xlu0 %4676
  %4678 = vrot.lane.b32.xlu0 %v4615, 4
  %v4679 = vpop.permute.xlu0 %4678
  %4680 = vrot.lane.b32.xlu0 %v4617, 4
  %v4681 = vpop.permute.xlu0 %4680
  %4682 = vrot.lane.b32.xlu0 %v4619, 4
  %v4683 = vpop.permute.xlu0 %4682
  %4684 = vrot.lane.b32.xlu0 %v4621, 4
  %v4685 = vpop.permute.xlu0 %4684
  %4686 = vrot.lane.b32.xlu0 %v4623, 4
  %v4687 = vpop.permute.xlu0 %4686
  %4688 = vrot.lane.b32.xlu0 %v4625, 4
  %v4689 = vpop.permute.xlu0 %4688
  %4690 = vrot.lane.b32.xlu0 %v4627, 4
  %v4691 = vpop.permute.xlu0 %4690
  %4692 = vrot.lane.b32.xlu0 %v4629, 4
  %v4693 = vpop.permute.xlu0 %4692
  %4694 = vrot.lane.b32.xlu0 %v4631, 4
  %v4695 = vpop.permute.xlu0 %4694
  %4696 = vrot.lane.b32.xlu0 %v4633, 4
  %v4697 = vpop.permute.xlu0 %4696
  %4698 = vrot.lane.b32.xlu0 %v4635, 4
  %v4699 = vpop.permute.xlu0 %4698
  %4700 = vrot.lane.b32.xlu0 %v4637, 4
  %v4701 = vpop.permute.xlu0 %4700
  %4702 = vrot.lane.b32.xlu0 %v4639, 4
  %v4703 = vpop.permute.xlu0 %4702
  %4704 = vrot.lane.b32.xlu0 %v4641, 4
  %v4705 = vpop.permute.xlu0 %4704
  %4706 = vrot.lane.b32.xlu0 %v4643, 4
  %v4707 = vpop.permute.xlu0 %4706
  %4708 = vrot.lane.b32.xlu0 %v4645, 4
  %v4709 = vpop.permute.xlu0 %4708
  %4710 = vrot.lane.b32.xlu0 %v4647, 4
  %v4711 = vpop.permute.xlu0 %4710
  %4712 = vrot.lane.b32.xlu0 %v4649, 4
  %v4713 = vpop.permute.xlu0 %4712
  %4714 = vrot.lane.b32.xlu0 %v4651, 4
  %v4715 = vpop.permute.xlu0 %4714
  %4716 = vrot.lane.b32.xlu0 %v4653, 4
  %v4717 = vpop.permute.xlu0 %4716
  %4718 = vrot.lane.b32.xlu0 %v4655, 4
  %v4719 = vpop.permute.xlu0 %4718
  %4720 = vrot.lane.b32.xlu0 %v4657, 4
  %v4721 = vpop.permute.xlu0 %4720
  %4722 = vrot.lane.b32.xlu0 %v4659, 4
  %v4723 = vpop.permute.xlu0 %4722
  %4724 = vrot.lane.b32.xlu0 %v4661, 4
  %v4725 = vpop.permute.xlu0 %4724
  %4726 = vrot.lane.b32.xlu0 %v4663, 4
  %v4727 = vpop.permute.xlu0 %4726
  %4728 = vrot.lane.b32.xlu0 %v4665, 4
  %v4729 = vpop.permute.xlu0 %4728
  %4730 = vrot.lane.b32.xlu0 %v4667, 4
  %v4731 = vpop.permute.xlu0 %4730
  %4732 = vrot.lane.b32.xlu0 %v4669, 4
  %v4733 = vpop.permute.xlu0 %4732
  %4734 = vrot.lane.b32.xlu0 %v4668, 4
  %v4735 = vpop.permute.xlu0 %4734
  %v4769 = vrot.slane %v4535, 2
  %v4770 = vrot.slane %v4536, 2
  %v4771 = vsel %vm502, %v4769, %v4770
  %v4772 = vrot.slane %v4537, 2
  %v4773 = vsel %vm502, %v4770, %v4772
  %v4774 = vrot.slane %v4538, 2
  %v4775 = vsel %vm502, %v4772, %v4774
  %v4776 = vrot.slane %v4539, 2
  %v4777 = vsel %vm502, %v4774, %v4776
  %v4778 = vrot.slane %v4540, 2
  %v4779 = vsel %vm502, %v4776, %v4778
  %v4780 = vrot.slane %v4541, 2
  %v4781 = vsel %vm502, %v4778, %v4780
  %v4782 = vrot.slane %v4542, 2
  %v4783 = vsel %vm502, %v4780, %v4782
  %v4784 = vrot.slane %v4543, 2
  %v4785 = vsel %vm502, %v4782, %v4784
  %v4786 = vrot.slane %v4544, 2
  %v4787 = vsel %vm502, %v4784, %v4786
  %v4788 = vrot.slane %v4545, 2
  %v4789 = vsel %vm502, %v4786, %v4788
  %v4790 = vrot.slane %v4546, 2
  %v4791 = vsel %vm502, %v4788, %v4790
  %v4792 = vrot.slane %v4547, 2
  %v4793 = vsel %vm502, %v4790, %v4792
  %v4794 = vrot.slane %v4548, 2
  %v4795 = vsel %vm502, %v4792, %v4794
  %v4796 = vrot.slane %v4549, 2
  %v4797 = vsel %vm502, %v4794, %v4796
  %v4798 = vrot.slane %v4550, 2
  %v4799 = vsel %vm502, %v4796, %v4798
  %v4800 = vrot.slane %v4551, 2
  %v4801 = vsel %vm502, %v4798, %v4800
  %v4802 = vrot.slane %v4552, 2
  %v4803 = vsel %vm502, %v4800, %v4802
  %v4804 = vrot.slane %v4553, 2
  %v4805 = vsel %vm502, %v4802, %v4804
  %v4806 = vrot.slane %v4554, 2
  %v4807 = vsel %vm502, %v4804, %v4806
  %v4808 = vrot.slane %v4555, 2
  %v4809 = vsel %vm502, %v4806, %v4808
  %v4810 = vrot.slane %v4556, 2
  %v4811 = vsel %vm502, %v4808, %v4810
  %v4812 = vrot.slane %v4557, 2
  %v4813 = vsel %vm502, %v4810, %v4812
  %v4814 = vrot.slane %v4558, 2
  %v4815 = vsel %vm502, %v4812, %v4814
  %v4816 = vrot.slane %v4559, 2
  %v4817 = vsel %vm502, %v4814, %v4816
  %v4818 = vrot.slane %v4560, 2
  %v4819 = vsel %vm502, %v4816, %v4818
  %v4820 = vrot.slane %v4561, 2
  %v4821 = vsel %vm502, %v4818, %v4820
  %v4822 = vrot.slane %v4562, 2
  %v4823 = vsel %vm502, %v4820, %v4822
  %v4824 = vrot.slane %v4563, 2
  %v4825 = vsel %vm502, %v4822, %v4824
  %v4826 = vrot.slane %v4564, 2
  %v4827 = vsel %vm502, %v4824, %v4826
  %v4828 = vrot.slane %v4565, 2
  %v4829 = vsel %vm502, %v4826, %v4828
  %v4830 = vrot.slane %v4566, 2
  %v4831 = vsel %vm502, %v4828, %v4830
  %v4832 = vrot.slane %v4567, 2
  %v4833 = vsel %vm502, %v4830, %v4832
  %4834 = vrot.lane.b32.xlu0 %v4771, 8
  %v4835 = vpop.permute.xlu0 %4834
  %4836 = vrot.lane.b32.xlu0 %v4773, 8
  %v4837 = vpop.permute.xlu0 %4836
  %4838 = vrot.lane.b32.xlu0 %v4775, 8
  %v4839 = vpop.permute.xlu0 %4838
  %4840 = vrot.lane.b32.xlu0 %v4777, 8
  %v4841 = vpop.permute.xlu0 %4840
  %4842 = vrot.lane.b32.xlu0 %v4779, 8
  %v4843 = vpop.permute.xlu0 %4842
  %4844 = vrot.lane.b32.xlu0 %v4781, 8
  %v4845 = vpop.permute.xlu0 %4844
  %4846 = vrot.lane.b32.xlu0 %v4783, 8
  %v4847 = vpop.permute.xlu0 %4846
  %4848 = vrot.lane.b32.xlu0 %v4785, 8
  %v4849 = vpop.permute.xlu0 %4848
  %4850 = vrot.lane.b32.xlu0 %v4787, 8
  %v4851 = vpop.permute.xlu0 %4850
  %4852 = vrot.lane.b32.xlu0 %v4789, 8
  %v4853 = vpop.permute.xlu0 %4852
  %4854 = vrot.lane.b32.xlu0 %v4791, 8
  %v4855 = vpop.permute.xlu0 %4854
  %4856 = vrot.lane.b32.xlu0 %v4793, 8
  %v4857 = vpop.permute.xlu0 %4856
  %4858 = vrot.lane.b32.xlu0 %v4795, 8
  %v4859 = vpop.permute.xlu0 %4858
  %4860 = vrot.lane.b32.xlu0 %v4797, 8
  %v4861 = vpop.permute.xlu0 %4860
  %4862 = vrot.lane.b32.xlu0 %v4799, 8
  %v4863 = vpop.permute.xlu0 %4862
  %4864 = vrot.lane.b32.xlu0 %v4801, 8
  %v4865 = vpop.permute.xlu0 %4864
  %4866 = vrot.lane.b32.xlu0 %v4803, 8
  %v4867 = vpop.permute.xlu0 %4866
  %4868 = vrot.lane.b32.xlu0 %v4805, 8
  %v4869 = vpop.permute.xlu0 %4868
  %4870 = vrot.lane.b32.xlu0 %v4807, 8
  %v4871 = vpop.permute.xlu0 %4870
  %4872 = vrot.lane.b32.xlu0 %v4809, 8
  %v4873 = vpop.permute.xlu0 %4872
  %4874 = vrot.lane.b32.xlu0 %v4811, 8
  %v4875 = vpop.permute.xlu0 %4874
  %4876 = vrot.lane.b32.xlu0 %v4813, 8
  %v4877 = vpop.permute.xlu0 %4876
  %4878 = vrot.lane.b32.xlu0 %v4815, 8
  %v4879 = vpop.permute.xlu0 %4878
  %4880 = vrot.lane.b32.xlu0 %v4817, 8
  %v4881 = vpop.permute.xlu0 %4880
  %4882 = vrot.lane.b32.xlu0 %v4819, 8
  %v4883 = vpop.permute.xlu0 %4882
  %4884 = vrot.lane.b32.xlu0 %v4821, 8
  %v4885 = vpop.permute.xlu0 %4884
  %4886 = vrot.lane.b32.xlu0 %v4823, 8
  %v4887 = vpop.permute.xlu0 %4886
  %4888 = vrot.lane.b32.xlu0 %v4825, 8
  %v4889 = vpop.permute.xlu0 %4888
  %4890 = vrot.lane.b32.xlu0 %v4827, 8
  %v4891 = vpop.permute.xlu0 %4890
  %4892 = vrot.lane.b32.xlu0 %v4829, 8
  %v4893 = vpop.permute.xlu0 %4892
  %4894 = vrot.lane.b32.xlu0 %v4831, 8
  %v4895 = vpop.permute.xlu0 %4894
  %4896 = vrot.lane.b32.xlu0 %v4833, 8
  %v4897 = vpop.permute.xlu0 %4896
  %4898 = vrot.lane.b32.xlu0 %v4832, 8
  %v4899 = vpop.permute.xlu0 %4898
  %v4934 = vrot.slane %v4536, 7
  %v4935 = vrot.slane %v4537, 7
  %v4936 = vsel %vm668, %v4934, %v4935
  %v4937 = vrot.slane %v4538, 7
  %v4938 = vsel %vm668, %v4935, %v4937
  %v4939 = vrot.slane %v4539, 7
  %v4940 = vsel %vm668, %v4937, %v4939
  %v4941 = vrot.slane %v4540, 7
  %v4942 = vsel %vm668, %v4939, %v4941
  %v4943 = vrot.slane %v4541, 7
  %v4944 = vsel %vm668, %v4941, %v4943
  %v4945 = vrot.slane %v4542, 7
  %v4946 = vsel %vm668, %v4943, %v4945
  %v4947 = vrot.slane %v4543, 7
  %v4948 = vsel %vm668, %v4945, %v4947
  %v4949 = vrot.slane %v4544, 7
  %v4950 = vsel %vm668, %v4947, %v4949
  %v4951 = vrot.slane %v4545, 7
  %v4952 = vsel %vm668, %v4949, %v4951
  %v4953 = vrot.slane %v4546, 7
  %v4954 = vsel %vm668, %v4951, %v4953
  %v4955 = vrot.slane %v4547, 7
  %v4956 = vsel %vm668, %v4953, %v4955
  %v4957 = vrot.slane %v4548, 7
  %v4958 = vsel %vm668, %v4955, %v4957
  %v4959 = vrot.slane %v4549, 7
  %v4960 = vsel %vm668, %v4957, %v4959
  %v4961 = vrot.slane %v4550, 7
  %v4962 = vsel %vm668, %v4959, %v4961
  %v4963 = vrot.slane %v4551, 7
  %v4964 = vsel %vm668, %v4961, %v4963
  %v4965 = vrot.slane %v4552, 7
  %v4966 = vsel %vm668, %v4963, %v4965
  %v4967 = vrot.slane %v4553, 7
  %v4968 = vsel %vm668, %v4965, %v4967
  %v4969 = vrot.slane %v4554, 7
  %v4970 = vsel %vm668, %v4967, %v4969
  %v4971 = vrot.slane %v4555, 7
  %v4972 = vsel %vm668, %v4969, %v4971
  %v4973 = vrot.slane %v4556, 7
  %v4974 = vsel %vm668, %v4971, %v4973
  %v4975 = vrot.slane %v4557, 7
  %v4976 = vsel %vm668, %v4973, %v4975
  %v4977 = vrot.slane %v4558, 7
  %v4978 = vsel %vm668, %v4975, %v4977
  %v4979 = vrot.slane %v4559, 7
  %v4980 = vsel %vm668, %v4977, %v4979
  %v4981 = vrot.slane %v4560, 7
  %v4982 = vsel %vm668, %v4979, %v4981
  %v4983 = vrot.slane %v4561, 7
  %v4984 = vsel %vm668, %v4981, %v4983
  %v4985 = vrot.slane %v4562, 7
  %v4986 = vsel %vm668, %v4983, %v4985
  %v4987 = vrot.slane %v4563, 7
  %v4988 = vsel %vm668, %v4985, %v4987
  %v4989 = vrot.slane %v4564, 7
  %v4990 = vsel %vm668, %v4987, %v4989
  %v4991 = vrot.slane %v4565, 7
  %v4992 = vsel %vm668, %v4989, %v4991
  %v4993 = vrot.slane %v4566, 7
  %v4994 = vsel %vm668, %v4991, %v4993
  %v4995 = vrot.slane %v4567, 7
  %v4996 = vsel %vm668, %v4993, %v4995
  %v4997 = vrot.slane %v4568, 7
  %v4998 = vsel %vm668, %v4995, %v4997
  %4999 = vrot.lane.b32.xlu0 %v4936, 12
  %v5000 = vpop.permute.xlu0 %4999
  %5001 = vrot.lane.b32.xlu0 %v4938, 12
  %v5002 = vpop.permute.xlu0 %5001
  %5003 = vrot.lane.b32.xlu0 %v4940, 12
  %v5004 = vpop.permute.xlu0 %5003
  %5005 = vrot.lane.b32.xlu0 %v4942, 12
  %v5006 = vpop.permute.xlu0 %5005
  %5007 = vrot.lane.b32.xlu0 %v4944, 12
  %v5008 = vpop.permute.xlu0 %5007
  %5009 = vrot.lane.b32.xlu0 %v4946, 12
  %v5010 = vpop.permute.xlu0 %5009
  %5011 = vrot.lane.b32.xlu0 %v4948, 12
  %v5012 = vpop.permute.xlu0 %5011
  %5013 = vrot.lane.b32.xlu0 %v4950, 12
  %v5014 = vpop.permute.xlu0 %5013
  %5015 = vrot.lane.b32.xlu0 %v4952, 12
  %v5016 = vpop.permute.xlu0 %5015
  %5017 = vrot.lane.b32.xlu0 %v4954, 12
  %v5018 = vpop.permute.xlu0 %5017
  %5019 = vrot.lane.b32.xlu0 %v4956, 12
  %v5020 = vpop.permute.xlu0 %5019
  %5021 = vrot.lane.b32.xlu0 %v4958, 12
  %v5022 = vpop.permute.xlu0 %5021
  %5023 = vrot.lane.b32.xlu0 %v4960, 12
  %v5024 = vpop.permute.xlu0 %5023
  %5025 = vrot.lane.b32.xlu0 %v4962, 12
  %v5026 = vpop.permute.xlu0 %5025
  %5027 = vrot.lane.b32.xlu0 %v4964, 12
  %v5028 = vpop.permute.xlu0 %5027
  %5029 = vrot.lane.b32.xlu0 %v4966, 12
  %v5030 = vpop.permute.xlu0 %5029
  %5031 = vrot.lane.b32.xlu0 %v4968, 12
  %v5032 = vpop.permute.xlu0 %5031
  %5033 = vrot.lane.b32.xlu0 %v4970, 12
  %v5034 = vpop.permute.xlu0 %5033
  %5035 = vrot.lane.b32.xlu0 %v4972, 12
  %v5036 = vpop.permute.xlu0 %5035
  %5037 = vrot.lane.b32.xlu0 %v4974, 12
  %v5038 = vpop.permute.xlu0 %5037
  %5039 = vrot.lane.b32.xlu0 %v4976, 12
  %v5040 = vpop.permute.xlu0 %5039
  %5041 = vrot.lane.b32.xlu0 %v4978, 12
  %v5042 = vpop.permute.xlu0 %5041
  %5043 = vrot.lane.b32.xlu0 %v4980, 12
  %v5044 = vpop.permute.xlu0 %5043
  %5045 = vrot.lane.b32.xlu0 %v4982, 12
  %v5046 = vpop.permute.xlu0 %5045
  %5047 = vrot.lane.b32.xlu0 %v4984, 12
  %v5048 = vpop.permute.xlu0 %5047
  %5049 = vrot.lane.b32.xlu0 %v4986, 12
  %v5050 = vpop.permute.xlu0 %5049
  %5051 = vrot.lane.b32.xlu0 %v4988, 12
  %v5052 = vpop.permute.xlu0 %5051
  %5053 = vrot.lane.b32.xlu0 %v4990, 12
  %v5054 = vpop.permute.xlu0 %5053
  %5055 = vrot.lane.b32.xlu0 %v4992, 12
  %v5056 = vpop.permute.xlu0 %5055
  %5057 = vrot.lane.b32.xlu0 %v4994, 12
  %v5058 = vpop.permute.xlu0 %5057
  %5059 = vrot.lane.b32.xlu0 %v4996, 12
  %v5060 = vpop.permute.xlu0 %5059
  %5061 = vrot.lane.b32.xlu0 %v4998, 12
  %v5062 = vpop.permute.xlu0 %5061
  %5063 = vrot.lane.b32.xlu0 %v4997, 12
  %v5064 = vpop.permute.xlu0 %5063
  %5099 = vrot.lane.b32.xlu0 %v4537, 16
  %v5100 = vpop.permute.xlu0 %5099
  %5101 = vrot.lane.b32.xlu0 %v4538, 16
  %v5102 = vpop.permute.xlu0 %5101
  %5103 = vrot.lane.b32.xlu0 %v4539, 16
  %v5104 = vpop.permute.xlu0 %5103
  %5105 = vrot.lane.b32.xlu0 %v4540, 16
  %v5106 = vpop.permute.xlu0 %5105
  %5107 = vrot.lane.b32.xlu0 %v4541, 16
  %v5108 = vpop.permute.xlu0 %5107
  %5109 = vrot.lane.b32.xlu0 %v4542, 16
  %v5110 = vpop.permute.xlu0 %5109
  %5111 = vrot.lane.b32.xlu0 %v4543, 16
  %v5112 = vpop.permute.xlu0 %5111
  %5113 = vrot.lane.b32.xlu0 %v4544, 16
  %v5114 = vpop.permute.xlu0 %5113
  %5115 = vrot.lane.b32.xlu0 %v4545, 16
  %v5116 = vpop.permute.xlu0 %5115
  %5117 = vrot.lane.b32.xlu0 %v4546, 16
  %v5118 = vpop.permute.xlu0 %5117
  %5119 = vrot.lane.b32.xlu0 %v4547, 16
  %v5120 = vpop.permute.xlu0 %5119
  %5121 = vrot.lane.b32.xlu0 %v4548, 16
  %v5122 = vpop.permute.xlu0 %5121
  %5123 = vrot.lane.b32.xlu0 %v4549, 16
  %v5124 = vpop.permute.xlu0 %5123
  %5125 = vrot.lane.b32.xlu0 %v4550, 16
  %v5126 = vpop.permute.xlu0 %5125
  %5127 = vrot.lane.b32.xlu0 %v4551, 16
  %v5128 = vpop.permute.xlu0 %5127
  %5129 = vrot.lane.b32.xlu0 %v4552, 16
  %v5130 = vpop.permute.xlu0 %5129
  %5131 = vrot.lane.b32.xlu0 %v4553, 16
  %v5132 = vpop.permute.xlu0 %5131
  %5133 = vrot.lane.b32.xlu0 %v4554, 16
  %v5134 = vpop.permute.xlu0 %5133
  %5135 = vrot.lane.b32.xlu0 %v4555, 16
  %v5136 = vpop.permute.xlu0 %5135
  %5137 = vrot.lane.b32.xlu0 %v4556, 16
  %v5138 = vpop.permute.xlu0 %5137
  %5139 = vrot.lane.b32.xlu0 %v4557, 16
  %v5140 = vpop.permute.xlu0 %5139
  %5141 = vrot.lane.b32.xlu0 %v4558, 16
  %v5142 = vpop.permute.xlu0 %5141
  %5143 = vrot.lane.b32.xlu0 %v4559, 16
  %v5144 = vpop.permute.xlu0 %5143
  %5145 = vrot.lane.b32.xlu0 %v4560, 16
  %v5146 = vpop.permute.xlu0 %5145
  %5147 = vrot.lane.b32.xlu0 %v4561, 16
  %v5148 = vpop.permute.xlu0 %5147
  %5149 = vrot.lane.b32.xlu0 %v4562, 16
  %v5150 = vpop.permute.xlu0 %5149
  %5151 = vrot.lane.b32.xlu0 %v4563, 16
  %v5152 = vpop.permute.xlu0 %5151
  %5153 = vrot.lane.b32.xlu0 %v4564, 16
  %v5154 = vpop.permute.xlu0 %5153
  %5155 = vrot.lane.b32.xlu0 %v4565, 16
  %v5156 = vpop.permute.xlu0 %5155
  %5157 = vrot.lane.b32.xlu0 %v4566, 16
  %v5158 = vpop.permute.xlu0 %5157
  %5159 = vrot.lane.b32.xlu0 %v4567, 16
  %v5160 = vpop.permute.xlu0 %5159
  %5161 = vrot.lane.b32.xlu0 %v4568, 16
  %v5162 = vpop.permute.xlu0 %5161
  %5163 = vrot.lane.b32.xlu0 %v4569, 16
  %v5164 = vpop.permute.xlu0 %5163
  %v5198 = vrot.slane %v4568, 1
  %v5199 = vsel %vm337, %v4668, %v5198
  %v5200 = vrot.slane %v4569, 1
  %v5201 = vsel %vm337, %v5198, %v5200
  %5202 = vrot.lane.b32.xlu0 %v4611, 20
  %v5203 = vpop.permute.xlu0 %5202
  %5204 = vrot.lane.b32.xlu0 %v4613, 20
  %v5205 = vpop.permute.xlu0 %5204
  %5206 = vrot.lane.b32.xlu0 %v4615, 20
  %v5207 = vpop.permute.xlu0 %5206
  %5208 = vrot.lane.b32.xlu0 %v4617, 20
  %v5209 = vpop.permute.xlu0 %5208
  %5210 = vrot.lane.b32.xlu0 %v4619, 20
  %v5211 = vpop.permute.xlu0 %5210
  %5212 = vrot.lane.b32.xlu0 %v4621, 20
  %v5213 = vpop.permute.xlu0 %5212
  %5214 = vrot.lane.b32.xlu0 %v4623, 20
  %v5215 = vpop.permute.xlu0 %5214
  %5216 = vrot.lane.b32.xlu0 %v4625, 20
  %v5217 = vpop.permute.xlu0 %5216
  %5218 = vrot.lane.b32.xlu0 %v4627, 20
  %v5219 = vpop.permute.xlu0 %5218
  %5220 = vrot.lane.b32.xlu0 %v4629, 20
  %v5221 = vpop.permute.xlu0 %5220
  %5222 = vrot.lane.b32.xlu0 %v4631, 20
  %v5223 = vpop.permute.xlu0 %5222
  %5224 = vrot.lane.b32.xlu0 %v4633, 20
  %v5225 = vpop.permute.xlu0 %5224
  %5226 = vrot.lane.b32.xlu0 %v4635, 20
  %v5227 = vpop.permute.xlu0 %5226
  %5228 = vrot.lane.b32.xlu0 %v4637, 20
  %v5229 = vpop.permute.xlu0 %5228
  %5230 = vrot.lane.b32.xlu0 %v4639, 20
  %v5231 = vpop.permute.xlu0 %5230
  %5232 = vrot.lane.b32.xlu0 %v4641, 20
  %v5233 = vpop.permute.xlu0 %5232
  %5234 = vrot.lane.b32.xlu0 %v4643, 20
  %v5235 = vpop.permute.xlu0 %5234
  %5236 = vrot.lane.b32.xlu0 %v4645, 20
  %v5237 = vpop.permute.xlu0 %5236
  %5238 = vrot.lane.b32.xlu0 %v4647, 20
  %v5239 = vpop.permute.xlu0 %5238
  %5240 = vrot.lane.b32.xlu0 %v4649, 20
  %v5241 = vpop.permute.xlu0 %5240
  %5242 = vrot.lane.b32.xlu0 %v4651, 20
  %v5243 = vpop.permute.xlu0 %5242
  %5244 = vrot.lane.b32.xlu0 %v4653, 20
  %v5245 = vpop.permute.xlu0 %5244
  %5246 = vrot.lane.b32.xlu0 %v4655, 20
  %v5247 = vpop.permute.xlu0 %5246
  %5248 = vrot.lane.b32.xlu0 %v4657, 20
  %v5249 = vpop.permute.xlu0 %5248
  %5250 = vrot.lane.b32.xlu0 %v4659, 20
  %v5251 = vpop.permute.xlu0 %5250
  %5252 = vrot.lane.b32.xlu0 %v4661, 20
  %v5253 = vpop.permute.xlu0 %5252
  %5254 = vrot.lane.b32.xlu0 %v4663, 20
  %v5255 = vpop.permute.xlu0 %5254
  %5256 = vrot.lane.b32.xlu0 %v4665, 20
  %v5257 = vpop.permute.xlu0 %5256
  %5258 = vrot.lane.b32.xlu0 %v4667, 20
  %v5259 = vpop.permute.xlu0 %5258
  %5260 = vrot.lane.b32.xlu0 %v4669, 20
  %v5261 = vpop.permute.xlu0 %5260
  %5262 = vrot.lane.b32.xlu0 %v5199, 20
  %v5263 = vpop.permute.xlu0 %5262
  %5264 = vrot.lane.b32.xlu0 %v5201, 20
  %v5265 = vpop.permute.xlu0 %5264
  %5266 = vrot.lane.b32.xlu0 %v5200, 20
  %v5267 = vpop.permute.xlu0 %5266
  %v5302 = vrot.slane %v4538, 6
  %v5303 = vrot.slane %v4539, 6
  %v5304 = vsel %vm1037, %v5302, %v5303
  %v5305 = vrot.slane %v4540, 6
  %v5306 = vsel %vm1037, %v5303, %v5305
  %v5307 = vrot.slane %v4541, 6
  %v5308 = vsel %vm1037, %v5305, %v5307
  %v5309 = vrot.slane %v4542, 6
  %v5310 = vsel %vm1037, %v5307, %v5309
  %v5311 = vrot.slane %v4543, 6
  %v5312 = vsel %vm1037, %v5309, %v5311
  %v5313 = vrot.slane %v4544, 6
  %v5314 = vsel %vm1037, %v5311, %v5313
  %v5315 = vrot.slane %v4545, 6
  %v5316 = vsel %vm1037, %v5313, %v5315
  %v5317 = vrot.slane %v4546, 6
  %v5318 = vsel %vm1037, %v5315, %v5317
  %v5319 = vrot.slane %v4547, 6
  %v5320 = vsel %vm1037, %v5317, %v5319
  %v5321 = vrot.slane %v4548, 6
  %v5322 = vsel %vm1037, %v5319, %v5321
  %v5323 = vrot.slane %v4549, 6
  %v5324 = vsel %vm1037, %v5321, %v5323
  %v5325 = vrot.slane %v4550, 6
  %v5326 = vsel %vm1037, %v5323, %v5325
  %v5327 = vrot.slane %v4551, 6
  %v5328 = vsel %vm1037, %v5325, %v5327
  %v5329 = vrot.slane %v4552, 6
  %v5330 = vsel %vm1037, %v5327, %v5329
  %v5331 = vrot.slane %v4553, 6
  %v5332 = vsel %vm1037, %v5329, %v5331
  %v5333 = vrot.slane %v4554, 6
  %v5334 = vsel %vm1037, %v5331, %v5333
  %v5335 = vrot.slane %v4555, 6
  %v5336 = vsel %vm1037, %v5333, %v5335
  %v5337 = vrot.slane %v4556, 6
  %v5338 = vsel %vm1037, %v5335, %v5337
  %v5339 = vrot.slane %v4557, 6
  %v5340 = vsel %vm1037, %v5337, %v5339
  %v5341 = vrot.slane %v4558, 6
  %v5342 = vsel %vm1037, %v5339, %v5341
  %v5343 = vrot.slane %v4559, 6
  %v5344 = vsel %vm1037, %v5341, %v5343
  %v5345 = vrot.slane %v4560, 6
  %v5346 = vsel %vm1037, %v5343, %v5345
  %v5347 = vrot.slane %v4561, 6
  %v5348 = vsel %vm1037, %v5345, %v5347
  %v5349 = vrot.slane %v4562, 6
  %v5350 = vsel %vm1037, %v5347, %v5349
  %v5351 = vrot.slane %v4563, 6
  %v5352 = vsel %vm1037, %v5349, %v5351
  %v5353 = vrot.slane %v4564, 6
  %v5354 = vsel %vm1037, %v5351, %v5353
  %v5355 = vrot.slane %v4565, 6
  %v5356 = vsel %vm1037, %v5353, %v5355
  %v5357 = vrot.slane %v4566, 6
  %v5358 = vsel %vm1037, %v5355, %v5357
  %v5359 = vrot.slane %v4567, 6
  %v5360 = vsel %vm1037, %v5357, %v5359
  %v5361 = vrot.slane %v4568, 6
  %v5362 = vsel %vm1037, %v5359, %v5361
  %v5363 = vrot.slane %v4569, 6
  %v5364 = vsel %vm1037, %v5361, %v5363
  %v5365 = vrot.slane %v4570, 6
  %v5366 = vsel %vm1037, %v5363, %v5365
  %5367 = vrot.lane.b32.xlu0 %v5304, 24
  %v5368 = vpop.permute.xlu0 %5367
  %5369 = vrot.lane.b32.xlu0 %v5306, 24
  %v5370 = vpop.permute.xlu0 %5369
  %5371 = vrot.lane.b32.xlu0 %v5308, 24
  %v5372 = vpop.permute.xlu0 %5371
  %5373 = vrot.lane.b32.xlu0 %v5310, 24
  %v5374 = vpop.permute.xlu0 %5373
  %5375 = vrot.lane.b32.xlu0 %v5312, 24
  %v5376 = vpop.permute.xlu0 %5375
  %5377 = vrot.lane.b32.xlu0 %v5314, 24
  %v5378 = vpop.permute.xlu0 %5377
  %5379 = vrot.lane.b32.xlu0 %v5316, 24
  %v5380 = vpop.permute.xlu0 %5379
  %5381 = vrot.lane.b32.xlu0 %v5318, 24
  %v5382 = vpop.permute.xlu0 %5381
  %5383 = vrot.lane.b32.xlu0 %v5320, 24
  %v5384 = vpop.permute.xlu0 %5383
  %5385 = vrot.lane.b32.xlu0 %v5322, 24
  %v5386 = vpop.permute.xlu0 %5385
  %5387 = vrot.lane.b32.xlu0 %v5324, 24
  %v5388 = vpop.permute.xlu0 %5387
  %5389 = vrot.lane.b32.xlu0 %v5326, 24
  %v5390 = vpop.permute.xlu0 %5389
  %5391 = vrot.lane.b32.xlu0 %v5328, 24
  %v5392 = vpop.permute.xlu0 %5391
  %5393 = vrot.lane.b32.xlu0 %v5330, 24
  %v5394 = vpop.permute.xlu0 %5393
  %5395 = vrot.lane.b32.xlu0 %v5332, 24
  %v5396 = vpop.permute.xlu0 %5395
  %5397 = vrot.lane.b32.xlu0 %v5334, 24
  %v5398 = vpop.permute.xlu0 %5397
  %5399 = vrot.lane.b32.xlu0 %v5336, 24
  %v5400 = vpop.permute.xlu0 %5399
  %5401 = vrot.lane.b32.xlu0 %v5338, 24
  %v5402 = vpop.permute.xlu0 %5401
  %5403 = vrot.lane.b32.xlu0 %v5340, 24
  %v5404 = vpop.permute.xlu0 %5403
  %5405 = vrot.lane.b32.xlu0 %v5342, 24
  %v5406 = vpop.permute.xlu0 %5405
  %5407 = vrot.lane.b32.xlu0 %v5344, 24
  %v5408 = vpop.permute.xlu0 %5407
  %5409 = vrot.lane.b32.xlu0 %v5346, 24
  %v5410 = vpop.permute.xlu0 %5409
  %5411 = vrot.lane.b32.xlu0 %v5348, 24
  %v5412 = vpop.permute.xlu0 %5411
  %5413 = vrot.lane.b32.xlu0 %v5350, 24
  %v5414 = vpop.permute.xlu0 %5413
  %5415 = vrot.lane.b32.xlu0 %v5352, 24
  %v5416 = vpop.permute.xlu0 %5415
  %5417 = vrot.lane.b32.xlu0 %v5354, 24
  %v5418 = vpop.permute.xlu0 %5417
  %5419 = vrot.lane.b32.xlu0 %v5356, 24
  %v5420 = vpop.permute.xlu0 %5419
  %5421 = vrot.lane.b32.xlu0 %v5358, 24
  %v5422 = vpop.permute.xlu0 %5421
  %5423 = vrot.lane.b32.xlu0 %v5360, 24
  %v5424 = vpop.permute.xlu0 %5423
  %5425 = vrot.lane.b32.xlu0 %v5362, 24
  %v5426 = vpop.permute.xlu0 %5425
  %5427 = vrot.lane.b32.xlu0 %v5364, 24
  %v5428 = vpop.permute.xlu0 %5427
  %5429 = vrot.lane.b32.xlu0 %v5366, 24
  %v5430 = vpop.permute.xlu0 %5429
  %5431 = vrot.lane.b32.xlu0 %v5365, 24
  %v5432 = vpop.permute.xlu0 %5431
  %v5466 = vrot.slane %v4569, 7
  %v5467 = vsel %vm668, %v4997, %v5466
  %v5468 = vrot.slane %v4570, 7
  %v5469 = vsel %vm668, %v5466, %v5468
  %5470 = vrot.lane.b32.xlu0 %v4940, 28
  %v5471 = vpop.permute.xlu0 %5470
  %5472 = vrot.lane.b32.xlu0 %v4942, 28
  %v5473 = vpop.permute.xlu0 %5472
  %5474 = vrot.lane.b32.xlu0 %v4944, 28
  %v5475 = vpop.permute.xlu0 %5474
  %5476 = vrot.lane.b32.xlu0 %v4946, 28
  %v5477 = vpop.permute.xlu0 %5476
  %5478 = vrot.lane.b32.xlu0 %v4948, 28
  %v5479 = vpop.permute.xlu0 %5478
  %5480 = vrot.lane.b32.xlu0 %v4950, 28
  %v5481 = vpop.permute.xlu0 %5480
  %5482 = vrot.lane.b32.xlu0 %v4952, 28
  %v5483 = vpop.permute.xlu0 %5482
  %5484 = vrot.lane.b32.xlu0 %v4954, 28
  %v5485 = vpop.permute.xlu0 %5484
  %5486 = vrot.lane.b32.xlu0 %v4956, 28
  %v5487 = vpop.permute.xlu0 %5486
  %5488 = vrot.lane.b32.xlu0 %v4958, 28
  %v5489 = vpop.permute.xlu0 %5488
  %5490 = vrot.lane.b32.xlu0 %v4960, 28
  %v5491 = vpop.permute.xlu0 %5490
  %5492 = vrot.lane.b32.xlu0 %v4962, 28
  %v5493 = vpop.permute.xlu0 %5492
  %5494 = vrot.lane.b32.xlu0 %v4964, 28
  %v5495 = vpop.permute.xlu0 %5494
  %5496 = vrot.lane.b32.xlu0 %v4966, 28
  %v5497 = vpop.permute.xlu0 %5496
  %5498 = vrot.lane.b32.xlu0 %v4968, 28
  %v5499 = vpop.permute.xlu0 %5498
  %5500 = vrot.lane.b32.xlu0 %v4970, 28
  %v5501 = vpop.permute.xlu0 %5500
  %5502 = vrot.lane.b32.xlu0 %v4972, 28
  %v5503 = vpop.permute.xlu0 %5502
  %5504 = vrot.lane.b32.xlu0 %v4974, 28
  %v5505 = vpop.permute.xlu0 %5504
  %5506 = vrot.lane.b32.xlu0 %v4976, 28
  %v5507 = vpop.permute.xlu0 %5506
  %5508 = vrot.lane.b32.xlu0 %v4978, 28
  %v5509 = vpop.permute.xlu0 %5508
  %5510 = vrot.lane.b32.xlu0 %v4980, 28
  %v5511 = vpop.permute.xlu0 %5510
  %5512 = vrot.lane.b32.xlu0 %v4982, 28
  %v5513 = vpop.permute.xlu0 %5512
  %5514 = vrot.lane.b32.xlu0 %v4984, 28
  %v5515 = vpop.permute.xlu0 %5514
  %5516 = vrot.lane.b32.xlu0 %v4986, 28
  %v5517 = vpop.permute.xlu0 %5516
  %5518 = vrot.lane.b32.xlu0 %v4988, 28
  %v5519 = vpop.permute.xlu0 %5518
  %5520 = vrot.lane.b32.xlu0 %v4990, 28
  %v5521 = vpop.permute.xlu0 %5520
  %5522 = vrot.lane.b32.xlu0 %v4992, 28
  %v5523 = vpop.permute.xlu0 %5522
  %5524 = vrot.lane.b32.xlu0 %v4994, 28
  %v5525 = vpop.permute.xlu0 %5524
  %5526 = vrot.lane.b32.xlu0 %v4996, 28
  %v5527 = vpop.permute.xlu0 %5526
  %5528 = vrot.lane.b32.xlu0 %v4998, 28
  %v5529 = vpop.permute.xlu0 %5528
  %5530 = vrot.lane.b32.xlu0 %v5467, 28
  %v5531 = vpop.permute.xlu0 %5530
  %5532 = vrot.lane.b32.xlu0 %v5469, 28
  %v5533 = vpop.permute.xlu0 %5532
  %5534 = vrot.lane.b32.xlu0 %v5468, 28
  %v5535 = vpop.permute.xlu0 %5534
  %5570 = vrot.lane.b32.xlu0 %v4539, 32
  %v5571 = vpop.permute.xlu0 %5570
  %5572 = vrot.lane.b32.xlu0 %v4540, 32
  %v5573 = vpop.permute.xlu0 %5572
  %5574 = vrot.lane.b32.xlu0 %v4541, 32
  %v5575 = vpop.permute.xlu0 %5574
  %5576 = vrot.lane.b32.xlu0 %v4542, 32
  %v5577 = vpop.permute.xlu0 %5576
  %5578 = vrot.lane.b32.xlu0 %v4543, 32
  %v5579 = vpop.permute.xlu0 %5578
  %5580 = vrot.lane.b32.xlu0 %v4544, 32
  %v5581 = vpop.permute.xlu0 %5580
  %5582 = vrot.lane.b32.xlu0 %v4545, 32
  %v5583 = vpop.permute.xlu0 %5582
  %5584 = vrot.lane.b32.xlu0 %v4546, 32
  %v5585 = vpop.permute.xlu0 %5584
  %5586 = vrot.lane.b32.xlu0 %v4547, 32
  %v5587 = vpop.permute.xlu0 %5586
  %5588 = vrot.lane.b32.xlu0 %v4548, 32
  %v5589 = vpop.permute.xlu0 %5588
  %5590 = vrot.lane.b32.xlu0 %v4549, 32
  %v5591 = vpop.permute.xlu0 %5590
  %5592 = vrot.lane.b32.xlu0 %v4550, 32
  %v5593 = vpop.permute.xlu0 %5592
  %5594 = vrot.lane.b32.xlu0 %v4551, 32
  %v5595 = vpop.permute.xlu0 %5594
  %5596 = vrot.lane.b32.xlu0 %v4552, 32
  %v5597 = vpop.permute.xlu0 %5596
  %5598 = vrot.lane.b32.xlu0 %v4553, 32
  %v5599 = vpop.permute.xlu0 %5598
  %5600 = vrot.lane.b32.xlu0 %v4554, 32
  %v5601 = vpop.permute.xlu0 %5600
  %5602 = vrot.lane.b32.xlu0 %v4555, 32
  %v5603 = vpop.permute.xlu0 %5602
  %5604 = vrot.lane.b32.xlu0 %v4556, 32
  %v5605 = vpop.permute.xlu0 %5604
  %5606 = vrot.lane.b32.xlu0 %v4557, 32
  %v5607 = vpop.permute.xlu0 %5606
  %5608 = vrot.lane.b32.xlu0 %v4558, 32
  %v5609 = vpop.permute.xlu0 %5608
  %5610 = vrot.lane.b32.xlu0 %v4559, 32
  %v5611 = vpop.permute.xlu0 %5610
  %5612 = vrot.lane.b32.xlu0 %v4560, 32
  %v5613 = vpop.permute.xlu0 %5612
  %5614 = vrot.lane.b32.xlu0 %v4561, 32
  %v5615 = vpop.permute.xlu0 %5614
  %5616 = vrot.lane.b32.xlu0 %v4562, 32
  %v5617 = vpop.permute.xlu0 %5616
  %5618 = vrot.lane.b32.xlu0 %v4563, 32
  %v5619 = vpop.permute.xlu0 %5618
  %5620 = vrot.lane.b32.xlu0 %v4564, 32
  %v5621 = vpop.permute.xlu0 %5620
  %5622 = vrot.lane.b32.xlu0 %v4565, 32
  %v5623 = vpop.permute.xlu0 %5622
  %5624 = vrot.lane.b32.xlu0 %v4566, 32
  %v5625 = vpop.permute.xlu0 %5624
  %5626 = vrot.lane.b32.xlu0 %v4567, 32
  %v5627 = vpop.permute.xlu0 %5626
  %5628 = vrot.lane.b32.xlu0 %v4568, 32
  %v5629 = vpop.permute.xlu0 %5628
  %5630 = vrot.lane.b32.xlu0 %v4569, 32
  %v5631 = vpop.permute.xlu0 %5630
  %5632 = vrot.lane.b32.xlu0 %v4570, 32
  %v5633 = vpop.permute.xlu0 %5632
  %5634 = vrot.lane.b32.xlu0 %v4571, 32
  %v5635 = vpop.permute.xlu0 %5634
  %v5669 = vsel %vm1405, %v4535, %v4671
  %v5670 = vsel %vm1405, %v4536, %v4673
  %v5671 = vsel %vm1405, %v4537, %v4675
  %v5672 = vsel %vm1405, %v4538, %v4677
  %v5673 = vsel %vm1405, %v4539, %v4679
  %v5674 = vsel %vm1405, %v4540, %v4681
  %v5675 = vsel %vm1405, %v4541, %v4683
  %v5676 = vsel %vm1405, %v4542, %v4685
  %v5677 = vsel %vm1405, %v4543, %v4687
  %v5678 = vsel %vm1405, %v4544, %v4689
  %v5679 = vsel %vm1405, %v4545, %v4691
  %v5680 = vsel %vm1405, %v4546, %v4693
  %v5681 = vsel %vm1405, %v4547, %v4695
  %v5682 = vsel %vm1405, %v4548, %v4697
  %v5683 = vsel %vm1405, %v4549, %v4699
  %v5684 = vsel %vm1405, %v4550, %v4701
  %v5685 = vsel %vm1405, %v4551, %v4703
  %v5686 = vsel %vm1405, %v4552, %v4705
  %v5687 = vsel %vm1405, %v4553, %v4707
  %v5688 = vsel %vm1405, %v4554, %v4709
  %v5689 = vsel %vm1405, %v4555, %v4711
  %v5690 = vsel %vm1405, %v4556, %v4713
  %v5691 = vsel %vm1405, %v4557, %v4715
  %v5692 = vsel %vm1405, %v4558, %v4717
  %v5693 = vsel %vm1405, %v4559, %v4719
  %v5694 = vsel %vm1405, %v4560, %v4721
  %v5695 = vsel %vm1405, %v4561, %v4723
  %v5696 = vsel %vm1405, %v4562, %v4725
  %v5697 = vsel %vm1405, %v4563, %v4727
  %v5698 = vsel %vm1405, %v4564, %v4729
  %v5699 = vsel %vm1405, %v4565, %v4731
  %v5700 = vsel %vm1405, %v4566, %v4733
  %v5701 = vsel %vm1405, %v4567, %v4735
  %v5702 = vsel %vm1439, %v5669, %v4835
  %v5703 = vsel %vm1439, %v5670, %v4837
  %v5704 = vsel %vm1439, %v5671, %v4839
  %v5705 = vsel %vm1439, %v5672, %v4841
  %v5706 = vsel %vm1439, %v5673, %v4843
  %v5707 = vsel %vm1439, %v5674, %v4845
  %v5708 = vsel %vm1439, %v5675, %v4847
  %v5709 = vsel %vm1439, %v5676, %v4849
  %v5710 = vsel %vm1439, %v5677, %v4851
  %v5711 = vsel %vm1439, %v5678, %v4853
  %v5712 = vsel %vm1439, %v5679, %v4855
  %v5713 = vsel %vm1439, %v5680, %v4857
  %v5714 = vsel %vm1439, %v5681, %v4859
  %v5715 = vsel %vm1439, %v5682, %v4861
  %v5716 = vsel %vm1439, %v5683, %v4863
  %v5717 = vsel %vm1439, %v5684, %v4865
  %v5718 = vsel %vm1439, %v5685, %v4867
  %v5719 = vsel %vm1439, %v5686, %v4869
  %v5720 = vsel %vm1439, %v5687, %v4871
  %v5721 = vsel %vm1439, %v5688, %v4873
  %v5722 = vsel %vm1439, %v5689, %v4875
  %v5723 = vsel %vm1439, %v5690, %v4877
  %v5724 = vsel %vm1439, %v5691, %v4879
  %v5725 = vsel %vm1439, %v5692, %v4881
  %v5726 = vsel %vm1439, %v5693, %v4883
  %v5727 = vsel %vm1439, %v5694, %v4885
  %v5728 = vsel %vm1439, %v5695, %v4887
  %v5729 = vsel %vm1439, %v5696, %v4889
  %v5730 = vsel %vm1439, %v5697, %v4891
  %v5731 = vsel %vm1439, %v5698, %v4893
  %v5732 = vsel %vm1439, %v5699, %v4895
  %v5733 = vsel %vm1439, %v5700, %v4897
  %v5734 = vsel %vm1439, %v5701, %v4899
  %v5735 = vsel %vm1473, %v5702, %v5000
  %v5736 = vsel %vm1473, %v5703, %v5002
  %v5737 = vsel %vm1473, %v5704, %v5004
  %v5738 = vsel %vm1473, %v5705, %v5006
  %v5739 = vsel %vm1473, %v5706, %v5008
  %v5740 = vsel %vm1473, %v5707, %v5010
  %v5741 = vsel %vm1473, %v5708, %v5012
  %v5742 = vsel %vm1473, %v5709, %v5014
  %v5743 = vsel %vm1473, %v5710, %v5016
  %v5744 = vsel %vm1473, %v5711, %v5018
  %v5745 = vsel %vm1473, %v5712, %v5020
  %v5746 = vsel %vm1473, %v5713, %v5022
  %v5747 = vsel %vm1473, %v5714, %v5024
  %v5748 = vsel %vm1473, %v5715, %v5026
  %v5749 = vsel %vm1473, %v5716, %v5028
  %v5750 = vsel %vm1473, %v5717, %v5030
  %v5751 = vsel %vm1473, %v5718, %v5032
  %v5752 = vsel %vm1473, %v5719, %v5034
  %v5753 = vsel %vm1473, %v5720, %v5036
  %v5754 = vsel %vm1473, %v5721, %v5038
  %v5755 = vsel %vm1473, %v5722, %v5040
  %v5756 = vsel %vm1473, %v5723, %v5042
  %v5757 = vsel %vm1473, %v5724, %v5044
  %v5758 = vsel %vm1473, %v5725, %v5046
  %v5759 = vsel %vm1473, %v5726, %v5048
  %v5760 = vsel %vm1473, %v5727, %v5050
  %v5761 = vsel %vm1473, %v5728, %v5052
  %v5762 = vsel %vm1473, %v5729, %v5054
  %v5763 = vsel %vm1473, %v5730, %v5056
  %v5764 = vsel %vm1473, %v5731, %v5058
  %v5765 = vsel %vm1473, %v5732, %v5060
  %v5766 = vsel %vm1473, %v5733, %v5062
  %v5767 = vsel %vm1473, %v5734, %v5064
  %v5768 = vsel %vm1507, %v5735, %v5100
  %v5769 = vsel %vm1507, %v5736, %v5102
  %v5770 = vsel %vm1507, %v5737, %v5104
  %v5771 = vsel %vm1507, %v5738, %v5106
  %v5772 = vsel %vm1507, %v5739, %v5108
  %v5773 = vsel %vm1507, %v5740, %v5110
  %v5774 = vsel %vm1507, %v5741, %v5112
  %v5775 = vsel %vm1507, %v5742, %v5114
  %v5776 = vsel %vm1507, %v5743, %v5116
  %v5777 = vsel %vm1507, %v5744, %v5118
  %v5778 = vsel %vm1507, %v5745, %v5120
  %v5779 = vsel %vm1507, %v5746, %v5122
  %v5780 = vsel %vm1507, %v5747, %v5124
  %v5781 = vsel %vm1507, %v5748, %v5126
  %v5782 = vsel %vm1507, %v5749, %v5128
  %v5783 = vsel %vm1507, %v5750, %v5130
  %v5784 = vsel %vm1507, %v5751, %v5132
  %v5785 = vsel %vm1507, %v5752, %v5134
  %v5786 = vsel %vm1507, %v5753, %v5136
  %v5787 = vsel %vm1507, %v5754, %v5138
  %v5788 = vsel %vm1507, %v5755, %v5140
  %v5789 = vsel %vm1507, %v5756, %v5142
  %v5790 = vsel %vm1507, %v5757, %v5144
  %v5791 = vsel %vm1507, %v5758, %v5146
  %v5792 = vsel %vm1507, %v5759, %v5148
  %v5793 = vsel %vm1507, %v5760, %v5150
  %v5794 = vsel %vm1507, %v5761, %v5152
  %v5795 = vsel %vm1507, %v5762, %v5154
  %v5796 = vsel %vm1507, %v5763, %v5156
  %v5797 = vsel %vm1507, %v5764, %v5158
  %v5798 = vsel %vm1507, %v5765, %v5160
  %v5799 = vsel %vm1507, %v5766, %v5162
  %v5800 = vsel %vm1507, %v5767, %v5164
  %v5801 = vsel %vm1541, %v5768, %v5203
  %v5802 = vsel %vm1541, %v5769, %v5205
  %v5803 = vsel %vm1541, %v5770, %v5207
  %v5804 = vsel %vm1541, %v5771, %v5209
  %v5805 = vsel %vm1541, %v5772, %v5211
  %v5806 = vsel %vm1541, %v5773, %v5213
  %v5807 = vsel %vm1541, %v5774, %v5215
  %v5808 = vsel %vm1541, %v5775, %v5217
  %v5809 = vsel %vm1541, %v5776, %v5219
  %v5810 = vsel %vm1541, %v5777, %v5221
  %v5811 = vsel %vm1541, %v5778, %v5223
  %v5812 = vsel %vm1541, %v5779, %v5225
  %v5813 = vsel %vm1541, %v5780, %v5227
  %v5814 = vsel %vm1541, %v5781, %v5229
  %v5815 = vsel %vm1541, %v5782, %v5231
  %v5816 = vsel %vm1541, %v5783, %v5233
  %v5817 = vsel %vm1541, %v5784, %v5235
  %v5818 = vsel %vm1541, %v5785, %v5237
  %v5819 = vsel %vm1541, %v5786, %v5239
  %v5820 = vsel %vm1541, %v5787, %v5241
  %v5821 = vsel %vm1541, %v5788, %v5243
  %v5822 = vsel %vm1541, %v5789, %v5245
  %v5823 = vsel %vm1541, %v5790, %v5247
  %v5824 = vsel %vm1541, %v5791, %v5249
  %v5825 = vsel %vm1541, %v5792, %v5251
  %v5826 = vsel %vm1541, %v5793, %v5253
  %v5827 = vsel %vm1541, %v5794, %v5255
  %v5828 = vsel %vm1541, %v5795, %v5257
  %v5829 = vsel %vm1541, %v5796, %v5259
  %v5830 = vsel %vm1541, %v5797, %v5261
  %v5831 = vsel %vm1541, %v5798, %v5263
  %v5832 = vsel %vm1541, %v5799, %v5265
  %v5833 = vsel %vm1541, %v5800, %v5267
  %v5834 = vsel %vm1575, %v5801, %v5368
  %v5835 = vsel %vm1575, %v5802, %v5370
  %v5836 = vsel %vm1575, %v5803, %v5372
  %v5837 = vsel %vm1575, %v5804, %v5374
  %v5838 = vsel %vm1575, %v5805, %v5376
  %v5839 = vsel %vm1575, %v5806, %v5378
  %v5840 = vsel %vm1575, %v5807, %v5380
  %v5841 = vsel %vm1575, %v5808, %v5382
  %v5842 = vsel %vm1575, %v5809, %v5384
  %v5843 = vsel %vm1575, %v5810, %v5386
  %v5844 = vsel %vm1575, %v5811, %v5388
  %v5845 = vsel %vm1575, %v5812, %v5390
  %v5846 = vsel %vm1575, %v5813, %v5392
  %v5847 = vsel %vm1575, %v5814, %v5394
  %v5848 = vsel %vm1575, %v5815, %v5396
  %v5849 = vsel %vm1575, %v5816, %v5398
  %v5850 = vsel %vm1575, %v5817, %v5400
  %v5851 = vsel %vm1575, %v5818, %v5402
  %v5852 = vsel %vm1575, %v5819, %v5404
  %v5853 = vsel %vm1575, %v5820, %v5406
  %v5854 = vsel %vm1575, %v5821, %v5408
  %v5855 = vsel %vm1575, %v5822, %v5410
  %v5856 = vsel %vm1575, %v5823, %v5412
  %v5857 = vsel %vm1575, %v5824, %v5414
  %v5858 = vsel %vm1575, %v5825, %v5416
  %v5859 = vsel %vm1575, %v5826, %v5418
  %v5860 = vsel %vm1575, %v5827, %v5420
  %v5861 = vsel %vm1575, %v5828, %v5422
  %v5862 = vsel %vm1575, %v5829, %v5424
  %v5863 = vsel %vm1575, %v5830, %v5426
  %v5864 = vsel %vm1575, %v5831, %v5428
  %v5865 = vsel %vm1575, %v5832, %v5430
  %v5866 = vsel %vm1575, %v5833, %v5432
  %v5867 = vsel %vm1609, %v5834, %v5471
  %v5868 = vsel %vm1609, %v5835, %v5473
  %v5869 = vsel %vm1609, %v5836, %v5475
  %v5870 = vsel %vm1609, %v5837, %v5477
  %v5871 = vsel %vm1609, %v5838, %v5479
  %v5872 = vsel %vm1609, %v5839, %v5481
  %v5873 = vsel %vm1609, %v5840, %v5483
  %v5874 = vsel %vm1609, %v5841, %v5485
  %v5875 = vsel %vm1609, %v5842, %v5487
  %v5876 = vsel %vm1609, %v5843, %v5489
  %v5877 = vsel %vm1609, %v5844, %v5491
  %v5878 = vsel %vm1609, %v5845, %v5493
  %v5879 = vsel %vm1609, %v5846, %v5495
  %v5880 = vsel %vm1609, %v5847, %v5497
  %v5881 = vsel %vm1609, %v5848, %v5499
  %v5882 = vsel %vm1609, %v5849, %v5501
  %v5883 = vsel %vm1609, %v5850, %v5503
  %v5884 = vsel %vm1609, %v5851, %v5505
  %v5885 = vsel %vm1609, %v5852, %v5507
  %v5886 = vsel %vm1609, %v5853, %v5509
  %v5887 = vsel %vm1609, %v5854, %v5511
  %v5888 = vsel %vm1609, %v5855, %v5513
  %v5889 = vsel %vm1609, %v5856, %v5515
  %v5890 = vsel %vm1609, %v5857, %v5517
  %v5891 = vsel %vm1609, %v5858, %v5519
  %v5892 = vsel %vm1609, %v5859, %v5521
  %v5893 = vsel %vm1609, %v5860, %v5523
  %v5894 = vsel %vm1609, %v5861, %v5525
  %v5895 = vsel %vm1609, %v5862, %v5527
  %v5896 = vsel %vm1609, %v5863, %v5529
  %v5897 = vsel %vm1609, %v5864, %v5531
  %v5898 = vsel %vm1609, %v5865, %v5533
  %v5899 = vsel %vm1609, %v5866, %v5535
  %v5900 = vsel %vm1643, %v5867, %v5571
  %v5901 = vsel %vm1643, %v5868, %v5573
  %v5902 = vsel %vm1643, %v5869, %v5575
  %v5903 = vsel %vm1643, %v5870, %v5577
  %v5904 = vsel %vm1643, %v5871, %v5579
  %v5905 = vsel %vm1643, %v5872, %v5581
  %v5906 = vsel %vm1643, %v5873, %v5583
  %v5907 = vsel %vm1643, %v5874, %v5585
  %v5908 = vsel %vm1643, %v5875, %v5587
  %v5909 = vsel %vm1643, %v5876, %v5589
  %v5910 = vsel %vm1643, %v5877, %v5591
  %v5911 = vsel %vm1643, %v5878, %v5593
  %v5912 = vsel %vm1643, %v5879, %v5595
  %v5913 = vsel %vm1643, %v5880, %v5597
  %v5914 = vsel %vm1643, %v5881, %v5599
  %v5915 = vsel %vm1643, %v5882, %v5601
  %v5916 = vsel %vm1643, %v5883, %v5603
  %v5917 = vsel %vm1643, %v5884, %v5605
  %v5918 = vsel %vm1643, %v5885, %v5607
  %v5919 = vsel %vm1643, %v5886, %v5609
  %v5920 = vsel %vm1643, %v5887, %v5611
  %v5921 = vsel %vm1643, %v5888, %v5613
  %v5922 = vsel %vm1643, %v5889, %v5615
  %v5923 = vsel %vm1643, %v5890, %v5617
  %v5924 = vsel %vm1643, %v5891, %v5619
  %v5925 = vsel %vm1643, %v5892, %v5621
  %v5926 = vsel %vm1643, %v5893, %v5623
  %v5927 = vsel %vm1643, %v5894, %v5625
  %v5928 = vsel %vm1643, %v5895, %v5627
  %v5929 = vsel %vm1643, %v5896, %v5629
  %v5930 = vsel %vm1643, %v5897, %v5631
  %v5931 = vsel %vm1643, %v5898, %v5633
  %v5932 = vsel %vm1643, %v5899, %v5635
  %v5934 = vsel %vm1683, %v5900, 0
  %v5937 = vsel %vm1683, %v5901, 0
  %v5940 = vsel %vm1683, %v5902, 0
  %v5943 = vsel %vm1683, %v5903, 0
  %v5946 = vsel %vm1683, %v5904, 0
  %v5949 = vsel %vm1683, %v5905, 0
  %v5952 = vsel %vm1683, %v5906, 0
  %v5955 = vsel %vm1683, %v5907, 0
  %v5958 = vsel %vm1683, %v5908, 0
  %v5961 = vsel %vm1683, %v5909, 0
  %v5964 = vsel %vm1683, %v5910, 0
  %v5967 = vsel %vm1683, %v5911, 0
  %v5970 = vsel %vm1683, %v5912, 0
  %v5973 = vsel %vm1683, %v5913, 0
  %v5976 = vsel %vm1683, %v5914, 0
  %v5979 = vsel %vm1683, %v5915, 0
  %v5982 = vsel %vm1683, %v5916, 0
  %v5985 = vsel %vm1683, %v5917, 0
  %v5988 = vsel %vm1683, %v5918, 0
  %v5991 = vsel %vm1683, %v5919, 0
  %v5994 = vsel %vm1683, %v5920, 0
  %v5997 = vsel %vm1683, %v5921, 0
  %v6000 = vsel %vm1683, %v5922, 0
  %v6003 = vsel %vm1683, %v5923, 0
  %v6006 = vsel %vm1683, %v5924, 0
  %v6009 = vsel %vm1683, %v5925, 0
  %v6012 = vsel %vm1683, %v5926, 0
  %v6015 = vsel %vm1683, %v5927, 0
  %v6018 = vsel %vm1683, %v5928, 0
  %v6021 = vsel %vm1683, %v5929, 0
  %v6024 = vsel %vm1683, %v5930, 0
  %v6027 = vsel %vm1683, %v5931, 0
  %v6030 = vsel %vm1683, %v5932, 0
  %6032 = vmatprep.subr.mxu0 0.0
  %6033 = vmatpush1.msra.mxu0 %v38
  %6034 = vmatprep.subr.mxu0 0.0
  %6035 = vmatpush1.msra.mxu0 %v39
  %6036 = vmatprep.subr.mxu0 0.0
  %6037 = vmatpush1.msra.mxu0 %v40
  %6038 = vmatprep.subr.mxu0 0.0
  %6039 = vmatpush1.msra.mxu0 %v41
  %6040 = vmatprep.subr.mxu0 0.0
  %6041 = vmatpush1.msra.mxu0 %v1785
  %6042 = vmatprep.subr.mxu0 0.0
  %6043 = vmatpush1.msra.mxu0 0.0
  %6044 = vmatprep.subr.mxu0 0.0
  %6045 = vmatpush1.msra.mxu0 0.0
  %6046 = vmatprep.subr.mxu0 0.0
  %6047 = vmatpush1.msra.mxu0 0.0
  %6048 = vmatprep.subr.mxu0 0.0
  %6049 = vmatpush1.msra.mxu0 0.0
  %6050 = vmatprep.subr.mxu0 0.0
  %6051 = vmatpush1.msra.mxu0 0.0
  %6052 = vmatprep.subr.mxu0 0.0
  %6053 = vmatpush1.msra.mxu0 0.0
  %6054 = vmatprep.subr.mxu0 0.0
  %6055 = vmatpush1.msra.mxu0 0.0
  %6056 = vmatprep.subr.mxu0 0.0
  %6057 = vmatpush1.msra.mxu0 0.0
  %6058 = vmatprep.subr.mxu0 0.0
  %6059 = vmatpush1.msra.mxu0 0.0
  %6060 = vmatprep.subr.mxu0 0.0
  %6061 = vmatpush1.msra.mxu0 0.0
  %6062 = vmatprep.subr.mxu0 0.0
  %6063 = vmatpush1.msra.mxu0 0.0
  %6064 = vmatprep.subr.mxu0 0.0
  %6065 = vmatpush1.msra.mxu0 0.0
  %6066 = vmatprep.subr.mxu0 0.0
  %6067 = vmatpush1.msra.mxu0 0.0
  %6068 = vmatprep.subr.mxu0 0.0
  %6069 = vmatpush1.msra.mxu0 0.0
  %6070 = vmatprep.subr.mxu0 0.0
  %6071 = vmatpush1.msra.mxu0 0.0
  %6072 = vmatprep.subr.mxu0 0.0
  %6073 = vmatpush1.msra.mxu0 0.0
  %6074 = vmatprep.subr.mxu0 0.0
  %6075 = vmatpush1.msra.mxu0 0.0
  %6076 = vmatprep.subr.mxu0 0.0
  %6077 = vmatpush1.msra.mxu0 0.0
  %6078 = vmatprep.subr.mxu0 0.0
  %6079 = vmatpush1.msra.mxu0 0.0
  %6080 = vmatprep.subr.mxu0 0.0
  %6081 = vmatpush1.msra.mxu0 0.0
  %6082 = vmatprep.subr.mxu0 0.0
  %6083 = vmatpush1.msra.mxu0 0.0
  %6084 = vmatprep.subr.mxu0 0.0
  %6085 = vmatpush1.msra.mxu0 0.0
  %6086 = vmatprep.subr.mxu0 0.0
  %6087 = vmatpush1.msra.mxu0 0.0
  %6088 = vmatprep.subr.mxu0 0.0
  %6089 = vmatpush1.msra.mxu0 0.0
  %6090 = vmatprep.subr.mxu0 0.0
  %6091 = vmatpush1.msra.mxu0 0.0
  %6092 = vmatprep.subr.mxu0 0.0
  %6093 = vmatpush1.msra.mxu0 0.0
  %6094 = vmatprep.subr.mxu0 0.0
  %6095 = vmatpush1.msra.mxu0 0.0
  %6096 = vmatprep.mubr.f32.mxu0 0.0
  %6097 = vmatmul.mubr.f32.gmra.mrb[0].mxu0 %v5934
  %v6098 = vpop.f32.mrb[0].mxu0
  %v6099 = vadd.f32 %v1681, %v6098
  %v6100 = vpop.f32.mrb[0].mxu0
  %6101 = vmatprep.mubr.f32.mxu0 0.0
  %6102 = vmatmul.mubr.f32.gmra.mrb[0].mxu0 %v5937
  %v6103 = vpop.f32.mrb[0].mxu0
  %v6104 = vadd.f32 %v1681, %v6103
  %v6105 = vpop.f32.mrb[0].mxu0
  %6106 = vmatprep.mubr.f32.mxu0 0.0
  %6107 = vmatmul.mubr.f32.gmra.mrb[0].mxu0 %v5940
  %v6108 = vpop.f32.mrb[0].mxu0
  %v6109 = vadd.f32 %v1681, %v6108
  %v6110 = vpop.f32.mrb[0].mxu0
  %6111 = vmatprep.mubr.f32.mxu0 0.0
  %6112 = vmatmul.mubr.f32.gmra.mrb[0].mxu0 %v5943
  %v6113 = vpop.f32.mrb[0].mxu0
  %v6114 = vadd.f32 %v1681, %v6113
  %v6115 = vpop.f32.mrb[0].mxu0
  %6116 = vmatprep.mubr.f32.mxu0 0.0
  %6117 = vmatmul.mubr.f32.gmra.mrb[0].mxu0 %v5946
  %v6118 = vpop.f32.mrb[0].mxu0
  %v6119 = vadd.f32 %v1681, %v6118
  %v6120 = vpop.f32.mrb[0].mxu0
  %6121 = vmatprep.mubr.f32.mxu0 0.0
  %6122 = vmatmul.mubr.f32.gmra.mrb[0].mxu0 %v5949
  %v6123 = vpop.f32.mrb[0].mxu0
  %v6124 = vadd.f32 %v1681, %v6123
  %v6125 = vpop.f32.mrb[0].mxu0
  %6126 = vmatprep.mubr.f32.mxu0 0.0
  %6127 = vmatmul.mubr.f32.gmra.mrb[0].mxu0 %v5952
  %v6128 = vpop.f32.mrb[0].mxu0
  %v6129 = vadd.f32 %v1681, %v6128
  %v6130 = vpop.f32.mrb[0].mxu0
  %6131 = vmatprep.mubr.f32.mxu0 0.0
  %6132 = vmatmul.mubr.f32.gmra.mrb[0].mxu0 %v5955
  %v6133 = vpop.f32.mrb[0].mxu0
  %v6134 = vadd.f32 %v1681, %v6133
  %v6135 = vpop.f32.mrb[0].mxu0
  %6136 = vmatprep.mubr.f32.mxu0 0.0
  %6137 = vmatmul.mubr.f32.gmra.mrb[0].mxu0 %v5958
  %v6138 = vpop.f32.mrb[0].mxu0
  %v6139 = vadd.f32 %v1681, %v6138
  %v6140 = vpop.f32.mrb[0].mxu0
  %6141 = vmatprep.mubr.f32.mxu0 0.0
  %6142 = vmatmul.mubr.f32.gmra.mrb[0].mxu0 %v5961
  %v6143 = vpop.f32.mrb[0].mxu0
  %v6144 = vadd.f32 %v1681, %v6143
  %v6145 = vpop.f32.mrb[0].mxu0
  %6146 = vmatprep.mubr.f32.mxu0 0.0
  %6147 = vmatmul.mubr.f32.gmra.mrb[0].mxu0 %v5964
  %v6148 = vpop.f32.mrb[0].mxu0
  %v6149 = vadd.f32 %v1681, %v6148
  %v6150 = vpop.f32.mrb[0].mxu0
  %6151 = vmatprep.mubr.f32.mxu0 0.0
  %6152 = vmatmul.mubr.f32.gmra.mrb[0].mxu0 %v5967
  %v6153 = vpop.f32.mrb[0].mxu0
  %v6154 = vadd.f32 %v1681, %v6153
  %v6155 = vpop.f32.mrb[0].mxu0
  %6156 = vmatprep.mubr.f32.mxu0 0.0
  %6157 = vmatmul.mubr.f32.gmra.mrb[0].mxu0 %v5970
  %v6158 = vpop.f32.mrb[0].mxu0
  %v6159 = vadd.f32 %v1681, %v6158
  %v6160 = vpop.f32.mrb[0].mxu0
  %6161 = vmatprep.mubr.f32.mxu0 0.0
  %6162 = vmatmul.mubr.f32.gmra.mrb[0].mxu0 %v5973
  %v6163 = vpop.f32.mrb[0].mxu0
  %v6164 = vadd.f32 %v1681, %v6163
  %v6165 = vpop.f32.mrb[0].mxu0
  %6166 = vmatprep.mubr.f32.mxu0 0.0
  %6167 = vmatmul.mubr.f32.gmra.mrb[0].mxu0 %v5976
  %v6168 = vpop.f32.mrb[0].mxu0
  %v6169 = vadd.f32 %v1681, %v6168
  %v6170 = vpop.f32.mrb[0].mxu0
  %6171 = vmatprep.mubr.f32.mxu0 0.0
  %6172 = vmatmul.mubr.f32.gmra.mrb[0].mxu0 %v5979
  %v6173 = vpop.f32.mrb[0].mxu0
  %v6174 = vadd.f32 %v1681, %v6173
  %v6175 = vpop.f32.mrb[0].mxu0
  %6176 = vmatprep.mubr.f32.mxu0 0.0
  %6177 = vmatmul.mubr.f32.gmra.mrb[0].mxu0 %v5982
  %v6178 = vpop.f32.mrb[0].mxu0
  %v6179 = vadd.f32 %v1681, %v6178
  %v6180 = vpop.f32.mrb[0].mxu0
  %6181 = vmatprep.mubr.f32.mxu0 0.0
  %6182 = vmatmul.mubr.f32.gmra.mrb[0].mxu0 %v5985
  %v6183 = vpop.f32.mrb[0].mxu0
  %v6184 = vadd.f32 %v1681, %v6183
  %v6185 = vpop.f32.mrb[0].mxu0
  %6186 = vmatprep.mubr.f32.mxu0 0.0
  %6187 = vmatmul.mubr.f32.gmra.mrb[0].mxu0 %v5988
  %v6188 = vpop.f32.mrb[0].mxu0
  %v6189 = vadd.f32 %v1681, %v6188
  %v6190 = vpop.f32.mrb[0].mxu0
  %6191 = vmatprep.mubr.f32.mxu0 0.0
  %6192 = vmatmul.mubr.f32.gmra.mrb[0].mxu0 %v5991
  %v6193 = vpop.f32.mrb[0].mxu0
  %v6194 = vadd.f32 %v1681, %v6193
  %v6195 = vpop.f32.mrb[0].mxu0
  %6196 = vmatprep.mubr.f32.mxu0 0.0
  %6197 = vmatmul.mubr.f32.gmra.mrb[0].mxu0 %v5994
  %v6198 = vpop.f32.mrb[0].mxu0
  %v6199 = vadd.f32 %v1681, %v6198
  %v6200 = vpop.f32.mrb[0].mxu0
  %6201 = vmatprep.mubr.f32.mxu0 0.0
  %6202 = vmatmul.mubr.f32.gmra.mrb[0].mxu0 %v5997
  %v6203 = vpop.f32.mrb[0].mxu0
  %v6204 = vadd.f32 %v1681, %v6203
  %v6205 = vpop.f32.mrb[0].mxu0
  %6206 = vmatprep.mubr.f32.mxu0 0.0
  %6207 = vmatmul.mubr.f32.gmra.mrb[0].mxu0 %v6000
  %v6208 = vpop.f32.mrb[0].mxu0
  %v6209 = vadd.f32 %v1681, %v6208
  %v6210 = vpop.f32.mrb[0].mxu0
  %6211 = vmatprep.mubr.f32.mxu0 0.0
  %6212 = vmatmul.mubr.f32.gmra.mrb[0].mxu0 %v6003
  %v6213 = vpop.f32.mrb[0].mxu0
  %v6214 = vadd.f32 %v1681, %v6213
  %v6215 = vpop.f32.mrb[0].mxu0
  %6216 = vmatprep.mubr.f32.mxu0 0.0
  %6217 = vmatmul.mubr.f32.gmra.mrb[0].mxu0 %v6006
  %v6218 = vpop.f32.mrb[0].mxu0
  %v6219 = vadd.f32 %v1681, %v6218
  %v6220 = vpop.f32.mrb[0].mxu0
  %6221 = vmatprep.mubr.f32.mxu0 0.0
  %6222 = vmatmul.mubr.f32.gmra.mrb[0].mxu0 %v6009
  %v6223 = vpop.f32.mrb[0].mxu0
  %v6224 = vadd.f32 %v1681, %v6223
  %v6225 = vpop.f32.mrb[0].mxu0
  %6226 = vmatprep.mubr.f32.mxu0 0.0
  %6227 = vmatmul.mubr.f32.gmra.mrb[0].mxu0 %v6012
  %v6228 = vpop.f32.mrb[0].mxu0
  %v6229 = vadd.f32 %v1681, %v6228
  %v6230 = vpop.f32.mrb[0].mxu0
  %6231 = vmatprep.mubr.f32.mxu0 0.0
  %6232 = vmatmul.mubr.f32.gmra.mrb[0].mxu0 %v6015
  %v6233 = vpop.f32.mrb[0].mxu0
  %v6234 = vadd.f32 %v1681, %v6233
  %v6235 = vpop.f32.mrb[0].mxu0
  %6236 = vmatprep.mubr.f32.mxu0 0.0
  %6237 = vmatmul.mubr.f32.gmra.mrb[0].mxu0 %v6018
  %v6238 = vpop.f32.mrb[0].mxu0
  %v6239 = vadd.f32 %v1681, %v6238
  %v6240 = vpop.f32.mrb[0].mxu0
  %6241 = vmatprep.mubr.f32.mxu0 0.0
  %6242 = vmatmul.mubr.f32.gmra.mrb[0].mxu0 %v6021
  %v6243 = vpop.f32.mrb[0].mxu0
  %v6244 = vadd.f32 %v1681, %v6243
  %v6245 = vpop.f32.mrb[0].mxu0
  %6246 = vmatprep.mubr.f32.mxu0 0.0
  %6247 = vmatmul.mubr.f32.gmra.mrb[0].mxu0 %v6024
  %v6248 = vpop.f32.mrb[0].mxu0
  %v6249 = vadd.f32 %v1681, %v6248
  %v6250 = vpop.f32.mrb[0].mxu0
  %6251 = vmatprep.mubr.f32.mxu0 0.0
  %6252 = vmatmul.mubr.f32.gmra.mrb[0].mxu0 %v6027
  %v6253 = vpop.f32.mrb[0].mxu0
  %v6254 = vadd.f32 %v1681, %v6253
  %v6255 = vpop.f32.mrb[0].mxu0
  %6256 = vmatprep.mubr.f32.mxu0 0.0
  %6257 = vmatmul.mubr.f32.gmra.mrb[0].mxu0 %v6030
  %v6258 = vpop.f32.mrb[0].mxu0
  %v6259 = vadd.f32 %v1681, %v6258
  %v6260 = vpop.f32.mrb[0].mxu0
  %6261 = vdwg.mxu0
  %v6262 = vmul.f32 %v6099, %v2020
  %v6263 = vmul.f32 %v6104, %v2025
  %v6264 = vmul.f32 %v6109, %v2030
  %v6265 = vmul.f32 %v6114, %v2035
  %v6266 = vmul.f32 %v6119, %v2040
  %v6267 = vmul.f32 %v6124, %v2045
  %v6268 = vmul.f32 %v6129, %v2050
  %v6269 = vmul.f32 %v6134, %v2055
  %v6270 = vmul.f32 %v6139, %v2060
  %v6271 = vmul.f32 %v6144, %v2065
  %v6272 = vmul.f32 %v6149, %v2070
  %v6273 = vmul.f32 %v6154, %v2075
  %v6274 = vmul.f32 %v6159, %v2080
  %v6275 = vmul.f32 %v6164, %v2085
  %v6276 = vmul.f32 %v6169, %v2090
  %v6277 = vmul.f32 %v6174, %v2095
  %v6278 = vmul.f32 %v6179, %v2100
  %v6279 = vmul.f32 %v6184, %v2105
  %v6280 = vmul.f32 %v6189, %v2110
  %v6281 = vmul.f32 %v6194, %v2115
  %v6282 = vmul.f32 %v6199, %v2120
  %v6283 = vmul.f32 %v6204, %v2125
  %v6284 = vmul.f32 %v6209, %v2130
  %v6285 = vmul.f32 %v6214, %v2135
  %v6286 = vmul.f32 %v6219, %v2140
  %v6287 = vmul.f32 %v6224, %v2145
  %v6288 = vmul.f32 %v6229, %v2150
  %v6289 = vmul.f32 %v6234, %v2155
  %v6290 = vmul.f32 %v6239, %v2160
  %v6291 = vmul.f32 %v6244, %v2165
  %v6292 = vmul.f32 %v6249, %v2170
  %v6293 = vmul.f32 %v6254, %v2175
  %v6294 = vmul.f32 %v6259, %v2180
  %v6295 = vsel %vm1643, %v6262, 0.0
  %v6296 = vsel %vm1643, %v6263, 0.0
  %v6297 = vadd.f32 %v6295, %v6296
  %v6298 = vsel %vm1643, %v6264, 0.0
  %v6299 = vadd.f32 %v6297, %v6298
  %v6300 = vsel %vm1643, %v6265, 0.0
  %v6301 = vadd.f32 %v6299, %v6300
  %v6302 = vsel %vm1643, %v6266, 0.0
  %v6303 = vadd.f32 %v6301, %v6302
  %v6304 = vsel %vm1643, %v6267, 0.0
  %v6305 = vadd.f32 %v6303, %v6304
  %v6306 = vsel %vm1643, %v6268, 0.0
  %v6307 = vadd.f32 %v6305, %v6306
  %v6308 = vsel %vm1643, %v6269, 0.0
  %v6309 = vadd.f32 %v6307, %v6308
  %v6310 = vsel %vm1643, %v6270, 0.0
  %v6311 = vadd.f32 %v6309, %v6310
  %v6312 = vsel %vm1643, %v6271, 0.0
  %v6313 = vadd.f32 %v6311, %v6312
  %v6314 = vsel %vm1643, %v6272, 0.0
  %v6315 = vadd.f32 %v6313, %v6314
  %v6316 = vsel %vm1643, %v6273, 0.0
  %v6317 = vadd.f32 %v6315, %v6316
  %v6318 = vsel %vm1643, %v6274, 0.0
  %v6319 = vadd.f32 %v6317, %v6318
  %v6320 = vsel %vm1643, %v6275, 0.0
  %v6321 = vadd.f32 %v6319, %v6320
  %v6322 = vsel %vm1643, %v6276, 0.0
  %v6323 = vadd.f32 %v6321, %v6322
  %v6324 = vsel %vm1643, %v6277, 0.0
  %v6325 = vadd.f32 %v6323, %v6324
  %v6326 = vsel %vm1643, %v6278, 0.0
  %v6327 = vadd.f32 %v6325, %v6326
  %v6328 = vsel %vm1643, %v6279, 0.0
  %v6329 = vadd.f32 %v6327, %v6328
  %v6330 = vsel %vm1643, %v6280, 0.0
  %v6331 = vadd.f32 %v6329, %v6330
  %v6332 = vsel %vm1643, %v6281, 0.0
  %v6333 = vadd.f32 %v6331, %v6332
  %v6334 = vsel %vm1643, %v6282, 0.0
  %v6335 = vadd.f32 %v6333, %v6334
  %v6336 = vsel %vm1643, %v6283, 0.0
  %v6337 = vadd.f32 %v6335, %v6336
  %v6338 = vsel %vm1643, %v6284, 0.0
  %v6339 = vadd.f32 %v6337, %v6338
  %v6340 = vsel %vm1643, %v6285, 0.0
  %v6341 = vadd.f32 %v6339, %v6340
  %v6342 = vsel %vm1643, %v6286, 0.0
  %v6343 = vadd.f32 %v6341, %v6342
  %v6344 = vsel %vm1643, %v6287, 0.0
  %v6345 = vadd.f32 %v6343, %v6344
  %v6346 = vsel %vm1643, %v6288, 0.0
  %v6347 = vadd.f32 %v6345, %v6346
  %v6348 = vsel %vm1643, %v6289, 0.0
  %v6349 = vadd.f32 %v6347, %v6348
  %v6350 = vsel %vm1643, %v6290, 0.0
  %v6351 = vadd.f32 %v6349, %v6350
  %v6352 = vsel %vm1643, %v6291, 0.0
  %v6353 = vadd.f32 %v6351, %v6352
  %v6354 = vsel %vm1643, %v6292, 0.0
  %v6355 = vadd.f32 %v6353, %v6354
  %v6356 = vsel %vm1643, %v6293, 0.0
  %v6357 = vadd.f32 %v6355, %v6356
  %v6358 = vsel %vm2278, %v6294, 0.0
  %v6359 = vadd.f32 %v6357, %v6358
  %v6360 = vrot.slane %v6359, 4
  %v6361 = vadd.f32 %v6359, %v6360
  %v6362 = vrot.slane %v6361, 2
  %v6363 = vadd.f32 %v6361, %v6362
  %v6364 = vrot.slane %v6363, 1
  %v6365 = vadd.f32 %v6363, %v6364
  %v6366 = vsel %vm1643, %v6365, 0.0
  %6367 = vadd.xlane.f32.xlu0 %v6366
  %v6368 = vpop.xlane.xlu0 %6367
  %v6369 = vmul.f32 %v6368, 0.00018491125
  %v6370 = vsub.f32 %v6262, %v6369
  %v6371 = vsub.f32 %v6263, %v6369
  %v6372 = vsub.f32 %v6264, %v6369
  %v6373 = vsub.f32 %v6265, %v6369
  %v6374 = vsub.f32 %v6266, %v6369
  %v6375 = vsub.f32 %v6267, %v6369
  %v6376 = vsub.f32 %v6268, %v6369
  %v6377 = vsub.f32 %v6269, %v6369
  %v6378 = vsub.f32 %v6270, %v6369
  %v6379 = vsub.f32 %v6271, %v6369
  %v6380 = vsub.f32 %v6272, %v6369
  %v6381 = vsub.f32 %v6273, %v6369
  %v6382 = vsub.f32 %v6274, %v6369
  %v6383 = vsub.f32 %v6275, %v6369
  %v6384 = vsub.f32 %v6276, %v6369
  %v6385 = vsub.f32 %v6277, %v6369
  %v6386 = vsub.f32 %v6278, %v6369
  %v6387 = vsub.f32 %v6279, %v6369
  %v6388 = vsub.f32 %v6280, %v6369
  %v6389 = vsub.f32 %v6281, %v6369
  %v6390 = vsub.f32 %v6282, %v6369
  %v6391 = vsub.f32 %v6283, %v6369
  %v6392 = vsub.f32 %v6284, %v6369
  %v6393 = vsub.f32 %v6285, %v6369
  %v6394 = vsub.f32 %v6286, %v6369
  %v6395 = vsub.f32 %v6287, %v6369
  %v6396 = vsub.f32 %v6288, %v6369
  %v6397 = vsub.f32 %v6289, %v6369
  %v6398 = vsub.f32 %v6290, %v6369
  %v6399 = vsub.f32 %v6291, %v6369
  %v6400 = vsub.f32 %v6292, %v6369
  %v6401 = vsub.f32 %v6293, %v6369
  %v6402 = vsub.f32 %v6294, %v6369
  %v6403 = vmul.f32 %v6370, %v2020
  %v6404 = vmul.f32 %v6371, %v2025
  %v6405 = vmul.f32 %v6372, %v2030
  %v6406 = vmul.f32 %v6373, %v2035
  %v6407 = vmul.f32 %v6374, %v2040
  %v6408 = vmul.f32 %v6375, %v2045
  %v6409 = vmul.f32 %v6376, %v2050
  %v6410 = vmul.f32 %v6377, %v2055
  %v6411 = vmul.f32 %v6378, %v2060
  %v6412 = vmul.f32 %v6379, %v2065
  %v6413 = vmul.f32 %v6380, %v2070
  %v6414 = vmul.f32 %v6381, %v2075
  %v6415 = vmul.f32 %v6382, %v2080
  %v6416 = vmul.f32 %v6383, %v2085
  %v6417 = vmul.f32 %v6384, %v2090
  %v6418 = vmul.f32 %v6385, %v2095
  %v6419 = vmul.f32 %v6386, %v2100
  %v6420 = vmul.f32 %v6387, %v2105
  %v6421 = vmul.f32 %v6388, %v2110
  %v6422 = vmul.f32 %v6389, %v2115
  %v6423 = vmul.f32 %v6390, %v2120
  %v6424 = vmul.f32 %v6391, %v2125
  %v6425 = vmul.f32 %v6392, %v2130
  %v6426 = vmul.f32 %v6393, %v2135
  %v6427 = vmul.f32 %v6394, %v2140
  %v6428 = vmul.f32 %v6395, %v2145
  %v6429 = vmul.f32 %v6396, %v2150
  %v6430 = vmul.f32 %v6397, %v2155
  %v6431 = vmul.f32 %v6398, %v2160
  %v6432 = vmul.f32 %v6399, %v2165
  %v6433 = vmul.f32 %v6400, %v2170
  %v6434 = vmul.f32 %v6401, %v2175
  %v6435 = vmul.f32 %v6402, %v2180
  %v6436 = vmul.f32 %v6403, %v6403
  %v6437 = vmul.f32 %v6404, %v6404
  %v6438 = vmul.f32 %v6405, %v6405
  %v6439 = vmul.f32 %v6406, %v6406
  %v6440 = vmul.f32 %v6407, %v6407
  %v6441 = vmul.f32 %v6408, %v6408
  %v6442 = vmul.f32 %v6409, %v6409
  %v6443 = vmul.f32 %v6410, %v6410
  %v6444 = vmul.f32 %v6411, %v6411
  %v6445 = vmul.f32 %v6412, %v6412
  %v6446 = vmul.f32 %v6413, %v6413
  %v6447 = vmul.f32 %v6414, %v6414
  %v6448 = vmul.f32 %v6415, %v6415
  %v6449 = vmul.f32 %v6416, %v6416
  %v6450 = vmul.f32 %v6417, %v6417
  %v6451 = vmul.f32 %v6418, %v6418
  %v6452 = vmul.f32 %v6419, %v6419
  %v6453 = vmul.f32 %v6420, %v6420
  %v6454 = vmul.f32 %v6421, %v6421
  %v6455 = vmul.f32 %v6422, %v6422
  %v6456 = vmul.f32 %v6423, %v6423
  %v6457 = vmul.f32 %v6424, %v6424
  %v6458 = vmul.f32 %v6425, %v6425
  %v6459 = vmul.f32 %v6426, %v6426
  %v6460 = vmul.f32 %v6427, %v6427
  %v6461 = vmul.f32 %v6428, %v6428
  %v6462 = vmul.f32 %v6429, %v6429
  %v6463 = vmul.f32 %v6430, %v6430
  %v6464 = vmul.f32 %v6431, %v6431
  %v6465 = vmul.f32 %v6432, %v6432
  %v6466 = vmul.f32 %v6433, %v6433
  %v6467 = vmul.f32 %v6434, %v6434
  %v6468 = vmul.f32 %v6435, %v6435
  %v6469 = vsel %vm1643, %v6436, 0.0
  %v6470 = vsel %vm1643, %v6437, 0.0
  %v6471 = vadd.f32 %v6469, %v6470
  %v6472 = vsel %vm1643, %v6438, 0.0
  %v6473 = vadd.f32 %v6471, %v6472
  %v6474 = vsel %vm1643, %v6439, 0.0
  %v6475 = vadd.f32 %v6473, %v6474
  %v6476 = vsel %vm1643, %v6440, 0.0
  %v6477 = vadd.f32 %v6475, %v6476
  %v6478 = vsel %vm1643, %v6441, 0.0
  %v6479 = vadd.f32 %v6477, %v6478
  %v6480 = vsel %vm1643, %v6442, 0.0
  %v6481 = vadd.f32 %v6479, %v6480
  %v6482 = vsel %vm1643, %v6443, 0.0
  %v6483 = vadd.f32 %v6481, %v6482
  %v6484 = vsel %vm1643, %v6444, 0.0
  %v6485 = vadd.f32 %v6483, %v6484
  %v6486 = vsel %vm1643, %v6445, 0.0
  %v6487 = vadd.f32 %v6485, %v6486
  %v6488 = vsel %vm1643, %v6446, 0.0
  %v6489 = vadd.f32 %v6487, %v6488
  %v6490 = vsel %vm1643, %v6447, 0.0
  %v6491 = vadd.f32 %v6489, %v6490
  %v6492 = vsel %vm1643, %v6448, 0.0
  %v6493 = vadd.f32 %v6491, %v6492
  %v6494 = vsel %vm1643, %v6449, 0.0
  %v6495 = vadd.f32 %v6493, %v6494
  %v6496 = vsel %vm1643, %v6450, 0.0
  %v6497 = vadd.f32 %v6495, %v6496
  %v6498 = vsel %vm1643, %v6451, 0.0
  %v6499 = vadd.f32 %v6497, %v6498
  %v6500 = vsel %vm1643, %v6452, 0.0
  %v6501 = vadd.f32 %v6499, %v6500
  %v6502 = vsel %vm1643, %v6453, 0.0
  %v6503 = vadd.f32 %v6501, %v6502
  %v6504 = vsel %vm1643, %v6454, 0.0
  %v6505 = vadd.f32 %v6503, %v6504
  %v6506 = vsel %vm1643, %v6455, 0.0
  %v6507 = vadd.f32 %v6505, %v6506
  %v6508 = vsel %vm1643, %v6456, 0.0
  %v6509 = vadd.f32 %v6507, %v6508
  %v6510 = vsel %vm1643, %v6457, 0.0
  %v6511 = vadd.f32 %v6509, %v6510
  %v6512 = vsel %vm1643, %v6458, 0.0
  %v6513 = vadd.f32 %v6511, %v6512
  %v6514 = vsel %vm1643, %v6459, 0.0
  %v6515 = vadd.f32 %v6513, %v6514
  %v6516 = vsel %vm1643, %v6460, 0.0
  %v6517 = vadd.f32 %v6515, %v6516
  %v6518 = vsel %vm1643, %v6461, 0.0
  %v6519 = vadd.f32 %v6517, %v6518
  %v6520 = vsel %vm1643, %v6462, 0.0
  %v6521 = vadd.f32 %v6519, %v6520
  %v6522 = vsel %vm1643, %v6463, 0.0
  %v6523 = vadd.f32 %v6521, %v6522
  %v6524 = vsel %vm1643, %v6464, 0.0
  %v6525 = vadd.f32 %v6523, %v6524
  %v6526 = vsel %vm1643, %v6465, 0.0
  %v6527 = vadd.f32 %v6525, %v6526
  %v6528 = vsel %vm1643, %v6466, 0.0
  %v6529 = vadd.f32 %v6527, %v6528
  %v6530 = vsel %vm1643, %v6467, 0.0
  %v6531 = vadd.f32 %v6529, %v6530
  %v6532 = vsel %vm2278, %v6468, 0.0
  %v6533 = vadd.f32 %v6531, %v6532
  %v6534 = vrot.slane %v6533, 4
  %v6535 = vadd.f32 %v6533, %v6534
  %v6536 = vrot.slane %v6535, 2
  %v6537 = vadd.f32 %v6535, %v6536
  %v6538 = vrot.slane %v6537, 1
  %v6539 = vadd.f32 %v6537, %v6538
  %v6540 = vsel %vm1643, %v6539, 0.0
  %6541 = vadd.xlane.f32.xlu0 %v6540
  %v6542 = vpop.xlane.xlu0 %6541
  %v6543 = vmul.f32 %v6542, 0.00018491125
  %v6544 = vadd.f32 %v6543, 1e-05
  %v6545 = vrsqrt.pop %v6544
  %v6546 = vmul.f32 %v6370, %v6545
  %v6547 = vmul.f32 %v6371, %v6545
  %v6548 = vmul.f32 %v6372, %v6545
  %v6549 = vmul.f32 %v6373, %v6545
  %v6550 = vmul.f32 %v6374, %v6545
  %v6551 = vmul.f32 %v6375, %v6545
  %v6552 = vmul.f32 %v6376, %v6545
  %v6553 = vmul.f32 %v6377, %v6545
  %v6554 = vmul.f32 %v6378, %v6545
  %v6555 = vmul.f32 %v6379, %v6545
  %v6556 = vmul.f32 %v6380, %v6545
  %v6557 = vmul.f32 %v6381, %v6545
  %v6558 = vmul.f32 %v6382, %v6545
  %v6559 = vmul.f32 %v6383, %v6545
  %v6560 = vmul.f32 %v6384, %v6545
  %v6561 = vmul.f32 %v6385, %v6545
  %v6562 = vmul.f32 %v6386, %v6545
  %v6563 = vmul.f32 %v6387, %v6545
  %v6564 = vmul.f32 %v6388, %v6545
  %v6565 = vmul.f32 %v6389, %v6545
  %v6566 = vmul.f32 %v6390, %v6545
  %v6567 = vmul.f32 %v6391, %v6545
  %v6568 = vmul.f32 %v6392, %v6545
  %v6569 = vmul.f32 %v6393, %v6545
  %v6570 = vmul.f32 %v6394, %v6545
  %v6571 = vmul.f32 %v6395, %v6545
  %v6572 = vmul.f32 %v6396, %v6545
  %v6573 = vmul.f32 %v6397, %v6545
  %v6574 = vmul.f32 %v6398, %v6545
  %v6575 = vmul.f32 %v6399, %v6545
  %v6576 = vmul.f32 %v6400, %v6545
  %v6577 = vmul.f32 %v6401, %v6545
  %v6578 = vmul.f32 %v6402, %v6545
  %v6579 = vmul.f32 %v6546, %v44
  %v6580 = vmul.f32 %v6547, %v45
  %v6581 = vmul.f32 %v6548, %v46
  %v6582 = vmul.f32 %v6549, %v47
  %v6583 = vmul.f32 %v6550, %v48
  %v6584 = vmul.f32 %v6551, %v49
  %v6585 = vmul.f32 %v6552, %v50
  %v6586 = vmul.f32 %v6553, %v51
  %v6587 = vmul.f32 %v6554, %v52
  %v6588 = vmul.f32 %v6555, %v53
  %v6589 = vmul.f32 %v6556, %v54
  %v6590 = vmul.f32 %v6557, %v55
  %v6591 = vmul.f32 %v6558, %v56
  %v6592 = vmul.f32 %v6559, %v57
  %v6593 = vmul.f32 %v6560, %v58
  %v6594 = vmul.f32 %v6561, %v59
  %v6595 = vmul.f32 %v6562, %v60
  %v6596 = vmul.f32 %v6563, %v61
  %v6597 = vmul.f32 %v6564, %v62
  %v6598 = vmul.f32 %v6565, %v63
  %v6599 = vmul.f32 %v6566, %v64
  %v6600 = vmul.f32 %v6567, %v65
  %v6601 = vmul.f32 %v6568, %v66
  %v6602 = vmul.f32 %v6569, %v67
  %v6603 = vmul.f32 %v6570, %v68
  %v6604 = vmul.f32 %v6571, %v69
  %v6605 = vmul.f32 %v6572, %v70
  %v6606 = vmul.f32 %v6573, %v71
  %v6607 = vmul.f32 %v6574, %v72
  %v6608 = vmul.f32 %v6575, %v73
  %v6609 = vmul.f32 %v6576, %v74
  %v6610 = vmul.f32 %v6577, %v75
  %v6611 = vmul.f32 %v6578, %v76
  %v6612 = vadd.f32 %v6579, %v77
  %v6613 = vadd.f32 %v6580, %v78
  %v6614 = vadd.f32 %v6581, %v79
  %v6615 = vadd.f32 %v6582, %v80
  %v6616 = vadd.f32 %v6583, %v81
  %v6617 = vadd.f32 %v6584, %v82
  %v6618 = vadd.f32 %v6585, %v83
  %v6619 = vadd.f32 %v6586, %v84
  %v6620 = vadd.f32 %v6587, %v85
  %v6621 = vadd.f32 %v6588, %v86
  %v6622 = vadd.f32 %v6589, %v87
  %v6623 = vadd.f32 %v6590, %v88
  %v6624 = vadd.f32 %v6591, %v89
  %v6625 = vadd.f32 %v6592, %v90
  %v6626 = vadd.f32 %v6593, %v91
  %v6627 = vadd.f32 %v6594, %v92
  %v6628 = vadd.f32 %v6595, %v93
  %v6629 = vadd.f32 %v6596, %v94
  %v6630 = vadd.f32 %v6597, %v95
  %v6631 = vadd.f32 %v6598, %v96
  %v6632 = vadd.f32 %v6599, %v97
  %v6633 = vadd.f32 %v6600, %v98
  %v6634 = vadd.f32 %v6601, %v99
  %v6635 = vadd.f32 %v6602, %v100
  %v6636 = vadd.f32 %v6603, %v101
  %v6637 = vadd.f32 %v6604, %v102
  %v6638 = vadd.f32 %v6605, %v103
  %v6639 = vadd.f32 %v6606, %v104
  %v6640 = vadd.f32 %v6607, %v105
  %v6641 = vadd.f32 %v6608, %v106
  %v6642 = vadd.f32 %v6609, %v107
  %v6643 = vadd.f32 %v6610, %v108
  %v6644 = vadd.f32 %v6611, %v109
  %v6645 = vmax.f32 %v6612, 0.0
  %v6646 = vmax.f32 %v6613, 0.0
  %v6647 = vmax.f32 %v6614, 0.0
  %v6648 = vmax.f32 %v6615, 0.0
  %v6649 = vmax.f32 %v6616, 0.0
  %v6650 = vmax.f32 %v6617, 0.0
  %v6651 = vmax.f32 %v6618, 0.0
  %v6652 = vmax.f32 %v6619, 0.0
  %v6653 = vmax.f32 %v6620, 0.0
  %v6654 = vmax.f32 %v6621, 0.0
  %v6655 = vmax.f32 %v6622, 0.0
  %v6656 = vmax.f32 %v6623, 0.0
  %v6657 = vmax.f32 %v6624, 0.0
  %v6658 = vmax.f32 %v6625, 0.0
  %v6659 = vmax.f32 %v6626, 0.0
  %v6660 = vmax.f32 %v6627, 0.0
  %v6661 = vmax.f32 %v6628, 0.0
  %v6662 = vmax.f32 %v6629, 0.0
  %v6663 = vmax.f32 %v6630, 0.0
  %v6664 = vmax.f32 %v6631, 0.0
  %v6665 = vmax.f32 %v6632, 0.0
  %v6666 = vmax.f32 %v6633, 0.0
  %v6667 = vmax.f32 %v6634, 0.0
  %v6668 = vmax.f32 %v6635, 0.0
  %v6669 = vmax.f32 %v6636, 0.0
  %v6670 = vmax.f32 %v6637, 0.0
  %v6671 = vmax.f32 %v6638, 0.0
  %v6672 = vmax.f32 %v6639, 0.0
  %v6673 = vmax.f32 %v6640, 0.0
  %v6674 = vmax.f32 %v6641, 0.0
  %v6675 = vmax.f32 %v6642, 0.0
  %v6676 = vmax.f32 %v6643, 0.0
  %v6677 = vmax.f32 %v6644, 0.0
  %v6707 = vrot.slane %v6645, 1
  %v6708 = vrot.slane %v6646, 1
  %v6709 = vsel %vm337, %v6707, %v6708
  %v6710 = vrot.slane %v6647, 1
  %v6711 = vsel %vm337, %v6708, %v6710
  %v6712 = vrot.slane %v6648, 1
  %v6713 = vsel %vm337, %v6710, %v6712
  %v6714 = vrot.slane %v6649, 1
  %v6715 = vsel %vm337, %v6712, %v6714
  %v6716 = vrot.slane %v6650, 1
  %v6717 = vsel %vm337, %v6714, %v6716
  %v6718 = vrot.slane %v6651, 1
  %v6719 = vsel %vm337, %v6716, %v6718
  %v6720 = vrot.slane %v6652, 1
  %v6721 = vsel %vm337, %v6718, %v6720
  %v6722 = vrot.slane %v6653, 1
  %v6723 = vsel %vm337, %v6720, %v6722
  %v6724 = vrot.slane %v6654, 1
  %v6725 = vsel %vm337, %v6722, %v6724
  %v6726 = vrot.slane %v6655, 1
  %v6727 = vsel %vm337, %v6724, %v6726
  %v6728 = vrot.slane %v6656, 1
  %v6729 = vsel %vm337, %v6726, %v6728
  %v6730 = vrot.slane %v6657, 1
  %v6731 = vsel %vm337, %v6728, %v6730
  %v6732 = vrot.slane %v6658, 1
  %v6733 = vsel %vm337, %v6730, %v6732
  %v6734 = vrot.slane %v6659, 1
  %v6735 = vsel %vm337, %v6732, %v6734
  %v6736 = vrot.slane %v6660, 1
  %v6737 = vsel %vm337, %v6734, %v6736
  %v6738 = vrot.slane %v6661, 1
  %v6739 = vsel %vm337, %v6736, %v6738
  %v6740 = vrot.slane %v6662, 1
  %v6741 = vsel %vm337, %v6738, %v6740
  %v6742 = vrot.slane %v6663, 1
  %v6743 = vsel %vm337, %v6740, %v6742
  %v6744 = vrot.slane %v6664, 1
  %v6745 = vsel %vm337, %v6742, %v6744
  %v6746 = vrot.slane %v6665, 1
  %v6747 = vsel %vm337, %v6744, %v6746
  %v6748 = vrot.slane %v6666, 1
  %v6749 = vsel %vm337, %v6746, %v6748
  %v6750 = vrot.slane %v6667, 1
  %v6751 = vsel %vm337, %v6748, %v6750
  %v6752 = vrot.slane %v6668, 1
  %v6753 = vsel %vm337, %v6750, %v6752
  %v6754 = vrot.slane %v6669, 1
  %v6755 = vsel %vm337, %v6752, %v6754
  %v6756 = vrot.slane %v6670, 1
  %v6757 = vsel %vm337, %v6754, %v6756
  %v6758 = vrot.slane %v6671, 1
  %v6759 = vsel %vm337, %v6756, %v6758
  %v6760 = vrot.slane %v6672, 1
  %v6761 = vsel %vm337, %v6758, %v6760
  %v6762 = vrot.slane %v6673, 1
  %v6763 = vsel %vm337, %v6760, %v6762
  %6764 = vrot.lane.b32.xlu0 %v6709, 32
  %v6765 = vpop.permute.xlu0 %6764
  %6766 = vrot.lane.b32.xlu0 %v6711, 32
  %v6767 = vpop.permute.xlu0 %6766
  %6768 = vrot.lane.b32.xlu0 %v6713, 32
  %v6769 = vpop.permute.xlu0 %6768
  %6770 = vrot.lane.b32.xlu0 %v6715, 32
  %v6771 = vpop.permute.xlu0 %6770
  %6772 = vrot.lane.b32.xlu0 %v6717, 32
  %v6773 = vpop.permute.xlu0 %6772
  %6774 = vrot.lane.b32.xlu0 %v6719, 32
  %v6775 = vpop.permute.xlu0 %6774
  %6776 = vrot.lane.b32.xlu0 %v6721, 32
  %v6777 = vpop.permute.xlu0 %6776
  %6778 = vrot.lane.b32.xlu0 %v6723, 32
  %v6779 = vpop.permute.xlu0 %6778
  %6780 = vrot.lane.b32.xlu0 %v6725, 32
  %v6781 = vpop.permute.xlu0 %6780
  %6782 = vrot.lane.b32.xlu0 %v6727, 32
  %v6783 = vpop.permute.xlu0 %6782
  %6784 = vrot.lane.b32.xlu0 %v6729, 32
  %v6785 = vpop.permute.xlu0 %6784
  %6786 = vrot.lane.b32.xlu0 %v6731, 32
  %v6787 = vpop.permute.xlu0 %6786
  %6788 = vrot.lane.b32.xlu0 %v6733, 32
  %v6789 = vpop.permute.xlu0 %6788
  %6790 = vrot.lane.b32.xlu0 %v6735, 32
  %v6791 = vpop.permute.xlu0 %6790
  %6792 = vrot.lane.b32.xlu0 %v6737, 32
  %v6793 = vpop.permute.xlu0 %6792
  %6794 = vrot.lane.b32.xlu0 %v6739, 32
  %v6795 = vpop.permute.xlu0 %6794
  %6796 = vrot.lane.b32.xlu0 %v6741, 32
  %v6797 = vpop.permute.xlu0 %6796
  %6798 = vrot.lane.b32.xlu0 %v6743, 32
  %v6799 = vpop.permute.xlu0 %6798
  %6800 = vrot.lane.b32.xlu0 %v6745, 32
  %v6801 = vpop.permute.xlu0 %6800
  %6802 = vrot.lane.b32.xlu0 %v6747, 32
  %v6803 = vpop.permute.xlu0 %6802
  %6804 = vrot.lane.b32.xlu0 %v6749, 32
  %v6805 = vpop.permute.xlu0 %6804
  %6806 = vrot.lane.b32.xlu0 %v6751, 32
  %v6807 = vpop.permute.xlu0 %6806
  %6808 = vrot.lane.b32.xlu0 %v6753, 32
  %v6809 = vpop.permute.xlu0 %6808
  %6810 = vrot.lane.b32.xlu0 %v6755, 32
  %v6811 = vpop.permute.xlu0 %6810
  %6812 = vrot.lane.b32.xlu0 %v6757, 32
  %v6813 = vpop.permute.xlu0 %6812
  %6814 = vrot.lane.b32.xlu0 %v6759, 32
  %v6815 = vpop.permute.xlu0 %6814
  %6816 = vrot.lane.b32.xlu0 %v6761, 32
  %v6817 = vpop.permute.xlu0 %6816
  %6818 = vrot.lane.b32.xlu0 %v6763, 32
  %v6819 = vpop.permute.xlu0 %6818
  %6820 = vrot.lane.b32.xlu0 %v6762, 32
  %v6821 = vpop.permute.xlu0 %6820
  %v6851 = vrot.slane %v6645, 2
  %v6852 = vrot.slane %v6646, 2
  %v6853 = vsel %vm502, %v6851, %v6852
  %v6854 = vrot.slane %v6647, 2
  %v6855 = vsel %vm502, %v6852, %v6854
  %v6856 = vrot.slane %v6648, 2
  %v6857 = vsel %vm502, %v6854, %v6856
  %v6858 = vrot.slane %v6649, 2
  %v6859 = vsel %vm502, %v6856, %v6858
  %v6860 = vrot.slane %v6650, 2
  %v6861 = vsel %vm502, %v6858, %v6860
  %v6862 = vrot.slane %v6651, 2
  %v6863 = vsel %vm502, %v6860, %v6862
  %v6864 = vrot.slane %v6652, 2
  %v6865 = vsel %vm502, %v6862, %v6864
  %v6866 = vrot.slane %v6653, 2
  %v6867 = vsel %vm502, %v6864, %v6866
  %v6868 = vrot.slane %v6654, 2
  %v6869 = vsel %vm502, %v6866, %v6868
  %v6870 = vrot.slane %v6655, 2
  %v6871 = vsel %vm502, %v6868, %v6870
  %v6872 = vrot.slane %v6656, 2
  %v6873 = vsel %vm502, %v6870, %v6872
  %v6874 = vrot.slane %v6657, 2
  %v6875 = vsel %vm502, %v6872, %v6874
  %v6876 = vrot.slane %v6658, 2
  %v6877 = vsel %vm502, %v6874, %v6876
  %v6878 = vrot.slane %v6659, 2
  %v6879 = vsel %vm502, %v6876, %v6878
  %v6880 = vrot.slane %v6660, 2
  %v6881 = vsel %vm502, %v6878, %v6880
  %v6882 = vrot.slane %v6661, 2
  %v6883 = vsel %vm502, %v6880, %v6882
  %v6884 = vrot.slane %v6662, 2
  %v6885 = vsel %vm502, %v6882, %v6884
  %v6886 = vrot.slane %v6663, 2
  %v6887 = vsel %vm502, %v6884, %v6886
  %v6888 = vrot.slane %v6664, 2
  %v6889 = vsel %vm502, %v6886, %v6888
  %v6890 = vrot.slane %v6665, 2
  %v6891 = vsel %vm502, %v6888, %v6890
  %v6892 = vrot.slane %v6666, 2
  %v6893 = vsel %vm502, %v6890, %v6892
  %v6894 = vrot.slane %v6667, 2
  %v6895 = vsel %vm502, %v6892, %v6894
  %v6896 = vrot.slane %v6668, 2
  %v6897 = vsel %vm502, %v6894, %v6896
  %v6898 = vrot.slane %v6669, 2
  %v6899 = vsel %vm502, %v6896, %v6898
  %v6900 = vrot.slane %v6670, 2
  %v6901 = vsel %vm502, %v6898, %v6900
  %v6902 = vrot.slane %v6671, 2
  %v6903 = vsel %vm502, %v6900, %v6902
  %v6904 = vrot.slane %v6672, 2
  %v6905 = vsel %vm502, %v6902, %v6904
  %v6906 = vrot.slane %v6673, 2
  %v6907 = vsel %vm502, %v6904, %v6906
  %6908 = vrot.lane.b32.xlu0 %v6853, 64
  %v6909 = vpop.permute.xlu0 %6908
  %6910 = vrot.lane.b32.xlu0 %v6855, 64
  %v6911 = vpop.permute.xlu0 %6910
  %6912 = vrot.lane.b32.xlu0 %v6857, 64
  %v6913 = vpop.permute.xlu0 %6912
  %6914 = vrot.lane.b32.xlu0 %v6859, 64
  %v6915 = vpop.permute.xlu0 %6914
  %6916 = vrot.lane.b32.xlu0 %v6861, 64
  %v6917 = vpop.permute.xlu0 %6916
  %6918 = vrot.lane.b32.xlu0 %v6863, 64
  %v6919 = vpop.permute.xlu0 %6918
  %6920 = vrot.lane.b32.xlu0 %v6865, 64
  %v6921 = vpop.permute.xlu0 %6920
  %6922 = vrot.lane.b32.xlu0 %v6867, 64
  %v6923 = vpop.permute.xlu0 %6922
  %6924 = vrot.lane.b32.xlu0 %v6869, 64
  %v6925 = vpop.permute.xlu0 %6924
  %6926 = vrot.lane.b32.xlu0 %v6871, 64
  %v6927 = vpop.permute.xlu0 %6926
  %6928 = vrot.lane.b32.xlu0 %v6873, 64
  %v6929 = vpop.permute.xlu0 %6928
  %6930 = vrot.lane.b32.xlu0 %v6875, 64
  %v6931 = vpop.permute.xlu0 %6930
  %6932 = vrot.lane.b32.xlu0 %v6877, 64
  %v6933 = vpop.permute.xlu0 %6932
  %6934 = vrot.lane.b32.xlu0 %v6879, 64
  %v6935 = vpop.permute.xlu0 %6934
  %6936 = vrot.lane.b32.xlu0 %v6881, 64
  %v6937 = vpop.permute.xlu0 %6936
  %6938 = vrot.lane.b32.xlu0 %v6883, 64
  %v6939 = vpop.permute.xlu0 %6938
  %6940 = vrot.lane.b32.xlu0 %v6885, 64
  %v6941 = vpop.permute.xlu0 %6940
  %6942 = vrot.lane.b32.xlu0 %v6887, 64
  %v6943 = vpop.permute.xlu0 %6942
  %6944 = vrot.lane.b32.xlu0 %v6889, 64
  %v6945 = vpop.permute.xlu0 %6944
  %6946 = vrot.lane.b32.xlu0 %v6891, 64
  %v6947 = vpop.permute.xlu0 %6946
  %6948 = vrot.lane.b32.xlu0 %v6893, 64
  %v6949 = vpop.permute.xlu0 %6948
  %6950 = vrot.lane.b32.xlu0 %v6895, 64
  %v6951 = vpop.permute.xlu0 %6950
  %6952 = vrot.lane.b32.xlu0 %v6897, 64
  %v6953 = vpop.permute.xlu0 %6952
  %6954 = vrot.lane.b32.xlu0 %v6899, 64
  %v6955 = vpop.permute.xlu0 %6954
  %6956 = vrot.lane.b32.xlu0 %v6901, 64
  %v6957 = vpop.permute.xlu0 %6956
  %6958 = vrot.lane.b32.xlu0 %v6903, 64
  %v6959 = vpop.permute.xlu0 %6958
  %6960 = vrot.lane.b32.xlu0 %v6905, 64
  %v6961 = vpop.permute.xlu0 %6960
  %6962 = vrot.lane.b32.xlu0 %v6907, 64
  %v6963 = vpop.permute.xlu0 %6962
  %6964 = vrot.lane.b32.xlu0 %v6906, 64
  %v6965 = vpop.permute.xlu0 %6964
  %v6996 = vrot.slane %v6646, 7
  %v6997 = vrot.slane %v6647, 7
  %v6998 = vsel %vm668, %v6996, %v6997
  %v6999 = vrot.slane %v6648, 7
  %v7000 = vsel %vm668, %v6997, %v6999
  %v7001 = vrot.slane %v6649, 7
  %v7002 = vsel %vm668, %v6999, %v7001
  %v7003 = vrot.slane %v6650, 7
  %v7004 = vsel %vm668, %v7001, %v7003
  %v7005 = vrot.slane %v6651, 7
  %v7006 = vsel %vm668, %v7003, %v7005
  %v7007 = vrot.slane %v6652, 7
  %v7008 = vsel %vm668, %v7005, %v7007
  %v7009 = vrot.slane %v6653, 7
  %v7010 = vsel %vm668, %v7007, %v7009
  %v7011 = vrot.slane %v6654, 7
  %v7012 = vsel %vm668, %v7009, %v7011
  %v7013 = vrot.slane %v6655, 7
  %v7014 = vsel %vm668, %v7011, %v7013
  %v7015 = vrot.slane %v6656, 7
  %v7016 = vsel %vm668, %v7013, %v7015
  %v7017 = vrot.slane %v6657, 7
  %v7018 = vsel %vm668, %v7015, %v7017
  %v7019 = vrot.slane %v6658, 7
  %v7020 = vsel %vm668, %v7017, %v7019
  %v7021 = vrot.slane %v6659, 7
  %v7022 = vsel %vm668, %v7019, %v7021
  %v7023 = vrot.slane %v6660, 7
  %v7024 = vsel %vm668, %v7021, %v7023
  %v7025 = vrot.slane %v6661, 7
  %v7026 = vsel %vm668, %v7023, %v7025
  %v7027 = vrot.slane %v6662, 7
  %v7028 = vsel %vm668, %v7025, %v7027
  %v7029 = vrot.slane %v6663, 7
  %v7030 = vsel %vm668, %v7027, %v7029
  %v7031 = vrot.slane %v6664, 7
  %v7032 = vsel %vm668, %v7029, %v7031
  %v7033 = vrot.slane %v6665, 7
  %v7034 = vsel %vm668, %v7031, %v7033
  %v7035 = vrot.slane %v6666, 7
  %v7036 = vsel %vm668, %v7033, %v7035
  %v7037 = vrot.slane %v6667, 7
  %v7038 = vsel %vm668, %v7035, %v7037
  %v7039 = vrot.slane %v6668, 7
  %v7040 = vsel %vm668, %v7037, %v7039
  %v7041 = vrot.slane %v6669, 7
  %v7042 = vsel %vm668, %v7039, %v7041
  %v7043 = vrot.slane %v6670, 7
  %v7044 = vsel %vm668, %v7041, %v7043
  %v7045 = vrot.slane %v6671, 7
  %v7046 = vsel %vm668, %v7043, %v7045
  %v7047 = vrot.slane %v6672, 7
  %v7048 = vsel %vm668, %v7045, %v7047
  %v7049 = vrot.slane %v6673, 7
  %v7050 = vsel %vm668, %v7047, %v7049
  %v7051 = vrot.slane %v6674, 7
  %v7052 = vsel %vm668, %v7049, %v7051
  %7053 = vrot.lane.b32.xlu0 %v6998, 96
  %v7054 = vpop.permute.xlu0 %7053
  %7055 = vrot.lane.b32.xlu0 %v7000, 96
  %v7056 = vpop.permute.xlu0 %7055
  %7057 = vrot.lane.b32.xlu0 %v7002, 96
  %v7058 = vpop.permute.xlu0 %7057
  %7059 = vrot.lane.b32.xlu0 %v7004, 96
  %v7060 = vpop.permute.xlu0 %7059
  %7061 = vrot.lane.b32.xlu0 %v7006, 96
  %v7062 = vpop.permute.xlu0 %7061
  %7063 = vrot.lane.b32.xlu0 %v7008, 96
  %v7064 = vpop.permute.xlu0 %7063
  %7065 = vrot.lane.b32.xlu0 %v7010, 96
  %v7066 = vpop.permute.xlu0 %7065
  %7067 = vrot.lane.b32.xlu0 %v7012, 96
  %v7068 = vpop.permute.xlu0 %7067
  %7069 = vrot.lane.b32.xlu0 %v7014, 96
  %v7070 = vpop.permute.xlu0 %7069
  %7071 = vrot.lane.b32.xlu0 %v7016, 96
  %v7072 = vpop.permute.xlu0 %7071
  %7073 = vrot.lane.b32.xlu0 %v7018, 96
  %v7074 = vpop.permute.xlu0 %7073
  %7075 = vrot.lane.b32.xlu0 %v7020, 96
  %v7076 = vpop.permute.xlu0 %7075
  %7077 = vrot.lane.b32.xlu0 %v7022, 96
  %v7078 = vpop.permute.xlu0 %7077
  %7079 = vrot.lane.b32.xlu0 %v7024, 96
  %v7080 = vpop.permute.xlu0 %7079
  %7081 = vrot.lane.b32.xlu0 %v7026, 96
  %v7082 = vpop.permute.xlu0 %7081
  %7083 = vrot.lane.b32.xlu0 %v7028, 96
  %v7084 = vpop.permute.xlu0 %7083
  %7085 = vrot.lane.b32.xlu0 %v7030, 96
  %v7086 = vpop.permute.xlu0 %7085
  %7087 = vrot.lane.b32.xlu0 %v7032, 96
  %v7088 = vpop.permute.xlu0 %7087
  %7089 = vrot.lane.b32.xlu0 %v7034, 96
  %v7090 = vpop.permute.xlu0 %7089
  %7091 = vrot.lane.b32.xlu0 %v7036, 96
  %v7092 = vpop.permute.xlu0 %7091
  %7093 = vrot.lane.b32.xlu0 %v7038, 96
  %v7094 = vpop.permute.xlu0 %7093
  %7095 = vrot.lane.b32.xlu0 %v7040, 96
  %v7096 = vpop.permute.xlu0 %7095
  %7097 = vrot.lane.b32.xlu0 %v7042, 96
  %v7098 = vpop.permute.xlu0 %7097
  %7099 = vrot.lane.b32.xlu0 %v7044, 96
  %v7100 = vpop.permute.xlu0 %7099
  %7101 = vrot.lane.b32.xlu0 %v7046, 96
  %v7102 = vpop.permute.xlu0 %7101
  %7103 = vrot.lane.b32.xlu0 %v7048, 96
  %v7104 = vpop.permute.xlu0 %7103
  %7105 = vrot.lane.b32.xlu0 %v7050, 96
  %v7106 = vpop.permute.xlu0 %7105
  %7107 = vrot.lane.b32.xlu0 %v7052, 96
  %v7108 = vpop.permute.xlu0 %7107
  %7109 = vrot.lane.b32.xlu0 %v7051, 96
  %v7110 = vpop.permute.xlu0 %7109
  %v7141 = vrot.slane %v6674, 1
  %v7142 = vsel %vm337, %v6762, %v7141
  %v7143 = vrot.slane %v6675, 1
  %v7144 = vsel %vm337, %v7141, %v7143
  %7145 = vrot.lane.b32.xlu0 %v7142, 32
  %v7146 = vpop.permute.xlu0 %7145
  %7147 = vrot.lane.b32.xlu0 %v7144, 32
  %v7148 = vpop.permute.xlu0 %7147
  %7149 = vrot.lane.b32.xlu0 %v7143, 32
  %v7150 = vpop.permute.xlu0 %7149
  %v7155 = vrot.slane %v6648, 6
  %v7156 = vrot.slane %v6649, 6
  %v7157 = vsel %vm1037, %v7155, %v7156
  %v7158 = vrot.slane %v6650, 6
  %v7159 = vsel %vm1037, %v7156, %v7158
  %v7160 = vrot.slane %v6651, 6
  %v7161 = vsel %vm1037, %v7158, %v7160
  %v7162 = vrot.slane %v6652, 6
  %v7163 = vsel %vm1037, %v7160, %v7162
  %v7164 = vrot.slane %v6653, 6
  %v7165 = vsel %vm1037, %v7162, %v7164
  %v7166 = vrot.slane %v6654, 6
  %v7167 = vsel %vm1037, %v7164, %v7166
  %v7168 = vrot.slane %v6655, 6
  %v7169 = vsel %vm1037, %v7166, %v7168
  %v7170 = vrot.slane %v6656, 6
  %v7171 = vsel %vm1037, %v7168, %v7170
  %v7172 = vrot.slane %v6657, 6
  %v7173 = vsel %vm1037, %v7170, %v7172
  %v7174 = vrot.slane %v6658, 6
  %v7175 = vsel %vm1037, %v7172, %v7174
  %v7176 = vrot.slane %v6659, 6
  %v7177 = vsel %vm1037, %v7174, %v7176
  %v7178 = vrot.slane %v6660, 6
  %v7179 = vsel %vm1037, %v7176, %v7178
  %v7180 = vrot.slane %v6661, 6
  %v7181 = vsel %vm1037, %v7178, %v7180
  %v7182 = vrot.slane %v6662, 6
  %v7183 = vsel %vm1037, %v7180, %v7182
  %v7184 = vrot.slane %v6663, 6
  %v7185 = vsel %vm1037, %v7182, %v7184
  %v7186 = vrot.slane %v6664, 6
  %v7187 = vsel %vm1037, %v7184, %v7186
  %v7188 = vrot.slane %v6665, 6
  %v7189 = vsel %vm1037, %v7186, %v7188
  %v7190 = vrot.slane %v6666, 6
  %v7191 = vsel %vm1037, %v7188, %v7190
  %v7192 = vrot.slane %v6667, 6
  %v7193 = vsel %vm1037, %v7190, %v7192
  %v7194 = vrot.slane %v6668, 6
  %v7195 = vsel %vm1037, %v7192, %v7194
  %v7196 = vrot.slane %v6669, 6
  %v7197 = vsel %vm1037, %v7194, %v7196
  %v7198 = vrot.slane %v6670, 6
  %v7199 = vsel %vm1037, %v7196, %v7198
  %v7200 = vrot.slane %v6671, 6
  %v7201 = vsel %vm1037, %v7198, %v7200
  %v7202 = vrot.slane %v6672, 6
  %v7203 = vsel %vm1037, %v7200, %v7202
  %v7204 = vrot.slane %v6673, 6
  %v7205 = vsel %vm1037, %v7202, %v7204
  %v7206 = vrot.slane %v6674, 6
  %v7207 = vsel %vm1037, %v7204, %v7206
  %v7208 = vrot.slane %v6675, 6
  %v7209 = vsel %vm1037, %v7206, %v7208
  %v7210 = vrot.slane %v6676, 6
  %v7211 = vsel %vm1037, %v7208, %v7210
  %7212 = vrot.lane.b32.xlu0 %v7157, 64
  %v7213 = vpop.permute.xlu0 %7212
  %7214 = vrot.lane.b32.xlu0 %v7159, 64
  %v7215 = vpop.permute.xlu0 %7214
  %7216 = vrot.lane.b32.xlu0 %v7161, 64
  %v7217 = vpop.permute.xlu0 %7216
  %7218 = vrot.lane.b32.xlu0 %v7163, 64
  %v7219 = vpop.permute.xlu0 %7218
  %7220 = vrot.lane.b32.xlu0 %v7165, 64
  %v7221 = vpop.permute.xlu0 %7220
  %7222 = vrot.lane.b32.xlu0 %v7167, 64
  %v7223 = vpop.permute.xlu0 %7222
  %7224 = vrot.lane.b32.xlu0 %v7169, 64
  %v7225 = vpop.permute.xlu0 %7224
  %7226 = vrot.lane.b32.xlu0 %v7171, 64
  %v7227 = vpop.permute.xlu0 %7226
  %7228 = vrot.lane.b32.xlu0 %v7173, 64
  %v7229 = vpop.permute.xlu0 %7228
  %7230 = vrot.lane.b32.xlu0 %v7175, 64
  %v7231 = vpop.permute.xlu0 %7230
  %7232 = vrot.lane.b32.xlu0 %v7177, 64
  %v7233 = vpop.permute.xlu0 %7232
  %7234 = vrot.lane.b32.xlu0 %v7179, 64
  %v7235 = vpop.permute.xlu0 %7234
  %7236 = vrot.lane.b32.xlu0 %v7181, 64
  %v7237 = vpop.permute.xlu0 %7236
  %7238 = vrot.lane.b32.xlu0 %v7183, 64
  %v7239 = vpop.permute.xlu0 %7238
  %7240 = vrot.lane.b32.xlu0 %v7185, 64
  %v7241 = vpop.permute.xlu0 %7240
  %7242 = vrot.lane.b32.xlu0 %v7187, 64
  %v7243 = vpop.permute.xlu0 %7242
  %7244 = vrot.lane.b32.xlu0 %v7189, 64
  %v7245 = vpop.permute.xlu0 %7244
  %7246 = vrot.lane.b32.xlu0 %v7191, 64
  %v7247 = vpop.permute.xlu0 %7246
  %7248 = vrot.lane.b32.xlu0 %v7193, 64
  %v7249 = vpop.permute.xlu0 %7248
  %7250 = vrot.lane.b32.xlu0 %v7195, 64
  %v7251 = vpop.permute.xlu0 %7250
  %7252 = vrot.lane.b32.xlu0 %v7197, 64
  %v7253 = vpop.permute.xlu0 %7252
  %7254 = vrot.lane.b32.xlu0 %v7199, 64
  %v7255 = vpop.permute.xlu0 %7254
  %7256 = vrot.lane.b32.xlu0 %v7201, 64
  %v7257 = vpop.permute.xlu0 %7256
  %7258 = vrot.lane.b32.xlu0 %v7203, 64
  %v7259 = vpop.permute.xlu0 %7258
  %7260 = vrot.lane.b32.xlu0 %v7205, 64
  %v7261 = vpop.permute.xlu0 %7260
  %7262 = vrot.lane.b32.xlu0 %v7207, 64
  %v7263 = vpop.permute.xlu0 %7262
  %7264 = vrot.lane.b32.xlu0 %v7209, 64
  %v7265 = vpop.permute.xlu0 %7264
  %7266 = vrot.lane.b32.xlu0 %v7211, 64
  %v7267 = vpop.permute.xlu0 %7266
  %7268 = vrot.lane.b32.xlu0 %v7210, 64
  %v7269 = vpop.permute.xlu0 %7268
  %v7299 = vrot.slane %v6675, 7
  %v7300 = vsel %vm668, %v7051, %v7299
  %v7301 = vrot.slane %v6676, 7
  %v7302 = vsel %vm668, %v7299, %v7301
  %7303 = vrot.lane.b32.xlu0 %v7300, 96
  %v7304 = vpop.permute.xlu0 %7303
  %7305 = vrot.lane.b32.xlu0 %v7302, 96
  %v7306 = vpop.permute.xlu0 %7305
  %7307 = vrot.lane.b32.xlu0 %v7301, 96
  %v7308 = vpop.permute.xlu0 %7307
  %v7312 = vsel %vm1643, %v6645, %v6765
  %v7313 = vsel %vm1643, %v6646, %v6767
  %v7314 = vsel %vm1643, %v6647, %v6769
  %v7315 = vsel %vm1643, %v6648, %v6771
  %v7316 = vsel %vm1643, %v6649, %v6773
  %v7317 = vsel %vm1643, %v6650, %v6775
  %v7318 = vsel %vm1643, %v6651, %v6777
  %v7319 = vsel %vm1643, %v6652, %v6779
  %v7320 = vsel %vm1643, %v6653, %v6781
  %v7321 = vsel %vm1643, %v6654, %v6783
  %v7322 = vsel %vm1643, %v6655, %v6785
  %v7323 = vsel %vm1643, %v6656, %v6787
  %v7324 = vsel %vm1643, %v6657, %v6789
  %v7325 = vsel %vm1643, %v6658, %v6791
  %v7326 = vsel %vm1643, %v6659, %v6793
  %v7327 = vsel %vm1643, %v6660, %v6795
  %v7328 = vsel %vm1643, %v6661, %v6797
  %v7329 = vsel %vm1643, %v6662, %v6799
  %v7330 = vsel %vm1643, %v6663, %v6801
  %v7331 = vsel %vm1643, %v6664, %v6803
  %v7332 = vsel %vm1643, %v6665, %v6805
  %v7333 = vsel %vm1643, %v6666, %v6807
  %v7334 = vsel %vm1643, %v6667, %v6809
  %v7335 = vsel %vm1643, %v6668, %v6811
  %v7336 = vsel %vm1643, %v6669, %v6813
  %v7337 = vsel %vm1643, %v6670, %v6815
  %v7338 = vsel %vm1643, %v6671, %v6817
  %v7339 = vsel %vm1643, %v6672, %v6819
  %v7340 = vsel %vm1643, %v6673, %v6821
  %v7341 = vsel %vm3262, %v7312, %v6909
  %v7342 = vsel %vm3262, %v7313, %v6911
  %v7343 = vsel %vm3262, %v7314, %v6913
  %v7344 = vsel %vm3262, %v7315, %v6915
  %v7345 = vsel %vm3262, %v7316, %v6917
  %v7346 = vsel %vm3262, %v7317, %v6919
  %v7347 = vsel %vm3262, %v7318, %v6921
  %v7348 = vsel %vm3262, %v7319, %v6923
  %v7349 = vsel %vm3262, %v7320, %v6925
  %v7350 = vsel %vm3262, %v7321, %v6927
  %v7351 = vsel %vm3262, %v7322, %v6929
  %v7352 = vsel %vm3262, %v7323, %v6931
  %v7353 = vsel %vm3262, %v7324, %v6933
  %v7354 = vsel %vm3262, %v7325, %v6935
  %v7355 = vsel %vm3262, %v7326, %v6937
  %v7356 = vsel %vm3262, %v7327, %v6939
  %v7357 = vsel %vm3262, %v7328, %v6941
  %v7358 = vsel %vm3262, %v7329, %v6943
  %v7359 = vsel %vm3262, %v7330, %v6945
  %v7360 = vsel %vm3262, %v7331, %v6947
  %v7361 = vsel %vm3262, %v7332, %v6949
  %v7362 = vsel %vm3262, %v7333, %v6951
  %v7363 = vsel %vm3262, %v7334, %v6953
  %v7364 = vsel %vm3262, %v7335, %v6955
  %v7365 = vsel %vm3262, %v7336, %v6957
  %v7366 = vsel %vm3262, %v7337, %v6959
  %v7367 = vsel %vm3262, %v7338, %v6961
  %v7368 = vsel %vm3262, %v7339, %v6963
  %v7369 = vsel %vm3262, %v7340, %v6965
  %v7370 = vsel %vm3292, %v7341, %v7054
  %v7371 = vsel %vm3292, %v7342, %v7056
  %v7372 = vsel %vm3292, %v7343, %v7058
  %v7373 = vsel %vm3292, %v7344, %v7060
  %v7374 = vsel %vm3292, %v7345, %v7062
  %v7375 = vsel %vm3292, %v7346, %v7064
  %v7376 = vsel %vm3292, %v7347, %v7066
  %v7377 = vsel %vm3292, %v7348, %v7068
  %v7378 = vsel %vm3292, %v7349, %v7070
  %v7379 = vsel %vm3292, %v7350, %v7072
  %v7380 = vsel %vm3292, %v7351, %v7074
  %v7381 = vsel %vm3292, %v7352, %v7076
  %v7382 = vsel %vm3292, %v7353, %v7078
  %v7383 = vsel %vm3292, %v7354, %v7080
  %v7384 = vsel %vm3292, %v7355, %v7082
  %v7385 = vsel %vm3292, %v7356, %v7084
  %v7386 = vsel %vm3292, %v7357, %v7086
  %v7387 = vsel %vm3292, %v7358, %v7088
  %v7388 = vsel %vm3292, %v7359, %v7090
  %v7389 = vsel %vm3292, %v7360, %v7092
  %v7390 = vsel %vm3292, %v7361, %v7094
  %v7391 = vsel %vm3292, %v7362, %v7096
  %v7392 = vsel %vm3292, %v7363, %v7098
  %v7393 = vsel %vm3292, %v7364, %v7100
  %v7394 = vsel %vm3292, %v7365, %v7102
  %v7395 = vsel %vm3292, %v7366, %v7104
  %v7396 = vsel %vm3292, %v7367, %v7106
  %v7397 = vsel %vm3292, %v7368, %v7108
  %v7398 = vsel %vm3292, %v7369, %v7110
  %v7399 = vsel %vm1643, %v6673, %v7146
  %v7400 = vsel %vm1643, %v6674, %v7148
  %v7401 = vsel %vm1643, %v6675, %v7150
  %v7402 = vsel %vm3262, %v7314, %v7213
  %v7403 = vsel %vm3262, %v7315, %v7215
  %v7404 = vsel %vm3262, %v7316, %v7217
  %v7405 = vsel %vm3262, %v7317, %v7219
  %v7406 = vsel %vm3262, %v7318, %v7221
  %v7407 = vsel %vm3262, %v7319, %v7223
  %v7408 = vsel %vm3262, %v7320, %v7225
  %v7409 = vsel %vm3262, %v7321, %v7227
  %v7410 = vsel %vm3262, %v7322, %v7229
  %v7411 = vsel %vm3262, %v7323, %v7231
  %v7412 = vsel %vm3262, %v7324, %v7233
  %v7413 = vsel %vm3262, %v7325, %v7235
  %v7414 = vsel %vm3262, %v7326, %v7237
  %v7415 = vsel %vm3262, %v7327, %v7239
  %v7416 = vsel %vm3262, %v7328, %v7241
  %v7417 = vsel %vm3262, %v7329, %v7243
  %v7418 = vsel %vm3262, %v7330, %v7245
  %v7419 = vsel %vm3262, %v7331, %v7247
  %v7420 = vsel %vm3262, %v7332, %v7249
  %v7421 = vsel %vm3262, %v7333, %v7251
  %v7422 = vsel %vm3262, %v7334, %v7253
  %v7423 = vsel %vm3262, %v7335, %v7255
  %v7424 = vsel %vm3262, %v7336, %v7257
  %v7425 = vsel %vm3262, %v7337, %v7259
  %v7426 = vsel %vm3262, %v7338, %v7261
  %v7427 = vsel %vm3262, %v7339, %v7263
  %v7428 = vsel %vm3262, %v7399, %v7265
  %v7429 = vsel %vm3262, %v7400, %v7267
  %v7430 = vsel %vm3262, %v7401, %v7269
  %v7431 = vsel %vm3292, %v7402, %v7058
  %v7432 = vsel %vm3292, %v7403, %v7060
  %v7433 = vsel %vm3292, %v7404, %v7062
  %v7434 = vsel %vm3292, %v7405, %v7064
  %v7435 = vsel %vm3292, %v7406, %v7066
  %v7436 = vsel %vm3292, %v7407, %v7068
  %v7437 = vsel %vm3292, %v7408, %v7070
  %v7438 = vsel %vm3292, %v7409, %v7072
  %v7439 = vsel %vm3292, %v7410, %v7074
  %v7440 = vsel %vm3292, %v7411, %v7076
  %v7441 = vsel %vm3292, %v7412, %v7078
  %v7442 = vsel %vm3292, %v7413, %v7080
  %v7443 = vsel %vm3292, %v7414, %v7082
  %v7444 = vsel %vm3292, %v7415, %v7084
  %v7445 = vsel %vm3292, %v7416, %v7086
  %v7446 = vsel %vm3292, %v7417, %v7088
  %v7447 = vsel %vm3292, %v7418, %v7090
  %v7448 = vsel %vm3292, %v7419, %v7092
  %v7449 = vsel %vm3292, %v7420, %v7094
  %v7450 = vsel %vm3292, %v7421, %v7096
  %v7451 = vsel %vm3292, %v7422, %v7098
  %v7452 = vsel %vm3292, %v7423, %v7100
  %v7453 = vsel %vm3292, %v7424, %v7102
  %v7454 = vsel %vm3292, %v7425, %v7104
  %v7455 = vsel %vm3292, %v7426, %v7106
  %v7456 = vsel %vm3292, %v7427, %v7108
  %v7457 = vsel %vm3292, %v7428, %v7304
  %v7458 = vsel %vm3292, %v7429, %v7306
  %v7459 = vsel %vm3292, %v7430, %v7308
  %v7460 = vsel %vm1643, %v6649, 0
  %v7462 = vsel %vm1643, %v6650, 0
  %v7464 = vsel %vm1643, %v6651, 0
  %v7466 = vsel %vm1643, %v6652, 0
  %v7468 = vsel %vm1643, %v6653, 0
  %v7470 = vsel %vm1643, %v6654, 0
  %v7472 = vsel %vm1643, %v6655, 0
  %v7474 = vsel %vm1643, %v6656, 0
  %v7476 = vsel %vm1643, %v6657, 0
  %v7478 = vsel %vm1643, %v6658, 0
  %v7480 = vsel %vm1643, %v6659, 0
  %v7482 = vsel %vm1643, %v6660, 0
  %v7484 = vsel %vm1643, %v6661, 0
  %v7486 = vsel %vm1643, %v6662, 0
  %v7488 = vsel %vm1643, %v6663, 0
  %v7490 = vsel %vm1643, %v6664, 0
  %v7492 = vsel %vm1643, %v6665, 0
  %v7494 = vsel %vm1643, %v6666, 0
  %v7496 = vsel %vm1643, %v6667, 0
  %v7498 = vsel %vm1643, %v6668, 0
  %v7500 = vsel %vm1643, %v6669, 0
  %v7502 = vsel %vm1643, %v6670, 0
  %v7504 = vsel %vm1643, %v6671, 0
  %v7506 = vsel %vm1643, %v6672, 0
  %v7508 = vsel %vm1643, %v6673, 0
  %v7510 = vsel %vm1643, %v6674, 0
  %v7512 = vsel %vm1643, %v6675, 0
  %v7514 = vsel %vm1643, %v6676, 0
  %v7517 = vsel %vm1643, %v6677, 0
  %7519 = vmatprep.subr.mxu0 0.0
  %7520 = vmatpush1.msra.mxu0 %v143
  %7521 = vmatprep.subr.mxu0 0.0
  %7522 = vmatpush1.msra.mxu0 %v144
  %7523 = vmatprep.subr.mxu0 0.0
  %7524 = vmatpush1.msra.mxu0 %v145
  %7525 = vmatprep.subr.mxu0 0.0
  %7526 = vmatpush1.msra.mxu0 %v146
  %7527 = vmatprep.subr.mxu0 0.0
  %7528 = vmatpush1.msra.mxu0 %v147
  %7529 = vmatprep.subr.mxu0 0.0
  %7530 = vmatpush1.msra.mxu0 %v148
  %7531 = vmatprep.subr.mxu0 0.0
  %7532 = vmatpush1.msra.mxu0 %v149
  %7533 = vmatprep.subr.mxu0 0.0
  %7534 = vmatpush1.msra.mxu0 %v150
  %7535 = vmatprep.subr.mxu0 0.0
  %7536 = vmatpush1.msra.mxu0 %v151
  %7537 = vmatprep.subr.mxu0 0.0
  %7538 = vmatpush1.msra.mxu0 %v152
  %7539 = vmatprep.subr.mxu0 0.0
  %7540 = vmatpush1.msra.mxu0 %v153
  %7541 = vmatprep.subr.mxu0 0.0
  %7542 = vmatpush1.msra.mxu0 %v154
  %7543 = vmatprep.subr.mxu0 0.0
  %7544 = vmatpush1.msra.mxu0 %v155
  %7545 = vmatprep.subr.mxu0 0.0
  %7546 = vmatpush1.msra.mxu0 %v156
  %7547 = vmatprep.subr.mxu0 0.0
  %7548 = vmatpush1.msra.mxu0 %v157
  %7549 = vmatprep.subr.mxu0 0.0
  %7550 = vmatpush1.msra.mxu0 %v158
  %7551 = vmatprep.subr.mxu0 0.0
  %7552 = vmatpush1.msra.mxu0 %v159
  %7553 = vmatprep.subr.mxu0 0.0
  %7554 = vmatpush1.msra.mxu0 %v160
  %7555 = vmatprep.subr.mxu0 0.0
  %7556 = vmatpush1.msra.mxu0 %v161
  %7557 = vmatprep.subr.mxu0 0.0
  %7558 = vmatpush1.msra.mxu0 %v162
  %7559 = vmatprep.subr.mxu0 0.0
  %7560 = vmatpush1.msra.mxu0 %v163
  %7561 = vmatprep.subr.mxu0 0.0
  %7562 = vmatpush1.msra.mxu0 %v164
  %7563 = vmatprep.subr.mxu0 0.0
  %7564 = vmatpush1.msra.mxu0 %v165
  %7565 = vmatprep.subr.mxu0 0.0
  %7566 = vmatpush1.msra.mxu0 %v166
  %7567 = vmatprep.subr.mxu0 0.0
  %7568 = vmatpush1.msra.mxu0 %v167
  %7569 = vmatprep.subr.mxu0 0.0
  %7570 = vmatpush1.msra.mxu0 %v168
  %7571 = vmatprep.subr.mxu0 0.0
  %7572 = vmatpush1.msra.mxu0 %v169
  %7573 = vmatprep.subr.mxu0 0.0
  %7574 = vmatpush1.msra.mxu0 %v170
  %7575 = vmatprep.subr.mxu0 0.0
  %7576 = vmatpush1.msra.mxu0 %v171
  %7577 = vmatprep.subr.mxu0 0.0
  %7578 = vmatpush1.msra.mxu0 %v172
  %7579 = vmatprep.subr.mxu0 0.0
  %7580 = vmatpush1.msra.mxu0 %v173
  %7581 = vmatprep.subr.mxu0 0.0
  %7582 = vmatpush1.msra.mxu0 %v174
  %7583 = vmatprep.mubr.f32.mxu0 %v7431
  %7584 = vmatmul.mubr.f32.gmra.mrb[0].mxu0 %v7370
  %v7585 = vpop.f32.mrb[0].mxu0
  %v7586 = vadd.f32 %v3387, %v7585
  %v7587 = vpop.f32.mrb[0].mxu0
  %7588 = vmatprep.mubr.f32.mxu0 %v7432
  %7589 = vmatmul.mubr.f32.gmra.mrb[0].mxu0 %v7371
  %v7590 = vpop.f32.mrb[0].mxu0
  %v7591 = vadd.f32 %v3387, %v7590
  %v7592 = vpop.f32.mrb[0].mxu0
  %7593 = vmatprep.mubr.f32.mxu0 %v7433
  %7594 = vmatmul.mubr.f32.gmra.mrb[0].mxu0 %v7372
  %v7595 = vpop.f32.mrb[0].mxu0
  %v7596 = vadd.f32 %v3387, %v7595
  %v7597 = vpop.f32.mrb[0].mxu0
  %7598 = vmatprep.mubr.f32.mxu0 %v7434
  %7599 = vmatmul.mubr.f32.gmra.mrb[0].mxu0 %v7373
  %v7600 = vpop.f32.mrb[0].mxu0
  %v7601 = vadd.f32 %v3387, %v7600
  %v7602 = vpop.f32.mrb[0].mxu0
  %7603 = vmatprep.mubr.f32.mxu0 %v7435
  %7604 = vmatmul.mubr.f32.gmra.mrb[0].mxu0 %v7374
  %v7605 = vpop.f32.mrb[0].mxu0
  %v7606 = vadd.f32 %v3387, %v7605
  %v7607 = vpop.f32.mrb[0].mxu0
  %7608 = vmatprep.mubr.f32.mxu0 %v7436
  %7609 = vmatmul.mubr.f32.gmra.mrb[0].mxu0 %v7375
  %v7610 = vpop.f32.mrb[0].mxu0
  %v7611 = vadd.f32 %v3387, %v7610
  %v7612 = vpop.f32.mrb[0].mxu0
  %7613 = vmatprep.mubr.f32.mxu0 %v7437
  %7614 = vmatmul.mubr.f32.gmra.mrb[0].mxu0 %v7376
  %v7615 = vpop.f32.mrb[0].mxu0
  %v7616 = vadd.f32 %v3387, %v7615
  %v7617 = vpop.f32.mrb[0].mxu0
  %7618 = vmatprep.mubr.f32.mxu0 %v7438
  %7619 = vmatmul.mubr.f32.gmra.mrb[0].mxu0 %v7377
  %v7620 = vpop.f32.mrb[0].mxu0
  %v7621 = vadd.f32 %v3387, %v7620
  %v7622 = vpop.f32.mrb[0].mxu0
  %7623 = vmatprep.mubr.f32.mxu0 %v7439
  %7624 = vmatmul.mubr.f32.gmra.mrb[0].mxu0 %v7378
  %v7625 = vpop.f32.mrb[0].mxu0
  %v7626 = vadd.f32 %v3387, %v7625
  %v7627 = vpop.f32.mrb[0].mxu0
  %7628 = vmatprep.mubr.f32.mxu0 %v7440
  %7629 = vmatmul.mubr.f32.gmra.mrb[0].mxu0 %v7379
  %v7630 = vpop.f32.mrb[0].mxu0
  %v7631 = vadd.f32 %v3387, %v7630
  %v7632 = vpop.f32.mrb[0].mxu0
  %7633 = vmatprep.mubr.f32.mxu0 %v7441
  %7634 = vmatmul.mubr.f32.gmra.mrb[0].mxu0 %v7380
  %v7635 = vpop.f32.mrb[0].mxu0
  %v7636 = vadd.f32 %v3387, %v7635
  %v7637 = vpop.f32.mrb[0].mxu0
  %7638 = vmatprep.mubr.f32.mxu0 %v7442
  %7639 = vmatmul.mubr.f32.gmra.mrb[0].mxu0 %v7381
  %v7640 = vpop.f32.mrb[0].mxu0
  %v7641 = vadd.f32 %v3387, %v7640
  %v7642 = vpop.f32.mrb[0].mxu0
  %7643 = vmatprep.mubr.f32.mxu0 %v7443
  %7644 = vmatmul.mubr.f32.gmra.mrb[0].mxu0 %v7382
  %v7645 = vpop.f32.mrb[0].mxu0
  %v7646 = vadd.f32 %v3387, %v7645
  %v7647 = vpop.f32.mrb[0].mxu0
  %7648 = vmatprep.mubr.f32.mxu0 %v7444
  %7649 = vmatmul.mubr.f32.gmra.mrb[0].mxu0 %v7383
  %v7650 = vpop.f32.mrb[0].mxu0
  %v7651 = vadd.f32 %v3387, %v7650
  %v7652 = vpop.f32.mrb[0].mxu0
  %7653 = vmatprep.mubr.f32.mxu0 %v7445
  %7654 = vmatmul.mubr.f32.gmra.mrb[0].mxu0 %v7384
  %v7655 = vpop.f32.mrb[0].mxu0
  %v7656 = vadd.f32 %v3387, %v7655
  %v7657 = vpop.f32.mrb[0].mxu0
  %7658 = vmatprep.mubr.f32.mxu0 %v7446
  %7659 = vmatmul.mubr.f32.gmra.mrb[0].mxu0 %v7385
  %v7660 = vpop.f32.mrb[0].mxu0
  %v7661 = vadd.f32 %v3387, %v7660
  %v7662 = vpop.f32.mrb[0].mxu0
  %7663 = vmatprep.mubr.f32.mxu0 %v7447
  %7664 = vmatmul.mubr.f32.gmra.mrb[0].mxu0 %v7386
  %v7665 = vpop.f32.mrb[0].mxu0
  %v7666 = vadd.f32 %v3387, %v7665
  %v7667 = vpop.f32.mrb[0].mxu0
  %7668 = vmatprep.mubr.f32.mxu0 %v7448
  %7669 = vmatmul.mubr.f32.gmra.mrb[0].mxu0 %v7387
  %v7670 = vpop.f32.mrb[0].mxu0
  %v7671 = vadd.f32 %v3387, %v7670
  %v7672 = vpop.f32.mrb[0].mxu0
  %7673 = vmatprep.mubr.f32.mxu0 %v7449
  %7674 = vmatmul.mubr.f32.gmra.mrb[0].mxu0 %v7388
  %v7675 = vpop.f32.mrb[0].mxu0
  %v7676 = vadd.f32 %v3387, %v7675
  %v7677 = vpop.f32.mrb[0].mxu0
  %7678 = vmatprep.mubr.f32.mxu0 %v7450
  %7679 = vmatmul.mubr.f32.gmra.mrb[0].mxu0 %v7389
  %v7680 = vpop.f32.mrb[0].mxu0
  %v7681 = vadd.f32 %v3387, %v7680
  %v7682 = vpop.f32.mrb[0].mxu0
  %7683 = vmatprep.mubr.f32.mxu0 %v7451
  %7684 = vmatmul.mubr.f32.gmra.mrb[0].mxu0 %v7390
  %v7685 = vpop.f32.mrb[0].mxu0
  %v7686 = vadd.f32 %v3387, %v7685
  %v7687 = vpop.f32.mrb[0].mxu0
  %7688 = vmatprep.mubr.f32.mxu0 %v7452
  %7689 = vmatmul.mubr.f32.gmra.mrb[0].mxu0 %v7391
  %v7690 = vpop.f32.mrb[0].mxu0
  %v7691 = vadd.f32 %v3387, %v7690
  %v7692 = vpop.f32.mrb[0].mxu0
  %7693 = vmatprep.mubr.f32.mxu0 %v7453
  %7694 = vmatmul.mubr.f32.gmra.mrb[0].mxu0 %v7392
  %v7695 = vpop.f32.mrb[0].mxu0
  %v7696 = vadd.f32 %v3387, %v7695
  %v7697 = vpop.f32.mrb[0].mxu0
  %7698 = vmatprep.mubr.f32.mxu0 %v7454
  %7699 = vmatmul.mubr.f32.gmra.mrb[0].mxu0 %v7393
  %v7700 = vpop.f32.mrb[0].mxu0
  %v7701 = vadd.f32 %v3387, %v7700
  %v7702 = vpop.f32.mrb[0].mxu0
  %7703 = vmatprep.mubr.f32.mxu0 %v7455
  %7704 = vmatmul.mubr.f32.gmra.mrb[0].mxu0 %v7394
  %v7705 = vpop.f32.mrb[0].mxu0
  %v7706 = vadd.f32 %v3387, %v7705
  %v7707 = vpop.f32.mrb[0].mxu0
  %7708 = vmatprep.mubr.f32.mxu0 %v7456
  %7709 = vmatmul.mubr.f32.gmra.mrb[0].mxu0 %v7395
  %v7710 = vpop.f32.mrb[0].mxu0
  %v7711 = vadd.f32 %v3387, %v7710
  %v7712 = vpop.f32.mrb[0].mxu0
  %7713 = vmatprep.mubr.f32.mxu0 %v7457
  %7714 = vmatmul.mubr.f32.gmra.mrb[0].mxu0 %v7396
  %v7715 = vpop.f32.mrb[0].mxu0
  %v7716 = vadd.f32 %v3387, %v7715
  %v7717 = vpop.f32.mrb[0].mxu0
  %7718 = vmatprep.mubr.f32.mxu0 %v7458
  %7719 = vmatmul.mubr.f32.gmra.mrb[0].mxu0 %v7397
  %v7720 = vpop.f32.mrb[0].mxu0
  %v7721 = vadd.f32 %v3387, %v7720
  %v7722 = vpop.f32.mrb[0].mxu0
  %7723 = vmatprep.mubr.f32.mxu0 %v7459
  %7724 = vmatmul.mubr.f32.gmra.mrb[0].mxu0 %v7398
  %v7725 = vpop.f32.mrb[0].mxu0
  %v7726 = vadd.f32 %v3387, %v7725
  %v7727 = vpop.f32.mrb[0].mxu0
  %7728 = vdwg.mxu0
  %7729 = vmatprep.subr.mxu0 0.0
  %7730 = vmatpush1.msra.mxu0 %v175
  %7731 = vmatprep.subr.mxu0 0.0
  %7732 = vmatpush1.msra.mxu0 %v176
  %7733 = vmatprep.subr.mxu0 0.0
  %7734 = vmatpush1.msra.mxu0 %v177
  %7735 = vmatprep.subr.mxu0 0.0
  %7736 = vmatpush1.msra.mxu0 %v178
  %7737 = vmatprep.subr.mxu0 0.0
  %7738 = vmatpush1.msra.mxu0 0.0
  %7739 = vmatprep.subr.mxu0 0.0
  %7740 = vmatpush1.msra.mxu0 0.0
  %7741 = vmatprep.subr.mxu0 0.0
  %7742 = vmatpush1.msra.mxu0 0.0
  %7743 = vmatprep.subr.mxu0 0.0
  %7744 = vmatpush1.msra.mxu0 0.0
  %7745 = vmatprep.subr.mxu0 0.0
  %7746 = vmatpush1.msra.mxu0 0.0
  %7747 = vmatprep.subr.mxu0 0.0
  %7748 = vmatpush1.msra.mxu0 0.0
  %7749 = vmatprep.subr.mxu0 0.0
  %7750 = vmatpush1.msra.mxu0 0.0
  %7751 = vmatprep.subr.mxu0 0.0
  %7752 = vmatpush1.msra.mxu0 0.0
  %7753 = vmatprep.subr.mxu0 0.0
  %7754 = vmatpush1.msra.mxu0 0.0
  %7755 = vmatprep.subr.mxu0 0.0
  %7756 = vmatpush1.msra.mxu0 0.0
  %7757 = vmatprep.subr.mxu0 0.0
  %7758 = vmatpush1.msra.mxu0 0.0
  %7759 = vmatprep.subr.mxu0 0.0
  %7760 = vmatpush1.msra.mxu0 0.0
  %7761 = vmatprep.subr.mxu0 0.0
  %7762 = vmatpush1.msra.mxu0 0.0
  %7763 = vmatprep.subr.mxu0 0.0
  %7764 = vmatpush1.msra.mxu0 0.0
  %7765 = vmatprep.subr.mxu0 0.0
  %7766 = vmatpush1.msra.mxu0 0.0
  %7767 = vmatprep.subr.mxu0 0.0
  %7768 = vmatpush1.msra.mxu0 0.0
  %7769 = vmatprep.subr.mxu0 0.0
  %7770 = vmatpush1.msra.mxu0 0.0
  %7771 = vmatprep.subr.mxu0 0.0
  %7772 = vmatpush1.msra.mxu0 0.0
  %7773 = vmatprep.subr.mxu0 0.0
  %7774 = vmatpush1.msra.mxu0 0.0
  %7775 = vmatprep.subr.mxu0 0.0
  %7776 = vmatpush1.msra.mxu0 0.0
  %7777 = vmatprep.subr.mxu0 0.0
  %7778 = vmatpush1.msra.mxu0 0.0
  %7779 = vmatprep.subr.mxu0 0.0
  %7780 = vmatpush1.msra.mxu0 0.0
  %7781 = vmatprep.subr.mxu0 0.0
  %7782 = vmatpush1.msra.mxu0 0.0
  %7783 = vmatprep.subr.mxu0 0.0
  %7784 = vmatpush1.msra.mxu0 0.0
  %7785 = vmatprep.subr.mxu0 0.0
  %7786 = vmatpush1.msra.mxu0 0.0
  %7787 = vmatprep.subr.mxu0 0.0
  %7788 = vmatpush1.msra.mxu0 0.0
  %7789 = vmatprep.subr.mxu0 0.0
  %7790 = vmatpush1.msra.mxu0 0.0
  %7791 = vmatprep.subr.mxu0 0.0
  %7792 = vmatpush1.msra.mxu0 0.0
  %7793 = vmatprep.mubr.f32.mxu0 0.0
  %7794 = vmatmul.mubr.f32.gmra.mrb[0].mxu0 %v7460
  %v7795 = vpop.f32.mrb[0].mxu0
  %v7796 = vadd.f32 %v7586, %v7795
  %v7797 = vpop.f32.mrb[0].mxu0
  %7798 = vmatprep.mubr.f32.mxu0 0.0
  %7799 = vmatmul.mubr.f32.gmra.mrb[0].mxu0 %v7462
  %v7800 = vpop.f32.mrb[0].mxu0
  %v7801 = vadd.f32 %v7591, %v7800
  %v7802 = vpop.f32.mrb[0].mxu0
  %7803 = vmatprep.mubr.f32.mxu0 0.0
  %7804 = vmatmul.mubr.f32.gmra.mrb[0].mxu0 %v7464
  %v7805 = vpop.f32.mrb[0].mxu0
  %v7806 = vadd.f32 %v7596, %v7805
  %v7807 = vpop.f32.mrb[0].mxu0
  %7808 = vmatprep.mubr.f32.mxu0 0.0
  %7809 = vmatmul.mubr.f32.gmra.mrb[0].mxu0 %v7466
  %v7810 = vpop.f32.mrb[0].mxu0
  %v7811 = vadd.f32 %v7601, %v7810
  %v7812 = vpop.f32.mrb[0].mxu0
  %7813 = vmatprep.mubr.f32.mxu0 0.0
  %7814 = vmatmul.mubr.f32.gmra.mrb[0].mxu0 %v7468
  %v7815 = vpop.f32.mrb[0].mxu0
  %v7816 = vadd.f32 %v7606, %v7815
  %v7817 = vpop.f32.mrb[0].mxu0
  %7818 = vmatprep.mubr.f32.mxu0 0.0
  %7819 = vmatmul.mubr.f32.gmra.mrb[0].mxu0 %v7470
  %v7820 = vpop.f32.mrb[0].mxu0
  %v7821 = vadd.f32 %v7611, %v7820
  %v7822 = vpop.f32.mrb[0].mxu0
  %7823 = vmatprep.mubr.f32.mxu0 0.0
  %7824 = vmatmul.mubr.f32.gmra.mrb[0].mxu0 %v7472
  %v7825 = vpop.f32.mrb[0].mxu0
  %v7826 = vadd.f32 %v7616, %v7825
  %v7827 = vpop.f32.mrb[0].mxu0
  %7828 = vmatprep.mubr.f32.mxu0 0.0
  %7829 = vmatmul.mubr.f32.gmra.mrb[0].mxu0 %v7474
  %v7830 = vpop.f32.mrb[0].mxu0
  %v7831 = vadd.f32 %v7621, %v7830
  %v7832 = vpop.f32.mrb[0].mxu0
  %7833 = vmatprep.mubr.f32.mxu0 0.0
  %7834 = vmatmul.mubr.f32.gmra.mrb[0].mxu0 %v7476
  %v7835 = vpop.f32.mrb[0].mxu0
  %v7836 = vadd.f32 %v7626, %v7835
  %v7837 = vpop.f32.mrb[0].mxu0
  %7838 = vmatprep.mubr.f32.mxu0 0.0
  %7839 = vmatmul.mubr.f32.gmra.mrb[0].mxu0 %v7478
  %v7840 = vpop.f32.mrb[0].mxu0
  %v7841 = vadd.f32 %v7631, %v7840
  %v7842 = vpop.f32.mrb[0].mxu0
  %7843 = vmatprep.mubr.f32.mxu0 0.0
  %7844 = vmatmul.mubr.f32.gmra.mrb[0].mxu0 %v7480
  %v7845 = vpop.f32.mrb[0].mxu0
  %v7846 = vadd.f32 %v7636, %v7845
  %v7847 = vpop.f32.mrb[0].mxu0
  %7848 = vmatprep.mubr.f32.mxu0 0.0
  %7849 = vmatmul.mubr.f32.gmra.mrb[0].mxu0 %v7482
  %v7850 = vpop.f32.mrb[0].mxu0
  %v7851 = vadd.f32 %v7641, %v7850
  %v7852 = vpop.f32.mrb[0].mxu0
  %7853 = vmatprep.mubr.f32.mxu0 0.0
  %7854 = vmatmul.mubr.f32.gmra.mrb[0].mxu0 %v7484
  %v7855 = vpop.f32.mrb[0].mxu0
  %v7856 = vadd.f32 %v7646, %v7855
  %v7857 = vpop.f32.mrb[0].mxu0
  %7858 = vmatprep.mubr.f32.mxu0 0.0
  %7859 = vmatmul.mubr.f32.gmra.mrb[0].mxu0 %v7486
  %v7860 = vpop.f32.mrb[0].mxu0
  %v7861 = vadd.f32 %v7651, %v7860
  %v7862 = vpop.f32.mrb[0].mxu0
  %7863 = vmatprep.mubr.f32.mxu0 0.0
  %7864 = vmatmul.mubr.f32.gmra.mrb[0].mxu0 %v7488
  %v7865 = vpop.f32.mrb[0].mxu0
  %v7866 = vadd.f32 %v7656, %v7865
  %v7867 = vpop.f32.mrb[0].mxu0
  %7868 = vmatprep.mubr.f32.mxu0 0.0
  %7869 = vmatmul.mubr.f32.gmra.mrb[0].mxu0 %v7490
  %v7870 = vpop.f32.mrb[0].mxu0
  %v7871 = vadd.f32 %v7661, %v7870
  %v7872 = vpop.f32.mrb[0].mxu0
  %7873 = vmatprep.mubr.f32.mxu0 0.0
  %7874 = vmatmul.mubr.f32.gmra.mrb[0].mxu0 %v7492
  %v7875 = vpop.f32.mrb[0].mxu0
  %v7876 = vadd.f32 %v7666, %v7875
  %v7877 = vpop.f32.mrb[0].mxu0
  %7878 = vmatprep.mubr.f32.mxu0 0.0
  %7879 = vmatmul.mubr.f32.gmra.mrb[0].mxu0 %v7494
  %v7880 = vpop.f32.mrb[0].mxu0
  %v7881 = vadd.f32 %v7671, %v7880
  %v7882 = vpop.f32.mrb[0].mxu0
  %7883 = vmatprep.mubr.f32.mxu0 0.0
  %7884 = vmatmul.mubr.f32.gmra.mrb[0].mxu0 %v7496
  %v7885 = vpop.f32.mrb[0].mxu0
  %v7886 = vadd.f32 %v7676, %v7885
  %v7887 = vpop.f32.mrb[0].mxu0
  %7888 = vmatprep.mubr.f32.mxu0 0.0
  %7889 = vmatmul.mubr.f32.gmra.mrb[0].mxu0 %v7498
  %v7890 = vpop.f32.mrb[0].mxu0
  %v7891 = vadd.f32 %v7681, %v7890
  %v7892 = vpop.f32.mrb[0].mxu0
  %7893 = vmatprep.mubr.f32.mxu0 0.0
  %7894 = vmatmul.mubr.f32.gmra.mrb[0].mxu0 %v7500
  %v7895 = vpop.f32.mrb[0].mxu0
  %v7896 = vadd.f32 %v7686, %v7895
  %v7897 = vpop.f32.mrb[0].mxu0
  %7898 = vmatprep.mubr.f32.mxu0 0.0
  %7899 = vmatmul.mubr.f32.gmra.mrb[0].mxu0 %v7502
  %v7900 = vpop.f32.mrb[0].mxu0
  %v7901 = vadd.f32 %v7691, %v7900
  %v7902 = vpop.f32.mrb[0].mxu0
  %7903 = vmatprep.mubr.f32.mxu0 0.0
  %7904 = vmatmul.mubr.f32.gmra.mrb[0].mxu0 %v7504
  %v7905 = vpop.f32.mrb[0].mxu0
  %v7906 = vadd.f32 %v7696, %v7905
  %v7907 = vpop.f32.mrb[0].mxu0
  %7908 = vmatprep.mubr.f32.mxu0 0.0
  %7909 = vmatmul.mubr.f32.gmra.mrb[0].mxu0 %v7506
  %v7910 = vpop.f32.mrb[0].mxu0
  %v7911 = vadd.f32 %v7701, %v7910
  %v7912 = vpop.f32.mrb[0].mxu0
  %7913 = vmatprep.mubr.f32.mxu0 0.0
  %7914 = vmatmul.mubr.f32.gmra.mrb[0].mxu0 %v7508
  %v7915 = vpop.f32.mrb[0].mxu0
  %v7916 = vadd.f32 %v7706, %v7915
  %v7917 = vpop.f32.mrb[0].mxu0
  %7918 = vmatprep.mubr.f32.mxu0 0.0
  %7919 = vmatmul.mubr.f32.gmra.mrb[0].mxu0 %v7510
  %v7920 = vpop.f32.mrb[0].mxu0
  %v7921 = vadd.f32 %v7711, %v7920
  %v7922 = vpop.f32.mrb[0].mxu0
  %7923 = vmatprep.mubr.f32.mxu0 0.0
  %7924 = vmatmul.mubr.f32.gmra.mrb[0].mxu0 %v7512
  %v7925 = vpop.f32.mrb[0].mxu0
  %v7926 = vadd.f32 %v7716, %v7925
  %v7927 = vpop.f32.mrb[0].mxu0
  %7928 = vmatprep.mubr.f32.mxu0 0.0
  %7929 = vmatmul.mubr.f32.gmra.mrb[0].mxu0 %v7514
  %v7930 = vpop.f32.mrb[0].mxu0
  %v7931 = vadd.f32 %v7721, %v7930
  %v7932 = vpop.f32.mrb[0].mxu0
  %7933 = vmatprep.mubr.f32.mxu0 0.0
  %7934 = vmatmul.mubr.f32.gmra.mrb[0].mxu0 %v7517
  %v7935 = vpop.f32.mrb[0].mxu0
  %v7936 = vadd.f32 %v7726, %v7935
  %v7937 = vpop.f32.mrb[0].mxu0
  %7938 = vdwg.mxu0
  %v7939 = vmul.f32 %v7796, %v3871
  %v7940 = vmul.f32 %v7801, %v3876
  %v7941 = vmul.f32 %v7806, %v3881
  %v7942 = vmul.f32 %v7811, %v3886
  %v7943 = vmul.f32 %v7816, %v3891
  %v7944 = vmul.f32 %v7821, %v3896
  %v7945 = vmul.f32 %v7826, %v3901
  %v7946 = vmul.f32 %v7831, %v3906
  %v7947 = vmul.f32 %v7836, %v3911
  %v7948 = vmul.f32 %v7841, %v3916
  %v7949 = vmul.f32 %v7846, %v3921
  %v7950 = vmul.f32 %v7851, %v3926
  %v7951 = vmul.f32 %v7856, %v3931
  %v7952 = vmul.f32 %v7861, %v3936
  %v7953 = vmul.f32 %v7866, %v3941
  %v7954 = vmul.f32 %v7871, %v3946
  %v7955 = vmul.f32 %v7876, %v3951
  %v7956 = vmul.f32 %v7881, %v3956
  %v7957 = vmul.f32 %v7886, %v3961
  %v7958 = vmul.f32 %v7891, %v3966
  %v7959 = vmul.f32 %v7896, %v3971
  %v7960 = vmul.f32 %v7901, %v3976
  %v7961 = vmul.f32 %v7906, %v3981
  %v7962 = vmul.f32 %v7911, %v3986
  %v7963 = vmul.f32 %v7916, %v3991
  %v7964 = vmul.f32 %v7921, %v3996
  %v7965 = vmul.f32 %v7926, %v4001
  %v7966 = vmul.f32 %v7931, %v4006
  %v7967 = vmul.f32 %v7936, %v4011
  %v7968 = vsel %vm3262, %v7939, 0.0
  %v7969 = vsel %vm3262, %v7940, 0.0
  %v7970 = vadd.f32 %v7968, %v7969
  %v7971 = vsel %vm3262, %v7941, 0.0
  %v7972 = vadd.f32 %v7970, %v7971
  %v7973 = vsel %vm3262, %v7942, 0.0
  %v7974 = vadd.f32 %v7972, %v7973
  %v7975 = vsel %vm3262, %v7943, 0.0
  %v7976 = vadd.f32 %v7974, %v7975
  %v7977 = vsel %vm3262, %v7944, 0.0
  %v7978 = vadd.f32 %v7976, %v7977
  %v7979 = vsel %vm3262, %v7945, 0.0
  %v7980 = vadd.f32 %v7978, %v7979
  %v7981 = vsel %vm3262, %v7946, 0.0
  %v7982 = vadd.f32 %v7980, %v7981
  %v7983 = vsel %vm3262, %v7947, 0.0
  %v7984 = vadd.f32 %v7982, %v7983
  %v7985 = vsel %vm3262, %v7948, 0.0
  %v7986 = vadd.f32 %v7984, %v7985
  %v7987 = vsel %vm3262, %v7949, 0.0
  %v7988 = vadd.f32 %v7986, %v7987
  %v7989 = vsel %vm3262, %v7950, 0.0
  %v7990 = vadd.f32 %v7988, %v7989
  %v7991 = vsel %vm3262, %v7951, 0.0
  %v7992 = vadd.f32 %v7990, %v7991
  %v7993 = vsel %vm3262, %v7952, 0.0
  %v7994 = vadd.f32 %v7992, %v7993
  %v7995 = vsel %vm3262, %v7953, 0.0
  %v7996 = vadd.f32 %v7994, %v7995
  %v7997 = vsel %vm3262, %v7954, 0.0
  %v7998 = vadd.f32 %v7996, %v7997
  %v7999 = vsel %vm3262, %v7955, 0.0
  %v8000 = vadd.f32 %v7998, %v7999
  %v8001 = vsel %vm3262, %v7956, 0.0
  %v8002 = vadd.f32 %v8000, %v8001
  %v8003 = vsel %vm3262, %v7957, 0.0
  %v8004 = vadd.f32 %v8002, %v8003
  %v8005 = vsel %vm3262, %v7958, 0.0
  %v8006 = vadd.f32 %v8004, %v8005
  %v8007 = vsel %vm3262, %v7959, 0.0
  %v8008 = vadd.f32 %v8006, %v8007
  %v8009 = vsel %vm3262, %v7960, 0.0
  %v8010 = vadd.f32 %v8008, %v8009
  %v8011 = vsel %vm3262, %v7961, 0.0
  %v8012 = vadd.f32 %v8010, %v8011
  %v8013 = vsel %vm3262, %v7962, 0.0
  %v8014 = vadd.f32 %v8012, %v8013
  %v8015 = vsel %vm3262, %v7963, 0.0
  %v8016 = vadd.f32 %v8014, %v8015
  %v8017 = vsel %vm3262, %v7964, 0.0
  %v8018 = vadd.f32 %v8016, %v8017
  %v8019 = vsel %vm3262, %v7965, 0.0
  %v8020 = vadd.f32 %v8018, %v8019
  %v8021 = vsel %vm3262, %v7966, 0.0
  %v8022 = vadd.f32 %v8020, %v8021
  %v8023 = vsel %vm4097, %v7967, 0.0
  %v8024 = vadd.f32 %v8022, %v8023
  %v8025 = vrot.slane %v8024, 4
  %v8026 = vadd.f32 %v8024, %v8025
  %v8027 = vrot.slane %v8026, 2
  %v8028 = vadd.f32 %v8026, %v8027
  %v8029 = vrot.slane %v8028, 1
  %v8030 = vadd.f32 %v8028, %v8029
  %v8031 = vsel %vm3262, %v8030, 0.0
  %8032 = vadd.xlane.f32.xlu0 %v8031
  %v8033 = vpop.xlane.xlu0 %8032
  %v8034 = vmul.f32 %v8033, 0.00012913223
  %v8035 = vsub.f32 %v7939, %v8034
  %v8036 = vsub.f32 %v7940, %v8034
  %v8037 = vsub.f32 %v7941, %v8034
  %v8038 = vsub.f32 %v7942, %v8034
  %v8039 = vsub.f32 %v7943, %v8034
  %v8040 = vsub.f32 %v7944, %v8034
  %v8041 = vsub.f32 %v7945, %v8034
  %v8042 = vsub.f32 %v7946, %v8034
  %v8043 = vsub.f32 %v7947, %v8034
  %v8044 = vsub.f32 %v7948, %v8034
  %v8045 = vsub.f32 %v7949, %v8034
  %v8046 = vsub.f32 %v7950, %v8034
  %v8047 = vsub.f32 %v7951, %v8034
  %v8048 = vsub.f32 %v7952, %v8034
  %v8049 = vsub.f32 %v7953, %v8034
  %v8050 = vsub.f32 %v7954, %v8034
  %v8051 = vsub.f32 %v7955, %v8034
  %v8052 = vsub.f32 %v7956, %v8034
  %v8053 = vsub.f32 %v7957, %v8034
  %v8054 = vsub.f32 %v7958, %v8034
  %v8055 = vsub.f32 %v7959, %v8034
  %v8056 = vsub.f32 %v7960, %v8034
  %v8057 = vsub.f32 %v7961, %v8034
  %v8058 = vsub.f32 %v7962, %v8034
  %v8059 = vsub.f32 %v7963, %v8034
  %v8060 = vsub.f32 %v7964, %v8034
  %v8061 = vsub.f32 %v7965, %v8034
  %v8062 = vsub.f32 %v7966, %v8034
  %v8063 = vsub.f32 %v7967, %v8034
  %v8064 = vmul.f32 %v8035, %v3871
  %v8065 = vmul.f32 %v8036, %v3876
  %v8066 = vmul.f32 %v8037, %v3881
  %v8067 = vmul.f32 %v8038, %v3886
  %v8068 = vmul.f32 %v8039, %v3891
  %v8069 = vmul.f32 %v8040, %v3896
  %v8070 = vmul.f32 %v8041, %v3901
  %v8071 = vmul.f32 %v8042, %v3906
  %v8072 = vmul.f32 %v8043, %v3911
  %v8073 = vmul.f32 %v8044, %v3916
  %v8074 = vmul.f32 %v8045, %v3921
  %v8075 = vmul.f32 %v8046, %v3926
  %v8076 = vmul.f32 %v8047, %v3931
  %v8077 = vmul.f32 %v8048, %v3936
  %v8078 = vmul.f32 %v8049, %v3941
  %v8079 = vmul.f32 %v8050, %v3946
  %v8080 = vmul.f32 %v8051, %v3951
  %v8081 = vmul.f32 %v8052, %v3956
  %v8082 = vmul.f32 %v8053, %v3961
  %v8083 = vmul.f32 %v8054, %v3966
  %v8084 = vmul.f32 %v8055, %v3971
  %v8085 = vmul.f32 %v8056, %v3976
  %v8086 = vmul.f32 %v8057, %v3981
  %v8087 = vmul.f32 %v8058, %v3986
  %v8088 = vmul.f32 %v8059, %v3991
  %v8089 = vmul.f32 %v8060, %v3996
  %v8090 = vmul.f32 %v8061, %v4001
  %v8091 = vmul.f32 %v8062, %v4006
  %v8092 = vmul.f32 %v8063, %v4011
  %v8093 = vmul.f32 %v8064, %v8064
  %v8094 = vmul.f32 %v8065, %v8065
  %v8095 = vmul.f32 %v8066, %v8066
  %v8096 = vmul.f32 %v8067, %v8067
  %v8097 = vmul.f32 %v8068, %v8068
  %v8098 = vmul.f32 %v8069, %v8069
  %v8099 = vmul.f32 %v8070, %v8070
  %v8100 = vmul.f32 %v8071, %v8071
  %v8101 = vmul.f32 %v8072, %v8072
  %v8102 = vmul.f32 %v8073, %v8073
  %v8103 = vmul.f32 %v8074, %v8074
  %v8104 = vmul.f32 %v8075, %v8075
  %v8105 = vmul.f32 %v8076, %v8076
  %v8106 = vmul.f32 %v8077, %v8077
  %v8107 = vmul.f32 %v8078, %v8078
  %v8108 = vmul.f32 %v8079, %v8079
  %v8109 = vmul.f32 %v8080, %v8080
  %v8110 = vmul.f32 %v8081, %v8081
  %v8111 = vmul.f32 %v8082, %v8082
  %v8112 = vmul.f32 %v8083, %v8083
  %v8113 = vmul.f32 %v8084, %v8084
  %v8114 = vmul.f32 %v8085, %v8085
  %v8115 = vmul.f32 %v8086, %v8086
  %v8116 = vmul.f32 %v8087, %v8087
  %v8117 = vmul.f32 %v8088, %v8088
  %v8118 = vmul.f32 %v8089, %v8089
  %v8119 = vmul.f32 %v8090, %v8090
  %v8120 = vmul.f32 %v8091, %v8091
  %v8121 = vmul.f32 %v8092, %v8092
  %v8122 = vsel %vm3262, %v8093, 0.0
  %v8123 = vsel %vm3262, %v8094, 0.0
  %v8124 = vadd.f32 %v8122, %v8123
  %v8125 = vsel %vm3262, %v8095, 0.0
  %v8126 = vadd.f32 %v8124, %v8125
  %v8127 = vsel %vm3262, %v8096, 0.0
  %v8128 = vadd.f32 %v8126, %v8127
  %v8129 = vsel %vm3262, %v8097, 0.0
  %v8130 = vadd.f32 %v8128, %v8129
  %v8131 = vsel %vm3262, %v8098, 0.0
  %v8132 = vadd.f32 %v8130, %v8131
  %v8133 = vsel %vm3262, %v8099, 0.0
  %v8134 = vadd.f32 %v8132, %v8133
  %v8135 = vsel %vm3262, %v8100, 0.0
  %v8136 = vadd.f32 %v8134, %v8135
  %v8137 = vsel %vm3262, %v8101, 0.0
  %v8138 = vadd.f32 %v8136, %v8137
  %v8139 = vsel %vm3262, %v8102, 0.0
  %v8140 = vadd.f32 %v8138, %v8139
  %v8141 = vsel %vm3262, %v8103, 0.0
  %v8142 = vadd.f32 %v8140, %v8141
  %v8143 = vsel %vm3262, %v8104, 0.0
  %v8144 = vadd.f32 %v8142, %v8143
  %v8145 = vsel %vm3262, %v8105, 0.0
  %v8146 = vadd.f32 %v8144, %v8145
  %v8147 = vsel %vm3262, %v8106, 0.0
  %v8148 = vadd.f32 %v8146, %v8147
  %v8149 = vsel %vm3262, %v8107, 0.0
  %v8150 = vadd.f32 %v8148, %v8149
  %v8151 = vsel %vm3262, %v8108, 0.0
  %v8152 = vadd.f32 %v8150, %v8151
  %v8153 = vsel %vm3262, %v8109, 0.0
  %v8154 = vadd.f32 %v8152, %v8153
  %v8155 = vsel %vm3262, %v8110, 0.0
  %v8156 = vadd.f32 %v8154, %v8155
  %v8157 = vsel %vm3262, %v8111, 0.0
  %v8158 = vadd.f32 %v8156, %v8157
  %v8159 = vsel %vm3262, %v8112, 0.0
  %v8160 = vadd.f32 %v8158, %v8159
  %v8161 = vsel %vm3262, %v8113, 0.0
  %v8162 = vadd.f32 %v8160, %v8161
  %v8163 = vsel %vm3262, %v8114, 0.0
  %v8164 = vadd.f32 %v8162, %v8163
  %v8165 = vsel %vm3262, %v8115, 0.0
  %v8166 = vadd.f32 %v8164, %v8165
  %v8167 = vsel %vm3262, %v8116, 0.0
  %v8168 = vadd.f32 %v8166, %v8167
  %v8169 = vsel %vm3262, %v8117, 0.0
  %v8170 = vadd.f32 %v8168, %v8169
  %v8171 = vsel %vm3262, %v8118, 0.0
  %v8172 = vadd.f32 %v8170, %v8171
  %v8173 = vsel %vm3262, %v8119, 0.0
  %v8174 = vadd.f32 %v8172, %v8173
  %v8175 = vsel %vm3262, %v8120, 0.0
  %v8176 = vadd.f32 %v8174, %v8175
  %v8177 = vsel %vm4097, %v8121, 0.0
  %v8178 = vadd.f32 %v8176, %v8177
  %v8179 = vrot.slane %v8178, 4
  %v8180 = vadd.f32 %v8178, %v8179
  %v8181 = vrot.slane %v8180, 2
  %v8182 = vadd.f32 %v8180, %v8181
  %v8183 = vrot.slane %v8182, 1
  %v8184 = vadd.f32 %v8182, %v8183
  %v8185 = vsel %vm3262, %v8184, 0.0
  %8186 = vadd.xlane.f32.xlu0 %v8185
  %v8187 = vpop.xlane.xlu0 %8186
  %v8188 = vmul.f32 %v8187, 0.00012913223
  %v8189 = vadd.f32 %v8188, 1e-05
  %v8190 = vrsqrt.pop %v8189
  %v8191 = vmul.f32 %v8035, %v8190
  %v8192 = vmul.f32 %v8036, %v8190
  %v8193 = vmul.f32 %v8037, %v8190
  %v8194 = vmul.f32 %v8038, %v8190
  %v8195 = vmul.f32 %v8039, %v8190
  %v8196 = vmul.f32 %v8040, %v8190
  %v8197 = vmul.f32 %v8041, %v8190
  %v8198 = vmul.f32 %v8042, %v8190
  %v8199 = vmul.f32 %v8043, %v8190
  %v8200 = vmul.f32 %v8044, %v8190
  %v8201 = vmul.f32 %v8045, %v8190
  %v8202 = vmul.f32 %v8046, %v8190
  %v8203 = vmul.f32 %v8047, %v8190
  %v8204 = vmul.f32 %v8048, %v8190
  %v8205 = vmul.f32 %v8049, %v8190
  %v8206 = vmul.f32 %v8050, %v8190
  %v8207 = vmul.f32 %v8051, %v8190
  %v8208 = vmul.f32 %v8052, %v8190
  %v8209 = vmul.f32 %v8053, %v8190
  %v8210 = vmul.f32 %v8054, %v8190
  %v8211 = vmul.f32 %v8055, %v8190
  %v8212 = vmul.f32 %v8056, %v8190
  %v8213 = vmul.f32 %v8057, %v8190
  %v8214 = vmul.f32 %v8058, %v8190
  %v8215 = vmul.f32 %v8059, %v8190
  %v8216 = vmul.f32 %v8060, %v8190
  %v8217 = vmul.f32 %v8061, %v8190
  %v8218 = vmul.f32 %v8062, %v8190
  %v8219 = vmul.f32 %v8063, %v8190
  %v8220 = vmul.f32 %v8191, %v180
  %v8221 = vmul.f32 %v8192, %v181
  %v8222 = vmul.f32 %v8193, %v182
  %v8223 = vmul.f32 %v8194, %v183
  %v8224 = vmul.f32 %v8195, %v184
  %v8225 = vmul.f32 %v8196, %v185
  %v8226 = vmul.f32 %v8197, %v186
  %v8227 = vmul.f32 %v8198, %v187
  %v8228 = vmul.f32 %v8199, %v188
  %v8229 = vmul.f32 %v8200, %v189
  %v8230 = vmul.f32 %v8201, %v190
  %v8231 = vmul.f32 %v8202, %v191
  %v8232 = vmul.f32 %v8203, %v192
  %v8233 = vmul.f32 %v8204, %v193
  %v8234 = vmul.f32 %v8205, %v194
  %v8235 = vmul.f32 %v8206, %v195
  %v8236 = vmul.f32 %v8207, %v196
  %v8237 = vmul.f32 %v8208, %v197
  %v8238 = vmul.f32 %v8209, %v198
  %v8239 = vmul.f32 %v8210, %v199
  %v8240 = vmul.f32 %v8211, %v200
  %v8241 = vmul.f32 %v8212, %v201
  %v8242 = vmul.f32 %v8213, %v202
  %v8243 = vmul.f32 %v8214, %v203
  %v8244 = vmul.f32 %v8215, %v204
  %v8245 = vmul.f32 %v8216, %v205
  %v8246 = vmul.f32 %v8217, %v206
  %v8247 = vmul.f32 %v8218, %v207
  %v8248 = vmul.f32 %v8219, %v208
  %v8249 = vadd.f32 %v8220, %v209
  %v8250 = vadd.f32 %v8221, %v210
  %v8251 = vadd.f32 %v8222, %v211
  %v8252 = vadd.f32 %v8223, %v212
  %v8253 = vadd.f32 %v8224, %v213
  %v8254 = vadd.f32 %v8225, %v214
  %v8255 = vadd.f32 %v8226, %v215
  %v8256 = vadd.f32 %v8227, %v216
  %v8257 = vadd.f32 %v8228, %v217
  %v8258 = vadd.f32 %v8229, %v218
  %v8259 = vadd.f32 %v8230, %v219
  %v8260 = vadd.f32 %v8231, %v220
  %v8261 = vadd.f32 %v8232, %v221
  %v8262 = vadd.f32 %v8233, %v222
  %v8263 = vadd.f32 %v8234, %v223
  %v8264 = vadd.f32 %v8235, %v224
  %v8265 = vadd.f32 %v8236, %v225
  %v8266 = vadd.f32 %v8237, %v226
  %v8267 = vadd.f32 %v8238, %v227
  %v8268 = vadd.f32 %v8239, %v228
  %v8269 = vadd.f32 %v8240, %v229
  %v8270 = vadd.f32 %v8241, %v230
  %v8271 = vadd.f32 %v8242, %v231
  %v8272 = vadd.f32 %v8243, %v232
  %v8273 = vadd.f32 %v8244, %v233
  %v8274 = vadd.f32 %v8245, %v234
  %v8275 = vadd.f32 %v8246, %v235
  %v8276 = vadd.f32 %v8247, %v236
  %v8277 = vadd.f32 %v8248, %v237
  %v8278 = vmax.f32 %v8249, 0.0
  %v8279 = vmax.f32 %v8250, 0.0
  %v8280 = vmax.f32 %v8251, 0.0
  %v8281 = vmax.f32 %v8252, 0.0
  %v8282 = vmax.f32 %v8253, 0.0
  %v8283 = vmax.f32 %v8254, 0.0
  %v8284 = vmax.f32 %v8255, 0.0
  %v8285 = vmax.f32 %v8256, 0.0
  %v8286 = vmax.f32 %v8257, 0.0
  %v8287 = vmax.f32 %v8258, 0.0
  %v8288 = vmax.f32 %v8259, 0.0
  %v8289 = vmax.f32 %v8260, 0.0
  %v8290 = vmax.f32 %v8261, 0.0
  %v8291 = vmax.f32 %v8262, 0.0
  %v8292 = vmax.f32 %v8263, 0.0
  %v8293 = vmax.f32 %v8264, 0.0
  %v8294 = vmax.f32 %v8265, 0.0
  %v8295 = vmax.f32 %v8266, 0.0
  %v8296 = vmax.f32 %v8267, 0.0
  %v8297 = vmax.f32 %v8268, 0.0
  %v8298 = vmax.f32 %v8269, 0.0
  %v8299 = vmax.f32 %v8270, 0.0
  %v8300 = vmax.f32 %v8271, 0.0
  %v8301 = vmax.f32 %v8272, 0.0
  %v8302 = vmax.f32 %v8273, 0.0
  %v8303 = vmax.f32 %v8274, 0.0
  %v8304 = vmax.f32 %v8275, 0.0
  %v8305 = vmax.f32 %v8276, 0.0
  %v8306 = vmax.f32 %v8277, 0.0
  %v8307 = vpack.c.bf16 %v8279, %v8278
  %v8308 = vpack.c.bf16 %v8281, %v8280
  %v8309 = vpack.c.bf16 %v8283, %v8282
  %v8310 = vpack.c.bf16 %v8285, %v8284
  %v8311 = vpack.c.bf16 %v8287, %v8286
  %v8312 = vpack.c.bf16 %v8289, %v8288
  %v8313 = vpack.c.bf16 %v8291, %v8290
  %v8314 = vpack.c.bf16 %v8293, %v8292
  %v8315 = vpack.c.bf16 %v8295, %v8294
  %v8316 = vpack.c.bf16 %v8297, %v8296
  %v8317 = vpack.c.bf16 %v8299, %v8298
  %v8318 = vpack.c.bf16 %v8301, %v8300
  %v8319 = vpack.c.bf16 %v8303, %v8302
  %v8320 = vpack.c.bf16 %v8305, %v8304
  %v8321 = vpack.c.bf16 %v8306, %v8306
  %v8337 = vunpack.c.l.b16 %v8307
  %v8338 = vunpack.c.h.b16 %v8307
  %v8339 = vunpack.c.l.b16 %v8308
  %v8340 = vunpack.c.h.b16 %v8308
  %v8341 = vunpack.c.l.b16 %v8309
  %v8342 = vunpack.c.h.b16 %v8309
  %v8343 = vunpack.c.l.b16 %v8310
  %v8344 = vunpack.c.h.b16 %v8310
  %v8345 = vunpack.c.l.b16 %v8311
  %v8346 = vunpack.c.h.b16 %v8311
  %v8347 = vunpack.c.l.b16 %v8312
  %v8348 = vunpack.c.h.b16 %v8312
  %v8349 = vunpack.c.l.b16 %v8313
  %v8350 = vunpack.c.h.b16 %v8313
  %v8351 = vunpack.c.l.b16 %v8314
  %v8352 = vunpack.c.h.b16 %v8314
  %v8353 = vunpack.c.l.b16 %v8315
  %v8354 = vunpack.c.h.b16 %v8315
  %v8355 = vunpack.c.l.b16 %v8316
  %v8356 = vunpack.c.h.b16 %v8316
  %v8357 = vunpack.c.l.b16 %v8317
  %v8358 = vunpack.c.h.b16 %v8317
  %v8359 = vunpack.c.l.b16 %v8318
  %v8360 = vunpack.c.h.b16 %v8318
  %v8361 = vunpack.c.l.b16 %v8319
  %v8362 = vunpack.c.h.b16 %v8319
  %v8363 = vunpack.c.l.b16 %v8320
  %v8364 = vunpack.c.h.b16 %v8320
  %v8365 = vunpack.c.l.b16 %v8321
  %v8366 = vpack.c.b16 %v8337, %v8337
  %v8367 = vpack.c.b16 %v8338, %v8338
  %v8368 = vpack.c.b16 %v8339, %v8339
  %v8369 = vpack.c.b16 %v8340, %v8340
  %v8370 = vpack.c.b16 %v8341, %v8341
  %v8371 = vpack.c.b16 %v8342, %v8342
  %v8372 = vpack.c.b16 %v8343, %v8343
  %v8373 = vpack.c.b16 %v8344, %v8344
  %v8374 = vpack.c.b16 %v8345, %v8345
  %v8375 = vpack.c.b16 %v8346, %v8346
  %v8376 = vpack.c.b16 %v8347, %v8347
  %v8377 = vpack.c.b16 %v8348, %v8348
  %v8378 = vpack.c.b16 %v8349, %v8349
  %v8379 = vpack.c.b16 %v8350, %v8350
  %v8380 = vpack.c.b16 %v8351, %v8351
  %v8381 = vpack.c.b16 %v8352, %v8352
  %v8382 = vpack.c.b16 %v8353, %v8353
  %v8383 = vpack.c.b16 %v8354, %v8354
  %v8384 = vpack.c.b16 %v8355, %v8355
  %v8385 = vpack.c.b16 %v8356, %v8356
  %v8386 = vpack.c.b16 %v8357, %v8357
  %v8387 = vpack.c.b16 %v8358, %v8358
  %v8388 = vpack.c.b16 %v8359, %v8359
  %v8389 = vpack.c.b16 %v8360, %v8360
  %v8390 = vpack.c.b16 %v8361, %v8361
  %v8391 = vpack.c.b16 %v8362, %v8362
  %v8392 = vpack.c.b16 %v8363, %v8363
  %v8393 = vpack.c.b16 %v8364, %v8364
  %v8394 = vpack.c.b16 %v8365, %v8365
  %s8424 = scalar_lea.vmem %s11, 116
  %8425 = vst.msk [vmem:[%s8424] sm:$0xf] %vm4499, %v8366
  %8426 = vst.msk [vmem:[%s8424 + $0x4] sm:$0xf] %vm4499, %v8367
  %8427 = vst.msk [vmem:[%s8424 + $0x8] sm:$0xf] %vm4499, %v8368
  %8428 = vst.msk [vmem:[%s8424 + $0xc] sm:$0xf] %vm4499, %v8369
  %8429 = vst.msk [vmem:[%s8424 + $0x10] sm:$0xf] %vm4499, %v8370
  %8430 = vst.msk [vmem:[%s8424 + $0x14] sm:$0xf] %vm4499, %v8371
  %8431 = vst.msk [vmem:[%s8424 + $0x18] sm:$0xf] %vm4499, %v8372
  %8432 = vst.msk [vmem:[%s8424 + $0x1c] sm:$0xf] %vm4499, %v8373
  %8433 = vst.msk [vmem:[%s8424 + $0x20] sm:$0xf] %vm4499, %v8374
  %8434 = vst.msk [vmem:[%s8424 + $0x24] sm:$0xf] %vm4499, %v8375
  %8435 = vst.msk [vmem:[%s8424 + $0x28] sm:$0xf] %vm4499, %v8376
  %8436 = vst.msk [vmem:[%s8424 + $0x2c] sm:$0xf] %vm4499, %v8377
  %8437 = vst.msk [vmem:[%s8424 + $0x30] sm:$0xf] %vm4499, %v8378
  %8438 = vst.msk [vmem:[%s8424 + $0x34] sm:$0xf] %vm4499, %v8379
  %8439 = vst.msk [vmem:[%s8424 + $0x38] sm:$0xf] %vm4499, %v8380
  %8440 = vst.msk [vmem:[%s8424 + $0x3c] sm:$0xf] %vm4499, %v8381
  %8441 = vst.msk [vmem:[%s8424 + $0x40] sm:$0xf] %vm4499, %v8382
  %8442 = vst.msk [vmem:[%s8424 + $0x44] sm:$0xf] %vm4499, %v8383
  %8443 = vst.msk [vmem:[%s8424 + $0x48] sm:$0xf] %vm4499, %v8384
  %8444 = vst.msk [vmem:[%s8424 + $0x4c] sm:$0xf] %vm4499, %v8385
  %8445 = vst.msk [vmem:[%s8424 + $0x50] sm:$0xf] %vm4499, %v8386
  %8446 = vst.msk [vmem:[%s8424 + $0x54] sm:$0xf] %vm4499, %v8387
  %8447 = vst.msk [vmem:[%s8424 + $0x58] sm:$0xf] %vm4499, %v8388
  %8448 = vst.msk [vmem:[%s8424 + $0x5c] sm:$0xf] %vm4499, %v8389
  %8449 = vst.msk [vmem:[%s8424 + $0x60] sm:$0xf] %vm4499, %v8390
  %8450 = vst.msk [vmem:[%s8424 + $0x64] sm:$0xf] %vm4499, %v8391
  %8451 = vst.msk [vmem:[%s8424 + $0x68] sm:$0xf] %vm4499, %v8392
  %8452 = vst.msk [vmem:[%s8424 + $0x6c] sm:$0xf] %vm4499, %v8393
  %v8453 = vld [vmem:[%s8424 + $0x70] sm:$0x1]
  %v8454 = vsel %vm4530, %v8394, %v8453
  %8455 = vst [vmem:[%s8424 + $0x70] sm:$0x1] %v8454
  // Predicated region
  $region46: #{dqn_forward.2} parent=0 // pred_check
    _
  $region47: #{dqn_forward.2} parent=0 // pred_check_branch
    %8457 = sbr.rel (0) target = $region49
  $region48: #{dqn_forward.2} parent=0 // pred_region
    _
  $region49: #{dqn_forward.2} parent=0 // pred_fallthru
    _
  // Predicated region
  $region50: #{dqn_forward.2} parent=0 // pred_check
    _
  $region51: #{dqn_forward.2} parent=0 // pred_check_branch
    %8459 = sbr.rel (0) target = $region53
  $region52: #{dqn_forward.2} parent=0 // pred_region
    _
  $region53: #{dqn_forward.2} parent=0 // pred_fallthru
    _

// kernel: dqn_forward.3
$region0: #{dqn_forward.3}
  #allocation0 [shape = 'u32[]', space=smem, size = 0x4, offset = 0x4, fixed_abs, tag = 'smem constant byte address 0x4 - core index']
  #allocation1 [shape = 'u32[144,128]{1,0:T(1,128)}', space=vmem, size = 0x12000, scoped, tag = 'internal scratch']
  %s0 = inlined_call_operand.vmem [shape: bf16[2,7744], index: 0, kind: input, shape index: {}]
  %s1 = inlined_call_operand.vmem [shape: bf16[7744,128], index: 1, kind: input, shape index: {}]
  %s2 = inlined_call_operand.vmem [shape: f32[1,128], index: 2, kind: input, shape index: {}]
  %s3 = inlined_call_operand.vmem [shape: f32[128,6], index: 3, kind: input, shape index: {}]
  %s4 = inlined_call_operand.vmem [shape: f32[1,6], index: 4, kind: input, shape index: {}]
  %s5 = inlined_call_operand.hbm [shape: f32[2,6], index: 5, kind: output, shape index: {}]
  %s6 = sld [smem:[#allocation0]]
  $region30: #{dqn_forward.3} parent=0
    _
  %s8 = ssub.s32 1, %s6
  %s9 = scalar_select 0, %s8, %s6
  $region1: #{dqn_forward.3} parent=0
    #allocation2 [shape = 'u8[1024]{0}', space=vmem, size = 0x400, scoped, tag = 'output window, operand 0, single buffered']
    #allocation3 [shape = 's32[1]{0}', space=sflag, size = 0x4, scoped, tag = 'scoped memory for dqn_forward.3']
    %10 = vsyncpa [#allocation3], 0
    // Predicated region
    $region2: #{dqn_forward.3} parent=1 // pred_check
      _
    $region3: #{dqn_forward.3} parent=1 // pred_check_branch
      %12 = sbr.rel (0) target = $region5
    $region4: #{dqn_forward.3} parent=1 // pred_region
      _
    $region5: #{dqn_forward.3} parent=1 // pred_fallthru
      _
    // Predicated region
    $region6: #{dqn_forward.3} parent=1 // pred_check
      _
    $region7: #{dqn_forward.3} parent=1 // pred_check_branch
      %14 = sbr.rel (0) target = $region9
    $region8: #{dqn_forward.3} parent=1 // pred_region
      _
    $region9: #{dqn_forward.3} parent=1 // pred_fallthru
      _
    // Predicated region
    $region10: #{dqn_forward.3} parent=1 // pred_check
      _
    $region11: #{dqn_forward.3} parent=1 // pred_check_branch
      %16 = sbr.rel (0) target = $region13
    $region12: #{dqn_forward.3} parent=1 // pred_region
      _
    $region13: #{dqn_forward.3} parent=1 // pred_fallthru
      _
    // Predicated region
    $region14: #{dqn_forward.3} parent=1 // pred_check
      _
    $region15: #{dqn_forward.3} parent=1 // pred_check_branch
      %18 = sbr.rel (0) target = $region17
    $region16: #{dqn_forward.3} parent=1 // pred_region
      _
    $region17: #{dqn_forward.3} parent=1 // pred_fallthru
      _
    // Predicated region
    $region18: #{dqn_forward.3} parent=1 // pred_check
      _
    $region19: #{dqn_forward.3} parent=1 // pred_check_branch
      %20 = sbr.rel (0) target = $region21
    $region20: #{dqn_forward.3} parent=1 // pred_region
      _
    $region21: #{dqn_forward.3} parent=1 // pred_fallthru
      _
    %v22 = vld [vmem:[%s0] sm:$0xff]
    %v23 = vld [vmem:[%s0 + $0x8] sm:$0xff]
    %v24 = vld [vmem:[%s0 + $0x10] sm:$0xff]
    %v25 = vld [vmem:[%s0 + $0x18] sm:$0xff]
    %v26 = vld [vmem:[%s0 + $0x20] sm:$0xff]
    %v27 = vld [vmem:[%s0 + $0x28] sm:$0xff]
    %v28 = vld [vmem:[%s0 + $0x30] sm:$0xff]
    %v29 = vld [vmem:[%s0 + $0x38] sm:$0x1f]
    %v30 = vld [vmem:[%s1] sm:$0xf]
    %v31 = vld [vmem:[%s1 + $0x4] sm:$0xf]
    %v32 = vld [vmem:[%s1 + $0x8] sm:$0xf]
    %v33 = vld [vmem:[%s1 + $0xc] sm:$0xf]
    %v34 = vld [vmem:[%s1 + $0x10] sm:$0xf]
    %v35 = vld [vmem:[%s1 + $0x14] sm:$0xf]
    %v36 = vld [vmem:[%s1 + $0x18] sm:$0xf]
    %v37 = vld [vmem:[%s1 + $0x1c] sm:$0xf]
    %v38 = vld [vmem:[%s1 + $0x20] sm:$0xf]
    %v39 = vld [vmem:[%s1 + $0x24] sm:$0xf]
    %v40 = vld [vmem:[%s1 + $0x28] sm:$0xf]
    %v41 = vld [vmem:[%s1 + $0x2c] sm:$0xf]
    %v42 = vld [vmem:[%s1 + $0x30] sm:$0xf]
    %v43 = vld [vmem:[%s1 + $0x34] sm:$0xf]
    %v44 = vld [vmem:[%s1 + $0x38] sm:$0xf]
    %v45 = vld [vmem:[%s1 + $0x3c] sm:$0xf]
    %v46 = vld [vmem:[%s1 + $0x40] sm:$0xf]
    %v47 = vld [vmem:[%s1 + $0x44] sm:$0xf]
    %v48 = vld [vmem:[%s1 + $0x48] sm:$0xf]
    %v49 = vld [vmem:[%s1 + $0x4c] sm:$0xf]
    %v50 = vld [vmem:[%s1 + $0x50] sm:$0xf]
    %v51 = vld [vmem:[%s1 + $0x54] sm:$0xf]
    %v52 = vld [vmem:[%s1 + $0x58] sm:$0xf]
    %v53 = vld [vmem:[%s1 + $0x5c] sm:$0xf]
    %v54 = vld [vmem:[%s1 + $0x60] sm:$0xf]
    %v55 = vld [vmem:[%s1 + $0x64] sm:$0xf]
    %v56 = vld [vmem:[%s1 + $0x68] sm:$0xf]
    %v57 = vld [vmem:[%s1 + $0x6c] sm:$0xf]
    %v58 = vld [vmem:[%s1 + $0x70] sm:$0xf]
    %v59 = vld [vmem:[%s1 + $0x74] sm:$0xf]
    %v60 = vld [vmem:[%s1 + $0x78] sm:$0xf]
    %v61 = vld [vmem:[%s1 + $0x7c] sm:$0xf]
    %v62 = vld [vmem:[%s1 + $0x80] sm:$0xf]
    %v63 = vld [vmem:[%s1 + $0x84] sm:$0xf]
    %v64 = vld [vmem:[%s1 + $0x88] sm:$0xf]
    %v65 = vld [vmem:[%s1 + $0x8c] sm:$0xf]
    %v66 = vld [vmem:[%s1 + $0x90] sm:$0xf]
    %v67 = vld [vmem:[%s1 + $0x94] sm:$0xf]
    %v68 = vld [vmem:[%s1 + $0x98] sm:$0xf]
    %v69 = vld [vmem:[%s1 + $0x9c] sm:$0xf]
    %v70 = vld [vmem:[%s1 + $0xa0] sm:$0xf]
    %v71 = vld [vmem:[%s1 + $0xa4] sm:$0xf]
    %v72 = vld [vmem:[%s1 + $0xa8] sm:$0xf]
    %v73 = vld [vmem:[%s1 + $0xac] sm:$0xf]
    %v74 = vld [vmem:[%s1 + $0xb0] sm:$0xf]
    %v75 = vld [vmem:[%s1 + $0xb4] sm:$0xf]
    %v76 = vld [vmem:[%s1 + $0xb8] sm:$0xf]
    %v77 = vld [vmem:[%s1 + $0xbc] sm:$0xf]
    %v78 = vld [vmem:[%s1 + $0xc0] sm:$0xf]
    %v79 = vld [vmem:[%s1 + $0xc4] sm:$0xf]
    %v80 = vld [vmem:[%s1 + $0xc8] sm:$0xf]
    %v81 = vld [vmem:[%s1 + $0xcc] sm:$0xf]
    %v82 = vld [vmem:[%s1 + $0xd0] sm:$0xf]
    %v83 = vld [vmem:[%s1 + $0xd4] sm:$0xf]
    %v84 = vld [vmem:[%s1 + $0xd8] sm:$0xf]
    %v85 = vld [vmem:[%s1 + $0xdc] sm:$0xf]
    %v86 = vld [vmem:[%s1 + $0xe0] sm:$0xf]
    %v87 = vld [vmem:[%s1 + $0xe4] sm:$0xf]
    %v88 = vld [vmem:[%s1 + $0xe8] sm:$0xf]
    %v89 = vld [vmem:[%s1 + $0xec] sm:$0xf]
    %v90 = vld [vmem:[%s1 + $0xf0] sm:$0xf]
    %v91 = vld [vmem:[%s1 + $0xf4] sm:$0xf]
    %v92 = vld [vmem:[%s1 + $0xf8] sm:$0xf]
    %v93 = vld [vmem:[%s1 + $0xfc] sm:$0xf]
    %v94 = vld [vmem:[%s1 + $0x100] sm:$0xf]
    %v95 = vld [vmem:[%s1 + $0x104] sm:$0xf]
    %v96 = vld [vmem:[%s1 + $0x108] sm:$0xf]
    %v97 = vld [vmem:[%s1 + $0x10c] sm:$0xf]
    %v98 = vld [vmem:[%s1 + $0x110] sm:$0xf]
    %v99 = vld [vmem:[%s1 + $0x114] sm:$0xf]
    %v100 = vld [vmem:[%s1 + $0x118] sm:$0xf]
    %v101 = vld [vmem:[%s1 + $0x11c] sm:$0xf]
    %v102 = vld [vmem:[%s1 + $0x120] sm:$0xf]
    %v103 = vld [vmem:[%s1 + $0x124] sm:$0xf]
    %v104 = vld [vmem:[%s1 + $0x128] sm:$0xf]
    %v105 = vld [vmem:[%s1 + $0x12c] sm:$0xf]
    %v106 = vld [vmem:[%s1 + $0x130] sm:$0xf]
    %v107 = vld [vmem:[%s1 + $0x134] sm:$0xf]
    %v108 = vld [vmem:[%s1 + $0x138] sm:$0xf]
    %v109 = vld [vmem:[%s1 + $0x13c] sm:$0xf]
    %v110 = vld [vmem:[%s1 + $0x140] sm:$0xf]
    %v111 = vld [vmem:[%s1 + $0x144] sm:$0xf]
    %v112 = vld [vmem:[%s1 + $0x148] sm:$0xf]
    %v113 = vld [vmem:[%s1 + $0x14c] sm:$0xf]
    %v114 = vld [vmem:[%s1 + $0x150] sm:$0xf]
    %v115 = vld [vmem:[%s1 + $0x154] sm:$0xf]
    %v116 = vld [vmem:[%s1 + $0x158] sm:$0xf]
    %v117 = vld [vmem:[%s1 + $0x15c] sm:$0xf]
    %v118 = vld [vmem:[%s1 + $0x160] sm:$0xf]
    %v119 = vld [vmem:[%s1 + $0x164] sm:$0xf]
    %v120 = vld [vmem:[%s1 + $0x168] sm:$0xf]
    %v121 = vld [vmem:[%s1 + $0x16c] sm:$0xf]
    %v122 = vld [vmem:[%s1 + $0x170] sm:$0xf]
    %v123 = vld [vmem:[%s1 + $0x174] sm:$0xf]
    %v124 = vld [vmem:[%s1 + $0x178] sm:$0xf]
    %v125 = vld [vmem:[%s1 + $0x17c] sm:$0xf]
    %v126 = vld [vmem:[%s1 + $0x180] sm:$0xf]
    %v127 = vld [vmem:[%s1 + $0x184] sm:$0xf]
    %v128 = vld [vmem:[%s1 + $0x188] sm:$0xf]
    %v129 = vld [vmem:[%s1 + $0x18c] sm:$0xf]
    %v130 = vld [vmem:[%s1 + $0x190] sm:$0xf]
    %v131 = vld [vmem:[%s1 + $0x194] sm:$0xf]
    %v132 = vld [vmem:[%s1 + $0x198] sm:$0xf]
    %v133 = vld [vmem:[%s1 + $0x19c] sm:$0xf]
    %v134 = vld [vmem:[%s1 + $0x1a0] sm:$0xf]
    %v135 = vld [vmem:[%s1 + $0x1a4] sm:$0xf]
    %v136 = vld [vmem:[%s1 + $0x1a8] sm:$0xf]
    %v137 = vld [vmem:[%s1 + $0x1ac] sm:$0xf]
    %v138 = vld [vmem:[%s1 + $0x1b0] sm:$0xf]
    %v139 = vld [vmem:[%s1 + $0x1b4] sm:$0xf]
    %v140 = vld [vmem:[%s1 + $0x1b8] sm:$0xf]
    %v141 = vld [vmem:[%s1 + $0x1bc] sm:$0xf]
    %v142 = vld [vmem:[%s1 + $0x1c0] sm:$0xf]
    %v143 = vld [vmem:[%s1 + $0x1c4] sm:$0xf]
    %v144 = vld [vmem:[%s1 + $0x1c8] sm:$0xf]
    %v145 = vld [vmem:[%s1 + $0x1cc] sm:$0xf]
    %v146 = vld [vmem:[%s1 + $0x1d0] sm:$0xf]
    %v147 = vld [vmem:[%s1 + $0x1d4] sm:$0xf]
    %v148 = vld [vmem:[%s1 + $0x1d8] sm:$0xf]
    %v149 = vld [vmem:[%s1 + $0x1dc] sm:$0xf]
    %v150 = vld [vmem:[%s1 + $0x1e0] sm:$0xf]
    %v151 = vld [vmem:[%s1 + $0x1e4] sm:$0xf]
    %v152 = vld [vmem:[%s1 + $0x1e8] sm:$0xf]
    %v153 = vld [vmem:[%s1 + $0x1ec] sm:$0xf]
    %v154 = vld [vmem:[%s1 + $0x1f0] sm:$0xf]
    %v155 = vld [vmem:[%s1 + $0x1f4] sm:$0xf]
    %v156 = vld [vmem:[%s1 + $0x1f8] sm:$0xf]
    %v157 = vld [vmem:[%s1 + $0x1fc] sm:$0xf]
    %v158 = vld [vmem:[%s1 + $0x200] sm:$0xf]
    %v159 = vld [vmem:[%s1 + $0x204] sm:$0xf]
    %v160 = vld [vmem:[%s1 + $0x208] sm:$0xf]
    %v161 = vld [vmem:[%s1 + $0x20c] sm:$0xf]
    %v162 = vld [vmem:[%s1 + $0x210] sm:$0xf]
    %v163 = vld [vmem:[%s1 + $0x214] sm:$0xf]
    %v164 = vld [vmem:[%s1 + $0x218] sm:$0xf]
    %v165 = vld [vmem:[%s1 + $0x21c] sm:$0xf]
    %v166 = vld [vmem:[%s1 + $0x220] sm:$0xf]
    %v167 = vld [vmem:[%s1 + $0x224] sm:$0xf]
    %v168 = vld [vmem:[%s1 + $0x228] sm:$0xf]
    %v169 = vld [vmem:[%s1 + $0x22c] sm:$0xf]
    %v170 = vld [vmem:[%s1 + $0x230] sm:$0xf]
    %v171 = vld [vmem:[%s1 + $0x234] sm:$0xf]
    %v172 = vld [vmem:[%s1 + $0x238] sm:$0xf]
    %v173 = vld [vmem:[%s1 + $0x23c] sm:$0xf]
    %v174 = vld [vmem:[%s1 + $0x240] sm:$0xf]
    %v175 = vld [vmem:[%s1 + $0x244] sm:$0xf]
    %v176 = vld [vmem:[%s1 + $0x248] sm:$0xf]
    %v177 = vld [vmem:[%s1 + $0x24c] sm:$0xf]
    %v178 = vld [vmem:[%s1 + $0x250] sm:$0xf]
    %v179 = vld [vmem:[%s1 + $0x254] sm:$0xf]
    %v180 = vld [vmem:[%s1 + $0x258] sm:$0xf]
    %v181 = vld [vmem:[%s1 + $0x25c] sm:$0xf]
    %v182 = vld [vmem:[%s1 + $0x260] sm:$0xf]
    %v183 = vld [vmem:[%s1 + $0x264] sm:$0xf]
    %v184 = vld [vmem:[%s1 + $0x268] sm:$0xf]
    %v185 = vld [vmem:[%s1 + $0x26c] sm:$0xf]
    %v186 = vld [vmem:[%s1 + $0x270] sm:$0xf]
    %v187 = vld [vmem:[%s1 + $0x274] sm:$0xf]
    %v188 = vld [vmem:[%s1 + $0x278] sm:$0xf]
    %v189 = vld [vmem:[%s1 + $0x27c] sm:$0xf]
    %v190 = vld [vmem:[%s1 + $0x280] sm:$0xf]
    %v191 = vld [vmem:[%s1 + $0x284] sm:$0xf]
    %v192 = vld [vmem:[%s1 + $0x288] sm:$0xf]
    %v193 = vld [vmem:[%s1 + $0x28c] sm:$0xf]
    %v194 = vld [vmem:[%s1 + $0x290] sm:$0xf]
    %v195 = vld [vmem:[%s1 + $0x294] sm:$0xf]
    %v196 = vld [vmem:[%s1 + $0x298] sm:$0xf]
    %v197 = vld [vmem:[%s1 + $0x29c] sm:$0xf]
    %v198 = vld [vmem:[%s1 + $0x2a0] sm:$0xf]
    %v199 = vld [vmem:[%s1 + $0x2a4] sm:$0xf]
    %v200 = vld [vmem:[%s1 + $0x2a8] sm:$0xf]
    %v201 = vld [vmem:[%s1 + $0x2ac] sm:$0xf]
    %v202 = vld [vmem:[%s1 + $0x2b0] sm:$0xf]
    %v203 = vld [vmem:[%s1 + $0x2b4] sm:$0xf]
    %v204 = vld [vmem:[%s1 + $0x2b8] sm:$0xf]
    %v205 = vld [vmem:[%s1 + $0x2bc] sm:$0xf]
    %v206 = vld [vmem:[%s1 + $0x2c0] sm:$0xf]
    %v207 = vld [vmem:[%s1 + $0x2c4] sm:$0xf]
    %v208 = vld [vmem:[%s1 + $0x2c8] sm:$0xf]
    %v209 = vld [vmem:[%s1 + $0x2cc] sm:$0xf]
    %v210 = vld [vmem:[%s1 + $0x2d0] sm:$0xf]
    %v211 = vld [vmem:[%s1 + $0x2d4] sm:$0xf]
    %v212 = vld [vmem:[%s1 + $0x2d8] sm:$0xf]
    %v213 = vld [vmem:[%s1 + $0x2dc] sm:$0xf]
    %v214 = vld [vmem:[%s1 + $0x2e0] sm:$0xf]
    %v215 = vld [vmem:[%s1 + $0x2e4] sm:$0xf]
    %v216 = vld [vmem:[%s1 + $0x2e8] sm:$0xf]
    %v217 = vld [vmem:[%s1 + $0x2ec] sm:$0xf]
    %v218 = vld [vmem:[%s1 + $0x2f0] sm:$0xf]
    %v219 = vld [vmem:[%s1 + $0x2f4] sm:$0xf]
    %v220 = vld [vmem:[%s1 + $0x2f8] sm:$0xf]
    %v221 = vld [vmem:[%s1 + $0x2fc] sm:$0xf]
    %v222 = vld [vmem:[%s1 + $0x300] sm:$0xf]
    %v223 = vld [vmem:[%s1 + $0x304] sm:$0xf]
    %v224 = vld [vmem:[%s1 + $0x308] sm:$0xf]
    %v225 = vld [vmem:[%s1 + $0x30c] sm:$0xf]
    %v226 = vld [vmem:[%s1 + $0x310] sm:$0xf]
    %v227 = vld [vmem:[%s1 + $0x314] sm:$0xf]
    %v228 = vld [vmem:[%s1 + $0x318] sm:$0xf]
    %v229 = vld [vmem:[%s1 + $0x31c] sm:$0xf]
    %v230 = vld [vmem:[%s1 + $0x320] sm:$0xf]
    %v231 = vld [vmem:[%s1 + $0x324] sm:$0xf]
    %v232 = vld [vmem:[%s1 + $0x328] sm:$0xf]
    %v233 = vld [vmem:[%s1 + $0x32c] sm:$0xf]
    %v234 = vld [vmem:[%s1 + $0x330] sm:$0xf]
    %v235 = vld [vmem:[%s1 + $0x334] sm:$0xf]
    %v236 = vld [vmem:[%s1 + $0x338] sm:$0xf]
    %v237 = vld [vmem:[%s1 + $0x33c] sm:$0xf]
    %v238 = vld [vmem:[%s1 + $0x340] sm:$0xf]
    %v239 = vld [vmem:[%s1 + $0x344] sm:$0xf]
    %v240 = vld [vmem:[%s1 + $0x348] sm:$0xf]
    %v241 = vld [vmem:[%s1 + $0x34c] sm:$0xf]
    %v242 = vld [vmem:[%s1 + $0x350] sm:$0xf]
    %v243 = vld [vmem:[%s1 + $0x354] sm:$0xf]
    %v244 = vld [vmem:[%s1 + $0x358] sm:$0xf]
    %v245 = vld [vmem:[%s1 + $0x35c] sm:$0xf]
    %v246 = vld [vmem:[%s1 + $0x360] sm:$0xf]
    %v247 = vld [vmem:[%s1 + $0x364] sm:$0xf]
    %v248 = vld [vmem:[%s1 + $0x368] sm:$0xf]
    %v249 = vld [vmem:[%s1 + $0x36c] sm:$0xf]
    %v250 = vld [vmem:[%s1 + $0x370] sm:$0xf]
    %v251 = vld [vmem:[%s1 + $0x374] sm:$0xf]
    %v252 = vld [vmem:[%s1 + $0x378] sm:$0xf]
    %v253 = vld [vmem:[%s1 + $0x37c] sm:$0xf]
    %v254 = vld [vmem:[%s1 + $0x380] sm:$0xf]
    %v255 = vld [vmem:[%s1 + $0x384] sm:$0xf]
    %v256 = vld [vmem:[%s1 + $0x388] sm:$0xf]
    %v257 = vld [vmem:[%s1 + $0x38c] sm:$0xf]
    %v258 = vld [vmem:[%s1 + $0x390] sm:$0xf]
    %v259 = vld [vmem:[%s1 + $0x394] sm:$0xf]
    %v260 = vld [vmem:[%s1 + $0x398] sm:$0xf]
    %v261 = vld [vmem:[%s1 + $0x39c] sm:$0xf]
    %v262 = vld [vmem:[%s1 + $0x3a0] sm:$0xf]
    %v263 = vld [vmem:[%s1 + $0x3a4] sm:$0xf]
    %v264 = vld [vmem:[%s1 + $0x3a8] sm:$0xf]
    %v265 = vld [vmem:[%s1 + $0x3ac] sm:$0xf]
    %v266 = vld [vmem:[%s1 + $0x3b0] sm:$0xf]
    %v267 = vld [vmem:[%s1 + $0x3b4] sm:$0xf]
    %v268 = vld [vmem:[%s1 + $0x3b8] sm:$0xf]
    %v269 = vld [vmem:[%s1 + $0x3bc] sm:$0xf]
    %v270 = vld [vmem:[%s1 + $0x3c0] sm:$0xf]
    %v271 = vld [vmem:[%s1 + $0x3c4] sm:$0xf]
    %v272 = vld [vmem:[%s1 + $0x3c8] sm:$0xf]
    %v273 = vld [vmem:[%s1 + $0x3cc] sm:$0xf]
    %v274 = vld [vmem:[%s1 + $0x3d0] sm:$0xf]
    %v275 = vld [vmem:[%s1 + $0x3d4] sm:$0xf]
    %v276 = vld [vmem:[%s1 + $0x3d8] sm:$0xf]
    %v277 = vld [vmem:[%s1 + $0x3dc] sm:$0xf]
    %v278 = vld [vmem:[%s1 + $0x3e0] sm:$0xf]
    %v279 = vld [vmem:[%s1 + $0x3e4] sm:$0xf]
    %v280 = vld [vmem:[%s1 + $0x3e8] sm:$0xf]
    %v281 = vld [vmem:[%s1 + $0x3ec] sm:$0xf]
    %v282 = vld [vmem:[%s1 + $0x3f0] sm:$0xf]
    %v283 = vld [vmem:[%s1 + $0x3f4] sm:$0xf]
    %v284 = vld [vmem:[%s1 + $0x3f8] sm:$0xf]
    %v285 = vld [vmem:[%s1 + $0x3fc] sm:$0xf]
    %v286 = vld [vmem:[%s1 + $0x400] sm:$0xf]
    %v287 = vld [vmem:[%s1 + $0x404] sm:$0xf]
    %v288 = vld [vmem:[%s1 + $0x408] sm:$0xf]
    %v289 = vld [vmem:[%s1 + $0x40c] sm:$0xf]
    %v290 = vld [vmem:[%s1 + $0x410] sm:$0xf]
    %v291 = vld [vmem:[%s1 + $0x414] sm:$0xf]
    %v292 = vld [vmem:[%s1 + $0x418] sm:$0xf]
    %v293 = vld [vmem:[%s1 + $0x41c] sm:$0xf]
    %v294 = vld [vmem:[%s1 + $0x420] sm:$0xf]
    %v295 = vld [vmem:[%s1 + $0x424] sm:$0xf]
    %v296 = vld [vmem:[%s1 + $0x428] sm:$0xf]
    %v297 = vld [vmem:[%s1 + $0x42c] sm:$0xf]
    %v298 = vld [vmem:[%s1 + $0x430] sm:$0xf]
    %v299 = vld [vmem:[%s1 + $0x434] sm:$0xf]
    %v300 = vld [vmem:[%s1 + $0x438] sm:$0xf]
    %v301 = vld [vmem:[%s1 + $0x43c] sm:$0xf]
    %v302 = vld [vmem:[%s1 + $0x440] sm:$0xf]
    %v303 = vld [vmem:[%s1 + $0x444] sm:$0xf]
    %v304 = vld [vmem:[%s1 + $0x448] sm:$0xf]
    %v305 = vld [vmem:[%s1 + $0x44c] sm:$0xf]
    %v306 = vld [vmem:[%s1 + $0x450] sm:$0xf]
    %v307 = vld [vmem:[%s1 + $0x454] sm:$0xf]
    %v308 = vld [vmem:[%s1 + $0x458] sm:$0xf]
    %v309 = vld [vmem:[%s1 + $0x45c] sm:$0xf]
    %v310 = vld [vmem:[%s1 + $0x460] sm:$0xf]
    %v311 = vld [vmem:[%s1 + $0x464] sm:$0xf]
    %v312 = vld [vmem:[%s1 + $0x468] sm:$0xf]
    %v313 = vld [vmem:[%s1 + $0x46c] sm:$0xf]
    %v314 = vld [vmem:[%s1 + $0x470] sm:$0xf]
    %v315 = vld [vmem:[%s1 + $0x474] sm:$0xf]
    %v316 = vld [vmem:[%s1 + $0x478] sm:$0xf]
    %v317 = vld [vmem:[%s1 + $0x47c] sm:$0xf]
    %v318 = vld [vmem:[%s1 + $0x480] sm:$0xf]
    %v319 = vld [vmem:[%s1 + $0x484] sm:$0xf]
    %v320 = vld [vmem:[%s1 + $0x488] sm:$0xf]
    %v321 = vld [vmem:[%s1 + $0x48c] sm:$0xf]
    %v322 = vld [vmem:[%s1 + $0x490] sm:$0xf]
    %v323 = vld [vmem:[%s1 + $0x494] sm:$0xf]
    %v324 = vld [vmem:[%s1 + $0x498] sm:$0xf]
    %v325 = vld [vmem:[%s1 + $0x49c] sm:$0xf]
    %v326 = vld [vmem:[%s1 + $0x4a0] sm:$0xf]
    %v327 = vld [vmem:[%s1 + $0x4a4] sm:$0xf]
    %v328 = vld [vmem:[%s1 + $0x4a8] sm:$0xf]
    %v329 = vld [vmem:[%s1 + $0x4ac] sm:$0xf]
    %v330 = vld [vmem:[%s1 + $0x4b0] sm:$0xf]
    %v331 = vld [vmem:[%s1 + $0x4b4] sm:$0xf]
    %v332 = vld [vmem:[%s1 + $0x4b8] sm:$0xf]
    %v333 = vld [vmem:[%s1 + $0x4bc] sm:$0xf]
    %v334 = vld [vmem:[%s1 + $0x4c0] sm:$0xf]
    %v335 = vld [vmem:[%s1 + $0x4c4] sm:$0xf]
    %v336 = vld [vmem:[%s1 + $0x4c8] sm:$0xf]
    %v337 = vld [vmem:[%s1 + $0x4cc] sm:$0xf]
    %v338 = vld [vmem:[%s1 + $0x4d0] sm:$0xf]
    %v339 = vld [vmem:[%s1 + $0x4d4] sm:$0xf]
    %v340 = vld [vmem:[%s1 + $0x4d8] sm:$0xf]
    %v341 = vld [vmem:[%s1 + $0x4dc] sm:$0xf]
    %v342 = vld [vmem:[%s1 + $0x4e0] sm:$0xf]
    %v343 = vld [vmem:[%s1 + $0x4e4] sm:$0xf]
    %v344 = vld [vmem:[%s1 + $0x4e8] sm:$0xf]
    %v345 = vld [vmem:[%s1 + $0x4ec] sm:$0xf]
    %v346 = vld [vmem:[%s1 + $0x4f0] sm:$0xf]
    %v347 = vld [vmem:[%s1 + $0x4f4] sm:$0xf]
    %v348 = vld [vmem:[%s1 + $0x4f8] sm:$0xf]
    %v349 = vld [vmem:[%s1 + $0x4fc] sm:$0xf]
    %v350 = vld [vmem:[%s1 + $0x500] sm:$0xf]
    %v351 = vld [vmem:[%s1 + $0x504] sm:$0xf]
    %v352 = vld [vmem:[%s1 + $0x508] sm:$0xf]
    %v353 = vld [vmem:[%s1 + $0x50c] sm:$0xf]
    %v354 = vld [vmem:[%s1 + $0x510] sm:$0xf]
    %v355 = vld [vmem:[%s1 + $0x514] sm:$0xf]
    %v356 = vld [vmem:[%s1 + $0x518] sm:$0xf]
    %v357 = vld [vmem:[%s1 + $0x51c] sm:$0xf]
    %v358 = vld [vmem:[%s1 + $0x520] sm:$0xf]
    %v359 = vld [vmem:[%s1 + $0x524] sm:$0xf]
    %v360 = vld [vmem:[%s1 + $0x528] sm:$0xf]
    %v361 = vld [vmem:[%s1 + $0x52c] sm:$0xf]
    %v362 = vld [vmem:[%s1 + $0x530] sm:$0xf]
    %v363 = vld [vmem:[%s1 + $0x534] sm:$0xf]
    %v364 = vld [vmem:[%s1 + $0x538] sm:$0xf]
    %v365 = vld [vmem:[%s1 + $0x53c] sm:$0xf]
    %v366 = vld [vmem:[%s1 + $0x540] sm:$0xf]
    %v367 = vld [vmem:[%s1 + $0x544] sm:$0xf]
    %v368 = vld [vmem:[%s1 + $0x548] sm:$0xf]
    %v369 = vld [vmem:[%s1 + $0x54c] sm:$0xf]
    %v370 = vld [vmem:[%s1 + $0x550] sm:$0xf]
    %v371 = vld [vmem:[%s1 + $0x554] sm:$0xf]
    %v372 = vld [vmem:[%s1 + $0x558] sm:$0xf]
    %v373 = vld [vmem:[%s1 + $0x55c] sm:$0xf]
    %v374 = vld [vmem:[%s1 + $0x560] sm:$0xf]
    %v375 = vld [vmem:[%s1 + $0x564] sm:$0xf]
    %v376 = vld [vmem:[%s1 + $0x568] sm:$0xf]
    %v377 = vld [vmem:[%s1 + $0x56c] sm:$0xf]
    %v378 = vld [vmem:[%s1 + $0x570] sm:$0xf]
    %v379 = vld [vmem:[%s1 + $0x574] sm:$0xf]
    %v380 = vld [vmem:[%s1 + $0x578] sm:$0xf]
    %v381 = vld [vmem:[%s1 + $0x57c] sm:$0xf]
    %v382 = vld [vmem:[%s1 + $0x580] sm:$0xf]
    %v383 = vld [vmem:[%s1 + $0x584] sm:$0xf]
    %v384 = vld [vmem:[%s1 + $0x588] sm:$0xf]
    %v385 = vld [vmem:[%s1 + $0x58c] sm:$0xf]
    %v386 = vld [vmem:[%s1 + $0x590] sm:$0xf]
    %v387 = vld [vmem:[%s1 + $0x594] sm:$0xf]
    %v388 = vld [vmem:[%s1 + $0x598] sm:$0xf]
    %v389 = vld [vmem:[%s1 + $0x59c] sm:$0xf]
    %v390 = vld [vmem:[%s1 + $0x5a0] sm:$0xf]
    %v391 = vld [vmem:[%s1 + $0x5a4] sm:$0xf]
    %v392 = vld [vmem:[%s1 + $0x5a8] sm:$0xf]
    %v393 = vld [vmem:[%s1 + $0x5ac] sm:$0xf]
    %v394 = vld [vmem:[%s1 + $0x5b0] sm:$0xf]
    %v395 = vld [vmem:[%s1 + $0x5b4] sm:$0xf]
    %v396 = vld [vmem:[%s1 + $0x5b8] sm:$0xf]
    %v397 = vld [vmem:[%s1 + $0x5bc] sm:$0xf]
    %v398 = vld [vmem:[%s1 + $0x5c0] sm:$0xf]
    %v399 = vld [vmem:[%s1 + $0x5c4] sm:$0xf]
    %v400 = vld [vmem:[%s1 + $0x5c8] sm:$0xf]
    %v401 = vld [vmem:[%s1 + $0x5cc] sm:$0xf]
    %v402 = vld [vmem:[%s1 + $0x5d0] sm:$0xf]
    %v403 = vld [vmem:[%s1 + $0x5d4] sm:$0xf]
    %v404 = vld [vmem:[%s1 + $0x5d8] sm:$0xf]
    %v405 = vld [vmem:[%s1 + $0x5dc] sm:$0xf]
    %v406 = vld [vmem:[%s1 + $0x5e0] sm:$0xf]
    %v407 = vld [vmem:[%s1 + $0x5e4] sm:$0xf]
    %v408 = vld [vmem:[%s1 + $0x5e8] sm:$0xf]
    %v409 = vld [vmem:[%s1 + $0x5ec] sm:$0xf]
    %v410 = vld [vmem:[%s1 + $0x5f0] sm:$0xf]
    %v411 = vld [vmem:[%s1 + $0x5f4] sm:$0xf]
    %v412 = vld [vmem:[%s1 + $0x5f8] sm:$0xf]
    %v413 = vld [vmem:[%s1 + $0x5fc] sm:$0xf]
    %v414 = vld [vmem:[%s1 + $0x600] sm:$0xf]
    %v415 = vld [vmem:[%s1 + $0x604] sm:$0xf]
    %v416 = vld [vmem:[%s1 + $0x608] sm:$0xf]
    %v417 = vld [vmem:[%s1 + $0x60c] sm:$0xf]
    %v418 = vld [vmem:[%s1 + $0x610] sm:$0xf]
    %v419 = vld [vmem:[%s1 + $0x614] sm:$0xf]
    %v420 = vld [vmem:[%s1 + $0x618] sm:$0xf]
    %v421 = vld [vmem:[%s1 + $0x61c] sm:$0xf]
    %v422 = vld [vmem:[%s1 + $0x620] sm:$0xf]
    %v423 = vld [vmem:[%s1 + $0x624] sm:$0xf]
    %v424 = vld [vmem:[%s1 + $0x628] sm:$0xf]
    %v425 = vld [vmem:[%s1 + $0x62c] sm:$0xf]
    %v426 = vld [vmem:[%s1 + $0x630] sm:$0xf]
    %v427 = vld [vmem:[%s1 + $0x634] sm:$0xf]
    %v428 = vld [vmem:[%s1 + $0x638] sm:$0xf]
    %v429 = vld [vmem:[%s1 + $0x63c] sm:$0xf]
    %v430 = vld [vmem:[%s1 + $0x640] sm:$0xf]
    %v431 = vld [vmem:[%s1 + $0x644] sm:$0xf]
    %v432 = vld [vmem:[%s1 + $0x648] sm:$0xf]
    %v433 = vld [vmem:[%s1 + $0x64c] sm:$0xf]
    %v434 = vld [vmem:[%s1 + $0x650] sm:$0xf]
    %v435 = vld [vmem:[%s1 + $0x654] sm:$0xf]
    %v436 = vld [vmem:[%s1 + $0x658] sm:$0xf]
    %v437 = vld [vmem:[%s1 + $0x65c] sm:$0xf]
    %v438 = vld [vmem:[%s1 + $0x660] sm:$0xf]
    %v439 = vld [vmem:[%s1 + $0x664] sm:$0xf]
    %v440 = vld [vmem:[%s1 + $0x668] sm:$0xf]
    %v441 = vld [vmem:[%s1 + $0x66c] sm:$0xf]
    %v442 = vld [vmem:[%s1 + $0x670] sm:$0xf]
    %v443 = vld [vmem:[%s1 + $0x674] sm:$0xf]
    %v444 = vld [vmem:[%s1 + $0x678] sm:$0xf]
    %v445 = vld [vmem:[%s1 + $0x67c] sm:$0xf]
    %v446 = vld [vmem:[%s1 + $0x680] sm:$0xf]
    %v447 = vld [vmem:[%s1 + $0x684] sm:$0xf]
    %v448 = vld [vmem:[%s1 + $0x688] sm:$0xf]
    %v449 = vld [vmem:[%s1 + $0x68c] sm:$0xf]
    %v450 = vld [vmem:[%s1 + $0x690] sm:$0xf]
    %v451 = vld [vmem:[%s1 + $0x694] sm:$0xf]
    %v452 = vld [vmem:[%s1 + $0x698] sm:$0xf]
    %v453 = vld [vmem:[%s1 + $0x69c] sm:$0xf]
    %v454 = vld [vmem:[%s1 + $0x6a0] sm:$0xf]
    %v455 = vld [vmem:[%s1 + $0x6a4] sm:$0xf]
    %v456 = vld [vmem:[%s1 + $0x6a8] sm:$0xf]
    %v457 = vld [vmem:[%s1 + $0x6ac] sm:$0xf]
    %v458 = vld [vmem:[%s1 + $0x6b0] sm:$0xf]
    %v459 = vld [vmem:[%s1 + $0x6b4] sm:$0xf]
    %v460 = vld [vmem:[%s1 + $0x6b8] sm:$0xf]
    %v461 = vld [vmem:[%s1 + $0x6bc] sm:$0xf]
    %v462 = vld [vmem:[%s1 + $0x6c0] sm:$0xf]
    %v463 = vld [vmem:[%s1 + $0x6c4] sm:$0xf]
    %v464 = vld [vmem:[%s1 + $0x6c8] sm:$0xf]
    %v465 = vld [vmem:[%s1 + $0x6cc] sm:$0xf]
    %v466 = vld [vmem:[%s1 + $0x6d0] sm:$0xf]
    %v467 = vld [vmem:[%s1 + $0x6d4] sm:$0xf]
    %v468 = vld [vmem:[%s1 + $0x6d8] sm:$0xf]
    %v469 = vld [vmem:[%s1 + $0x6dc] sm:$0xf]
    %v470 = vld [vmem:[%s1 + $0x6e0] sm:$0xf]
    %v471 = vld [vmem:[%s1 + $0x6e4] sm:$0xf]
    %v472 = vld [vmem:[%s1 + $0x6e8] sm:$0xf]
    %v473 = vld [vmem:[%s1 + $0x6ec] sm:$0xf]
    %v474 = vld [vmem:[%s1 + $0x6f0] sm:$0xf]
    %v475 = vld [vmem:[%s1 + $0x6f4] sm:$0xf]
    %v476 = vld [vmem:[%s1 + $0x6f8] sm:$0xf]
    %v477 = vld [vmem:[%s1 + $0x6fc] sm:$0xf]
    %v478 = vld [vmem:[%s1 + $0x700] sm:$0xf]
    %v479 = vld [vmem:[%s1 + $0x704] sm:$0xf]
    %v480 = vld [vmem:[%s1 + $0x708] sm:$0xf]
    %v481 = vld [vmem:[%s1 + $0x70c] sm:$0xf]
    %v482 = vld [vmem:[%s1 + $0x710] sm:$0xf]
    %v483 = vld [vmem:[%s1 + $0x714] sm:$0xf]
    %v484 = vld [vmem:[%s1 + $0x718] sm:$0xf]
    %v485 = vld [vmem:[%s1 + $0x71c] sm:$0xf]
    %v486 = vld [vmem:[%s1 + $0x720] sm:$0xf]
    %v487 = vld [vmem:[%s1 + $0x724] sm:$0xf]
    %v488 = vld [vmem:[%s1 + $0x728] sm:$0xf]
    %v489 = vld [vmem:[%s1 + $0x72c] sm:$0xf]
    %v490 = vld [vmem:[%s1 + $0x730] sm:$0xf]
    %v491 = vld [vmem:[%s1 + $0x734] sm:$0xf]
    %v492 = vld [vmem:[%s1 + $0x738] sm:$0xf]
    %v493 = vld [vmem:[%s1 + $0x73c] sm:$0xf]
    %v494 = vld [vmem:[%s1 + $0x740] sm:$0xf]
    %v495 = vld [vmem:[%s1 + $0x744] sm:$0xf]
    %v496 = vld [vmem:[%s1 + $0x748] sm:$0xf]
    %v497 = vld [vmem:[%s1 + $0x74c] sm:$0xf]
    %v498 = vld [vmem:[%s1 + $0x750] sm:$0xf]
    %v499 = vld [vmem:[%s1 + $0x754] sm:$0xf]
    %v500 = vld [vmem:[%s1 + $0x758] sm:$0xf]
    %v501 = vld [vmem:[%s1 + $0x75c] sm:$0xf]
    %v502 = vld [vmem:[%s1 + $0x760] sm:$0xf]
    %v503 = vld [vmem:[%s1 + $0x764] sm:$0xf]
    %v504 = vld [vmem:[%s1 + $0x768] sm:$0xf]
    %v505 = vld [vmem:[%s1 + $0x76c] sm:$0xf]
    %v506 = vld [vmem:[%s1 + $0x770] sm:$0xf]
    %v507 = vld [vmem:[%s1 + $0x774] sm:$0xf]
    %v508 = vld [vmem:[%s1 + $0x778] sm:$0xf]
    %v509 = vld [vmem:[%s1 + $0x77c] sm:$0xf]
    %v510 = vld [vmem:[%s1 + $0x780] sm:$0xf]
    %v511 = vld [vmem:[%s1 + $0x784] sm:$0xf]
    %v512 = vld [vmem:[%s1 + $0x788] sm:$0xf]
    %v513 = vld [vmem:[%s1 + $0x78c] sm:$0xf]
    %v514 = vld [vmem:[%s1 + $0x790] sm:$0xf]
    %v515 = vld [vmem:[%s1 + $0x794] sm:$0xf]
    %v516 = vld [vmem:[%s1 + $0x798] sm:$0xf]
    %v517 = vld [vmem:[%s1 + $0x79c] sm:$0xf]
    %v518 = vld [vmem:[%s1 + $0x7a0] sm:$0xf]
    %v519 = vld [vmem:[%s1 + $0x7a4] sm:$0xf]
    %v520 = vld [vmem:[%s1 + $0x7a8] sm:$0xf]
    %v521 = vld [vmem:[%s1 + $0x7ac] sm:$0xf]
    %v522 = vld [vmem:[%s1 + $0x7b0] sm:$0xf]
    %v523 = vld [vmem:[%s1 + $0x7b4] sm:$0xf]
    %v524 = vld [vmem:[%s1 + $0x7b8] sm:$0xf]
    %v525 = vld [vmem:[%s1 + $0x7bc] sm:$0xf]
    %v526 = vld [vmem:[%s1 + $0x7c0] sm:$0xf]
    %v527 = vld [vmem:[%s1 + $0x7c4] sm:$0xf]
    %v528 = vld [vmem:[%s1 + $0x7c8] sm:$0xf]
    %v529 = vld [vmem:[%s1 + $0x7cc] sm:$0xf]
    %v530 = vld [vmem:[%s1 + $0x7d0] sm:$0xf]
    %v531 = vld [vmem:[%s1 + $0x7d4] sm:$0xf]
    %v532 = vld [vmem:[%s1 + $0x7d8] sm:$0xf]
    %v533 = vld [vmem:[%s1 + $0x7dc] sm:$0xf]
    %v534 = vld [vmem:[%s1 + $0x7e0] sm:$0xf]
    %v535 = vld [vmem:[%s1 + $0x7e4] sm:$0xf]
    %v536 = vld [vmem:[%s1 + $0x7e8] sm:$0xf]
    %v537 = vld [vmem:[%s1 + $0x7ec] sm:$0xf]
    %v538 = vld [vmem:[%s1 + $0x7f0] sm:$0xf]
    %v539 = vld [vmem:[%s1 + $0x7f4] sm:$0xf]
    %v540 = vld [vmem:[%s1 + $0x7f8] sm:$0xf]
    %v541 = vld [vmem:[%s1 + $0x7fc] sm:$0xf]
    %v542 = vld [vmem:[%s1 + $0x800] sm:$0xf]
    %v543 = vld [vmem:[%s1 + $0x804] sm:$0xf]
    %v544 = vld [vmem:[%s1 + $0x808] sm:$0xf]
    %v545 = vld [vmem:[%s1 + $0x80c] sm:$0xf]
    %v546 = vld [vmem:[%s1 + $0x810] sm:$0xf]
    %v547 = vld [vmem:[%s1 + $0x814] sm:$0xf]
    %v548 = vld [vmem:[%s1 + $0x818] sm:$0xf]
    %v549 = vld [vmem:[%s1 + $0x81c] sm:$0xf]
    %v550 = vld [vmem:[%s1 + $0x820] sm:$0xf]
    %v551 = vld [vmem:[%s1 + $0x824] sm:$0xf]
    %v552 = vld [vmem:[%s1 + $0x828] sm:$0xf]
    %v553 = vld [vmem:[%s1 + $0x82c] sm:$0xf]
    %v554 = vld [vmem:[%s1 + $0x830] sm:$0xf]
    %v555 = vld [vmem:[%s1 + $0x834] sm:$0xf]
    %v556 = vld [vmem:[%s1 + $0x838] sm:$0xf]
    %v557 = vld [vmem:[%s1 + $0x83c] sm:$0xf]
    %v558 = vld [vmem:[%s1 + $0x840] sm:$0xf]
    %v559 = vld [vmem:[%s1 + $0x844] sm:$0xf]
    %v560 = vld [vmem:[%s1 + $0x848] sm:$0xf]
    %v561 = vld [vmem:[%s1 + $0x84c] sm:$0xf]
    %v562 = vld [vmem:[%s1 + $0x850] sm:$0xf]
    %v563 = vld [vmem:[%s1 + $0x854] sm:$0xf]
    %v564 = vld [vmem:[%s1 + $0x858] sm:$0xf]
    %v565 = vld [vmem:[%s1 + $0x85c] sm:$0xf]
    %v566 = vld [vmem:[%s1 + $0x860] sm:$0xf]
    %v567 = vld [vmem:[%s1 + $0x864] sm:$0xf]
    %v568 = vld [vmem:[%s1 + $0x868] sm:$0xf]
    %v569 = vld [vmem:[%s1 + $0x86c] sm:$0xf]
    %v570 = vld [vmem:[%s1 + $0x870] sm:$0xf]
    %v571 = vld [vmem:[%s1 + $0x874] sm:$0xf]
    %v572 = vld [vmem:[%s1 + $0x878] sm:$0xf]
    %v573 = vld [vmem:[%s1 + $0x87c] sm:$0xf]
    %v574 = vld [vmem:[%s1 + $0x880] sm:$0xf]
    %v575 = vld [vmem:[%s1 + $0x884] sm:$0xf]
    %v576 = vld [vmem:[%s1 + $0x888] sm:$0xf]
    %v577 = vld [vmem:[%s1 + $0x88c] sm:$0xf]
    %v578 = vld [vmem:[%s1 + $0x890] sm:$0xf]
    %v579 = vld [vmem:[%s1 + $0x894] sm:$0xf]
    %v580 = vld [vmem:[%s1 + $0x898] sm:$0xf]
    %v581 = vld [vmem:[%s1 + $0x89c] sm:$0xf]
    %v582 = vld [vmem:[%s1 + $0x8a0] sm:$0xf]
    %v583 = vld [vmem:[%s1 + $0x8a4] sm:$0xf]
    %v584 = vld [vmem:[%s1 + $0x8a8] sm:$0xf]
    %v585 = vld [vmem:[%s1 + $0x8ac] sm:$0xf]
    %v586 = vld [vmem:[%s1 + $0x8b0] sm:$0xf]
    %v587 = vld [vmem:[%s1 + $0x8b4] sm:$0xf]
    %v588 = vld [vmem:[%s1 + $0x8b8] sm:$0xf]
    %v589 = vld [vmem:[%s1 + $0x8bc] sm:$0xf]
    %v590 = vld [vmem:[%s1 + $0x8c0] sm:$0xf]
    %v591 = vld [vmem:[%s1 + $0x8c4] sm:$0xf]
    %v592 = vld [vmem:[%s1 + $0x8c8] sm:$0xf]
    %v593 = vld [vmem:[%s1 + $0x8cc] sm:$0xf]
    %v594 = vld [vmem:[%s1 + $0x8d0] sm:$0xf]
    %v595 = vld [vmem:[%s1 + $0x8d4] sm:$0xf]
    %v596 = vld [vmem:[%s1 + $0x8d8] sm:$0xf]
    %v597 = vld [vmem:[%s1 + $0x8dc] sm:$0xf]
    %v598 = vld [vmem:[%s1 + $0x8e0] sm:$0xf]
    %v599 = vld [vmem:[%s1 + $0x8e4] sm:$0xf]
    %v600 = vld [vmem:[%s1 + $0x8e8] sm:$0xf]
    %v601 = vld [vmem:[%s1 + $0x8ec] sm:$0xf]
    %v602 = vld [vmem:[%s1 + $0x8f0] sm:$0xf]
    %v603 = vld [vmem:[%s1 + $0x8f4] sm:$0xf]
    %v604 = vld [vmem:[%s1 + $0x8f8] sm:$0xf]
    %v605 = vld [vmem:[%s1 + $0x8fc] sm:$0xf]
    %v606 = vld [vmem:[%s1 + $0x900] sm:$0xf]
    %v607 = vld [vmem:[%s1 + $0x904] sm:$0xf]
    %v608 = vld [vmem:[%s1 + $0x908] sm:$0xf]
    %v609 = vld [vmem:[%s1 + $0x90c] sm:$0xf]
    %v610 = vld [vmem:[%s1 + $0x910] sm:$0xf]
    %v611 = vld [vmem:[%s1 + $0x914] sm:$0xf]
    %v612 = vld [vmem:[%s1 + $0x918] sm:$0xf]
    %v613 = vld [vmem:[%s1 + $0x91c] sm:$0xf]
    %v614 = vld [vmem:[%s1 + $0x920] sm:$0xf]
    %v615 = vld [vmem:[%s1 + $0x924] sm:$0xf]
    %v616 = vld [vmem:[%s1 + $0x928] sm:$0xf]
    %v617 = vld [vmem:[%s1 + $0x92c] sm:$0xf]
    %v618 = vld [vmem:[%s1 + $0x930] sm:$0xf]
    %v619 = vld [vmem:[%s1 + $0x934] sm:$0xf]
    %v620 = vld [vmem:[%s1 + $0x938] sm:$0xf]
    %v621 = vld [vmem:[%s1 + $0x93c] sm:$0xf]
    %v622 = vld [vmem:[%s1 + $0x940] sm:$0xf]
    %v623 = vld [vmem:[%s1 + $0x944] sm:$0xf]
    %v624 = vld [vmem:[%s1 + $0x948] sm:$0xf]
    %v625 = vld [vmem:[%s1 + $0x94c] sm:$0xf]
    %v626 = vld [vmem:[%s1 + $0x950] sm:$0xf]
    %v627 = vld [vmem:[%s1 + $0x954] sm:$0xf]
    %v628 = vld [vmem:[%s1 + $0x958] sm:$0xf]
    %v629 = vld [vmem:[%s1 + $0x95c] sm:$0xf]
    %v630 = vld [vmem:[%s1 + $0x960] sm:$0xf]
    %v631 = vld [vmem:[%s1 + $0x964] sm:$0xf]
    %v632 = vld [vmem:[%s1 + $0x968] sm:$0xf]
    %v633 = vld [vmem:[%s1 + $0x96c] sm:$0xf]
    %v634 = vld [vmem:[%s1 + $0x970] sm:$0xf]
    %v635 = vld [vmem:[%s1 + $0x974] sm:$0xf]
    %v636 = vld [vmem:[%s1 + $0x978] sm:$0xf]
    %v637 = vld [vmem:[%s1 + $0x97c] sm:$0xf]
    %v638 = vld [vmem:[%s1 + $0x980] sm:$0xf]
    %v639 = vld [vmem:[%s1 + $0x984] sm:$0xf]
    %v640 = vld [vmem:[%s1 + $0x988] sm:$0xf]
    %v641 = vld [vmem:[%s1 + $0x98c] sm:$0xf]
    %v642 = vld [vmem:[%s1 + $0x990] sm:$0xf]
    %v643 = vld [vmem:[%s1 + $0x994] sm:$0xf]
    %v644 = vld [vmem:[%s1 + $0x998] sm:$0xf]
    %v645 = vld [vmem:[%s1 + $0x99c] sm:$0xf]
    %v646 = vld [vmem:[%s1 + $0x9a0] sm:$0xf]
    %v647 = vld [vmem:[%s1 + $0x9a4] sm:$0xf]
    %v648 = vld [vmem:[%s1 + $0x9a8] sm:$0xf]
    %v649 = vld [vmem:[%s1 + $0x9ac] sm:$0xf]
    %v650 = vld [vmem:[%s1 + $0x9b0] sm:$0xf]
    %v651 = vld [vmem:[%s1 + $0x9b4] sm:$0xf]
    %v652 = vld [vmem:[%s1 + $0x9b8] sm:$0xf]
    %v653 = vld [vmem:[%s1 + $0x9bc] sm:$0xf]
    %v654 = vld [vmem:[%s1 + $0x9c0] sm:$0xf]
    %v655 = vld [vmem:[%s1 + $0x9c4] sm:$0xf]
    %v656 = vld [vmem:[%s1 + $0x9c8] sm:$0xf]
    %v657 = vld [vmem:[%s1 + $0x9cc] sm:$0xf]
    %v658 = vld [vmem:[%s1 + $0x9d0] sm:$0xf]
    %v659 = vld [vmem:[%s1 + $0x9d4] sm:$0xf]
    %v660 = vld [vmem:[%s1 + $0x9d8] sm:$0xf]
    %v661 = vld [vmem:[%s1 + $0x9dc] sm:$0xf]
    %v662 = vld [vmem:[%s1 + $0x9e0] sm:$0xf]
    %v663 = vld [vmem:[%s1 + $0x9e4] sm:$0xf]
    %v664 = vld [vmem:[%s1 + $0x9e8] sm:$0xf]
    %v665 = vld [vmem:[%s1 + $0x9ec] sm:$0xf]
    %v666 = vld [vmem:[%s1 + $0x9f0] sm:$0xf]
    %v667 = vld [vmem:[%s1 + $0x9f4] sm:$0xf]
    %v668 = vld [vmem:[%s1 + $0x9f8] sm:$0xf]
    %v669 = vld [vmem:[%s1 + $0x9fc] sm:$0xf]
    %v670 = vld [vmem:[%s1 + $0xa00] sm:$0xf]
    %v671 = vld [vmem:[%s1 + $0xa04] sm:$0xf]
    %v672 = vld [vmem:[%s1 + $0xa08] sm:$0xf]
    %v673 = vld [vmem:[%s1 + $0xa0c] sm:$0xf]
    %v674 = vld [vmem:[%s1 + $0xa10] sm:$0xf]
    %v675 = vld [vmem:[%s1 + $0xa14] sm:$0xf]
    %v676 = vld [vmem:[%s1 + $0xa18] sm:$0xf]
    %v677 = vld [vmem:[%s1 + $0xa1c] sm:$0xf]
    %v678 = vld [vmem:[%s1 + $0xa20] sm:$0xf]
    %v679 = vld [vmem:[%s1 + $0xa24] sm:$0xf]
    %v680 = vld [vmem:[%s1 + $0xa28] sm:$0xf]
    %v681 = vld [vmem:[%s1 + $0xa2c] sm:$0xf]
    %v682 = vld [vmem:[%s1 + $0xa30] sm:$0xf]
    %v683 = vld [vmem:[%s1 + $0xa34] sm:$0xf]
    %v684 = vld [vmem:[%s1 + $0xa38] sm:$0xf]
    %v685 = vld [vmem:[%s1 + $0xa3c] sm:$0xf]
    %v686 = vld [vmem:[%s1 + $0xa40] sm:$0xf]
    %v687 = vld [vmem:[%s1 + $0xa44] sm:$0xf]
    %v688 = vld [vmem:[%s1 + $0xa48] sm:$0xf]
    %v689 = vld [vmem:[%s1 + $0xa4c] sm:$0xf]
    %v690 = vld [vmem:[%s1 + $0xa50] sm:$0xf]
    %v691 = vld [vmem:[%s1 + $0xa54] sm:$0xf]
    %v692 = vld [vmem:[%s1 + $0xa58] sm:$0xf]
    %v693 = vld [vmem:[%s1 + $0xa5c] sm:$0xf]
    %v694 = vld [vmem:[%s1 + $0xa60] sm:$0xf]
    %v695 = vld [vmem:[%s1 + $0xa64] sm:$0xf]
    %v696 = vld [vmem:[%s1 + $0xa68] sm:$0xf]
    %v697 = vld [vmem:[%s1 + $0xa6c] sm:$0xf]
    %v698 = vld [vmem:[%s1 + $0xa70] sm:$0xf]
    %v699 = vld [vmem:[%s1 + $0xa74] sm:$0xf]
    %v700 = vld [vmem:[%s1 + $0xa78] sm:$0xf]
    %v701 = vld [vmem:[%s1 + $0xa7c] sm:$0xf]
    %v702 = vld [vmem:[%s1 + $0xa80] sm:$0xf]
    %v703 = vld [vmem:[%s1 + $0xa84] sm:$0xf]
    %v704 = vld [vmem:[%s1 + $0xa88] sm:$0xf]
    %v705 = vld [vmem:[%s1 + $0xa8c] sm:$0xf]
    %v706 = vld [vmem:[%s1 + $0xa90] sm:$0xf]
    %v707 = vld [vmem:[%s1 + $0xa94] sm:$0xf]
    %v708 = vld [vmem:[%s1 + $0xa98] sm:$0xf]
    %v709 = vld [vmem:[%s1 + $0xa9c] sm:$0xf]
    %v710 = vld [vmem:[%s1 + $0xaa0] sm:$0xf]
    %v711 = vld [vmem:[%s1 + $0xaa4] sm:$0xf]
    %v712 = vld [vmem:[%s1 + $0xaa8] sm:$0xf]
    %v713 = vld [vmem:[%s1 + $0xaac] sm:$0xf]
    %v714 = vld [vmem:[%s1 + $0xab0] sm:$0xf]
    %v715 = vld [vmem:[%s1 + $0xab4] sm:$0xf]
    %v716 = vld [vmem:[%s1 + $0xab8] sm:$0xf]
    %v717 = vld [vmem:[%s1 + $0xabc] sm:$0xf]
    %v718 = vld [vmem:[%s1 + $0xac0] sm:$0xf]
    %v719 = vld [vmem:[%s1 + $0xac4] sm:$0xf]
    %v720 = vld [vmem:[%s1 + $0xac8] sm:$0xf]
    %v721 = vld [vmem:[%s1 + $0xacc] sm:$0xf]
    %v722 = vld [vmem:[%s1 + $0xad0] sm:$0xf]
    %v723 = vld [vmem:[%s1 + $0xad4] sm:$0xf]
    %v724 = vld [vmem:[%s1 + $0xad8] sm:$0xf]
    %v725 = vld [vmem:[%s1 + $0xadc] sm:$0xf]
    %v726 = vld [vmem:[%s1 + $0xae0] sm:$0xf]
    %v727 = vld [vmem:[%s1 + $0xae4] sm:$0xf]
    %v728 = vld [vmem:[%s1 + $0xae8] sm:$0xf]
    %v729 = vld [vmem:[%s1 + $0xaec] sm:$0xf]
    %v730 = vld [vmem:[%s1 + $0xaf0] sm:$0xf]
    %v731 = vld [vmem:[%s1 + $0xaf4] sm:$0xf]
    %v732 = vld [vmem:[%s1 + $0xaf8] sm:$0xf]
    %v733 = vld [vmem:[%s1 + $0xafc] sm:$0xf]
    %v734 = vld [vmem:[%s1 + $0xb00] sm:$0xf]
    %v735 = vld [vmem:[%s1 + $0xb04] sm:$0xf]
    %v736 = vld [vmem:[%s1 + $0xb08] sm:$0xf]
    %v737 = vld [vmem:[%s1 + $0xb0c] sm:$0xf]
    %v738 = vld [vmem:[%s1 + $0xb10] sm:$0xf]
    %v739 = vld [vmem:[%s1 + $0xb14] sm:$0xf]
    %v740 = vld [vmem:[%s1 + $0xb18] sm:$0xf]
    %v741 = vld [vmem:[%s1 + $0xb1c] sm:$0xf]
    %v742 = vld [vmem:[%s1 + $0xb20] sm:$0xf]
    %v743 = vld [vmem:[%s1 + $0xb24] sm:$0xf]
    %v744 = vld [vmem:[%s1 + $0xb28] sm:$0xf]
    %v745 = vld [vmem:[%s1 + $0xb2c] sm:$0xf]
    %v746 = vld [vmem:[%s1 + $0xb30] sm:$0xf]
    %v747 = vld [vmem:[%s1 + $0xb34] sm:$0xf]
    %v748 = vld [vmem:[%s1 + $0xb38] sm:$0xf]
    %v749 = vld [vmem:[%s1 + $0xb3c] sm:$0xf]
    %v750 = vld [vmem:[%s1 + $0xb40] sm:$0xf]
    %v751 = vld [vmem:[%s1 + $0xb44] sm:$0xf]
    %v752 = vld [vmem:[%s1 + $0xb48] sm:$0xf]
    %v753 = vld [vmem:[%s1 + $0xb4c] sm:$0xf]
    %v754 = vld [vmem:[%s1 + $0xb50] sm:$0xf]
    %v755 = vld [vmem:[%s1 + $0xb54] sm:$0xf]
    %v756 = vld [vmem:[%s1 + $0xb58] sm:$0xf]
    %v757 = vld [vmem:[%s1 + $0xb5c] sm:$0xf]
    %v758 = vld [vmem:[%s1 + $0xb60] sm:$0xf]
    %v759 = vld [vmem:[%s1 + $0xb64] sm:$0xf]
    %v760 = vld [vmem:[%s1 + $0xb68] sm:$0xf]
    %v761 = vld [vmem:[%s1 + $0xb6c] sm:$0xf]
    %v762 = vld [vmem:[%s1 + $0xb70] sm:$0xf]
    %v763 = vld [vmem:[%s1 + $0xb74] sm:$0xf]
    %v764 = vld [vmem:[%s1 + $0xb78] sm:$0xf]
    %v765 = vld [vmem:[%s1 + $0xb7c] sm:$0xf]
    %v766 = vld [vmem:[%s1 + $0xb80] sm:$0xf]
    %v767 = vld [vmem:[%s1 + $0xb84] sm:$0xf]
    %v768 = vld [vmem:[%s1 + $0xb88] sm:$0xf]
    %v769 = vld [vmem:[%s1 + $0xb8c] sm:$0xf]
    %v770 = vld [vmem:[%s1 + $0xb90] sm:$0xf]
    %v771 = vld [vmem:[%s1 + $0xb94] sm:$0xf]
    %v772 = vld [vmem:[%s1 + $0xb98] sm:$0xf]
    %v773 = vld [vmem:[%s1 + $0xb9c] sm:$0xf]
    %v774 = vld [vmem:[%s1 + $0xba0] sm:$0xf]
    %v775 = vld [vmem:[%s1 + $0xba4] sm:$0xf]
    %v776 = vld [vmem:[%s1 + $0xba8] sm:$0xf]
    %v777 = vld [vmem:[%s1 + $0xbac] sm:$0xf]
    %v778 = vld [vmem:[%s1 + $0xbb0] sm:$0xf]
    %v779 = vld [vmem:[%s1 + $0xbb4] sm:$0xf]
    %v780 = vld [vmem:[%s1 + $0xbb8] sm:$0xf]
    %v781 = vld [vmem:[%s1 + $0xbbc] sm:$0xf]
    %v782 = vld [vmem:[%s1 + $0xbc0] sm:$0xf]
    %v783 = vld [vmem:[%s1 + $0xbc4] sm:$0xf]
    %v784 = vld [vmem:[%s1 + $0xbc8] sm:$0xf]
    %v785 = vld [vmem:[%s1 + $0xbcc] sm:$0xf]
    %v786 = vld [vmem:[%s1 + $0xbd0] sm:$0xf]
    %v787 = vld [vmem:[%s1 + $0xbd4] sm:$0xf]
    %v788 = vld [vmem:[%s1 + $0xbd8] sm:$0xf]
    %v789 = vld [vmem:[%s1 + $0xbdc] sm:$0xf]
    %v790 = vld [vmem:[%s1 + $0xbe0] sm:$0xf]
    %v791 = vld [vmem:[%s1 + $0xbe4] sm:$0xf]
    %v792 = vld [vmem:[%s1 + $0xbe8] sm:$0xf]
    %v793 = vld [vmem:[%s1 + $0xbec] sm:$0xf]
    %v794 = vld [vmem:[%s1 + $0xbf0] sm:$0xf]
    %v795 = vld [vmem:[%s1 + $0xbf4] sm:$0xf]
    %v796 = vld [vmem:[%s1 + $0xbf8] sm:$0xf]
    %v797 = vld [vmem:[%s1 + $0xbfc] sm:$0xf]
    %v798 = vld [vmem:[%s1 + $0xc00] sm:$0xf]
    %v799 = vld [vmem:[%s1 + $0xc04] sm:$0xf]
    %v800 = vld [vmem:[%s1 + $0xc08] sm:$0xf]
    %v801 = vld [vmem:[%s1 + $0xc0c] sm:$0xf]
    %v802 = vld [vmem:[%s1 + $0xc10] sm:$0xf]
    %v803 = vld [vmem:[%s1 + $0xc14] sm:$0xf]
    %v804 = vld [vmem:[%s1 + $0xc18] sm:$0xf]
    %v805 = vld [vmem:[%s1 + $0xc1c] sm:$0xf]
    %v806 = vld [vmem:[%s1 + $0xc20] sm:$0xf]
    %v807 = vld [vmem:[%s1 + $0xc24] sm:$0xf]
    %v808 = vld [vmem:[%s1 + $0xc28] sm:$0xf]
    %v809 = vld [vmem:[%s1 + $0xc2c] sm:$0xf]
    %v810 = vld [vmem:[%s1 + $0xc30] sm:$0xf]
    %v811 = vld [vmem:[%s1 + $0xc34] sm:$0xf]
    %v812 = vld [vmem:[%s1 + $0xc38] sm:$0xf]
    %v813 = vld [vmem:[%s1 + $0xc3c] sm:$0xf]
    %v814 = vld [vmem:[%s1 + $0xc40] sm:$0xf]
    %v815 = vld [vmem:[%s1 + $0xc44] sm:$0xf]
    %v816 = vld [vmem:[%s1 + $0xc48] sm:$0xf]
    %v817 = vld [vmem:[%s1 + $0xc4c] sm:$0xf]
    %v818 = vld [vmem:[%s1 + $0xc50] sm:$0xf]
    %v819 = vld [vmem:[%s1 + $0xc54] sm:$0xf]
    %v820 = vld [vmem:[%s1 + $0xc58] sm:$0xf]
    %v821 = vld [vmem:[%s1 + $0xc5c] sm:$0xf]
    %v822 = vld [vmem:[%s1 + $0xc60] sm:$0xf]
    %v823 = vld [vmem:[%s1 + $0xc64] sm:$0xf]
    %v824 = vld [vmem:[%s1 + $0xc68] sm:$0xf]
    %v825 = vld [vmem:[%s1 + $0xc6c] sm:$0xf]
    %v826 = vld [vmem:[%s1 + $0xc70] sm:$0xf]
    %v827 = vld [vmem:[%s1 + $0xc74] sm:$0xf]
    %v828 = vld [vmem:[%s1 + $0xc78] sm:$0xf]
    %v829 = vld [vmem:[%s1 + $0xc7c] sm:$0xf]
    %v830 = vld [vmem:[%s1 + $0xc80] sm:$0xf]
    %v831 = vld [vmem:[%s1 + $0xc84] sm:$0xf]
    %v832 = vld [vmem:[%s1 + $0xc88] sm:$0xf]
    %v833 = vld [vmem:[%s1 + $0xc8c] sm:$0xf]
    %v834 = vld [vmem:[%s1 + $0xc90] sm:$0xf]
    %v835 = vld [vmem:[%s1 + $0xc94] sm:$0xf]
    %v836 = vld [vmem:[%s1 + $0xc98] sm:$0xf]
    %v837 = vld [vmem:[%s1 + $0xc9c] sm:$0xf]
    %v838 = vld [vmem:[%s1 + $0xca0] sm:$0xf]
    %v839 = vld [vmem:[%s1 + $0xca4] sm:$0xf]
    %v840 = vld [vmem:[%s1 + $0xca8] sm:$0xf]
    %v841 = vld [vmem:[%s1 + $0xcac] sm:$0xf]
    %v842 = vld [vmem:[%s1 + $0xcb0] sm:$0xf]
    %v843 = vld [vmem:[%s1 + $0xcb4] sm:$0xf]
    %v844 = vld [vmem:[%s1 + $0xcb8] sm:$0xf]
    %v845 = vld [vmem:[%s1 + $0xcbc] sm:$0xf]
    %v846 = vld [vmem:[%s1 + $0xcc0] sm:$0xf]
    %v847 = vld [vmem:[%s1 + $0xcc4] sm:$0xf]
    %v848 = vld [vmem:[%s1 + $0xcc8] sm:$0xf]
    %v849 = vld [vmem:[%s1 + $0xccc] sm:$0xf]
    %v850 = vld [vmem:[%s1 + $0xcd0] sm:$0xf]
    %v851 = vld [vmem:[%s1 + $0xcd4] sm:$0xf]
    %v852 = vld [vmem:[%s1 + $0xcd8] sm:$0xf]
    %v853 = vld [vmem:[%s1 + $0xcdc] sm:$0xf]
    %v854 = vld [vmem:[%s1 + $0xce0] sm:$0xf]
    %v855 = vld [vmem:[%s1 + $0xce4] sm:$0xf]
    %v856 = vld [vmem:[%s1 + $0xce8] sm:$0xf]
    %v857 = vld [vmem:[%s1 + $0xcec] sm:$0xf]
    %v858 = vld [vmem:[%s1 + $0xcf0] sm:$0xf]
    %v859 = vld [vmem:[%s1 + $0xcf4] sm:$0xf]
    %v860 = vld [vmem:[%s1 + $0xcf8] sm:$0xf]
    %v861 = vld [vmem:[%s1 + $0xcfc] sm:$0xf]
    %v862 = vld [vmem:[%s1 + $0xd00] sm:$0xf]
    %v863 = vld [vmem:[%s1 + $0xd04] sm:$0xf]
    %v864 = vld [vmem:[%s1 + $0xd08] sm:$0xf]
    %v865 = vld [vmem:[%s1 + $0xd0c] sm:$0xf]
    %v866 = vld [vmem:[%s1 + $0xd10] sm:$0xf]
    %v867 = vld [vmem:[%s1 + $0xd14] sm:$0xf]
    %v868 = vld [vmem:[%s1 + $0xd18] sm:$0xf]
    %v869 = vld [vmem:[%s1 + $0xd1c] sm:$0xf]
    %v870 = vld [vmem:[%s1 + $0xd20] sm:$0xf]
    %v871 = vld [vmem:[%s1 + $0xd24] sm:$0xf]
    %v872 = vld [vmem:[%s1 + $0xd28] sm:$0xf]
    %v873 = vld [vmem:[%s1 + $0xd2c] sm:$0xf]
    %v874 = vld [vmem:[%s1 + $0xd30] sm:$0xf]
    %v875 = vld [vmem:[%s1 + $0xd34] sm:$0xf]
    %v876 = vld [vmem:[%s1 + $0xd38] sm:$0xf]
    %v877 = vld [vmem:[%s1 + $0xd3c] sm:$0xf]
    %v878 = vld [vmem:[%s1 + $0xd40] sm:$0xf]
    %v879 = vld [vmem:[%s1 + $0xd44] sm:$0xf]
    %v880 = vld [vmem:[%s1 + $0xd48] sm:$0xf]
    %v881 = vld [vmem:[%s1 + $0xd4c] sm:$0xf]
    %v882 = vld [vmem:[%s1 + $0xd50] sm:$0xf]
    %v883 = vld [vmem:[%s1 + $0xd54] sm:$0xf]
    %v884 = vld [vmem:[%s1 + $0xd58] sm:$0xf]
    %v885 = vld [vmem:[%s1 + $0xd5c] sm:$0xf]
    %v886 = vld [vmem:[%s1 + $0xd60] sm:$0xf]
    %v887 = vld [vmem:[%s1 + $0xd64] sm:$0xf]
    %v888 = vld [vmem:[%s1 + $0xd68] sm:$0xf]
    %v889 = vld [vmem:[%s1 + $0xd6c] sm:$0xf]
    %v890 = vld [vmem:[%s1 + $0xd70] sm:$0xf]
    %v891 = vld [vmem:[%s1 + $0xd74] sm:$0xf]
    %v892 = vld [vmem:[%s1 + $0xd78] sm:$0xf]
    %v893 = vld [vmem:[%s1 + $0xd7c] sm:$0xf]
    %v894 = vld [vmem:[%s1 + $0xd80] sm:$0xf]
    %v895 = vld [vmem:[%s1 + $0xd84] sm:$0xf]
    %v896 = vld [vmem:[%s1 + $0xd88] sm:$0xf]
    %v897 = vld [vmem:[%s1 + $0xd8c] sm:$0xf]
    %v898 = vld [vmem:[%s1 + $0xd90] sm:$0xf]
    %v899 = vld [vmem:[%s1 + $0xd94] sm:$0xf]
    %v900 = vld [vmem:[%s1 + $0xd98] sm:$0xf]
    %v901 = vld [vmem:[%s1 + $0xd9c] sm:$0xf]
    %v902 = vld [vmem:[%s1 + $0xda0] sm:$0xf]
    %v903 = vld [vmem:[%s1 + $0xda4] sm:$0xf]
    %v904 = vld [vmem:[%s1 + $0xda8] sm:$0xf]
    %v905 = vld [vmem:[%s1 + $0xdac] sm:$0xf]
    %v906 = vld [vmem:[%s1 + $0xdb0] sm:$0xf]
    %v907 = vld [vmem:[%s1 + $0xdb4] sm:$0xf]
    %v908 = vld [vmem:[%s1 + $0xdb8] sm:$0xf]
    %v909 = vld [vmem:[%s1 + $0xdbc] sm:$0xf]
    %v910 = vld [vmem:[%s1 + $0xdc0] sm:$0xf]
    %v911 = vld [vmem:[%s1 + $0xdc4] sm:$0xf]
    %v912 = vld [vmem:[%s1 + $0xdc8] sm:$0xf]
    %v913 = vld [vmem:[%s1 + $0xdcc] sm:$0xf]
    %v914 = vld [vmem:[%s1 + $0xdd0] sm:$0xf]
    %v915 = vld [vmem:[%s1 + $0xdd4] sm:$0xf]
    %v916 = vld [vmem:[%s1 + $0xdd8] sm:$0xf]
    %v917 = vld [vmem:[%s1 + $0xddc] sm:$0xf]
    %v918 = vld [vmem:[%s1 + $0xde0] sm:$0xf]
    %v919 = vld [vmem:[%s1 + $0xde4] sm:$0xf]
    %v920 = vld [vmem:[%s1 + $0xde8] sm:$0xf]
    %v921 = vld [vmem:[%s1 + $0xdec] sm:$0xf]
    %v922 = vld [vmem:[%s1 + $0xdf0] sm:$0xf]
    %v923 = vld [vmem:[%s1 + $0xdf4] sm:$0xf]
    %v924 = vld [vmem:[%s1 + $0xdf8] sm:$0xf]
    %v925 = vld [vmem:[%s1 + $0xdfc] sm:$0xf]
    %v926 = vld [vmem:[%s1 + $0xe00] sm:$0xf]
    %v927 = vld [vmem:[%s1 + $0xe04] sm:$0xf]
    %v928 = vld [vmem:[%s1 + $0xe08] sm:$0xf]
    %v929 = vld [vmem:[%s1 + $0xe0c] sm:$0xf]
    %v930 = vld [vmem:[%s1 + $0xe10] sm:$0xf]
    %v931 = vld [vmem:[%s1 + $0xe14] sm:$0xf]
    %v932 = vld [vmem:[%s1 + $0xe18] sm:$0xf]
    %v933 = vld [vmem:[%s1 + $0xe1c] sm:$0xf]
    %v934 = vld [vmem:[%s1 + $0xe20] sm:$0xf]
    %v935 = vld [vmem:[%s1 + $0xe24] sm:$0xf]
    %v936 = vld [vmem:[%s1 + $0xe28] sm:$0xf]
    %v937 = vld [vmem:[%s1 + $0xe2c] sm:$0xf]
    %v938 = vld [vmem:[%s1 + $0xe30] sm:$0xf]
    %v939 = vld [vmem:[%s1 + $0xe34] sm:$0xf]
    %v940 = vld [vmem:[%s1 + $0xe38] sm:$0xf]
    %v941 = vld [vmem:[%s1 + $0xe3c] sm:$0xf]
    %v942 = vld [vmem:[%s1 + $0xe40] sm:$0xf]
    %v943 = vld [vmem:[%s1 + $0xe44] sm:$0xf]
    %v944 = vld [vmem:[%s1 + $0xe48] sm:$0xf]
    %v945 = vld [vmem:[%s1 + $0xe4c] sm:$0xf]
    %v946 = vld [vmem:[%s1 + $0xe50] sm:$0xf]
    %v947 = vld [vmem:[%s1 + $0xe54] sm:$0xf]
    %v948 = vld [vmem:[%s1 + $0xe58] sm:$0xf]
    %v949 = vld [vmem:[%s1 + $0xe5c] sm:$0xf]
    %v950 = vld [vmem:[%s1 + $0xe60] sm:$0xf]
    %v951 = vld [vmem:[%s1 + $0xe64] sm:$0xf]
    %v952 = vld [vmem:[%s1 + $0xe68] sm:$0xf]
    %v953 = vld [vmem:[%s1 + $0xe6c] sm:$0xf]
    %v954 = vld [vmem:[%s1 + $0xe70] sm:$0xf]
    %v955 = vld [vmem:[%s1 + $0xe74] sm:$0xf]
    %v956 = vld [vmem:[%s1 + $0xe78] sm:$0xf]
    %v957 = vld [vmem:[%s1 + $0xe7c] sm:$0xf]
    %v958 = vld [vmem:[%s1 + $0xe80] sm:$0xf]
    %v959 = vld [vmem:[%s1 + $0xe84] sm:$0xf]
    %v960 = vld [vmem:[%s1 + $0xe88] sm:$0xf]
    %v961 = vld [vmem:[%s1 + $0xe8c] sm:$0xf]
    %v962 = vld [vmem:[%s1 + $0xe90] sm:$0xf]
    %v963 = vld [vmem:[%s1 + $0xe94] sm:$0xf]
    %v964 = vld [vmem:[%s1 + $0xe98] sm:$0xf]
    %v965 = vld [vmem:[%s1 + $0xe9c] sm:$0xf]
    %v966 = vld [vmem:[%s1 + $0xea0] sm:$0xf]
    %v967 = vld [vmem:[%s1 + $0xea4] sm:$0xf]
    %v968 = vld [vmem:[%s1 + $0xea8] sm:$0xf]
    %v969 = vld [vmem:[%s1 + $0xeac] sm:$0xf]
    %v970 = vld [vmem:[%s1 + $0xeb0] sm:$0xf]
    %v971 = vld [vmem:[%s1 + $0xeb4] sm:$0xf]
    %v972 = vld [vmem:[%s1 + $0xeb8] sm:$0xf]
    %v973 = vld [vmem:[%s1 + $0xebc] sm:$0xf]
    %v974 = vld [vmem:[%s1 + $0xec0] sm:$0xf]
    %v975 = vld [vmem:[%s1 + $0xec4] sm:$0xf]
    %v976 = vld [vmem:[%s1 + $0xec8] sm:$0xf]
    %v977 = vld [vmem:[%s1 + $0xecc] sm:$0xf]
    %v978 = vld [vmem:[%s1 + $0xed0] sm:$0xf]
    %v979 = vld [vmem:[%s1 + $0xed4] sm:$0xf]
    %v980 = vld [vmem:[%s1 + $0xed8] sm:$0xf]
    %v981 = vld [vmem:[%s1 + $0xedc] sm:$0xf]
    %v982 = vld [vmem:[%s1 + $0xee0] sm:$0xf]
    %v983 = vld [vmem:[%s1 + $0xee4] sm:$0xf]
    %v984 = vld [vmem:[%s1 + $0xee8] sm:$0xf]
    %v985 = vld [vmem:[%s1 + $0xeec] sm:$0xf]
    %v986 = vld [vmem:[%s1 + $0xef0] sm:$0xf]
    %v987 = vld [vmem:[%s1 + $0xef4] sm:$0xf]
    %v988 = vld [vmem:[%s1 + $0xef8] sm:$0xf]
    %v989 = vld [vmem:[%s1 + $0xefc] sm:$0xf]
    %v990 = vld [vmem:[%s1 + $0xf00] sm:$0xf]
    %v991 = vld [vmem:[%s1 + $0xf04] sm:$0xf]
    %v992 = vld [vmem:[%s1 + $0xf08] sm:$0xf]
    %v993 = vld [vmem:[%s1 + $0xf0c] sm:$0xf]
    %v994 = vld [vmem:[%s1 + $0xf10] sm:$0xf]
    %v995 = vld [vmem:[%s1 + $0xf14] sm:$0xf]
    %v996 = vld [vmem:[%s1 + $0xf18] sm:$0xf]
    %v997 = vld [vmem:[%s1 + $0xf1c] sm:$0xf]
    %v998 = vld [vmem:[%s2] sm:$0x1]
    %v1000 = vlaneseq
    %v1001 = vshrl.u32 %v1000, 7
    %v1002 = vsub.s32 0, %v1001
    %v1003 = vrot.slane %v998, %v1002
    %v1013 = vcombine.high %v22, %v22
    %v1015 = vunpack.c.l.s4 1966171168
    %v1016 = vunpack.c.0.s8 %v1015
    %v1017 = vlaneseq
    %v1018 = vshrl.u32 %v1017, 7
    %v1019 = vsub.s32 %v1016, %v1018
    %v1020 = vrot.slane %v22, %v1019
    %v1022 = vunpack.c.l.s4 1966171168
    %v1023 = vunpack.c.0.s8 %v1022
    %v1024 = vlaneseq
    %v1025 = vshrl.u32 %v1024, 7
    %v1026 = vsub.s32 %v1023, %v1025
    %v1027 = vrot.slane %v1013, %v1026
    %v1028 = vcombine.high %v1020, %v1020
    %v1029 = vcombine.high %v1027, %v1027
    %v1031 = vunpack.c.l.s4 1966171168
    %v1032 = vunpack.c.0.s8 %v1031
    %v1033 = vlaneseq
    %v1034 = vshrl.u32 %v1033, 7
    %v1035 = vsub.s32 %v1032, %v1034
    %v1036 = vrot.slane %v1020, %v1035
    %v1038 = vunpack.c.l.s4 1966171168
    %v1039 = vunpack.c.0.s8 %v1038
    %v1040 = vlaneseq
    %v1041 = vshrl.u32 %v1040, 7
    %v1042 = vsub.s32 %v1039, %v1041
    %v1043 = vrot.slane %v1027, %v1042
    %v1045 = vunpack.c.l.s4 1966171168
    %v1046 = vunpack.c.0.s8 %v1045
    %v1047 = vlaneseq
    %v1048 = vshrl.u32 %v1047, 7
    %v1049 = vsub.s32 %v1046, %v1048
    %v1050 = vrot.slane %v1028, %v1049
    %v1052 = vunpack.c.l.s4 1966171168
    %v1053 = vunpack.c.0.s8 %v1052
    %v1054 = vlaneseq
    %v1055 = vshrl.u32 %v1054, 7
    %v1056 = vsub.s32 %v1053, %v1055
    %v1057 = vrot.slane %v1029, %v1056
    %v1058 = vcombine.high %v1036, %v1036
    %v1059 = vcombine.high %v1043, %v1043
    %v1060 = vcombine.high %v1050, %v1050
    %v1061 = vcombine.high %v1057, %v1057
    %v1062 = vcombine.high %v23, %v23
    %v1064 = vunpack.c.l.s4 1966171168
    %v1065 = vunpack.c.0.s8 %v1064
    %v1066 = vlaneseq
    %v1067 = vshrl.u32 %v1066, 7
    %v1068 = vsub.s32 %v1065, %v1067
    %v1069 = vrot.slane %v23, %v1068
    %v1071 = vunpack.c.l.s4 1966171168
    %v1072 = vunpack.c.0.s8 %v1071
    %v1073 = vlaneseq
    %v1074 = vshrl.u32 %v1073, 7
    %v1075 = vsub.s32 %v1072, %v1074
    %v1076 = vrot.slane %v1062, %v1075
    %v1077 = vcombine.high %v1069, %v1069
    %v1078 = vcombine.high %v1076, %v1076
    %v1080 = vunpack.c.l.s4 1966171168
    %v1081 = vunpack.c.0.s8 %v1080
    %v1082 = vlaneseq
    %v1083 = vshrl.u32 %v1082, 7
    %v1084 = vsub.s32 %v1081, %v1083
    %v1085 = vrot.slane %v1069, %v1084
    %v1087 = vunpack.c.l.s4 1966171168
    %v1088 = vunpack.c.0.s8 %v1087
    %v1089 = vlaneseq
    %v1090 = vshrl.u32 %v1089, 7
    %v1091 = vsub.s32 %v1088, %v1090
    %v1092 = vrot.slane %v1076, %v1091
    %v1094 = vunpack.c.l.s4 1966171168
    %v1095 = vunpack.c.0.s8 %v1094
    %v1096 = vlaneseq
    %v1097 = vshrl.u32 %v1096, 7
    %v1098 = vsub.s32 %v1095, %v1097
    %v1099 = vrot.slane %v1077, %v1098
    %v1101 = vunpack.c.l.s4 1966171168
    %v1102 = vunpack.c.0.s8 %v1101
    %v1103 = vlaneseq
    %v1104 = vshrl.u32 %v1103, 7
    %v1105 = vsub.s32 %v1102, %v1104
    %v1106 = vrot.slane %v1078, %v1105
    %v1107 = vcombine.high %v1085, %v1085
    %v1108 = vcombine.high %v1092, %v1092
    %v1109 = vcombine.high %v1099, %v1099
    %v1110 = vcombine.high %v1106, %v1106
    %v1111 = vcombine.high %v24, %v24
    %v1113 = vunpack.c.l.s4 1966171168
    %v1114 = vunpack.c.0.s8 %v1113
    %v1115 = vlaneseq
    %v1116 = vshrl.u32 %v1115, 7
    %v1117 = vsub.s32 %v1114, %v1116
    %v1118 = vrot.slane %v24, %v1117
    %v1120 = vunpack.c.l.s4 1966171168
    %v1121 = vunpack.c.0.s8 %v1120
    %v1122 = vlaneseq
    %v1123 = vshrl.u32 %v1122, 7
    %v1124 = vsub.s32 %v1121, %v1123
    %v1125 = vrot.slane %v1111, %v1124
    %v1126 = vcombine.high %v1118, %v1118
    %v1127 = vcombine.high %v1125, %v1125
    %v1129 = vunpack.c.l.s4 1966171168
    %v1130 = vunpack.c.0.s8 %v1129
    %v1131 = vlaneseq
    %v1132 = vshrl.u32 %v1131, 7
    %v1133 = vsub.s32 %v1130, %v1132
    %v1134 = vrot.slane %v1118, %v1133
    %v1136 = vunpack.c.l.s4 1966171168
    %v1137 = vunpack.c.0.s8 %v1136
    %v1138 = vlaneseq
    %v1139 = vshrl.u32 %v1138, 7
    %v1140 = vsub.s32 %v1137, %v1139
    %v1141 = vrot.slane %v1125, %v1140
    %v1143 = vunpack.c.l.s4 1966171168
    %v1144 = vunpack.c.0.s8 %v1143
    %v1145 = vlaneseq
    %v1146 = vshrl.u32 %v1145, 7
    %v1147 = vsub.s32 %v1144, %v1146
    %v1148 = vrot.slane %v1126, %v1147
    %v1150 = vunpack.c.l.s4 1966171168
    %v1151 = vunpack.c.0.s8 %v1150
    %v1152 = vlaneseq
    %v1153 = vshrl.u32 %v1152, 7
    %v1154 = vsub.s32 %v1151, %v1153
    %v1155 = vrot.slane %v1127, %v1154
    %v1156 = vcombine.high %v1134, %v1134
    %v1157 = vcombine.high %v1141, %v1141
    %v1158 = vcombine.high %v1148, %v1148
    %v1159 = vcombine.high %v1155, %v1155
    %v1160 = vcombine.high %v25, %v25
    %v1162 = vunpack.c.l.s4 1966171168
    %v1163 = vunpack.c.0.s8 %v1162
    %v1164 = vlaneseq
    %v1165 = vshrl.u32 %v1164, 7
    %v1166 = vsub.s32 %v1163, %v1165
    %v1167 = vrot.slane %v25, %v1166
    %v1169 = vunpack.c.l.s4 1966171168
    %v1170 = vunpack.c.0.s8 %v1169
    %v1171 = vlaneseq
    %v1172 = vshrl.u32 %v1171, 7
    %v1173 = vsub.s32 %v1170, %v1172
    %v1174 = vrot.slane %v1160, %v1173
    %v1175 = vcombine.high %v1167, %v1167
    %v1176 = vcombine.high %v1174, %v1174
    %v1178 = vunpack.c.l.s4 1966171168
    %v1179 = vunpack.c.0.s8 %v1178
    %v1180 = vlaneseq
    %v1181 = vshrl.u32 %v1180, 7
    %v1182 = vsub.s32 %v1179, %v1181
    %v1183 = vrot.slane %v1167, %v1182
    %v1185 = vunpack.c.l.s4 1966171168
    %v1186 = vunpack.c.0.s8 %v1185
    %v1187 = vlaneseq
    %v1188 = vshrl.u32 %v1187, 7
    %v1189 = vsub.s32 %v1186, %v1188
    %v1190 = vrot.slane %v1174, %v1189
    %v1192 = vunpack.c.l.s4 1966171168
    %v1193 = vunpack.c.0.s8 %v1192
    %v1194 = vlaneseq
    %v1195 = vshrl.u32 %v1194, 7
    %v1196 = vsub.s32 %v1193, %v1195
    %v1197 = vrot.slane %v1175, %v1196
    %v1199 = vunpack.c.l.s4 1966171168
    %v1200 = vunpack.c.0.s8 %v1199
    %v1201 = vlaneseq
    %v1202 = vshrl.u32 %v1201, 7
    %v1203 = vsub.s32 %v1200, %v1202
    %v1204 = vrot.slane %v1176, %v1203
    %v1205 = vcombine.high %v1183, %v1183
    %v1206 = vcombine.high %v1190, %v1190
    %v1207 = vcombine.high %v1197, %v1197
    %v1208 = vcombine.high %v1204, %v1204
    %v1209 = vcombine.high %v26, %v26
    %v1211 = vunpack.c.l.s4 1966171168
    %v1212 = vunpack.c.0.s8 %v1211
    %v1213 = vlaneseq
    %v1214 = vshrl.u32 %v1213, 7
    %v1215 = vsub.s32 %v1212, %v1214
    %v1216 = vrot.slane %v26, %v1215
    %v1218 = vunpack.c.l.s4 1966171168
    %v1219 = vunpack.c.0.s8 %v1218
    %v1220 = vlaneseq
    %v1221 = vshrl.u32 %v1220, 7
    %v1222 = vsub.s32 %v1219, %v1221
    %v1223 = vrot.slane %v1209, %v1222
    %v1224 = vcombine.high %v1216, %v1216
    %v1225 = vcombine.high %v1223, %v1223
    %v1227 = vunpack.c.l.s4 1966171168
    %v1228 = vunpack.c.0.s8 %v1227
    %v1229 = vlaneseq
    %v1230 = vshrl.u32 %v1229, 7
    %v1231 = vsub.s32 %v1228, %v1230
    %v1232 = vrot.slane %v1216, %v1231
    %v1234 = vunpack.c.l.s4 1966171168
    %v1235 = vunpack.c.0.s8 %v1234
    %v1236 = vlaneseq
    %v1237 = vshrl.u32 %v1236, 7
    %v1238 = vsub.s32 %v1235, %v1237
    %v1239 = vrot.slane %v1223, %v1238
    %v1241 = vunpack.c.l.s4 1966171168
    %v1242 = vunpack.c.0.s8 %v1241
    %v1243 = vlaneseq
    %v1244 = vshrl.u32 %v1243, 7
    %v1245 = vsub.s32 %v1242, %v1244
    %v1246 = vrot.slane %v1224, %v1245
    %v1248 = vunpack.c.l.s4 1966171168
    %v1249 = vunpack.c.0.s8 %v1248
    %v1250 = vlaneseq
    %v1251 = vshrl.u32 %v1250, 7
    %v1252 = vsub.s32 %v1249, %v1251
    %v1253 = vrot.slane %v1225, %v1252
    %v1254 = vcombine.high %v1232, %v1232
    %v1255 = vcombine.high %v1239, %v1239
    %v1256 = vcombine.high %v1246, %v1246
    %v1257 = vcombine.high %v1253, %v1253
    %v1258 = vcombine.high %v27, %v27
    %v1260 = vunpack.c.l.s4 1966171168
    %v1261 = vunpack.c.0.s8 %v1260
    %v1262 = vlaneseq
    %v1263 = vshrl.u32 %v1262, 7
    %v1264 = vsub.s32 %v1261, %v1263
    %v1265 = vrot.slane %v27, %v1264
    %v1267 = vunpack.c.l.s4 1966171168
    %v1268 = vunpack.c.0.s8 %v1267
    %v1269 = vlaneseq
    %v1270 = vshrl.u32 %v1269, 7
    %v1271 = vsub.s32 %v1268, %v1270
    %v1272 = vrot.slane %v1258, %v1271
    %v1273 = vcombine.high %v1265, %v1265
    %v1274 = vcombine.high %v1272, %v1272
    %v1276 = vunpack.c.l.s4 1966171168
    %v1277 = vunpack.c.0.s8 %v1276
    %v1278 = vlaneseq
    %v1279 = vshrl.u32 %v1278, 7
    %v1280 = vsub.s32 %v1277, %v1279
    %v1281 = vrot.slane %v1265, %v1280
    %v1283 = vunpack.c.l.s4 1966171168
    %v1284 = vunpack.c.0.s8 %v1283
    %v1285 = vlaneseq
    %v1286 = vshrl.u32 %v1285, 7
    %v1287 = vsub.s32 %v1284, %v1286
    %v1288 = vrot.slane %v1272, %v1287
    %v1290 = vunpack.c.l.s4 1966171168
    %v1291 = vunpack.c.0.s8 %v1290
    %v1292 = vlaneseq
    %v1293 = vshrl.u32 %v1292, 7
    %v1294 = vsub.s32 %v1291, %v1293
    %v1295 = vrot.slane %v1273, %v1294
    %v1297 = vunpack.c.l.s4 1966171168
    %v1298 = vunpack.c.0.s8 %v1297
    %v1299 = vlaneseq
    %v1300 = vshrl.u32 %v1299, 7
    %v1301 = vsub.s32 %v1298, %v1300
    %v1302 = vrot.slane %v1274, %v1301
    %v1303 = vcombine.high %v1281, %v1281
    %v1304 = vcombine.high %v1288, %v1288
    %v1305 = vcombine.high %v1295, %v1295
    %v1306 = vcombine.high %v1302, %v1302
    %v1307 = vcombine.high %v28, %v28
    %v1309 = vunpack.c.l.s4 1966171168
    %v1310 = vunpack.c.0.s8 %v1309
    %v1311 = vlaneseq
    %v1312 = vshrl.u32 %v1311, 7
    %v1313 = vsub.s32 %v1310, %v1312
    %v1314 = vrot.slane %v28, %v1313
    %v1316 = vunpack.c.l.s4 1966171168
    %v1317 = vunpack.c.0.s8 %v1316
    %v1318 = vlaneseq
    %v1319 = vshrl.u32 %v1318, 7
    %v1320 = vsub.s32 %v1317, %v1319
    %v1321 = vrot.slane %v1307, %v1320
    %v1322 = vcombine.high %v1314, %v1314
    %v1323 = vcombine.high %v1321, %v1321
    %v1325 = vunpack.c.l.s4 1966171168
    %v1326 = vunpack.c.0.s8 %v1325
    %v1327 = vlaneseq
    %v1328 = vshrl.u32 %v1327, 7
    %v1329 = vsub.s32 %v1326, %v1328
    %v1330 = vrot.slane %v1314, %v1329
    %v1332 = vunpack.c.l.s4 1966171168
    %v1333 = vunpack.c.0.s8 %v1332
    %v1334 = vlaneseq
    %v1335 = vshrl.u32 %v1334, 7
    %v1336 = vsub.s32 %v1333, %v1335
    %v1337 = vrot.slane %v1321, %v1336
    %v1339 = vunpack.c.l.s4 1966171168
    %v1340 = vunpack.c.0.s8 %v1339
    %v1341 = vlaneseq
    %v1342 = vshrl.u32 %v1341, 7
    %v1343 = vsub.s32 %v1340, %v1342
    %v1344 = vrot.slane %v1322, %v1343
    %v1346 = vunpack.c.l.s4 1966171168
    %v1347 = vunpack.c.0.s8 %v1346
    %v1348 = vlaneseq
    %v1349 = vshrl.u32 %v1348, 7
    %v1350 = vsub.s32 %v1347, %v1349
    %v1351 = vrot.slane %v1323, %v1350
    %v1352 = vcombine.high %v1330, %v1330
    %v1353 = vcombine.high %v1337, %v1337
    %v1354 = vcombine.high %v1344, %v1344
    %v1355 = vcombine.high %v1351, %v1351
    %v1356 = vcombine.high %v29, %v29
    %v1358 = vunpack.c.l.s4 1966171168
    %v1359 = vunpack.c.0.s8 %v1358
    %v1360 = vlaneseq
    %v1361 = vshrl.u32 %v1360, 7
    %v1362 = vsub.s32 %v1359, %v1361
    %v1363 = vrot.slane %v29, %v1362
    %v1365 = vunpack.c.l.s4 1966171168
    %v1366 = vunpack.c.0.s8 %v1365
    %v1367 = vlaneseq
    %v1368 = vshrl.u32 %v1367, 7
    %v1369 = vsub.s32 %v1366, %v1368
    %v1370 = vrot.slane %v1356, %v1369
    %v1371 = vcombine.high %v1363, %v1363
    %v1373 = vunpack.c.l.s4 1966171168
    %v1374 = vunpack.c.0.s8 %v1373
    %v1375 = vlaneseq
    %v1376 = vshrl.u32 %v1375, 7
    %v1377 = vsub.s32 %v1374, %v1376
    %v1378 = vrot.slane %v1363, %v1377
    %v1380 = vunpack.c.l.s4 1966171168
    %v1381 = vunpack.c.0.s8 %v1380
    %v1382 = vlaneseq
    %v1383 = vshrl.u32 %v1382, 7
    %v1384 = vsub.s32 %v1381, %v1383
    %v1385 = vrot.slane %v1370, %v1384
    %v1387 = vunpack.c.l.s4 1966171168
    %v1388 = vunpack.c.0.s8 %v1387
    %v1389 = vlaneseq
    %v1390 = vshrl.u32 %v1389, 7
    %v1391 = vsub.s32 %v1388, %v1390
    %v1392 = vrot.slane %v1371, %v1391
    %v1393 = vcombine.high %v1378, %v1378
    %v1394 = vcombine.high %v1392, %v1392
    %v2423 = vunpack.c.l.b16 %v30
    %v2424 = vunpack.c.l.b16 %v31
    %v2425 = vunpack.c.l.b16 %v32
    %v2426 = vunpack.c.l.b16 %v33
    %v2427 = vunpack.c.l.b16 %v34
    %v2428 = vunpack.c.l.b16 %v35
    %v2429 = vunpack.c.l.b16 %v36
    %v2430 = vunpack.c.l.b16 %v37
    %v2431 = vunpack.c.l.b16 %v38
    %v2432 = vunpack.c.l.b16 %v39
    %v2433 = vunpack.c.l.b16 %v40
    %v2434 = vunpack.c.l.b16 %v41
    %v2435 = vunpack.c.l.b16 %v42
    %v2436 = vunpack.c.l.b16 %v43
    %v2437 = vunpack.c.l.b16 %v44
    %v2438 = vunpack.c.l.b16 %v45
    %v2439 = vunpack.c.l.b16 %v46
    %v2440 = vunpack.c.l.b16 %v47
    %v2441 = vunpack.c.l.b16 %v48
    %v2442 = vunpack.c.l.b16 %v49
    %v2443 = vunpack.c.l.b16 %v50
    %v2444 = vunpack.c.l.b16 %v51
    %v2445 = vunpack.c.l.b16 %v52
    %v2446 = vunpack.c.l.b16 %v53
    %v2447 = vunpack.c.l.b16 %v54
    %v2448 = vunpack.c.l.b16 %v55
    %v2449 = vunpack.c.l.b16 %v56
    %v2450 = vunpack.c.l.b16 %v57
    %v2451 = vunpack.c.l.b16 %v58
    %v2452 = vunpack.c.l.b16 %v59
    %v2453 = vunpack.c.l.b16 %v60
    %v2454 = vunpack.c.l.b16 %v61
    %v2455 = vunpack.c.l.b16 %v62
    %v2456 = vunpack.c.l.b16 %v63
    %v2457 = vunpack.c.l.b16 %v64
    %v2458 = vunpack.c.l.b16 %v65
    %v2459 = vunpack.c.l.b16 %v66
    %v2460 = vunpack.c.l.b16 %v67
    %v2461 = vunpack.c.l.b16 %v68
    %v2462 = vunpack.c.l.b16 %v69
    %v2463 = vunpack.c.l.b16 %v70
    %v2464 = vunpack.c.l.b16 %v71
    %v2465 = vunpack.c.l.b16 %v72
    %v2466 = vunpack.c.l.b16 %v73
    %v2467 = vunpack.c.l.b16 %v74
    %v2468 = vunpack.c.l.b16 %v75
    %v2469 = vunpack.c.l.b16 %v76
    %v2470 = vunpack.c.l.b16 %v77
    %v2471 = vunpack.c.l.b16 %v78
    %v2472 = vunpack.c.l.b16 %v79
    %v2473 = vunpack.c.l.b16 %v80
    %v2474 = vunpack.c.l.b16 %v81
    %v2475 = vunpack.c.l.b16 %v82
    %v2476 = vunpack.c.l.b16 %v83
    %v2477 = vunpack.c.l.b16 %v84
    %v2478 = vunpack.c.l.b16 %v85
    %v2479 = vunpack.c.l.b16 %v86
    %v2480 = vunpack.c.l.b16 %v87
    %v2481 = vunpack.c.l.b16 %v88
    %v2482 = vunpack.c.l.b16 %v89
    %v2483 = vunpack.c.l.b16 %v90
    %v2484 = vunpack.c.l.b16 %v91
    %v2485 = vunpack.c.l.b16 %v92
    %v2486 = vunpack.c.l.b16 %v93
    %v2487 = vunpack.c.l.b16 %v94
    %v2488 = vunpack.c.l.b16 %v95
    %v2489 = vunpack.c.l.b16 %v96
    %v2490 = vunpack.c.l.b16 %v97
    %v2491 = vunpack.c.l.b16 %v98
    %v2492 = vunpack.c.l.b16 %v99
    %v2493 = vunpack.c.l.b16 %v100
    %v2494 = vunpack.c.l.b16 %v101
    %v2495 = vunpack.c.l.b16 %v102
    %v2496 = vunpack.c.l.b16 %v103
    %v2497 = vunpack.c.l.b16 %v104
    %v2498 = vunpack.c.l.b16 %v105
    %v2499 = vunpack.c.l.b16 %v106
    %v2500 = vunpack.c.l.b16 %v107
    %v2501 = vunpack.c.l.b16 %v108
    %v2502 = vunpack.c.l.b16 %v109
    %v2503 = vunpack.c.l.b16 %v110
    %v2504 = vunpack.c.l.b16 %v111
    %v2505 = vunpack.c.l.b16 %v112
    %v2506 = vunpack.c.l.b16 %v113
    %v2507 = vunpack.c.l.b16 %v114
    %v2508 = vunpack.c.l.b16 %v115
    %v2509 = vunpack.c.l.b16 %v116
    %v2510 = vunpack.c.l.b16 %v117
    %v2511 = vunpack.c.l.b16 %v118
    %v2512 = vunpack.c.l.b16 %v119
    %v2513 = vunpack.c.l.b16 %v120
    %v2514 = vunpack.c.l.b16 %v121
    %v2515 = vunpack.c.l.b16 %v122
    %v2516 = vunpack.c.l.b16 %v123
    %v2517 = vunpack.c.l.b16 %v124
    %v2518 = vunpack.c.l.b16 %v125
    %v2519 = vunpack.c.l.b16 %v126
    %v2520 = vunpack.c.l.b16 %v127
    %v2521 = vunpack.c.l.b16 %v128
    %v2522 = vunpack.c.l.b16 %v129
    %v2523 = vunpack.c.l.b16 %v130
    %v2524 = vunpack.c.l.b16 %v131
    %v2525 = vunpack.c.l.b16 %v132
    %v2526 = vunpack.c.l.b16 %v133
    %v2527 = vunpack.c.l.b16 %v134
    %v2528 = vunpack.c.l.b16 %v135
    %v2529 = vunpack.c.l.b16 %v136
    %v2530 = vunpack.c.l.b16 %v137
    %v2531 = vunpack.c.l.b16 %v138
    %v2532 = vunpack.c.l.b16 %v139
    %v2533 = vunpack.c.l.b16 %v140
    %v2534 = vunpack.c.l.b16 %v141
    %v2535 = vunpack.c.l.b16 %v142
    %v2536 = vunpack.c.l.b16 %v143
    %v2537 = vunpack.c.l.b16 %v144
    %v2538 = vunpack.c.l.b16 %v145
    %v2539 = vunpack.c.l.b16 %v146
    %v2540 = vunpack.c.l.b16 %v147
    %v2541 = vunpack.c.l.b16 %v148
    %v2542 = vunpack.c.l.b16 %v149
    %v2543 = vunpack.c.l.b16 %v150
    %v2544 = vunpack.c.l.b16 %v151
    %v2545 = vunpack.c.l.b16 %v152
    %v2546 = vunpack.c.l.b16 %v153
    %v2547 = vunpack.c.l.b16 %v154
    %v2548 = vunpack.c.l.b16 %v155
    %v2549 = vunpack.c.l.b16 %v156
    %v2550 = vunpack.c.l.b16 %v157
    %v2551 = vunpack.c.l.b16 %v158
    %v2552 = vunpack.c.l.b16 %v159
    %v2553 = vunpack.c.l.b16 %v160
    %v2554 = vunpack.c.l.b16 %v161
    %v2555 = vunpack.c.l.b16 %v162
    %v2556 = vunpack.c.l.b16 %v163
    %v2557 = vunpack.c.l.b16 %v164
    %v2558 = vunpack.c.l.b16 %v165
    %v2559 = vunpack.c.l.b16 %v166
    %v2560 = vunpack.c.l.b16 %v167
    %v2561 = vunpack.c.l.b16 %v168
    %v2562 = vunpack.c.l.b16 %v169
    %v2563 = vunpack.c.l.b16 %v170
    %v2564 = vunpack.c.l.b16 %v171
    %v2565 = vunpack.c.l.b16 %v172
    %v2566 = vunpack.c.l.b16 %v173
    %v2567 = vunpack.c.l.b16 %v174
    %v2568 = vunpack.c.l.b16 %v175
    %v2569 = vunpack.c.l.b16 %v176
    %v2570 = vunpack.c.l.b16 %v177
    %v2571 = vunpack.c.l.b16 %v178
    %v2572 = vunpack.c.l.b16 %v179
    %v2573 = vunpack.c.l.b16 %v180
    %v2574 = vunpack.c.l.b16 %v181
    %v2575 = vunpack.c.l.b16 %v182
    %v2576 = vunpack.c.l.b16 %v183
    %v2577 = vunpack.c.l.b16 %v184
    %v2578 = vunpack.c.l.b16 %v185
    %v2579 = vunpack.c.l.b16 %v186
    %v2580 = vunpack.c.l.b16 %v187
    %v2581 = vunpack.c.l.b16 %v188
    %v2582 = vunpack.c.l.b16 %v189
    %v2583 = vunpack.c.l.b16 %v190
    %v2584 = vunpack.c.l.b16 %v191
    %v2585 = vunpack.c.l.b16 %v192
    %v2586 = vunpack.c.l.b16 %v193
    %v2587 = vunpack.c.l.b16 %v194
    %v2588 = vunpack.c.l.b16 %v195
    %v2589 = vunpack.c.l.b16 %v196
    %v2590 = vunpack.c.l.b16 %v197
    %v2591 = vunpack.c.l.b16 %v198
    %v2592 = vunpack.c.l.b16 %v199
    %v2593 = vunpack.c.l.b16 %v200
    %v2594 = vunpack.c.l.b16 %v201
    %v2595 = vunpack.c.l.b16 %v202
    %v2596 = vunpack.c.l.b16 %v203
    %v2597 = vunpack.c.l.b16 %v204
    %v2598 = vunpack.c.l.b16 %v205
    %v2599 = vunpack.c.l.b16 %v206
    %v2600 = vunpack.c.l.b16 %v207
    %v2601 = vunpack.c.l.b16 %v208
    %v2602 = vunpack.c.l.b16 %v209
    %v2603 = vunpack.c.l.b16 %v210
    %v2604 = vunpack.c.l.b16 %v211
    %v2605 = vunpack.c.l.b16 %v212
    %v2606 = vunpack.c.l.b16 %v213
    %v2607 = vunpack.c.l.b16 %v214
    %v2608 = vunpack.c.l.b16 %v215
    %v2609 = vunpack.c.l.b16 %v216
    %v2610 = vunpack.c.l.b16 %v217
    %v2611 = vunpack.c.l.b16 %v218
    %v2612 = vunpack.c.l.b16 %v219
    %v2613 = vunpack.c.l.b16 %v220
    %v2614 = vunpack.c.l.b16 %v221
    %v2615 = vunpack.c.l.b16 %v222
    %v2616 = vunpack.c.l.b16 %v223
    %v2617 = vunpack.c.l.b16 %v224
    %v2618 = vunpack.c.l.b16 %v225
    %v2619 = vunpack.c.l.b16 %v226
    %v2620 = vunpack.c.l.b16 %v227
    %v2621 = vunpack.c.l.b16 %v228
    %v2622 = vunpack.c.l.b16 %v229
    %v2623 = vunpack.c.l.b16 %v230
    %v2624 = vunpack.c.l.b16 %v231
    %v2625 = vunpack.c.l.b16 %v232
    %v2626 = vunpack.c.l.b16 %v233
    %v2627 = vunpack.c.l.b16 %v234
    %v2628 = vunpack.c.l.b16 %v235
    %v2629 = vunpack.c.l.b16 %v236
    %v2630 = vunpack.c.l.b16 %v237
    %v2631 = vunpack.c.l.b16 %v238
    %v2632 = vunpack.c.l.b16 %v239
    %v2633 = vunpack.c.l.b16 %v240
    %v2634 = vunpack.c.l.b16 %v241
    %v2635 = vunpack.c.l.b16 %v242
    %v2636 = vunpack.c.l.b16 %v243
    %v2637 = vunpack.c.l.b16 %v244
    %v2638 = vunpack.c.l.b16 %v245
    %v2639 = vunpack.c.l.b16 %v246
    %v2640 = vunpack.c.l.b16 %v247
    %v2641 = vunpack.c.l.b16 %v248
    %v2642 = vunpack.c.l.b16 %v249
    %v2643 = vunpack.c.l.b16 %v250
    %v2644 = vunpack.c.l.b16 %v251
    %v2645 = vunpack.c.l.b16 %v252
    %v2646 = vunpack.c.l.b16 %v253
    %v2647 = vunpack.c.l.b16 %v254
    %v2648 = vunpack.c.l.b16 %v255
    %v2649 = vunpack.c.l.b16 %v256
    %v2650 = vunpack.c.l.b16 %v257
    %v2651 = vunpack.c.l.b16 %v258
    %v2652 = vunpack.c.l.b16 %v259
    %v2653 = vunpack.c.l.b16 %v260
    %v2654 = vunpack.c.l.b16 %v261
    %v2655 = vunpack.c.l.b16 %v262
    %v2656 = vunpack.c.l.b16 %v263
    %v2657 = vunpack.c.l.b16 %v264
    %v2658 = vunpack.c.l.b16 %v265
    %v2659 = vunpack.c.l.b16 %v266
    %v2660 = vunpack.c.l.b16 %v267
    %v2661 = vunpack.c.l.b16 %v268
    %v2662 = vunpack.c.l.b16 %v269
    %v2663 = vunpack.c.l.b16 %v270
    %v2664 = vunpack.c.l.b16 %v271
    %v2665 = vunpack.c.l.b16 %v272
    %v2666 = vunpack.c.l.b16 %v273
    %v2667 = vunpack.c.l.b16 %v274
    %v2668 = vunpack.c.l.b16 %v275
    %v2669 = vunpack.c.l.b16 %v276
    %v2670 = vunpack.c.l.b16 %v277
    %v2671 = vunpack.c.l.b16 %v278
    %v2672 = vunpack.c.l.b16 %v279
    %v2673 = vunpack.c.l.b16 %v280
    %v2674 = vunpack.c.l.b16 %v281
    %v2675 = vunpack.c.l.b16 %v282
    %v2676 = vunpack.c.l.b16 %v283
    %v2677 = vunpack.c.l.b16 %v284
    %v2678 = vunpack.c.l.b16 %v285
    %v2679 = vunpack.c.l.b16 %v286
    %v2680 = vunpack.c.l.b16 %v287
    %v2681 = vunpack.c.l.b16 %v288
    %v2682 = vunpack.c.l.b16 %v289
    %v2683 = vunpack.c.l.b16 %v290
    %v2684 = vunpack.c.l.b16 %v291
    %v2685 = vunpack.c.l.b16 %v292
    %v2686 = vunpack.c.l.b16 %v293
    %v2687 = vunpack.c.l.b16 %v294
    %v2688 = vunpack.c.l.b16 %v295
    %v2689 = vunpack.c.l.b16 %v296
    %v2690 = vunpack.c.l.b16 %v297
    %v2691 = vunpack.c.l.b16 %v298
    %v2692 = vunpack.c.l.b16 %v299
    %v2693 = vunpack.c.l.b16 %v300
    %v2694 = vunpack.c.l.b16 %v301
    %v2695 = vunpack.c.l.b16 %v302
    %v2696 = vunpack.c.l.b16 %v303
    %v2697 = vunpack.c.l.b16 %v304
    %v2698 = vunpack.c.l.b16 %v305
    %v2699 = vunpack.c.l.b16 %v306
    %v2700 = vunpack.c.l.b16 %v307
    %v2701 = vunpack.c.l.b16 %v308
    %v2702 = vunpack.c.l.b16 %v309
    %v2703 = vunpack.c.l.b16 %v310
    %v2704 = vunpack.c.l.b16 %v311
    %v2705 = vunpack.c.l.b16 %v312
    %v2706 = vunpack.c.l.b16 %v313
    %v2707 = vunpack.c.l.b16 %v314
    %v2708 = vunpack.c.l.b16 %v315
    %v2709 = vunpack.c.l.b16 %v316
    %v2710 = vunpack.c.l.b16 %v317
    %v2711 = vunpack.c.l.b16 %v318
    %v2712 = vunpack.c.l.b16 %v319
    %v2713 = vunpack.c.l.b16 %v320
    %v2714 = vunpack.c.l.b16 %v321
    %v2715 = vunpack.c.l.b16 %v322
    %v2716 = vunpack.c.l.b16 %v323
    %v2717 = vunpack.c.l.b16 %v324
    %v2718 = vunpack.c.l.b16 %v325
    %v2719 = vunpack.c.l.b16 %v326
    %v2720 = vunpack.c.l.b16 %v327
    %v2721 = vunpack.c.l.b16 %v328
    %v2722 = vunpack.c.l.b16 %v329
    %v2723 = vunpack.c.l.b16 %v330
    %v2724 = vunpack.c.l.b16 %v331
    %v2725 = vunpack.c.l.b16 %v332
    %v2726 = vunpack.c.l.b16 %v333
    %v2727 = vunpack.c.l.b16 %v334
    %v2728 = vunpack.c.l.b16 %v335
    %v2729 = vunpack.c.l.b16 %v336
    %v2730 = vunpack.c.l.b16 %v337
    %v2731 = vunpack.c.l.b16 %v338
    %v2732 = vunpack.c.l.b16 %v339
    %v2733 = vunpack.c.l.b16 %v340
    %v2734 = vunpack.c.l.b16 %v341
    %v2735 = vunpack.c.l.b16 %v342
    %v2736 = vunpack.c.l.b16 %v343
    %v2737 = vunpack.c.l.b16 %v344
    %v2738 = vunpack.c.l.b16 %v345
    %v2739 = vunpack.c.l.b16 %v346
    %v2740 = vunpack.c.l.b16 %v347
    %v2741 = vunpack.c.l.b16 %v348
    %v2742 = vunpack.c.l.b16 %v349
    %v2743 = vunpack.c.l.b16 %v350
    %v2744 = vunpack.c.l.b16 %v351
    %v2745 = vunpack.c.l.b16 %v352
    %v2746 = vunpack.c.l.b16 %v353
    %v2747 = vunpack.c.l.b16 %v354
    %v2748 = vunpack.c.l.b16 %v355
    %v2749 = vunpack.c.l.b16 %v356
    %v2750 = vunpack.c.l.b16 %v357
    %v2751 = vunpack.c.l.b16 %v358
    %v2752 = vunpack.c.l.b16 %v359
    %v2753 = vunpack.c.l.b16 %v360
    %v2754 = vunpack.c.l.b16 %v361
    %v2755 = vunpack.c.l.b16 %v362
    %v2756 = vunpack.c.l.b16 %v363
    %v2757 = vunpack.c.l.b16 %v364
    %v2758 = vunpack.c.l.b16 %v365
    %v2759 = vunpack.c.l.b16 %v366
    %v2760 = vunpack.c.l.b16 %v367
    %v2761 = vunpack.c.l.b16 %v368
    %v2762 = vunpack.c.l.b16 %v369
    %v2763 = vunpack.c.l.b16 %v370
    %v2764 = vunpack.c.l.b16 %v371
    %v2765 = vunpack.c.l.b16 %v372
    %v2766 = vunpack.c.l.b16 %v373
    %v2767 = vunpack.c.l.b16 %v374
    %v2768 = vunpack.c.l.b16 %v375
    %v2769 = vunpack.c.l.b16 %v376
    %v2770 = vunpack.c.l.b16 %v377
    %v2771 = vunpack.c.l.b16 %v378
    %v2772 = vunpack.c.l.b16 %v379
    %v2773 = vunpack.c.l.b16 %v380
    %v2774 = vunpack.c.l.b16 %v381
    %v2775 = vunpack.c.l.b16 %v382
    %v2776 = vunpack.c.l.b16 %v383
    %v2777 = vunpack.c.l.b16 %v384
    %v2778 = vunpack.c.l.b16 %v385
    %v2779 = vunpack.c.l.b16 %v386
    %v2780 = vunpack.c.l.b16 %v387
    %v2781 = vunpack.c.l.b16 %v388
    %v2782 = vunpack.c.l.b16 %v389
    %v2783 = vunpack.c.l.b16 %v390
    %v2784 = vunpack.c.l.b16 %v391
    %v2785 = vunpack.c.l.b16 %v392
    %v2786 = vunpack.c.l.b16 %v393
    %v2787 = vunpack.c.l.b16 %v394
    %v2788 = vunpack.c.l.b16 %v395
    %v2789 = vunpack.c.l.b16 %v396
    %v2790 = vunpack.c.l.b16 %v397
    %v2791 = vunpack.c.l.b16 %v398
    %v2792 = vunpack.c.l.b16 %v399
    %v2793 = vunpack.c.l.b16 %v400
    %v2794 = vunpack.c.l.b16 %v401
    %v2795 = vunpack.c.l.b16 %v402
    %v2796 = vunpack.c.l.b16 %v403
    %v2797 = vunpack.c.l.b16 %v404
    %v2798 = vunpack.c.l.b16 %v405
    %v2799 = vunpack.c.l.b16 %v406
    %v2800 = vunpack.c.l.b16 %v407
    %v2801 = vunpack.c.l.b16 %v408
    %v2802 = vunpack.c.l.b16 %v409
    %v2803 = vunpack.c.l.b16 %v410
    %v2804 = vunpack.c.l.b16 %v411
    %v2805 = vunpack.c.l.b16 %v412
    %v2806 = vunpack.c.l.b16 %v413
    %v2807 = vunpack.c.l.b16 %v414
    %v2808 = vunpack.c.l.b16 %v415
    %v2809 = vunpack.c.l.b16 %v416
    %v2810 = vunpack.c.l.b16 %v417
    %v2811 = vunpack.c.l.b16 %v418
    %v2812 = vunpack.c.l.b16 %v419
    %v2813 = vunpack.c.l.b16 %v420
    %v2814 = vunpack.c.l.b16 %v421
    %v2815 = vunpack.c.l.b16 %v422
    %v2816 = vunpack.c.l.b16 %v423
    %v2817 = vunpack.c.l.b16 %v424
    %v2818 = vunpack.c.l.b16 %v425
    %v2819 = vunpack.c.l.b16 %v426
    %v2820 = vunpack.c.l.b16 %v427
    %v2821 = vunpack.c.l.b16 %v428
    %v2822 = vunpack.c.l.b16 %v429
    %v2823 = vunpack.c.l.b16 %v430
    %v2824 = vunpack.c.l.b16 %v431
    %v2825 = vunpack.c.l.b16 %v432
    %v2826 = vunpack.c.l.b16 %v433
    %v2827 = vunpack.c.l.b16 %v434
    %v2828 = vunpack.c.l.b16 %v435
    %v2829 = vunpack.c.l.b16 %v436
    %v2830 = vunpack.c.l.b16 %v437
    %v2831 = vunpack.c.l.b16 %v438
    %v2832 = vunpack.c.l.b16 %v439
    %v2833 = vunpack.c.l.b16 %v440
    %v2834 = vunpack.c.l.b16 %v441
    %v2835 = vunpack.c.l.b16 %v442
    %v2836 = vunpack.c.l.b16 %v443
    %v2837 = vunpack.c.l.b16 %v444
    %v2838 = vunpack.c.l.b16 %v445
    %v2839 = vunpack.c.l.b16 %v446
    %v2840 = vunpack.c.l.b16 %v447
    %v2841 = vunpack.c.l.b16 %v448
    %v2842 = vunpack.c.l.b16 %v449
    %v2843 = vunpack.c.l.b16 %v450
    %v2844 = vunpack.c.l.b16 %v451
    %v2845 = vunpack.c.l.b16 %v452
    %v2846 = vunpack.c.l.b16 %v453
    %v2847 = vunpack.c.l.b16 %v454
    %v2848 = vunpack.c.l.b16 %v455
    %v2849 = vunpack.c.l.b16 %v456
    %v2850 = vunpack.c.l.b16 %v457
    %v2851 = vunpack.c.l.b16 %v458
    %v2852 = vunpack.c.l.b16 %v459
    %v2853 = vunpack.c.l.b16 %v460
    %v2854 = vunpack.c.l.b16 %v461
    %v2855 = vunpack.c.l.b16 %v462
    %v2856 = vunpack.c.l.b16 %v463
    %v2857 = vunpack.c.l.b16 %v464
    %v2858 = vunpack.c.l.b16 %v465
    %v2859 = vunpack.c.l.b16 %v466
    %v2860 = vunpack.c.l.b16 %v467
    %v2861 = vunpack.c.l.b16 %v468
    %v2862 = vunpack.c.l.b16 %v469
    %v2863 = vunpack.c.l.b16 %v470
    %v2864 = vunpack.c.l.b16 %v471
    %v2865 = vunpack.c.l.b16 %v472
    %v2866 = vunpack.c.l.b16 %v473
    %v2867 = vunpack.c.l.b16 %v474
    %v2868 = vunpack.c.l.b16 %v475
    %v2869 = vunpack.c.l.b16 %v476
    %v2870 = vunpack.c.l.b16 %v477
    %v2871 = vunpack.c.l.b16 %v478
    %v2872 = vunpack.c.l.b16 %v479
    %v2873 = vunpack.c.l.b16 %v480
    %v2874 = vunpack.c.l.b16 %v481
    %v2875 = vunpack.c.l.b16 %v482
    %v2876 = vunpack.c.l.b16 %v483
    %v2877 = vunpack.c.l.b16 %v484
    %v2878 = vunpack.c.l.b16 %v485
    %v2879 = vunpack.c.l.b16 %v486
    %v2880 = vunpack.c.l.b16 %v487
    %v2881 = vunpack.c.l.b16 %v488
    %v2882 = vunpack.c.l.b16 %v489
    %v2883 = vunpack.c.l.b16 %v490
    %v2884 = vunpack.c.l.b16 %v491
    %v2885 = vunpack.c.l.b16 %v492
    %v2886 = vunpack.c.l.b16 %v493
    %v2887 = vunpack.c.l.b16 %v494
    %v2888 = vunpack.c.l.b16 %v495
    %v2889 = vunpack.c.l.b16 %v496
    %v2890 = vunpack.c.l.b16 %v497
    %v2891 = vunpack.c.l.b16 %v498
    %v2892 = vunpack.c.l.b16 %v499
    %v2893 = vunpack.c.l.b16 %v500
    %v2894 = vunpack.c.l.b16 %v501
    %v2895 = vunpack.c.l.b16 %v502
    %v2896 = vunpack.c.l.b16 %v503
    %v2897 = vunpack.c.l.b16 %v504
    %v2898 = vunpack.c.l.b16 %v505
    %v2899 = vunpack.c.l.b16 %v506
    %v2900 = vunpack.c.l.b16 %v507
    %v2901 = vunpack.c.l.b16 %v508
    %v2902 = vunpack.c.l.b16 %v509
    %v2903 = vunpack.c.l.b16 %v510
    %v2904 = vunpack.c.l.b16 %v511
    %v2905 = vunpack.c.l.b16 %v512
    %v2906 = vunpack.c.l.b16 %v513
    %v2907 = vunpack.c.l.b16 %v514
    %v2908 = vunpack.c.l.b16 %v515
    %v2909 = vunpack.c.l.b16 %v516
    %v2910 = vunpack.c.l.b16 %v517
    %v2911 = vunpack.c.l.b16 %v518
    %v2912 = vunpack.c.l.b16 %v519
    %v2913 = vunpack.c.l.b16 %v520
    %v2914 = vunpack.c.l.b16 %v521
    %v2915 = vunpack.c.l.b16 %v522
    %v2916 = vunpack.c.l.b16 %v523
    %v2917 = vunpack.c.l.b16 %v524
    %v2918 = vunpack.c.l.b16 %v525
    %v2919 = vunpack.c.l.b16 %v526
    %v2920 = vunpack.c.l.b16 %v527
    %v2921 = vunpack.c.l.b16 %v528
    %v2922 = vunpack.c.l.b16 %v529
    %v2923 = vunpack.c.l.b16 %v530
    %v2924 = vunpack.c.l.b16 %v531
    %v2925 = vunpack.c.l.b16 %v532
    %v2926 = vunpack.c.l.b16 %v533
    %v2927 = vunpack.c.l.b16 %v534
    %v2928 = vunpack.c.l.b16 %v535
    %v2929 = vunpack.c.l.b16 %v536
    %v2930 = vunpack.c.l.b16 %v537
    %v2931 = vunpack.c.l.b16 %v538
    %v2932 = vunpack.c.l.b16 %v539
    %v2933 = vunpack.c.l.b16 %v540
    %v2934 = vunpack.c.l.b16 %v541
    %v2935 = vunpack.c.l.b16 %v542
    %v2936 = vunpack.c.l.b16 %v543
    %v2937 = vunpack.c.l.b16 %v544
    %v2938 = vunpack.c.l.b16 %v545
    %v2939 = vunpack.c.l.b16 %v546
    %v2940 = vunpack.c.l.b16 %v547
    %v2941 = vunpack.c.l.b16 %v548
    %v2942 = vunpack.c.l.b16 %v549
    %v2943 = vunpack.c.l.b16 %v550
    %v2944 = vunpack.c.l.b16 %v551
    %v2945 = vunpack.c.l.b16 %v552
    %v2946 = vunpack.c.l.b16 %v553
    %v2947 = vunpack.c.l.b16 %v554
    %v2948 = vunpack.c.l.b16 %v555
    %v2949 = vunpack.c.l.b16 %v556
    %v2950 = vunpack.c.l.b16 %v557
    %v2951 = vunpack.c.l.b16 %v558
    %v2952 = vunpack.c.l.b16 %v559
    %v2953 = vunpack.c.l.b16 %v560
    %v2954 = vunpack.c.l.b16 %v561
    %v2955 = vunpack.c.l.b16 %v562
    %v2956 = vunpack.c.l.b16 %v563
    %v2957 = vunpack.c.l.b16 %v564
    %v2958 = vunpack.c.l.b16 %v565
    %v2959 = vunpack.c.l.b16 %v566
    %v2960 = vunpack.c.l.b16 %v567
    %v2961 = vunpack.c.l.b16 %v568
    %v2962 = vunpack.c.l.b16 %v569
    %v2963 = vunpack.c.l.b16 %v570
    %v2964 = vunpack.c.l.b16 %v571
    %v2965 = vunpack.c.l.b16 %v572
    %v2966 = vunpack.c.l.b16 %v573
    %v2967 = vunpack.c.l.b16 %v574
    %v2968 = vunpack.c.l.b16 %v575
    %v2969 = vunpack.c.l.b16 %v576
    %v2970 = vunpack.c.l.b16 %v577
    %v2971 = vunpack.c.l.b16 %v578
    %v2972 = vunpack.c.l.b16 %v579
    %v2973 = vunpack.c.l.b16 %v580
    %v2974 = vunpack.c.l.b16 %v581
    %v2975 = vunpack.c.l.b16 %v582
    %v2976 = vunpack.c.l.b16 %v583
    %v2977 = vunpack.c.l.b16 %v584
    %v2978 = vunpack.c.l.b16 %v585
    %v2979 = vunpack.c.l.b16 %v586
    %v2980 = vunpack.c.l.b16 %v587
    %v2981 = vunpack.c.l.b16 %v588
    %v2982 = vunpack.c.l.b16 %v589
    %v2983 = vunpack.c.l.b16 %v590
    %v2984 = vunpack.c.l.b16 %v591
    %v2985 = vunpack.c.l.b16 %v592
    %v2986 = vunpack.c.l.b16 %v593
    %v2987 = vunpack.c.l.b16 %v594
    %v2988 = vunpack.c.l.b16 %v595
    %v2989 = vunpack.c.l.b16 %v596
    %v2990 = vunpack.c.l.b16 %v597
    %v2991 = vunpack.c.l.b16 %v598
    %v2992 = vunpack.c.l.b16 %v599
    %v2993 = vunpack.c.l.b16 %v600
    %v2994 = vunpack.c.l.b16 %v601
    %v2995 = vunpack.c.l.b16 %v602
    %v2996 = vunpack.c.l.b16 %v603
    %v2997 = vunpack.c.l.b16 %v604
    %v2998 = vunpack.c.l.b16 %v605
    %v2999 = vunpack.c.l.b16 %v606
    %v3000 = vunpack.c.l.b16 %v607
    %v3001 = vunpack.c.l.b16 %v608
    %v3002 = vunpack.c.l.b16 %v609
    %v3003 = vunpack.c.l.b16 %v610
    %v3004 = vunpack.c.l.b16 %v611
    %v3005 = vunpack.c.l.b16 %v612
    %v3006 = vunpack.c.l.b16 %v613
    %v3007 = vunpack.c.l.b16 %v614
    %v3008 = vunpack.c.l.b16 %v615
    %v3009 = vunpack.c.l.b16 %v616
    %v3010 = vunpack.c.l.b16 %v617
    %v3011 = vunpack.c.l.b16 %v618
    %v3012 = vunpack.c.l.b16 %v619
    %v3013 = vunpack.c.l.b16 %v620
    %v3014 = vunpack.c.l.b16 %v621
    %v3015 = vunpack.c.l.b16 %v622
    %v3016 = vunpack.c.l.b16 %v623
    %v3017 = vunpack.c.l.b16 %v624
    %v3018 = vunpack.c.l.b16 %v625
    %v3019 = vunpack.c.l.b16 %v626
    %v3020 = vunpack.c.l.b16 %v627
    %v3021 = vunpack.c.l.b16 %v628
    %v3022 = vunpack.c.l.b16 %v629
    %v3023 = vunpack.c.l.b16 %v630
    %v3024 = vunpack.c.l.b16 %v631
    %v3025 = vunpack.c.l.b16 %v632
    %v3026 = vunpack.c.l.b16 %v633
    %v3027 = vunpack.c.l.b16 %v634
    %v3028 = vunpack.c.l.b16 %v635
    %v3029 = vunpack.c.l.b16 %v636
    %v3030 = vunpack.c.l.b16 %v637
    %v3031 = vunpack.c.l.b16 %v638
    %v3032 = vunpack.c.l.b16 %v639
    %v3033 = vunpack.c.l.b16 %v640
    %v3034 = vunpack.c.l.b16 %v641
    %v3035 = vunpack.c.l.b16 %v642
    %v3036 = vunpack.c.l.b16 %v643
    %v3037 = vunpack.c.l.b16 %v644
    %v3038 = vunpack.c.l.b16 %v645
    %v3039 = vunpack.c.l.b16 %v646
    %v3040 = vunpack.c.l.b16 %v647
    %v3041 = vunpack.c.l.b16 %v648
    %v3042 = vunpack.c.l.b16 %v649
    %v3043 = vunpack.c.l.b16 %v650
    %v3044 = vunpack.c.l.b16 %v651
    %v3045 = vunpack.c.l.b16 %v652
    %v3046 = vunpack.c.l.b16 %v653
    %v3047 = vunpack.c.l.b16 %v654
    %v3048 = vunpack.c.l.b16 %v655
    %v3049 = vunpack.c.l.b16 %v656
    %v3050 = vunpack.c.l.b16 %v657
    %v3051 = vunpack.c.l.b16 %v658
    %v3052 = vunpack.c.l.b16 %v659
    %v3053 = vunpack.c.l.b16 %v660
    %v3054 = vunpack.c.l.b16 %v661
    %v3055 = vunpack.c.l.b16 %v662
    %v3056 = vunpack.c.l.b16 %v663
    %v3057 = vunpack.c.l.b16 %v664
    %v3058 = vunpack.c.l.b16 %v665
    %v3059 = vunpack.c.l.b16 %v666
    %v3060 = vunpack.c.l.b16 %v667
    %v3061 = vunpack.c.l.b16 %v668
    %v3062 = vunpack.c.l.b16 %v669
    %v3063 = vunpack.c.l.b16 %v670
    %v3064 = vunpack.c.l.b16 %v671
    %v3065 = vunpack.c.l.b16 %v672
    %v3066 = vunpack.c.l.b16 %v673
    %v3067 = vunpack.c.l.b16 %v674
    %v3068 = vunpack.c.l.b16 %v675
    %v3069 = vunpack.c.l.b16 %v676
    %v3070 = vunpack.c.l.b16 %v677
    %v3071 = vunpack.c.l.b16 %v678
    %v3072 = vunpack.c.l.b16 %v679
    %v3073 = vunpack.c.l.b16 %v680
    %v3074 = vunpack.c.l.b16 %v681
    %v3075 = vunpack.c.l.b16 %v682
    %v3076 = vunpack.c.l.b16 %v683
    %v3077 = vunpack.c.l.b16 %v684
    %v3078 = vunpack.c.l.b16 %v685
    %v3079 = vunpack.c.l.b16 %v686
    %v3080 = vunpack.c.l.b16 %v687
    %v3081 = vunpack.c.l.b16 %v688
    %v3082 = vunpack.c.l.b16 %v689
    %v3083 = vunpack.c.l.b16 %v690
    %v3084 = vunpack.c.l.b16 %v691
    %v3085 = vunpack.c.l.b16 %v692
    %v3086 = vunpack.c.l.b16 %v693
    %v3087 = vunpack.c.l.b16 %v694
    %v3088 = vunpack.c.l.b16 %v695
    %v3089 = vunpack.c.l.b16 %v696
    %v3090 = vunpack.c.l.b16 %v697
    %v3091 = vunpack.c.l.b16 %v698
    %v3092 = vunpack.c.l.b16 %v699
    %v3093 = vunpack.c.l.b16 %v700
    %v3094 = vunpack.c.l.b16 %v701
    %v3095 = vunpack.c.l.b16 %v702
    %v3096 = vunpack.c.l.b16 %v703
    %v3097 = vunpack.c.l.b16 %v704
    %v3098 = vunpack.c.l.b16 %v705
    %v3099 = vunpack.c.l.b16 %v706
    %v3100 = vunpack.c.l.b16 %v707
    %v3101 = vunpack.c.l.b16 %v708
    %v3102 = vunpack.c.l.b16 %v709
    %v3103 = vunpack.c.l.b16 %v710
    %v3104 = vunpack.c.l.b16 %v711
    %v3105 = vunpack.c.l.b16 %v712
    %v3106 = vunpack.c.l.b16 %v713
    %v3107 = vunpack.c.l.b16 %v714
    %v3108 = vunpack.c.l.b16 %v715
    %v3109 = vunpack.c.l.b16 %v716
    %v3110 = vunpack.c.l.b16 %v717
    %v3111 = vunpack.c.l.b16 %v718
    %v3112 = vunpack.c.l.b16 %v719
    %v3113 = vunpack.c.l.b16 %v720
    %v3114 = vunpack.c.l.b16 %v721
    %v3115 = vunpack.c.l.b16 %v722
    %v3116 = vunpack.c.l.b16 %v723
    %v3117 = vunpack.c.l.b16 %v724
    %v3118 = vunpack.c.l.b16 %v725
    %v3119 = vunpack.c.l.b16 %v726
    %v3120 = vunpack.c.l.b16 %v727
    %v3121 = vunpack.c.l.b16 %v728
    %v3122 = vunpack.c.l.b16 %v729
    %v3123 = vunpack.c.l.b16 %v730
    %v3124 = vunpack.c.l.b16 %v731
    %v3125 = vunpack.c.l.b16 %v732
    %v3126 = vunpack.c.l.b16 %v733
    %v3127 = vunpack.c.l.b16 %v734
    %v3128 = vunpack.c.l.b16 %v735
    %v3129 = vunpack.c.l.b16 %v736
    %v3130 = vunpack.c.l.b16 %v737
    %v3131 = vunpack.c.l.b16 %v738
    %v3132 = vunpack.c.l.b16 %v739
    %v3133 = vunpack.c.l.b16 %v740
    %v3134 = vunpack.c.l.b16 %v741
    %v3135 = vunpack.c.l.b16 %v742
    %v3136 = vunpack.c.l.b16 %v743
    %v3137 = vunpack.c.l.b16 %v744
    %v3138 = vunpack.c.l.b16 %v745
    %v3139 = vunpack.c.l.b16 %v746
    %v3140 = vunpack.c.l.b16 %v747
    %v3141 = vunpack.c.l.b16 %v748
    %v3142 = vunpack.c.l.b16 %v749
    %v3143 = vunpack.c.l.b16 %v750
    %v3144 = vunpack.c.l.b16 %v751
    %v3145 = vunpack.c.l.b16 %v752
    %v3146 = vunpack.c.l.b16 %v753
    %v3147 = vunpack.c.l.b16 %v754
    %v3148 = vunpack.c.l.b16 %v755
    %v3149 = vunpack.c.l.b16 %v756
    %v3150 = vunpack.c.l.b16 %v757
    %v3151 = vunpack.c.l.b16 %v758
    %v3152 = vunpack.c.l.b16 %v759
    %v3153 = vunpack.c.l.b16 %v760
    %v3154 = vunpack.c.l.b16 %v761
    %v3155 = vunpack.c.l.b16 %v762
    %v3156 = vunpack.c.l.b16 %v763
    %v3157 = vunpack.c.l.b16 %v764
    %v3158 = vunpack.c.l.b16 %v765
    %v3159 = vunpack.c.l.b16 %v766
    %v3160 = vunpack.c.l.b16 %v767
    %v3161 = vunpack.c.l.b16 %v768
    %v3162 = vunpack.c.l.b16 %v769
    %v3163 = vunpack.c.l.b16 %v770
    %v3164 = vunpack.c.l.b16 %v771
    %v3165 = vunpack.c.l.b16 %v772
    %v3166 = vunpack.c.l.b16 %v773
    %v3167 = vunpack.c.l.b16 %v774
    %v3168 = vunpack.c.l.b16 %v775
    %v3169 = vunpack.c.l.b16 %v776
    %v3170 = vunpack.c.l.b16 %v777
    %v3171 = vunpack.c.l.b16 %v778
    %v3172 = vunpack.c.l.b16 %v779
    %v3173 = vunpack.c.l.b16 %v780
    %v3174 = vunpack.c.l.b16 %v781
    %v3175 = vunpack.c.l.b16 %v782
    %v3176 = vunpack.c.l.b16 %v783
    %v3177 = vunpack.c.l.b16 %v784
    %v3178 = vunpack.c.l.b16 %v785
    %v3179 = vunpack.c.l.b16 %v786
    %v3180 = vunpack.c.l.b16 %v787
    %v3181 = vunpack.c.l.b16 %v788
    %v3182 = vunpack.c.l.b16 %v789
    %v3183 = vunpack.c.l.b16 %v790
    %v3184 = vunpack.c.l.b16 %v791
    %v3185 = vunpack.c.l.b16 %v792
    %v3186 = vunpack.c.l.b16 %v793
    %v3187 = vunpack.c.l.b16 %v794
    %v3188 = vunpack.c.l.b16 %v795
    %v3189 = vunpack.c.l.b16 %v796
    %v3190 = vunpack.c.l.b16 %v797
    %v3191 = vunpack.c.l.b16 %v798
    %v3192 = vunpack.c.l.b16 %v799
    %v3193 = vunpack.c.l.b16 %v800
    %v3194 = vunpack.c.l.b16 %v801
    %v3195 = vunpack.c.l.b16 %v802
    %v3196 = vunpack.c.l.b16 %v803
    %v3197 = vunpack.c.l.b16 %v804
    %v3198 = vunpack.c.l.b16 %v805
    %v3199 = vunpack.c.l.b16 %v806
    %v3200 = vunpack.c.l.b16 %v807
    %v3201 = vunpack.c.l.b16 %v808
    %v3202 = vunpack.c.l.b16 %v809
    %v3203 = vunpack.c.l.b16 %v810
    %v3204 = vunpack.c.l.b16 %v811
    %v3205 = vunpack.c.l.b16 %v812
    %v3206 = vunpack.c.l.b16 %v813
    %v3207 = vunpack.c.l.b16 %v814
    %v3208 = vunpack.c.l.b16 %v815
    %v3209 = vunpack.c.l.b16 %v816
    %v3210 = vunpack.c.l.b16 %v817
    %v3211 = vunpack.c.l.b16 %v818
    %v3212 = vunpack.c.l.b16 %v819
    %v3213 = vunpack.c.l.b16 %v820
    %v3214 = vunpack.c.l.b16 %v821
    %v3215 = vunpack.c.l.b16 %v822
    %v3216 = vunpack.c.l.b16 %v823
    %v3217 = vunpack.c.l.b16 %v824
    %v3218 = vunpack.c.l.b16 %v825
    %v3219 = vunpack.c.l.b16 %v826
    %v3220 = vunpack.c.l.b16 %v827
    %v3221 = vunpack.c.l.b16 %v828
    %v3222 = vunpack.c.l.b16 %v829
    %v3223 = vunpack.c.l.b16 %v830
    %v3224 = vunpack.c.l.b16 %v831
    %v3225 = vunpack.c.l.b16 %v832
    %v3226 = vunpack.c.l.b16 %v833
    %v3227 = vunpack.c.l.b16 %v834
    %v3228 = vunpack.c.l.b16 %v835
    %v3229 = vunpack.c.l.b16 %v836
    %v3230 = vunpack.c.l.b16 %v837
    %v3231 = vunpack.c.l.b16 %v838
    %v3232 = vunpack.c.l.b16 %v839
    %v3233 = vunpack.c.l.b16 %v840
    %v3234 = vunpack.c.l.b16 %v841
    %v3235 = vunpack.c.l.b16 %v842
    %v3236 = vunpack.c.l.b16 %v843
    %v3237 = vunpack.c.l.b16 %v844
    %v3238 = vunpack.c.l.b16 %v845
    %v3239 = vunpack.c.l.b16 %v846
    %v3240 = vunpack.c.l.b16 %v847
    %v3241 = vunpack.c.l.b16 %v848
    %v3242 = vunpack.c.l.b16 %v849
    %v3243 = vunpack.c.l.b16 %v850
    %v3244 = vunpack.c.l.b16 %v851
    %v3245 = vunpack.c.l.b16 %v852
    %v3246 = vunpack.c.l.b16 %v853
    %v3247 = vunpack.c.l.b16 %v854
    %v3248 = vunpack.c.l.b16 %v855
    %v3249 = vunpack.c.l.b16 %v856
    %v3250 = vunpack.c.l.b16 %v857
    %v3251 = vunpack.c.l.b16 %v858
    %v3252 = vunpack.c.l.b16 %v859
    %v3253 = vunpack.c.l.b16 %v860
    %v3254 = vunpack.c.l.b16 %v861
    %v3255 = vunpack.c.l.b16 %v862
    %v3256 = vunpack.c.l.b16 %v863
    %v3257 = vunpack.c.l.b16 %v864
    %v3258 = vunpack.c.l.b16 %v865
    %v3259 = vunpack.c.l.b16 %v866
    %v3260 = vunpack.c.l.b16 %v867
    %v3261 = vunpack.c.l.b16 %v868
    %v3262 = vunpack.c.l.b16 %v869
    %v3263 = vunpack.c.l.b16 %v870
    %v3264 = vunpack.c.l.b16 %v871
    %v3265 = vunpack.c.l.b16 %v872
    %v3266 = vunpack.c.l.b16 %v873
    %v3267 = vunpack.c.l.b16 %v874
    %v3268 = vunpack.c.l.b16 %v875
    %v3269 = vunpack.c.l.b16 %v876
    %v3270 = vunpack.c.l.b16 %v877
    %v3271 = vunpack.c.l.b16 %v878
    %v3272 = vunpack.c.l.b16 %v879
    %v3273 = vunpack.c.l.b16 %v880
    %v3274 = vunpack.c.l.b16 %v881
    %v3275 = vunpack.c.l.b16 %v882
    %v3276 = vunpack.c.l.b16 %v883
    %v3277 = vunpack.c.l.b16 %v884
    %v3278 = vunpack.c.l.b16 %v885
    %v3279 = vunpack.c.l.b16 %v886
    %v3280 = vunpack.c.l.b16 %v887
    %v3281 = vunpack.c.l.b16 %v888
    %v3282 = vunpack.c.l.b16 %v889
    %v3283 = vunpack.c.l.b16 %v890
    %v3284 = vunpack.c.l.b16 %v891
    %v3285 = vunpack.c.l.b16 %v892
    %v3286 = vunpack.c.l.b16 %v893
    %v3287 = vunpack.c.l.b16 %v894
    %v3288 = vunpack.c.l.b16 %v895
    %v3289 = vunpack.c.l.b16 %v896
    %v3290 = vunpack.c.l.b16 %v897
    %v3291 = vunpack.c.l.b16 %v898
    %v3292 = vunpack.c.l.b16 %v899
    %v3293 = vunpack.c.l.b16 %v900
    %v3294 = vunpack.c.l.b16 %v901
    %v3295 = vunpack.c.l.b16 %v902
    %v3296 = vunpack.c.l.b16 %v903
    %v3297 = vunpack.c.l.b16 %v904
    %v3298 = vunpack.c.l.b16 %v905
    %v3299 = vunpack.c.l.b16 %v906
    %v3300 = vunpack.c.l.b16 %v907
    %v3301 = vunpack.c.l.b16 %v908
    %v3302 = vunpack.c.l.b16 %v909
    %v3303 = vunpack.c.l.b16 %v910
    %v3304 = vunpack.c.l.b16 %v911
    %v3305 = vunpack.c.l.b16 %v912
    %v3306 = vunpack.c.l.b16 %v913
    %v3307 = vunpack.c.l.b16 %v914
    %v3308 = vunpack.c.l.b16 %v915
    %v3309 = vunpack.c.l.b16 %v916
    %v3310 = vunpack.c.l.b16 %v917
    %v3311 = vunpack.c.l.b16 %v918
    %v3312 = vunpack.c.l.b16 %v919
    %v3313 = vunpack.c.l.b16 %v920
    %v3314 = vunpack.c.l.b16 %v921
    %v3315 = vunpack.c.l.b16 %v922
    %v3316 = vunpack.c.l.b16 %v923
    %v3317 = vunpack.c.l.b16 %v924
    %v3318 = vunpack.c.l.b16 %v925
    %v3319 = vunpack.c.l.b16 %v926
    %v3320 = vunpack.c.l.b16 %v927
    %v3321 = vunpack.c.l.b16 %v928
    %v3322 = vunpack.c.l.b16 %v929
    %v3323 = vunpack.c.l.b16 %v930
    %v3324 = vunpack.c.l.b16 %v931
    %v3325 = vunpack.c.l.b16 %v932
    %v3326 = vunpack.c.l.b16 %v933
    %v3327 = vunpack.c.l.b16 %v934
    %v3328 = vunpack.c.l.b16 %v935
    %v3329 = vunpack.c.l.b16 %v936
    %v3330 = vunpack.c.l.b16 %v937
    %v3331 = vunpack.c.l.b16 %v938
    %v3332 = vunpack.c.l.b16 %v939
    %v3333 = vunpack.c.l.b16 %v940
    %v3334 = vunpack.c.l.b16 %v941
    %v3335 = vunpack.c.l.b16 %v942
    %v3336 = vunpack.c.l.b16 %v943
    %v3337 = vunpack.c.l.b16 %v944
    %v3338 = vunpack.c.l.b16 %v945
    %v3339 = vunpack.c.l.b16 %v946
    %v3340 = vunpack.c.l.b16 %v947
    %v3341 = vunpack.c.l.b16 %v948
    %v3342 = vunpack.c.l.b16 %v949
    %v3343 = vunpack.c.l.b16 %v950
    %v3344 = vunpack.c.l.b16 %v951
    %v3345 = vunpack.c.l.b16 %v952
    %v3346 = vunpack.c.l.b16 %v953
    %v3347 = vunpack.c.l.b16 %v954
    %v3348 = vunpack.c.l.b16 %v955
    %v3349 = vunpack.c.l.b16 %v956
    %v3350 = vunpack.c.l.b16 %v957
    %v3351 = vunpack.c.l.b16 %v958
    %v3352 = vunpack.c.l.b16 %v959
    %v3353 = vunpack.c.l.b16 %v960
    %v3354 = vunpack.c.l.b16 %v961
    %v3355 = vunpack.c.l.b16 %v962
    %v3356 = vunpack.c.l.b16 %v963
    %v3357 = vunpack.c.l.b16 %v964
    %v3358 = vunpack.c.l.b16 %v965
    %v3359 = vunpack.c.l.b16 %v966
    %v3360 = vunpack.c.l.b16 %v967
    %v3361 = vunpack.c.l.b16 %v968
    %v3362 = vunpack.c.l.b16 %v969
    %v3363 = vunpack.c.l.b16 %v970
    %v3364 = vunpack.c.l.b16 %v971
    %v3365 = vunpack.c.l.b16 %v972
    %v3366 = vunpack.c.l.b16 %v973
    %v3367 = vunpack.c.l.b16 %v974
    %v3368 = vunpack.c.l.b16 %v975
    %v3369 = vunpack.c.l.b16 %v976
    %v3370 = vunpack.c.l.b16 %v977
    %v3371 = vunpack.c.l.b16 %v978
    %v3372 = vunpack.c.l.b16 %v979
    %v3373 = vunpack.c.l.b16 %v980
    %v3374 = vunpack.c.l.b16 %v981
    %v3375 = vunpack.c.l.b16 %v982
    %v3376 = vunpack.c.l.b16 %v983
    %v3377 = vunpack.c.l.b16 %v984
    %v3378 = vunpack.c.l.b16 %v985
    %v3379 = vunpack.c.l.b16 %v986
    %v3380 = vunpack.c.l.b16 %v987
    %v3381 = vunpack.c.l.b16 %v988
    %v3382 = vunpack.c.l.b16 %v989
    %v3383 = vunpack.c.l.b16 %v990
    %v3384 = vunpack.c.l.b16 %v991
    %v3385 = vunpack.c.l.b16 %v992
    %v3386 = vunpack.c.l.b16 %v993
    %v3387 = vunpack.c.l.b16 %v994
    %v3388 = vunpack.c.l.b16 %v995
    %v3389 = vunpack.c.l.b16 %v996
    %v3390 = vunpack.c.l.b16 %v997
    %v3391 = vpack.c.b16 %v2424, %v2423
    %v3392 = vpack.c.b16 %v2426, %v2425
    %v3393 = vpack.c.b16 %v2428, %v2427
    %v3394 = vpack.c.b16 %v2430, %v2429
    %v3395 = vpack.c.b16 %v2432, %v2431
    %v3396 = vpack.c.b16 %v2434, %v2433
    %v3397 = vpack.c.b16 %v2436, %v2435
    %v3398 = vpack.c.b16 %v2438, %v2437
    %v3399 = vpack.c.b16 %v2440, %v2439
    %v3400 = vpack.c.b16 %v2442, %v2441
    %v3401 = vpack.c.b16 %v2444, %v2443
    %v3402 = vpack.c.b16 %v2446, %v2445
    %v3403 = vpack.c.b16 %v2448, %v2447
    %v3404 = vpack.c.b16 %v2450, %v2449
    %v3405 = vpack.c.b16 %v2452, %v2451
    %v3406 = vpack.c.b16 %v2454, %v2453
    %v3407 = vpack.c.b16 %v2456, %v2455
    %v3408 = vpack.c.b16 %v2458, %v2457
    %v3409 = vpack.c.b16 %v2460, %v2459
    %v3410 = vpack.c.b16 %v2462, %v2461
    %v3411 = vpack.c.b16 %v2464, %v2463
    %v3412 = vpack.c.b16 %v2466, %v2465
    %v3413 = vpack.c.b16 %v2468, %v2467
    %v3414 = vpack.c.b16 %v2470, %v2469
    %v3415 = vpack.c.b16 %v2472, %v2471
    %v3416 = vpack.c.b16 %v2474, %v2473
    %v3417 = vpack.c.b16 %v2476, %v2475
    %v3418 = vpack.c.b16 %v2478, %v2477
    %v3419 = vpack.c.b16 %v2480, %v2479
    %v3420 = vpack.c.b16 %v2482, %v2481
    %v3421 = vpack.c.b16 %v2484, %v2483
    %v3422 = vpack.c.b16 %v2486, %v2485
    %v3423 = vpack.c.b16 %v2488, %v2487
    %v3424 = vpack.c.b16 %v2490, %v2489
    %v3425 = vpack.c.b16 %v2492, %v2491
    %v3426 = vpack.c.b16 %v2494, %v2493
    %v3427 = vpack.c.b16 %v2496, %v2495
    %v3428 = vpack.c.b16 %v2498, %v2497
    %v3429 = vpack.c.b16 %v2500, %v2499
    %v3430 = vpack.c.b16 %v2502, %v2501
    %v3431 = vpack.c.b16 %v2504, %v2503
    %v3432 = vpack.c.b16 %v2506, %v2505
    %v3433 = vpack.c.b16 %v2508, %v2507
    %v3434 = vpack.c.b16 %v2510, %v2509
    %v3435 = vpack.c.b16 %v2512, %v2511
    %v3436 = vpack.c.b16 %v2514, %v2513
    %v3437 = vpack.c.b16 %v2516, %v2515
    %v3438 = vpack.c.b16 %v2518, %v2517
    %v3439 = vpack.c.b16 %v2520, %v2519
    %v3440 = vpack.c.b16 %v2522, %v2521
    %v3441 = vpack.c.b16 %v2524, %v2523
    %v3442 = vpack.c.b16 %v2526, %v2525
    %v3443 = vpack.c.b16 %v2528, %v2527
    %v3444 = vpack.c.b16 %v2530, %v2529
    %v3445 = vpack.c.b16 %v2532, %v2531
    %v3446 = vpack.c.b16 %v2534, %v2533
    %v3447 = vpack.c.b16 %v2536, %v2535
    %v3448 = vpack.c.b16 %v2538, %v2537
    %v3449 = vpack.c.b16 %v2540, %v2539
    %v3450 = vpack.c.b16 %v2542, %v2541
    %v3451 = vpack.c.b16 %v2544, %v2543
    %v3452 = vpack.c.b16 %v2546, %v2545
    %v3453 = vpack.c.b16 %v2548, %v2547
    %v3454 = vpack.c.b16 %v2550, %v2549
    %v3455 = vpack.c.b16 %v2552, %v2551
    %v3456 = vpack.c.b16 %v2554, %v2553
    %v3457 = vpack.c.b16 %v2556, %v2555
    %v3458 = vpack.c.b16 %v2558, %v2557
    %v3459 = vpack.c.b16 %v2560, %v2559
    %v3460 = vpack.c.b16 %v2562, %v2561
    %v3461 = vpack.c.b16 %v2564, %v2563
    %v3462 = vpack.c.b16 %v2566, %v2565
    %v3463 = vpack.c.b16 %v2568, %v2567
    %v3464 = vpack.c.b16 %v2570, %v2569
    %v3465 = vpack.c.b16 %v2572, %v2571
    %v3466 = vpack.c.b16 %v2574, %v2573
    %v3467 = vpack.c.b16 %v2576, %v2575
    %v3468 = vpack.c.b16 %v2578, %v2577
    %v3469 = vpack.c.b16 %v2580, %v2579
    %v3470 = vpack.c.b16 %v2582, %v2581
    %v3471 = vpack.c.b16 %v2584, %v2583
    %v3472 = vpack.c.b16 %v2586, %v2585
    %v3473 = vpack.c.b16 %v2588, %v2587
    %v3474 = vpack.c.b16 %v2590, %v2589
    %v3475 = vpack.c.b16 %v2592, %v2591
    %v3476 = vpack.c.b16 %v2594, %v2593
    %v3477 = vpack.c.b16 %v2596, %v2595
    %v3478 = vpack.c.b16 %v2598, %v2597
    %v3479 = vpack.c.b16 %v2600, %v2599
    %v3480 = vpack.c.b16 %v2602, %v2601
    %v3481 = vpack.c.b16 %v2604, %v2603
    %v3482 = vpack.c.b16 %v2606, %v2605
    %v3483 = vpack.c.b16 %v2608, %v2607
    %v3484 = vpack.c.b16 %v2610, %v2609
    %v3485 = vpack.c.b16 %v2612, %v2611
    %v3486 = vpack.c.b16 %v2614, %v2613
    %v3487 = vpack.c.b16 %v2616, %v2615
    %v3488 = vpack.c.b16 %v2618, %v2617
    %v3489 = vpack.c.b16 %v2620, %v2619
    %v3490 = vpack.c.b16 %v2622, %v2621
    %v3491 = vpack.c.b16 %v2624, %v2623
    %v3492 = vpack.c.b16 %v2626, %v2625
    %v3493 = vpack.c.b16 %v2628, %v2627
    %v3494 = vpack.c.b16 %v2630, %v2629
    %v3495 = vpack.c.b16 %v2632, %v2631
    %v3496 = vpack.c.b16 %v2634, %v2633
    %v3497 = vpack.c.b16 %v2636, %v2635
    %v3498 = vpack.c.b16 %v2638, %v2637
    %v3499 = vpack.c.b16 %v2640, %v2639
    %v3500 = vpack.c.b16 %v2642, %v2641
    %v3501 = vpack.c.b16 %v2644, %v2643
    %v3502 = vpack.c.b16 %v2646, %v2645
    %v3503 = vpack.c.b16 %v2648, %v2647
    %v3504 = vpack.c.b16 %v2650, %v2649
    %v3505 = vpack.c.b16 %v2652, %v2651
    %v3506 = vpack.c.b16 %v2654, %v2653
    %v3507 = vpack.c.b16 %v2656, %v2655
    %v3508 = vpack.c.b16 %v2658, %v2657
    %v3509 = vpack.c.b16 %v2660, %v2659
    %v3510 = vpack.c.b16 %v2662, %v2661
    %v3511 = vpack.c.b16 %v2664, %v2663
    %v3512 = vpack.c.b16 %v2666, %v2665
    %v3513 = vpack.c.b16 %v2668, %v2667
    %v3514 = vpack.c.b16 %v2670, %v2669
    %v3515 = vpack.c.b16 %v2672, %v2671
    %v3516 = vpack.c.b16 %v2674, %v2673
    %v3517 = vpack.c.b16 %v2676, %v2675
    %v3518 = vpack.c.b16 %v2678, %v2677
    %v3519 = vpack.c.b16 %v2680, %v2679
    %v3520 = vpack.c.b16 %v2682, %v2681
    %v3521 = vpack.c.b16 %v2684, %v2683
    %v3522 = vpack.c.b16 %v2686, %v2685
    %v3523 = vpack.c.b16 %v2688, %v2687
    %v3524 = vpack.c.b16 %v2690, %v2689
    %v3525 = vpack.c.b16 %v2692, %v2691
    %v3526 = vpack.c.b16 %v2694, %v2693
    %v3527 = vpack.c.b16 %v2696, %v2695
    %v3528 = vpack.c.b16 %v2698, %v2697
    %v3529 = vpack.c.b16 %v2700, %v2699
    %v3530 = vpack.c.b16 %v2702, %v2701
    %v3531 = vpack.c.b16 %v2704, %v2703
    %v3532 = vpack.c.b16 %v2706, %v2705
    %v3533 = vpack.c.b16 %v2708, %v2707
    %v3534 = vpack.c.b16 %v2710, %v2709
    %v3535 = vpack.c.b16 %v2712, %v2711
    %v3536 = vpack.c.b16 %v2714, %v2713
    %v3537 = vpack.c.b16 %v2716, %v2715
    %v3538 = vpack.c.b16 %v2718, %v2717
    %v3539 = vpack.c.b16 %v2720, %v2719
    %v3540 = vpack.c.b16 %v2722, %v2721
    %v3541 = vpack.c.b16 %v2724, %v2723
    %v3542 = vpack.c.b16 %v2726, %v2725
    %v3543 = vpack.c.b16 %v2728, %v2727
    %v3544 = vpack.c.b16 %v2730, %v2729
    %v3545 = vpack.c.b16 %v2732, %v2731
    %v3546 = vpack.c.b16 %v2734, %v2733
    %v3547 = vpack.c.b16 %v2736, %v2735
    %v3548 = vpack.c.b16 %v2738, %v2737
    %v3549 = vpack.c.b16 %v2740, %v2739
    %v3550 = vpack.c.b16 %v2742, %v2741
    %v3551 = vpack.c.b16 %v2744, %v2743
    %v3552 = vpack.c.b16 %v2746, %v2745
    %v3553 = vpack.c.b16 %v2748, %v2747
    %v3554 = vpack.c.b16 %v2750, %v2749
    %v3555 = vpack.c.b16 %v2752, %v2751
    %v3556 = vpack.c.b16 %v2754, %v2753
    %v3557 = vpack.c.b16 %v2756, %v2755
    %v3558 = vpack.c.b16 %v2758, %v2757
    %v3559 = vpack.c.b16 %v2760, %v2759
    %v3560 = vpack.c.b16 %v2762, %v2761
    %v3561 = vpack.c.b16 %v2764, %v2763
    %v3562 = vpack.c.b16 %v2766, %v2765
    %v3563 = vpack.c.b16 %v2768, %v2767
    %v3564 = vpack.c.b16 %v2770, %v2769
    %v3565 = vpack.c.b16 %v2772, %v2771
    %v3566 = vpack.c.b16 %v2774, %v2773
    %v3567 = vpack.c.b16 %v2776, %v2775
    %v3568 = vpack.c.b16 %v2778, %v2777
    %v3569 = vpack.c.b16 %v2780, %v2779
    %v3570 = vpack.c.b16 %v2782, %v2781
    %v3571 = vpack.c.b16 %v2784, %v2783
    %v3572 = vpack.c.b16 %v2786, %v2785
    %v3573 = vpack.c.b16 %v2788, %v2787
    %v3574 = vpack.c.b16 %v2790, %v2789
    %v3575 = vpack.c.b16 %v2792, %v2791
    %v3576 = vpack.c.b16 %v2794, %v2793
    %v3577 = vpack.c.b16 %v2796, %v2795
    %v3578 = vpack.c.b16 %v2798, %v2797
    %v3579 = vpack.c.b16 %v2800, %v2799
    %v3580 = vpack.c.b16 %v2802, %v2801
    %v3581 = vpack.c.b16 %v2804, %v2803
    %v3582 = vpack.c.b16 %v2806, %v2805
    %v3583 = vpack.c.b16 %v2808, %v2807
    %v3584 = vpack.c.b16 %v2810, %v2809
    %v3585 = vpack.c.b16 %v2812, %v2811
    %v3586 = vpack.c.b16 %v2814, %v2813
    %v3587 = vpack.c.b16 %v2816, %v2815
    %v3588 = vpack.c.b16 %v2818, %v2817
    %v3589 = vpack.c.b16 %v2820, %v2819
    %v3590 = vpack.c.b16 %v2822, %v2821
    %v3591 = vpack.c.b16 %v2824, %v2823
    %v3592 = vpack.c.b16 %v2826, %v2825
    %v3593 = vpack.c.b16 %v2828, %v2827
    %v3594 = vpack.c.b16 %v2830, %v2829
    %v3595 = vpack.c.b16 %v2832, %v2831
    %v3596 = vpack.c.b16 %v2834, %v2833
    %v3597 = vpack.c.b16 %v2836, %v2835
    %v3598 = vpack.c.b16 %v2838, %v2837
    %v3599 = vpack.c.b16 %v2840, %v2839
    %v3600 = vpack.c.b16 %v2842, %v2841
    %v3601 = vpack.c.b16 %v2844, %v2843
    %v3602 = vpack.c.b16 %v2846, %v2845
    %v3603 = vpack.c.b16 %v2848, %v2847
    %v3604 = vpack.c.b16 %v2850, %v2849
    %v3605 = vpack.c.b16 %v2852, %v2851
    %v3606 = vpack.c.b16 %v2854, %v2853
    %v3607 = vpack.c.b16 %v2856, %v2855
    %v3608 = vpack.c.b16 %v2858, %v2857
    %v3609 = vpack.c.b16 %v2860, %v2859
    %v3610 = vpack.c.b16 %v2862, %v2861
    %v3611 = vpack.c.b16 %v2864, %v2863
    %v3612 = vpack.c.b16 %v2866, %v2865
    %v3613 = vpack.c.b16 %v2868, %v2867
    %v3614 = vpack.c.b16 %v2870, %v2869
    %v3615 = vpack.c.b16 %v2872, %v2871
    %v3616 = vpack.c.b16 %v2874, %v2873
    %v3617 = vpack.c.b16 %v2876, %v2875
    %v3618 = vpack.c.b16 %v2878, %v2877
    %v3619 = vpack.c.b16 %v2880, %v2879
    %v3620 = vpack.c.b16 %v2882, %v2881
    %v3621 = vpack.c.b16 %v2884, %v2883
    %v3622 = vpack.c.b16 %v2886, %v2885
    %v3623 = vpack.c.b16 %v2888, %v2887
    %v3624 = vpack.c.b16 %v2890, %v2889
    %v3625 = vpack.c.b16 %v2892, %v2891
    %v3626 = vpack.c.b16 %v2894, %v2893
    %v3627 = vpack.c.b16 %v2896, %v2895
    %v3628 = vpack.c.b16 %v2898, %v2897
    %v3629 = vpack.c.b16 %v2900, %v2899
    %v3630 = vpack.c.b16 %v2902, %v2901
    %v3631 = vpack.c.b16 %v2904, %v2903
    %v3632 = vpack.c.b16 %v2906, %v2905
    %v3633 = vpack.c.b16 %v2908, %v2907
    %v3634 = vpack.c.b16 %v2910, %v2909
    %v3635 = vpack.c.b16 %v2912, %v2911
    %v3636 = vpack.c.b16 %v2914, %v2913
    %v3637 = vpack.c.b16 %v2916, %v2915
    %v3638 = vpack.c.b16 %v2918, %v2917
    %v3639 = vpack.c.b16 %v2920, %v2919
    %v3640 = vpack.c.b16 %v2922, %v2921
    %v3641 = vpack.c.b16 %v2924, %v2923
    %v3642 = vpack.c.b16 %v2926, %v2925
    %v3643 = vpack.c.b16 %v2928, %v2927
    %v3644 = vpack.c.b16 %v2930, %v2929
    %v3645 = vpack.c.b16 %v2932, %v2931
    %v3646 = vpack.c.b16 %v2934, %v2933
    %v3647 = vpack.c.b16 %v2936, %v2935
    %v3648 = vpack.c.b16 %v2938, %v2937
    %v3649 = vpack.c.b16 %v2940, %v2939
    %v3650 = vpack.c.b16 %v2942, %v2941
    %v3651 = vpack.c.b16 %v2944, %v2943
    %v3652 = vpack.c.b16 %v2946, %v2945
    %v3653 = vpack.c.b16 %v2948, %v2947
    %v3654 = vpack.c.b16 %v2950, %v2949
    %v3655 = vpack.c.b16 %v2952, %v2951
    %v3656 = vpack.c.b16 %v2954, %v2953
    %v3657 = vpack.c.b16 %v2956, %v2955
    %v3658 = vpack.c.b16 %v2958, %v2957
    %v3659 = vpack.c.b16 %v2960, %v2959
    %v3660 = vpack.c.b16 %v2962, %v2961
    %v3661 = vpack.c.b16 %v2964, %v2963
    %v3662 = vpack.c.b16 %v2966, %v2965
    %v3663 = vpack.c.b16 %v2968, %v2967
    %v3664 = vpack.c.b16 %v2970, %v2969
    %v3665 = vpack.c.b16 %v2972, %v2971
    %v3666 = vpack.c.b16 %v2974, %v2973
    %v3667 = vpack.c.b16 %v2976, %v2975
    %v3668 = vpack.c.b16 %v2978, %v2977
    %v3669 = vpack.c.b16 %v2980, %v2979
    %v3670 = vpack.c.b16 %v2982, %v2981
    %v3671 = vpack.c.b16 %v2984, %v2983
    %v3672 = vpack.c.b16 %v2986, %v2985
    %v3673 = vpack.c.b16 %v2988, %v2987
    %v3674 = vpack.c.b16 %v2990, %v2989
    %v3675 = vpack.c.b16 %v2992, %v2991
    %v3676 = vpack.c.b16 %v2994, %v2993
    %v3677 = vpack.c.b16 %v2996, %v2995
    %v3678 = vpack.c.b16 %v2998, %v2997
    %v3679 = vpack.c.b16 %v3000, %v2999
    %v3680 = vpack.c.b16 %v3002, %v3001
    %v3681 = vpack.c.b16 %v3004, %v3003
    %v3682 = vpack.c.b16 %v3006, %v3005
    %v3683 = vpack.c.b16 %v3008, %v3007
    %v3684 = vpack.c.b16 %v3010, %v3009
    %v3685 = vpack.c.b16 %v3012, %v3011
    %v3686 = vpack.c.b16 %v3014, %v3013
    %v3687 = vpack.c.b16 %v3016, %v3015
    %v3688 = vpack.c.b16 %v3018, %v3017
    %v3689 = vpack.c.b16 %v3020, %v3019
    %v3690 = vpack.c.b16 %v3022, %v3021
    %v3691 = vpack.c.b16 %v3024, %v3023
    %v3692 = vpack.c.b16 %v3026, %v3025
    %v3693 = vpack.c.b16 %v3028, %v3027
    %v3694 = vpack.c.b16 %v3030, %v3029
    %v3695 = vpack.c.b16 %v3032, %v3031
    %v3696 = vpack.c.b16 %v3034, %v3033
    %v3697 = vpack.c.b16 %v3036, %v3035
    %v3698 = vpack.c.b16 %v3038, %v3037
    %v3699 = vpack.c.b16 %v3040, %v3039
    %v3700 = vpack.c.b16 %v3042, %v3041
    %v3701 = vpack.c.b16 %v3044, %v3043
    %v3702 = vpack.c.b16 %v3046, %v3045
    %v3703 = vpack.c.b16 %v3048, %v3047
    %v3704 = vpack.c.b16 %v3050, %v3049
    %v3705 = vpack.c.b16 %v3052, %v3051
    %v3706 = vpack.c.b16 %v3054, %v3053
    %v3707 = vpack.c.b16 %v3056, %v3055
    %v3708 = vpack.c.b16 %v3058, %v3057
    %v3709 = vpack.c.b16 %v3060, %v3059
    %v3710 = vpack.c.b16 %v3062, %v3061
    %v3711 = vpack.c.b16 %v3064, %v3063
    %v3712 = vpack.c.b16 %v3066, %v3065
    %v3713 = vpack.c.b16 %v3068, %v3067
    %v3714 = vpack.c.b16 %v3070, %v3069
    %v3715 = vpack.c.b16 %v3072, %v3071
    %v3716 = vpack.c.b16 %v3074, %v3073
    %v3717 = vpack.c.b16 %v3076, %v3075
    %v3718 = vpack.c.b16 %v3078, %v3077
    %v3719 = vpack.c.b16 %v3080, %v3079
    %v3720 = vpack.c.b16 %v3082, %v3081
    %v3721 = vpack.c.b16 %v3084, %v3083
    %v3722 = vpack.c.b16 %v3086, %v3085
    %v3723 = vpack.c.b16 %v3088, %v3087
    %v3724 = vpack.c.b16 %v3090, %v3089
    %v3725 = vpack.c.b16 %v3092, %v3091
    %v3726 = vpack.c.b16 %v3094, %v3093
    %v3727 = vpack.c.b16 %v3096, %v3095
    %v3728 = vpack.c.b16 %v3098, %v3097
    %v3729 = vpack.c.b16 %v3100, %v3099
    %v3730 = vpack.c.b16 %v3102, %v3101
    %v3731 = vpack.c.b16 %v3104, %v3103
    %v3732 = vpack.c.b16 %v3106, %v3105
    %v3733 = vpack.c.b16 %v3108, %v3107
    %v3734 = vpack.c.b16 %v3110, %v3109
    %v3735 = vpack.c.b16 %v3112, %v3111
    %v3736 = vpack.c.b16 %v3114, %v3113
    %v3737 = vpack.c.b16 %v3116, %v3115
    %v3738 = vpack.c.b16 %v3118, %v3117
    %v3739 = vpack.c.b16 %v3120, %v3119
    %v3740 = vpack.c.b16 %v3122, %v3121
    %v3741 = vpack.c.b16 %v3124, %v3123
    %v3742 = vpack.c.b16 %v3126, %v3125
    %v3743 = vpack.c.b16 %v3128, %v3127
    %v3744 = vpack.c.b16 %v3130, %v3129
    %v3745 = vpack.c.b16 %v3132, %v3131
    %v3746 = vpack.c.b16 %v3134, %v3133
    %v3747 = vpack.c.b16 %v3136, %v3135
    %v3748 = vpack.c.b16 %v3138, %v3137
    %v3749 = vpack.c.b16 %v3140, %v3139
    %v3750 = vpack.c.b16 %v3142, %v3141
    %v3751 = vpack.c.b16 %v3144, %v3143
    %v3752 = vpack.c.b16 %v3146, %v3145
    %v3753 = vpack.c.b16 %v3148, %v3147
    %v3754 = vpack.c.b16 %v3150, %v3149
    %v3755 = vpack.c.b16 %v3152, %v3151
    %v3756 = vpack.c.b16 %v3154, %v3153
    %v3757 = vpack.c.b16 %v3156, %v3155
    %v3758 = vpack.c.b16 %v3158, %v3157
    %v3759 = vpack.c.b16 %v3160, %v3159
    %v3760 = vpack.c.b16 %v3162, %v3161
    %v3761 = vpack.c.b16 %v3164, %v3163
    %v3762 = vpack.c.b16 %v3166, %v3165
    %v3763 = vpack.c.b16 %v3168, %v3167
    %v3764 = vpack.c.b16 %v3170, %v3169
    %v3765 = vpack.c.b16 %v3172, %v3171
    %v3766 = vpack.c.b16 %v3174, %v3173
    %v3767 = vpack.c.b16 %v3176, %v3175
    %v3768 = vpack.c.b16 %v3178, %v3177
    %v3769 = vpack.c.b16 %v3180, %v3179
    %v3770 = vpack.c.b16 %v3182, %v3181
    %v3771 = vpack.c.b16 %v3184, %v3183
    %v3772 = vpack.c.b16 %v3186, %v3185
    %v3773 = vpack.c.b16 %v3188, %v3187
    %v3774 = vpack.c.b16 %v3190, %v3189
    %v3775 = vpack.c.b16 %v3192, %v3191
    %v3776 = vpack.c.b16 %v3194, %v3193
    %v3777 = vpack.c.b16 %v3196, %v3195
    %v3778 = vpack.c.b16 %v3198, %v3197
    %v3779 = vpack.c.b16 %v3200, %v3199
    %v3780 = vpack.c.b16 %v3202, %v3201
    %v3781 = vpack.c.b16 %v3204, %v3203
    %v3782 = vpack.c.b16 %v3206, %v3205
    %v3783 = vpack.c.b16 %v3208, %v3207
    %v3784 = vpack.c.b16 %v3210, %v3209
    %v3785 = vpack.c.b16 %v3212, %v3211
    %v3786 = vpack.c.b16 %v3214, %v3213
    %v3787 = vpack.c.b16 %v3216, %v3215
    %v3788 = vpack.c.b16 %v3218, %v3217
    %v3789 = vpack.c.b16 %v3220, %v3219
    %v3790 = vpack.c.b16 %v3222, %v3221
    %v3791 = vpack.c.b16 %v3224, %v3223
    %v3792 = vpack.c.b16 %v3226, %v3225
    %v3793 = vpack.c.b16 %v3228, %v3227
    %v3794 = vpack.c.b16 %v3230, %v3229
    %v3795 = vpack.c.b16 %v3232, %v3231
    %v3796 = vpack.c.b16 %v3234, %v3233
    %v3797 = vpack.c.b16 %v3236, %v3235
    %v3798 = vpack.c.b16 %v3238, %v3237
    %v3799 = vpack.c.b16 %v3240, %v3239
    %v3800 = vpack.c.b16 %v3242, %v3241
    %v3801 = vpack.c.b16 %v3244, %v3243
    %v3802 = vpack.c.b16 %v3246, %v3245
    %v3803 = vpack.c.b16 %v3248, %v3247
    %v3804 = vpack.c.b16 %v3250, %v3249
    %v3805 = vpack.c.b16 %v3252, %v3251
    %v3806 = vpack.c.b16 %v3254, %v3253
    %v3807 = vpack.c.b16 %v3256, %v3255
    %v3808 = vpack.c.b16 %v3258, %v3257
    %v3809 = vpack.c.b16 %v3260, %v3259
    %v3810 = vpack.c.b16 %v3262, %v3261
    %v3811 = vpack.c.b16 %v3264, %v3263
    %v3812 = vpack.c.b16 %v3266, %v3265
    %v3813 = vpack.c.b16 %v3268, %v3267
    %v3814 = vpack.c.b16 %v3270, %v3269
    %v3815 = vpack.c.b16 %v3272, %v3271
    %v3816 = vpack.c.b16 %v3274, %v3273
    %v3817 = vpack.c.b16 %v3276, %v3275
    %v3818 = vpack.c.b16 %v3278, %v3277
    %v3819 = vpack.c.b16 %v3280, %v3279
    %v3820 = vpack.c.b16 %v3282, %v3281
    %v3821 = vpack.c.b16 %v3284, %v3283
    %v3822 = vpack.c.b16 %v3286, %v3285
    %v3823 = vpack.c.b16 %v3288, %v3287
    %v3824 = vpack.c.b16 %v3290, %v3289
    %v3825 = vpack.c.b16 %v3292, %v3291
    %v3826 = vpack.c.b16 %v3294, %v3293
    %v3827 = vpack.c.b16 %v3296, %v3295
    %v3828 = vpack.c.b16 %v3298, %v3297
    %v3829 = vpack.c.b16 %v3300, %v3299
    %v3830 = vpack.c.b16 %v3302, %v3301
    %v3831 = vpack.c.b16 %v3304, %v3303
    %v3832 = vpack.c.b16 %v3306, %v3305
    %v3833 = vpack.c.b16 %v3308, %v3307
    %v3834 = vpack.c.b16 %v3310, %v3309
    %v3835 = vpack.c.b16 %v3312, %v3311
    %v3836 = vpack.c.b16 %v3314, %v3313
    %v3837 = vpack.c.b16 %v3316, %v3315
    %v3838 = vpack.c.b16 %v3318, %v3317
    %v3839 = vpack.c.b16 %v3320, %v3319
    %v3840 = vpack.c.b16 %v3322, %v3321
    %v3841 = vpack.c.b16 %v3324, %v3323
    %v3842 = vpack.c.b16 %v3326, %v3325
    %v3843 = vpack.c.b16 %v3328, %v3327
    %v3844 = vpack.c.b16 %v3330, %v3329
    %v3845 = vpack.c.b16 %v3332, %v3331
    %v3846 = vpack.c.b16 %v3334, %v3333
    %v3847 = vpack.c.b16 %v3336, %v3335
    %v3848 = vpack.c.b16 %v3338, %v3337
    %v3849 = vpack.c.b16 %v3340, %v3339
    %v3850 = vpack.c.b16 %v3342, %v3341
    %v3851 = vpack.c.b16 %v3344, %v3343
    %v3852 = vpack.c.b16 %v3346, %v3345
    %v3853 = vpack.c.b16 %v3348, %v3347
    %v3854 = vpack.c.b16 %v3350, %v3349
    %v3855 = vpack.c.b16 %v3352, %v3351
    %v3856 = vpack.c.b16 %v3354, %v3353
    %v3857 = vpack.c.b16 %v3356, %v3355
    %v3858 = vpack.c.b16 %v3358, %v3357
    %v3859 = vpack.c.b16 %v3360, %v3359
    %v3860 = vpack.c.b16 %v3362, %v3361
    %v3861 = vpack.c.b16 %v3364, %v3363
    %v3862 = vpack.c.b16 %v3366, %v3365
    %v3863 = vpack.c.b16 %v3368, %v3367
    %v3864 = vpack.c.b16 %v3370, %v3369
    %v3865 = vpack.c.b16 %v3372, %v3371
    %v3866 = vpack.c.b16 %v3374, %v3373
    %v3867 = vpack.c.b16 %v3376, %v3375
    %v3868 = vpack.c.b16 %v3378, %v3377
    %v3869 = vpack.c.b16 %v3380, %v3379
    %v3870 = vpack.c.b16 %v3382, %v3381
    %v3871 = vpack.c.b16 %v3384, %v3383
    %v3872 = vpack.c.b16 %v3386, %v3385
    %v3873 = vpack.c.b16 %v3388, %v3387
    %v3874 = vpack.c.b16 %v3390, %v3389
    %vm4359 = vcmask 523264
    %v4361 = vsel %vm4359, %v1385, 0
    %4363 = vmatprep.subr.bf16.mxu0 0
    %4364 = vmatpush1.bf16.msra.mxu0 %v3391
    %4365 = vmatprep.subr.bf16.mxu0 0
    %4366 = vmatpush1.bf16.msra.mxu0 %v3392
    %4367 = vmatprep.subr.bf16.mxu0 0
    %4368 = vmatpush1.bf16.msra.mxu0 %v3393
    %4369 = vmatprep.subr.bf16.mxu0 0
    %4370 = vmatpush1.bf16.msra.mxu0 %v3394
    %4371 = vmatprep.subr.bf16.mxu0 0
    %4372 = vmatpush1.bf16.msra.mxu0 %v3395
    %4373 = vmatprep.subr.bf16.mxu0 0
    %4374 = vmatpush1.bf16.msra.mxu0 %v3396
    %4375 = vmatprep.subr.bf16.mxu0 0
    %4376 = vmatpush1.bf16.msra.mxu0 %v3397
    %4377 = vmatprep.subr.bf16.mxu0 0
    %4378 = vmatpush1.bf16.msra.mxu0 %v3398
    %4379 = vmatprep.subr.bf16.mxu0 0
    %4380 = vmatpush1.bf16.msra.mxu0 %v3399
    %4381 = vmatprep.subr.bf16.mxu0 0
    %4382 = vmatpush1.bf16.msra.mxu0 %v3400
    %4383 = vmatprep.subr.bf16.mxu0 0
    %4384 = vmatpush1.bf16.msra.mxu0 %v3401
    %4385 = vmatprep.subr.bf16.mxu0 0
    %4386 = vmatpush1.bf16.msra.mxu0 %v3402
    %4387 = vmatprep.subr.bf16.mxu0 0
    %4388 = vmatpush1.bf16.msra.mxu0 %v3403
    %4389 = vmatprep.subr.bf16.mxu0 0
    %4390 = vmatpush1.bf16.msra.mxu0 %v3404
    %4391 = vmatprep.subr.bf16.mxu0 0
    %4392 = vmatpush1.bf16.msra.mxu0 %v3405
    %4393 = vmatprep.subr.bf16.mxu0 0
    %4394 = vmatpush1.bf16.msra.mxu0 %v3406
    %4395 = vmatprep.mubr.bf16.mxu0 %v1050
    %4396 = vmatmul.mubr.bf16.gmra.mrb[0].mxu0 %v1036
    %v4397 = vpop.f32.mrb[0].mxu0
    %v4398 = vadd.f32 %v1003, %v4397
    %v4399 = vpop.f32.mrb[0].mxu0
    %v4400 = vpop.f32.mrb[0].mxu0
    %v4401 = vpop.f32.mrb[0].mxu0
    %4402 = vdwg.mxu0
    %4403 = vmatprep.subr.bf16.mxu0 0
    %4404 = vmatpush1.bf16.msra.mxu0 %v3407
    %4405 = vmatprep.subr.bf16.mxu0 0
    %4406 = vmatpush1.bf16.msra.mxu0 %v3408
    %4407 = vmatprep.subr.bf16.mxu0 0
    %4408 = vmatpush1.bf16.msra.mxu0 %v3409
    %4409 = vmatprep.subr.bf16.mxu0 0
    %4410 = vmatpush1.bf16.msra.mxu0 %v3410
    %4411 = vmatprep.subr.bf16.mxu0 0
    %4412 = vmatpush1.bf16.msra.mxu0 %v3411
    %4413 = vmatprep.subr.bf16.mxu0 0
    %4414 = vmatpush1.bf16.msra.mxu0 %v3412
    %4415 = vmatprep.subr.bf16.mxu0 0
    %4416 = vmatpush1.bf16.msra.mxu0 %v3413
    %4417 = vmatprep.subr.bf16.mxu0 0
    %4418 = vmatpush1.bf16.msra.mxu0 %v3414
    %4419 = vmatprep.subr.bf16.mxu0 0
    %4420 = vmatpush1.bf16.msra.mxu0 %v3415
    %4421 = vmatprep.subr.bf16.mxu0 0
    %4422 = vmatpush1.bf16.msra.mxu0 %v3416
    %4423 = vmatprep.subr.bf16.mxu0 0
    %4424 = vmatpush1.bf16.msra.mxu0 %v3417
    %4425 = vmatprep.subr.bf16.mxu0 0
    %4426 = vmatpush1.bf16.msra.mxu0 %v3418
    %4427 = vmatprep.subr.bf16.mxu0 0
    %4428 = vmatpush1.bf16.msra.mxu0 %v3419
    %4429 = vmatprep.subr.bf16.mxu0 0
    %4430 = vmatpush1.bf16.msra.mxu0 %v3420
    %4431 = vmatprep.subr.bf16.mxu0 0
    %4432 = vmatpush1.bf16.msra.mxu0 %v3421
    %4433 = vmatprep.subr.bf16.mxu0 0
    %4434 = vmatpush1.bf16.msra.mxu0 %v3422
    %4435 = vmatprep.mubr.bf16.mxu0 %v1060
    %4436 = vmatmul.mubr.bf16.gmra.mrb[0].mxu0 %v1058
    %v4437 = vpop.f32.mrb[0].mxu0
    %v4438 = vadd.f32 %v4398, %v4437
    %v4439 = vpop.f32.mrb[0].mxu0
    %v4440 = vpop.f32.mrb[0].mxu0
    %v4441 = vpop.f32.mrb[0].mxu0
    %4442 = vdwg.mxu0
    %4443 = vmatprep.subr.bf16.mxu0 0
    %4444 = vmatpush1.bf16.msra.mxu0 %v3423
    %4445 = vmatprep.subr.bf16.mxu0 0
    %4446 = vmatpush1.bf16.msra.mxu0 %v3424
    %4447 = vmatprep.subr.bf16.mxu0 0
    %4448 = vmatpush1.bf16.msra.mxu0 %v3425
    %4449 = vmatprep.subr.bf16.mxu0 0
    %4450 = vmatpush1.bf16.msra.mxu0 %v3426
    %4451 = vmatprep.subr.bf16.mxu0 0
    %4452 = vmatpush1.bf16.msra.mxu0 %v3427
    %4453 = vmatprep.subr.bf16.mxu0 0
    %4454 = vmatpush1.bf16.msra.mxu0 %v3428
    %4455 = vmatprep.subr.bf16.mxu0 0
    %4456 = vmatpush1.bf16.msra.mxu0 %v3429
    %4457 = vmatprep.subr.bf16.mxu0 0
    %4458 = vmatpush1.bf16.msra.mxu0 %v3430
    %4459 = vmatprep.subr.bf16.mxu0 0
    %4460 = vmatpush1.bf16.msra.mxu0 %v3431
    %4461 = vmatprep.subr.bf16.mxu0 0
    %4462 = vmatpush1.bf16.msra.mxu0 %v3432
    %4463 = vmatprep.subr.bf16.mxu0 0
    %4464 = vmatpush1.bf16.msra.mxu0 %v3433
    %4465 = vmatprep.subr.bf16.mxu0 0
    %4466 = vmatpush1.bf16.msra.mxu0 %v3434
    %4467 = vmatprep.subr.bf16.mxu0 0
    %4468 = vmatpush1.bf16.msra.mxu0 %v3435
    %4469 = vmatprep.subr.bf16.mxu0 0
    %4470 = vmatpush1.bf16.msra.mxu0 %v3436
    %4471 = vmatprep.subr.bf16.mxu0 0
    %4472 = vmatpush1.bf16.msra.mxu0 %v3437
    %4473 = vmatprep.subr.bf16.mxu0 0
    %4474 = vmatpush1.bf16.msra.mxu0 %v3438
    %4475 = vmatprep.mubr.bf16.mxu0 %v1057
    %4476 = vmatmul.mubr.bf16.gmra.mrb[0].mxu0 %v1043
    %v4477 = vpop.f32.mrb[0].mxu0
    %v4478 = vadd.f32 %v4438, %v4477
    %v4479 = vpop.f32.mrb[0].mxu0
    %v4480 = vpop.f32.mrb[0].mxu0
    %v4481 = vpop.f32.mrb[0].mxu0
    %4482 = vdwg.mxu0
    %4483 = vmatprep.subr.bf16.mxu0 0
    %4484 = vmatpush1.bf16.msra.mxu0 %v3439
    %4485 = vmatprep.subr.bf16.mxu0 0
    %4486 = vmatpush1.bf16.msra.mxu0 %v3440
    %4487 = vmatprep.subr.bf16.mxu0 0
    %4488 = vmatpush1.bf16.msra.mxu0 %v3441
    %4489 = vmatprep.subr.bf16.mxu0 0
    %4490 = vmatpush1.bf16.msra.mxu0 %v3442
    %4491 = vmatprep.subr.bf16.mxu0 0
    %4492 = vmatpush1.bf16.msra.mxu0 %v3443
    %4493 = vmatprep.subr.bf16.mxu0 0
    %4494 = vmatpush1.bf16.msra.mxu0 %v3444
    %4495 = vmatprep.subr.bf16.mxu0 0
    %4496 = vmatpush1.bf16.msra.mxu0 %v3445
    %4497 = vmatprep.subr.bf16.mxu0 0
    %4498 = vmatpush1.bf16.msra.mxu0 %v3446
    %4499 = vmatprep.subr.bf16.mxu0 0
    %4500 = vmatpush1.bf16.msra.mxu0 %v3447
    %4501 = vmatprep.subr.bf16.mxu0 0
    %4502 = vmatpush1.bf16.msra.mxu0 %v3448
    %4503 = vmatprep.subr.bf16.mxu0 0
    %4504 = vmatpush1.bf16.msra.mxu0 %v3449
    %4505 = vmatprep.subr.bf16.mxu0 0
    %4506 = vmatpush1.bf16.msra.mxu0 %v3450
    %4507 = vmatprep.subr.bf16.mxu0 0
    %4508 = vmatpush1.bf16.msra.mxu0 %v3451
    %4509 = vmatprep.subr.bf16.mxu0 0
    %4510 = vmatpush1.bf16.msra.mxu0 %v3452
    %4511 = vmatprep.subr.bf16.mxu0 0
    %4512 = vmatpush1.bf16.msra.mxu0 %v3453
    %4513 = vmatprep.subr.bf16.mxu0 0
    %4514 = vmatpush1.bf16.msra.mxu0 %v3454
    %4515 = vmatprep.mubr.bf16.mxu0 %v1061
    %4516 = vmatmul.mubr.bf16.gmra.mrb[0].mxu0 %v1059
    %v4517 = vpop.f32.mrb[0].mxu0
    %v4518 = vadd.f32 %v4478, %v4517
    %v4519 = vpop.f32.mrb[0].mxu0
    %v4520 = vpop.f32.mrb[0].mxu0
    %v4521 = vpop.f32.mrb[0].mxu0
    %4522 = vdwg.mxu0
    %4523 = vmatprep.subr.bf16.mxu0 0
    %4524 = vmatpush1.bf16.msra.mxu0 %v3455
    %4525 = vmatprep.subr.bf16.mxu0 0
    %4526 = vmatpush1.bf16.msra.mxu0 %v3456
    %4527 = vmatprep.subr.bf16.mxu0 0
    %4528 = vmatpush1.bf16.msra.mxu0 %v3457
    %4529 = vmatprep.subr.bf16.mxu0 0
    %4530 = vmatpush1.bf16.msra.mxu0 %v3458
    %4531 = vmatprep.subr.bf16.mxu0 0
    %4532 = vmatpush1.bf16.msra.mxu0 %v3459
    %4533 = vmatprep.subr.bf16.mxu0 0
    %4534 = vmatpush1.bf16.msra.mxu0 %v3460
    %4535 = vmatprep.subr.bf16.mxu0 0
    %4536 = vmatpush1.bf16.msra.mxu0 %v3461
    %4537 = vmatprep.subr.bf16.mxu0 0
    %4538 = vmatpush1.bf16.msra.mxu0 %v3462
    %4539 = vmatprep.subr.bf16.mxu0 0
    %4540 = vmatpush1.bf16.msra.mxu0 %v3463
    %4541 = vmatprep.subr.bf16.mxu0 0
    %4542 = vmatpush1.bf16.msra.mxu0 %v3464
    %4543 = vmatprep.subr.bf16.mxu0 0
    %4544 = vmatpush1.bf16.msra.mxu0 %v3465
    %4545 = vmatprep.subr.bf16.mxu0 0
    %4546 = vmatpush1.bf16.msra.mxu0 %v3466
    %4547 = vmatprep.subr.bf16.mxu0 0
    %4548 = vmatpush1.bf16.msra.mxu0 %v3467
    %4549 = vmatprep.subr.bf16.mxu0 0
    %4550 = vmatpush1.bf16.msra.mxu0 %v3468
    %4551 = vmatprep.subr.bf16.mxu0 0
    %4552 = vmatpush1.bf16.msra.mxu0 %v3469
    %4553 = vmatprep.subr.bf16.mxu0 0
    %4554 = vmatpush1.bf16.msra.mxu0 %v3470
    %4555 = vmatprep.mubr.bf16.mxu0 %v1099
    %4556 = vmatmul.mubr.bf16.gmra.mrb[0].mxu0 %v1085
    %v4557 = vpop.f32.mrb[0].mxu0
    %v4558 = vadd.f32 %v4518, %v4557
    %v4559 = vpop.f32.mrb[0].mxu0
    %v4560 = vpop.f32.mrb[0].mxu0
    %v4561 = vpop.f32.mrb[0].mxu0
    %4562 = vdwg.mxu0
    %4563 = vmatprep.subr.bf16.mxu0 0
    %4564 = vmatpush1.bf16.msra.mxu0 %v3471
    %4565 = vmatprep.subr.bf16.mxu0 0
    %4566 = vmatpush1.bf16.msra.mxu0 %v3472
    %4567 = vmatprep.subr.bf16.mxu0 0
    %4568 = vmatpush1.bf16.msra.mxu0 %v3473
    %4569 = vmatprep.subr.bf16.mxu0 0
    %4570 = vmatpush1.bf16.msra.mxu0 %v3474
    %4571 = vmatprep.subr.bf16.mxu0 0
    %4572 = vmatpush1.bf16.msra.mxu0 %v3475
    %4573 = vmatprep.subr.bf16.mxu0 0
    %4574 = vmatpush1.bf16.msra.mxu0 %v3476
    %4575 = vmatprep.subr.bf16.mxu0 0
    %4576 = vmatpush1.bf16.msra.mxu0 %v3477
    %4577 = vmatprep.subr.bf16.mxu0 0
    %4578 = vmatpush1.bf16.msra.mxu0 %v3478
    %4579 = vmatprep.subr.bf16.mxu0 0
    %4580 = vmatpush1.bf16.msra.mxu0 %v3479
    %4581 = vmatprep.subr.bf16.mxu0 0
    %4582 = vmatpush1.bf16.msra.mxu0 %v3480
    %4583 = vmatprep.subr.bf16.mxu0 0
    %4584 = vmatpush1.bf16.msra.mxu0 %v3481
    %4585 = vmatprep.subr.bf16.mxu0 0
    %4586 = vmatpush1.bf16.msra.mxu0 %v3482
    %4587 = vmatprep.subr.bf16.mxu0 0
    %4588 = vmatpush1.bf16.msra.mxu0 %v3483
    %4589 = vmatprep.subr.bf16.mxu0 0
    %4590 = vmatpush1.bf16.msra.mxu0 %v3484
    %4591 = vmatprep.subr.bf16.mxu0 0
    %4592 = vmatpush1.bf16.msra.mxu0 %v3485
    %4593 = vmatprep.subr.bf16.mxu0 0
    %4594 = vmatpush1.bf16.msra.mxu0 %v3486
    %4595 = vmatprep.mubr.bf16.mxu0 %v1109
    %4596 = vmatmul.mubr.bf16.gmra.mrb[0].mxu0 %v1107
    %v4597 = vpop.f32.mrb[0].mxu0
    %v4598 = vadd.f32 %v4558, %v4597
    %v4599 = vpop.f32.mrb[0].mxu0
    %v4600 = vpop.f32.mrb[0].mxu0
    %v4601 = vpop.f32.mrb[0].mxu0
    %4602 = vdwg.mxu0
    %4603 = vmatprep.subr.bf16.mxu0 0
    %4604 = vmatpush1.bf16.msra.mxu0 %v3487
    %4605 = vmatprep.subr.bf16.mxu0 0
    %4606 = vmatpush1.bf16.msra.mxu0 %v3488
    %4607 = vmatprep.subr.bf16.mxu0 0
    %4608 = vmatpush1.bf16.msra.mxu0 %v3489
    %4609 = vmatprep.subr.bf16.mxu0 0
    %4610 = vmatpush1.bf16.msra.mxu0 %v3490
    %4611 = vmatprep.subr.bf16.mxu0 0
    %4612 = vmatpush1.bf16.msra.mxu0 %v3491
    %4613 = vmatprep.subr.bf16.mxu0 0
    %4614 = vmatpush1.bf16.msra.mxu0 %v3492
    %4615 = vmatprep.subr.bf16.mxu0 0
    %4616 = vmatpush1.bf16.msra.mxu0 %v3493
    %4617 = vmatprep.subr.bf16.mxu0 0
    %4618 = vmatpush1.bf16.msra.mxu0 %v3494
    %4619 = vmatprep.subr.bf16.mxu0 0
    %4620 = vmatpush1.bf16.msra.mxu0 %v3495
    %4621 = vmatprep.subr.bf16.mxu0 0
    %4622 = vmatpush1.bf16.msra.mxu0 %v3496
    %4623 = vmatprep.subr.bf16.mxu0 0
    %4624 = vmatpush1.bf16.msra.mxu0 %v3497
    %4625 = vmatprep.subr.bf16.mxu0 0
    %4626 = vmatpush1.bf16.msra.mxu0 %v3498
    %4627 = vmatprep.subr.bf16.mxu0 0
    %4628 = vmatpush1.bf16.msra.mxu0 %v3499
    %4629 = vmatprep.subr.bf16.mxu0 0
    %4630 = vmatpush1.bf16.msra.mxu0 %v3500
    %4631 = vmatprep.subr.bf16.mxu0 0
    %4632 = vmatpush1.bf16.msra.mxu0 %v3501
    %4633 = vmatprep.subr.bf16.mxu0 0
    %4634 = vmatpush1.bf16.msra.mxu0 %v3502
    %4635 = vmatprep.mubr.bf16.mxu0 %v1106
    %4636 = vmatmul.mubr.bf16.gmra.mrb[0].mxu0 %v1092
    %v4637 = vpop.f32.mrb[0].mxu0
    %v4638 = vadd.f32 %v4598, %v4637
    %v4639 = vpop.f32.mrb[0].mxu0
    %v4640 = vpop.f32.mrb[0].mxu0
    %v4641 = vpop.f32.mrb[0].mxu0
    %4642 = vdwg.mxu0
    %4643 = vmatprep.subr.bf16.mxu0 0
    %4644 = vmatpush1.bf16.msra.mxu0 %v3503
    %4645 = vmatprep.subr.bf16.mxu0 0
    %4646 = vmatpush1.bf16.msra.mxu0 %v3504
    %4647 = vmatprep.subr.bf16.mxu0 0
    %4648 = vmatpush1.bf16.msra.mxu0 %v3505
    %4649 = vmatprep.subr.bf16.mxu0 0
    %4650 = vmatpush1.bf16.msra.mxu0 %v3506
    %4651 = vmatprep.subr.bf16.mxu0 0
    %4652 = vmatpush1.bf16.msra.mxu0 %v3507
    %4653 = vmatprep.subr.bf16.mxu0 0
    %4654 = vmatpush1.bf16.msra.mxu0 %v3508
    %4655 = vmatprep.subr.bf16.mxu0 0
    %4656 = vmatpush1.bf16.msra.mxu0 %v3509
    %4657 = vmatprep.subr.bf16.mxu0 0
    %4658 = vmatpush1.bf16.msra.mxu0 %v3510
    %4659 = vmatprep.subr.bf16.mxu0 0
    %4660 = vmatpush1.bf16.msra.mxu0 %v3511
    %4661 = vmatprep.subr.bf16.mxu0 0
    %4662 = vmatpush1.bf16.msra.mxu0 %v3512
    %4663 = vmatprep.subr.bf16.mxu0 0
    %4664 = vmatpush1.bf16.msra.mxu0 %v3513
    %4665 = vmatprep.subr.bf16.mxu0 0
    %4666 = vmatpush1.bf16.msra.mxu0 %v3514
    %4667 = vmatprep.subr.bf16.mxu0 0
    %4668 = vmatpush1.bf16.msra.mxu0 %v3515
    %4669 = vmatprep.subr.bf16.mxu0 0
    %4670 = vmatpush1.bf16.msra.mxu0 %v3516
    %4671 = vmatprep.subr.bf16.mxu0 0
    %4672 = vmatpush1.bf16.msra.mxu0 %v3517
    %4673 = vmatprep.subr.bf16.mxu0 0
    %4674 = vmatpush1.bf16.msra.mxu0 %v3518
    %4675 = vmatprep.mubr.bf16.mxu0 %v1110
    %4676 = vmatmul.mubr.bf16.gmra.mrb[0].mxu0 %v1108
    %v4677 = vpop.f32.mrb[0].mxu0
    %v4678 = vadd.f32 %v4638, %v4677
    %v4679 = vpop.f32.mrb[0].mxu0
    %v4680 = vpop.f32.mrb[0].mxu0
    %v4681 = vpop.f32.mrb[0].mxu0
    %4682 = vdwg.mxu0
    %4683 = vmatprep.subr.bf16.mxu0 0
    %4684 = vmatpush1.bf16.msra.mxu0 %v3519
    %4685 = vmatprep.subr.bf16.mxu0 0
    %4686 = vmatpush1.bf16.msra.mxu0 %v3520
    %4687 = vmatprep.subr.bf16.mxu0 0
    %4688 = vmatpush1.bf16.msra.mxu0 %v3521
    %4689 = vmatprep.subr.bf16.mxu0 0
    %4690 = vmatpush1.bf16.msra.mxu0 %v3522
    %4691 = vmatprep.subr.bf16.mxu0 0
    %4692 = vmatpush1.bf16.msra.mxu0 %v3523
    %4693 = vmatprep.subr.bf16.mxu0 0
    %4694 = vmatpush1.bf16.msra.mxu0 %v3524
    %4695 = vmatprep.subr.bf16.mxu0 0
    %4696 = vmatpush1.bf16.msra.mxu0 %v3525
    %4697 = vmatprep.subr.bf16.mxu0 0
    %4698 = vmatpush1.bf16.msra.mxu0 %v3526
    %4699 = vmatprep.subr.bf16.mxu0 0
    %4700 = vmatpush1.bf16.msra.mxu0 %v3527
    %4701 = vmatprep.subr.bf16.mxu0 0
    %4702 = vmatpush1.bf16.msra.mxu0 %v3528
    %4703 = vmatprep.subr.bf16.mxu0 0
    %4704 = vmatpush1.bf16.msra.mxu0 %v3529
    %4705 = vmatprep.subr.bf16.mxu0 0
    %4706 = vmatpush1.bf16.msra.mxu0 %v3530
    %4707 = vmatprep.subr.bf16.mxu0 0
    %4708 = vmatpush1.bf16.msra.mxu0 %v3531
    %4709 = vmatprep.subr.bf16.mxu0 0
    %4710 = vmatpush1.bf16.msra.mxu0 %v3532
    %4711 = vmatprep.subr.bf16.mxu0 0
    %4712 = vmatpush1.bf16.msra.mxu0 %v3533
    %4713 = vmatprep.subr.bf16.mxu0 0
    %4714 = vmatpush1.bf16.msra.mxu0 %v3534
    %4715 = vmatprep.mubr.bf16.mxu0 %v1148
    %4716 = vmatmul.mubr.bf16.gmra.mrb[0].mxu0 %v1134
    %v4717 = vpop.f32.mrb[0].mxu0
    %v4718 = vadd.f32 %v4678, %v4717
    %v4719 = vpop.f32.mrb[0].mxu0
    %v4720 = vpop.f32.mrb[0].mxu0
    %v4721 = vpop.f32.mrb[0].mxu0
    %4722 = vdwg.mxu0
    %4723 = vmatprep.subr.bf16.mxu0 0
    %4724 = vmatpush1.bf16.msra.mxu0 %v3535
    %4725 = vmatprep.subr.bf16.mxu0 0
    %4726 = vmatpush1.bf16.msra.mxu0 %v3536
    %4727 = vmatprep.subr.bf16.mxu0 0
    %4728 = vmatpush1.bf16.msra.mxu0 %v3537
    %4729 = vmatprep.subr.bf16.mxu0 0
    %4730 = vmatpush1.bf16.msra.mxu0 %v3538
    %4731 = vmatprep.subr.bf16.mxu0 0
    %4732 = vmatpush1.bf16.msra.mxu0 %v3539
    %4733 = vmatprep.subr.bf16.mxu0 0
    %4734 = vmatpush1.bf16.msra.mxu0 %v3540
    %4735 = vmatprep.subr.bf16.mxu0 0
    %4736 = vmatpush1.bf16.msra.mxu0 %v3541
    %4737 = vmatprep.subr.bf16.mxu0 0
    %4738 = vmatpush1.bf16.msra.mxu0 %v3542
    %4739 = vmatprep.subr.bf16.mxu0 0
    %4740 = vmatpush1.bf16.msra.mxu0 %v3543
    %4741 = vmatprep.subr.bf16.mxu0 0
    %4742 = vmatpush1.bf16.msra.mxu0 %v3544
    %4743 = vmatprep.subr.bf16.mxu0 0
    %4744 = vmatpush1.bf16.msra.mxu0 %v3545
    %4745 = vmatprep.subr.bf16.mxu0 0
    %4746 = vmatpush1.bf16.msra.mxu0 %v3546
    %4747 = vmatprep.subr.bf16.mxu0 0
    %4748 = vmatpush1.bf16.msra.mxu0 %v3547
    %4749 = vmatprep.subr.bf16.mxu0 0
    %4750 = vmatpush1.bf16.msra.mxu0 %v3548
    %4751 = vmatprep.subr.bf16.mxu0 0
    %4752 = vmatpush1.bf16.msra.mxu0 %v3549
    %4753 = vmatprep.subr.bf16.mxu0 0
    %4754 = vmatpush1.bf16.msra.mxu0 %v3550
    %4755 = vmatprep.mubr.bf16.mxu0 %v1158
    %4756 = vmatmul.mubr.bf16.gmra.mrb[0].mxu0 %v1156
    %v4757 = vpop.f32.mrb[0].mxu0
    %v4758 = vadd.f32 %v4718, %v4757
    %v4759 = vpop.f32.mrb[0].mxu0
    %v4760 = vpop.f32.mrb[0].mxu0
    %v4761 = vpop.f32.mrb[0].mxu0
    %4762 = vdwg.mxu0
    %4763 = vmatprep.subr.bf16.mxu0 0
    %4764 = vmatpush1.bf16.msra.mxu0 %v3551
    %4765 = vmatprep.subr.bf16.mxu0 0
    %4766 = vmatpush1.bf16.msra.mxu0 %v3552
    %4767 = vmatprep.subr.bf16.mxu0 0
    %4768 = vmatpush1.bf16.msra.mxu0 %v3553
    %4769 = vmatprep.subr.bf16.mxu0 0
    %4770 = vmatpush1.bf16.msra.mxu0 %v3554
    %4771 = vmatprep.subr.bf16.mxu0 0
    %4772 = vmatpush1.bf16.msra.mxu0 %v3555
    %4773 = vmatprep.subr.bf16.mxu0 0
    %4774 = vmatpush1.bf16.msra.mxu0 %v3556
    %4775 = vmatprep.subr.bf16.mxu0 0
    %4776 = vmatpush1.bf16.msra.mxu0 %v3557
    %4777 = vmatprep.subr.bf16.mxu0 0
    %4778 = vmatpush1.bf16.msra.mxu0 %v3558
    %4779 = vmatprep.subr.bf16.mxu0 0
    %4780 = vmatpush1.bf16.msra.mxu0 %v3559
    %4781 = vmatprep.subr.bf16.mxu0 0
    %4782 = vmatpush1.bf16.msra.mxu0 %v3560
    %4783 = vmatprep.subr.bf16.mxu0 0
    %4784 = vmatpush1.bf16.msra.mxu0 %v3561
    %4785 = vmatprep.subr.bf16.mxu0 0
    %4786 = vmatpush1.bf16.msra.mxu0 %v3562
    %4787 = vmatprep.subr.bf16.mxu0 0
    %4788 = vmatpush1.bf16.msra.mxu0 %v3563
    %4789 = vmatprep.subr.bf16.mxu0 0
    %4790 = vmatpush1.bf16.msra.mxu0 %v3564
    %4791 = vmatprep.subr.bf16.mxu0 0
    %4792 = vmatpush1.bf16.msra.mxu0 %v3565
    %4793 = vmatprep.subr.bf16.mxu0 0
    %4794 = vmatpush1.bf16.msra.mxu0 %v3566
    %4795 = vmatprep.mubr.bf16.mxu0 %v1155
    %4796 = vmatmul.mubr.bf16.gmra.mrb[0].mxu0 %v1141
    %v4797 = vpop.f32.mrb[0].mxu0
    %v4798 = vadd.f32 %v4758, %v4797
    %v4799 = vpop.f32.mrb[0].mxu0
    %v4800 = vpop.f32.mrb[0].mxu0
    %v4801 = vpop.f32.mrb[0].mxu0
    %4802 = vdwg.mxu0
    %4803 = vmatprep.subr.bf16.mxu0 0
    %4804 = vmatpush1.bf16.msra.mxu0 %v3567
    %4805 = vmatprep.subr.bf16.mxu0 0
    %4806 = vmatpush1.bf16.msra.mxu0 %v3568
    %4807 = vmatprep.subr.bf16.mxu0 0
    %4808 = vmatpush1.bf16.msra.mxu0 %v3569
    %4809 = vmatprep.subr.bf16.mxu0 0
    %4810 = vmatpush1.bf16.msra.mxu0 %v3570
    %4811 = vmatprep.subr.bf16.mxu0 0
    %4812 = vmatpush1.bf16.msra.mxu0 %v3571
    %4813 = vmatprep.subr.bf16.mxu0 0
    %4814 = vmatpush1.bf16.msra.mxu0 %v3572
    %4815 = vmatprep.subr.bf16.mxu0 0
    %4816 = vmatpush1.bf16.msra.mxu0 %v3573
    %4817 = vmatprep.subr.bf16.mxu0 0
    %4818 = vmatpush1.bf16.msra.mxu0 %v3574
    %4819 = vmatprep.subr.bf16.mxu0 0
    %4820 = vmatpush1.bf16.msra.mxu0 %v3575
    %4821 = vmatprep.subr.bf16.mxu0 0
    %4822 = vmatpush1.bf16.msra.mxu0 %v3576
    %4823 = vmatprep.subr.bf16.mxu0 0
    %4824 = vmatpush1.bf16.msra.mxu0 %v3577
    %4825 = vmatprep.subr.bf16.mxu0 0
    %4826 = vmatpush1.bf16.msra.mxu0 %v3578
    %4827 = vmatprep.subr.bf16.mxu0 0
    %4828 = vmatpush1.bf16.msra.mxu0 %v3579
    %4829 = vmatprep.subr.bf16.mxu0 0
    %4830 = vmatpush1.bf16.msra.mxu0 %v3580
    %4831 = vmatprep.subr.bf16.mxu0 0
    %4832 = vmatpush1.bf16.msra.mxu0 %v3581
    %4833 = vmatprep.subr.bf16.mxu0 0
    %4834 = vmatpush1.bf16.msra.mxu0 %v3582
    %4835 = vmatprep.mubr.bf16.mxu0 %v1159
    %4836 = vmatmul.mubr.bf16.gmra.mrb[0].mxu0 %v1157
    %v4837 = vpop.f32.mrb[0].mxu0
    %v4838 = vadd.f32 %v4798, %v4837
    %v4839 = vpop.f32.mrb[0].mxu0
    %v4840 = vpop.f32.mrb[0].mxu0
    %v4841 = vpop.f32.mrb[0].mxu0
    %4842 = vdwg.mxu0
    %4843 = vmatprep.subr.bf16.mxu0 0
    %4844 = vmatpush1.bf16.msra.mxu0 %v3583
    %4845 = vmatprep.subr.bf16.mxu0 0
    %4846 = vmatpush1.bf16.msra.mxu0 %v3584
    %4847 = vmatprep.subr.bf16.mxu0 0
    %4848 = vmatpush1.bf16.msra.mxu0 %v3585
    %4849 = vmatprep.subr.bf16.mxu0 0
    %4850 = vmatpush1.bf16.msra.mxu0 %v3586
    %4851 = vmatprep.subr.bf16.mxu0 0
    %4852 = vmatpush1.bf16.msra.mxu0 %v3587
    %4853 = vmatprep.subr.bf16.mxu0 0
    %4854 = vmatpush1.bf16.msra.mxu0 %v3588
    %4855 = vmatprep.subr.bf16.mxu0 0
    %4856 = vmatpush1.bf16.msra.mxu0 %v3589
    %4857 = vmatprep.subr.bf16.mxu0 0
    %4858 = vmatpush1.bf16.msra.mxu0 %v3590
    %4859 = vmatprep.subr.bf16.mxu0 0
    %4860 = vmatpush1.bf16.msra.mxu0 %v3591
    %4861 = vmatprep.subr.bf16.mxu0 0
    %4862 = vmatpush1.bf16.msra.mxu0 %v3592
    %4863 = vmatprep.subr.bf16.mxu0 0
    %4864 = vmatpush1.bf16.msra.mxu0 %v3593
    %4865 = vmatprep.subr.bf16.mxu0 0
    %4866 = vmatpush1.bf16.msra.mxu0 %v3594
    %4867 = vmatprep.subr.bf16.mxu0 0
    %4868 = vmatpush1.bf16.msra.mxu0 %v3595
    %4869 = vmatprep.subr.bf16.mxu0 0
    %4870 = vmatpush1.bf16.msra.mxu0 %v3596
    %4871 = vmatprep.subr.bf16.mxu0 0
    %4872 = vmatpush1.bf16.msra.mxu0 %v3597
    %4873 = vmatprep.subr.bf16.mxu0 0
    %4874 = vmatpush1.bf16.msra.mxu0 %v3598
    %4875 = vmatprep.mubr.bf16.mxu0 %v1197
    %4876 = vmatmul.mubr.bf16.gmra.mrb[0].mxu0 %v1183
    %v4877 = vpop.f32.mrb[0].mxu0
    %v4878 = vadd.f32 %v4838, %v4877
    %v4879 = vpop.f32.mrb[0].mxu0
    %v4880 = vpop.f32.mrb[0].mxu0
    %v4881 = vpop.f32.mrb[0].mxu0
    %4882 = vdwg.mxu0
    %4883 = vmatprep.subr.bf16.mxu0 0
    %4884 = vmatpush1.bf16.msra.mxu0 %v3599
    %4885 = vmatprep.subr.bf16.mxu0 0
    %4886 = vmatpush1.bf16.msra.mxu0 %v3600
    %4887 = vmatprep.subr.bf16.mxu0 0
    %4888 = vmatpush1.bf16.msra.mxu0 %v3601
    %4889 = vmatprep.subr.bf16.mxu0 0
    %4890 = vmatpush1.bf16.msra.mxu0 %v3602
    %4891 = vmatprep.subr.bf16.mxu0 0
    %4892 = vmatpush1.bf16.msra.mxu0 %v3603
    %4893 = vmatprep.subr.bf16.mxu0 0
    %4894 = vmatpush1.bf16.msra.mxu0 %v3604
    %4895 = vmatprep.subr.bf16.mxu0 0
    %4896 = vmatpush1.bf16.msra.mxu0 %v3605
    %4897 = vmatprep.subr.bf16.mxu0 0
    %4898 = vmatpush1.bf16.msra.mxu0 %v3606
    %4899 = vmatprep.subr.bf16.mxu0 0
    %4900 = vmatpush1.bf16.msra.mxu0 %v3607
    %4901 = vmatprep.subr.bf16.mxu0 0
    %4902 = vmatpush1.bf16.msra.mxu0 %v3608
    %4903 = vmatprep.subr.bf16.mxu0 0
    %4904 = vmatpush1.bf16.msra.mxu0 %v3609
    %4905 = vmatprep.subr.bf16.mxu0 0
    %4906 = vmatpush1.bf16.msra.mxu0 %v3610
    %4907 = vmatprep.subr.bf16.mxu0 0
    %4908 = vmatpush1.bf16.msra.mxu0 %v3611
    %4909 = vmatprep.subr.bf16.mxu0 0
    %4910 = vmatpush1.bf16.msra.mxu0 %v3612
    %4911 = vmatprep.subr.bf16.mxu0 0
    %4912 = vmatpush1.bf16.msra.mxu0 %v3613
    %4913 = vmatprep.subr.bf16.mxu0 0
    %4914 = vmatpush1.bf16.msra.mxu0 %v3614
    %4915 = vmatprep.mubr.bf16.mxu0 %v1207
    %4916 = vmatmul.mubr.bf16.gmra.mrb[0].mxu0 %v1205
    %v4917 = vpop.f32.mrb[0].mxu0
    %v4918 = vadd.f32 %v4878, %v4917
    %v4919 = vpop.f32.mrb[0].mxu0
    %v4920 = vpop.f32.mrb[0].mxu0
    %v4921 = vpop.f32.mrb[0].mxu0
    %4922 = vdwg.mxu0
    %4923 = vmatprep.subr.bf16.mxu0 0
    %4924 = vmatpush1.bf16.msra.mxu0 %v3615
    %4925 = vmatprep.subr.bf16.mxu0 0
    %4926 = vmatpush1.bf16.msra.mxu0 %v3616
    %4927 = vmatprep.subr.bf16.mxu0 0
    %4928 = vmatpush1.bf16.msra.mxu0 %v3617
    %4929 = vmatprep.subr.bf16.mxu0 0
    %4930 = vmatpush1.bf16.msra.mxu0 %v3618
    %4931 = vmatprep.subr.bf16.mxu0 0
    %4932 = vmatpush1.bf16.msra.mxu0 %v3619
    %4933 = vmatprep.subr.bf16.mxu0 0
    %4934 = vmatpush1.bf16.msra.mxu0 %v3620
    %4935 = vmatprep.subr.bf16.mxu0 0
    %4936 = vmatpush1.bf16.msra.mxu0 %v3621
    %4937 = vmatprep.subr.bf16.mxu0 0
    %4938 = vmatpush1.bf16.msra.mxu0 %v3622
    %4939 = vmatprep.subr.bf16.mxu0 0
    %4940 = vmatpush1.bf16.msra.mxu0 %v3623
    %4941 = vmatprep.subr.bf16.mxu0 0
    %4942 = vmatpush1.bf16.msra.mxu0 %v3624
    %4943 = vmatprep.subr.bf16.mxu0 0
    %4944 = vmatpush1.bf16.msra.mxu0 %v3625
    %4945 = vmatprep.subr.bf16.mxu0 0
    %4946 = vmatpush1.bf16.msra.mxu0 %v3626
    %4947 = vmatprep.subr.bf16.mxu0 0
    %4948 = vmatpush1.bf16.msra.mxu0 %v3627
    %4949 = vmatprep.subr.bf16.mxu0 0
    %4950 = vmatpush1.bf16.msra.mxu0 %v3628
    %4951 = vmatprep.subr.bf16.mxu0 0
    %4952 = vmatpush1.bf16.msra.mxu0 %v3629
    %4953 = vmatprep.subr.bf16.mxu0 0
    %4954 = vmatpush1.bf16.msra.mxu0 %v3630
    %4955 = vmatprep.mubr.bf16.mxu0 %v1204
    %4956 = vmatmul.mubr.bf16.gmra.mrb[0].mxu0 %v1190
    %v4957 = vpop.f32.mrb[0].mxu0
    %v4958 = vadd.f32 %v4918, %v4957
    %v4959 = vpop.f32.mrb[0].mxu0
    %v4960 = vpop.f32.mrb[0].mxu0
    %v4961 = vpop.f32.mrb[0].mxu0
    %4962 = vdwg.mxu0
    %4963 = vmatprep.subr.bf16.mxu0 0
    %4964 = vmatpush1.bf16.msra.mxu0 %v3631
    %4965 = vmatprep.subr.bf16.mxu0 0
    %4966 = vmatpush1.bf16.msra.mxu0 %v3632
    %4967 = vmatprep.subr.bf16.mxu0 0
    %4968 = vmatpush1.bf16.msra.mxu0 %v3633
    %4969 = vmatprep.subr.bf16.mxu0 0
    %4970 = vmatpush1.bf16.msra.mxu0 %v3634
    %4971 = vmatprep.subr.bf16.mxu0 0
    %4972 = vmatpush1.bf16.msra.mxu0 %v3635
    %4973 = vmatprep.subr.bf16.mxu0 0
    %4974 = vmatpush1.bf16.msra.mxu0 %v3636
    %4975 = vmatprep.subr.bf16.mxu0 0
    %4976 = vmatpush1.bf16.msra.mxu0 %v3637
    %4977 = vmatprep.subr.bf16.mxu0 0
    %4978 = vmatpush1.bf16.msra.mxu0 %v3638
    %4979 = vmatprep.subr.bf16.mxu0 0
    %4980 = vmatpush1.bf16.msra.mxu0 %v3639
    %4981 = vmatprep.subr.bf16.mxu0 0
    %4982 = vmatpush1.bf16.msra.mxu0 %v3640
    %4983 = vmatprep.subr.bf16.mxu0 0
    %4984 = vmatpush1.bf16.msra.mxu0 %v3641
    %4985 = vmatprep.subr.bf16.mxu0 0
    %4986 = vmatpush1.bf16.msra.mxu0 %v3642
    %4987 = vmatprep.subr.bf16.mxu0 0
    %4988 = vmatpush1.bf16.msra.mxu0 %v3643
    %4989 = vmatprep.subr.bf16.mxu0 0
    %4990 = vmatpush1.bf16.msra.mxu0 %v3644
    %4991 = vmatprep.subr.bf16.mxu0 0
    %4992 = vmatpush1.bf16.msra.mxu0 %v3645
    %4993 = vmatprep.subr.bf16.mxu0 0
    %4994 = vmatpush1.bf16.msra.mxu0 %v3646
    %4995 = vmatprep.mubr.bf16.mxu0 %v1208
    %4996 = vmatmul.mubr.bf16.gmra.mrb[0].mxu0 %v1206
    %v4997 = vpop.f32.mrb[0].mxu0
    %v4998 = vadd.f32 %v4958, %v4997
    %v4999 = vpop.f32.mrb[0].mxu0
    %v5000 = vpop.f32.mrb[0].mxu0
    %v5001 = vpop.f32.mrb[0].mxu0
    %5002 = vdwg.mxu0
    %5003 = vmatprep.subr.bf16.mxu0 0
    %5004 = vmatpush1.bf16.msra.mxu0 %v3647
    %5005 = vmatprep.subr.bf16.mxu0 0
    %5006 = vmatpush1.bf16.msra.mxu0 %v3648
    %5007 = vmatprep.subr.bf16.mxu0 0
    %5008 = vmatpush1.bf16.msra.mxu0 %v3649
    %5009 = vmatprep.subr.bf16.mxu0 0
    %5010 = vmatpush1.bf16.msra.mxu0 %v3650
    %5011 = vmatprep.subr.bf16.mxu0 0
    %5012 = vmatpush1.bf16.msra.mxu0 %v3651
    %5013 = vmatprep.subr.bf16.mxu0 0
    %5014 = vmatpush1.bf16.msra.mxu0 %v3652
    %5015 = vmatprep.subr.bf16.mxu0 0
    %5016 = vmatpush1.bf16.msra.mxu0 %v3653
    %5017 = vmatprep.subr.bf16.mxu0 0
    %5018 = vmatpush1.bf16.msra.mxu0 %v3654
    %5019 = vmatprep.subr.bf16.mxu0 0
    %5020 = vmatpush1.bf16.msra.mxu0 %v3655
    %5021 = vmatprep.subr.bf16.mxu0 0
    %5022 = vmatpush1.bf16.msra.mxu0 %v3656
    %5023 = vmatprep.subr.bf16.mxu0 0
    %5024 = vmatpush1.bf16.msra.mxu0 %v3657
    %5025 = vmatprep.subr.bf16.mxu0 0
    %5026 = vmatpush1.bf16.msra.mxu0 %v3658
    %5027 = vmatprep.subr.bf16.mxu0 0
    %5028 = vmatpush1.bf16.msra.mxu0 %v3659
    %5029 = vmatprep.subr.bf16.mxu0 0
    %5030 = vmatpush1.bf16.msra.mxu0 %v3660
    %5031 = vmatprep.subr.bf16.mxu0 0
    %5032 = vmatpush1.bf16.msra.mxu0 %v3661
    %5033 = vmatprep.subr.bf16.mxu0 0
    %5034 = vmatpush1.bf16.msra.mxu0 %v3662
    %5035 = vmatprep.mubr.bf16.mxu0 %v1246
    %5036 = vmatmul.mubr.bf16.gmra.mrb[0].mxu0 %v1232
    %v5037 = vpop.f32.mrb[0].mxu0
    %v5038 = vadd.f32 %v4998, %v5037
    %v5039 = vpop.f32.mrb[0].mxu0
    %v5040 = vpop.f32.mrb[0].mxu0
    %v5041 = vpop.f32.mrb[0].mxu0
    %5042 = vdwg.mxu0
    %5043 = vmatprep.subr.bf16.mxu0 0
    %5044 = vmatpush1.bf16.msra.mxu0 %v3663
    %5045 = vmatprep.subr.bf16.mxu0 0
    %5046 = vmatpush1.bf16.msra.mxu0 %v3664
    %5047 = vmatprep.subr.bf16.mxu0 0
    %5048 = vmatpush1.bf16.msra.mxu0 %v3665
    %5049 = vmatprep.subr.bf16.mxu0 0
    %5050 = vmatpush1.bf16.msra.mxu0 %v3666
    %5051 = vmatprep.subr.bf16.mxu0 0
    %5052 = vmatpush1.bf16.msra.mxu0 %v3667
    %5053 = vmatprep.subr.bf16.mxu0 0
    %5054 = vmatpush1.bf16.msra.mxu0 %v3668
    %5055 = vmatprep.subr.bf16.mxu0 0
    %5056 = vmatpush1.bf16.msra.mxu0 %v3669
    %5057 = vmatprep.subr.bf16.mxu0 0
    %5058 = vmatpush1.bf16.msra.mxu0 %v3670
    %5059 = vmatprep.subr.bf16.mxu0 0
    %5060 = vmatpush1.bf16.msra.mxu0 %v3671
    %5061 = vmatprep.subr.bf16.mxu0 0
    %5062 = vmatpush1.bf16.msra.mxu0 %v3672
    %5063 = vmatprep.subr.bf16.mxu0 0
    %5064 = vmatpush1.bf16.msra.mxu0 %v3673
    %5065 = vmatprep.subr.bf16.mxu0 0
    %5066 = vmatpush1.bf16.msra.mxu0 %v3674
    %5067 = vmatprep.subr.bf16.mxu0 0
    %5068 = vmatpush1.bf16.msra.mxu0 %v3675
    %5069 = vmatprep.subr.bf16.mxu0 0
    %5070 = vmatpush1.bf16.msra.mxu0 %v3676
    %5071 = vmatprep.subr.bf16.mxu0 0
    %5072 = vmatpush1.bf16.msra.mxu0 %v3677
    %5073 = vmatprep.subr.bf16.mxu0 0
    %5074 = vmatpush1.bf16.msra.mxu0 %v3678
    %5075 = vmatprep.mubr.bf16.mxu0 %v1256
    %5076 = vmatmul.mubr.bf16.gmra.mrb[0].mxu0 %v1254
    %v5077 = vpop.f32.mrb[0].mxu0
    %v5078 = vadd.f32 %v5038, %v5077
    %v5079 = vpop.f32.mrb[0].mxu0
    %v5080 = vpop.f32.mrb[0].mxu0
    %v5081 = vpop.f32.mrb[0].mxu0
    %5082 = vdwg.mxu0
    %5083 = vmatprep.subr.bf16.mxu0 0
    %5084 = vmatpush1.bf16.msra.mxu0 %v3679
    %5085 = vmatprep.subr.bf16.mxu0 0
    %5086 = vmatpush1.bf16.msra.mxu0 %v3680
    %5087 = vmatprep.subr.bf16.mxu0 0
    %5088 = vmatpush1.bf16.msra.mxu0 %v3681
    %5089 = vmatprep.subr.bf16.mxu0 0
    %5090 = vmatpush1.bf16.msra.mxu0 %v3682
    %5091 = vmatprep.subr.bf16.mxu0 0
    %5092 = vmatpush1.bf16.msra.mxu0 %v3683
    %5093 = vmatprep.subr.bf16.mxu0 0
    %5094 = vmatpush1.bf16.msra.mxu0 %v3684
    %5095 = vmatprep.subr.bf16.mxu0 0
    %5096 = vmatpush1.bf16.msra.mxu0 %v3685
    %5097 = vmatprep.subr.bf16.mxu0 0
    %5098 = vmatpush1.bf16.msra.mxu0 %v3686
    %5099 = vmatprep.subr.bf16.mxu0 0
    %5100 = vmatpush1.bf16.msra.mxu0 %v3687
    %5101 = vmatprep.subr.bf16.mxu0 0
    %5102 = vmatpush1.bf16.msra.mxu0 %v3688
    %5103 = vmatprep.subr.bf16.mxu0 0
    %5104 = vmatpush1.bf16.msra.mxu0 %v3689
    %5105 = vmatprep.subr.bf16.mxu0 0
    %5106 = vmatpush1.bf16.msra.mxu0 %v3690
    %5107 = vmatprep.subr.bf16.mxu0 0
    %5108 = vmatpush1.bf16.msra.mxu0 %v3691
    %5109 = vmatprep.subr.bf16.mxu0 0
    %5110 = vmatpush1.bf16.msra.mxu0 %v3692
    %5111 = vmatprep.subr.bf16.mxu0 0
    %5112 = vmatpush1.bf16.msra.mxu0 %v3693
    %5113 = vmatprep.subr.bf16.mxu0 0
    %5114 = vmatpush1.bf16.msra.mxu0 %v3694
    %5115 = vmatprep.mubr.bf16.mxu0 %v1253
    %5116 = vmatmul.mubr.bf16.gmra.mrb[0].mxu0 %v1239
    %v5117 = vpop.f32.mrb[0].mxu0
    %v5118 = vadd.f32 %v5078, %v5117
    %v5119 = vpop.f32.mrb[0].mxu0
    %v5120 = vpop.f32.mrb[0].mxu0
    %v5121 = vpop.f32.mrb[0].mxu0
    %5122 = vdwg.mxu0
    %5123 = vmatprep.subr.bf16.mxu0 0
    %5124 = vmatpush1.bf16.msra.mxu0 %v3695
    %5125 = vmatprep.subr.bf16.mxu0 0
    %5126 = vmatpush1.bf16.msra.mxu0 %v3696
    %5127 = vmatprep.subr.bf16.mxu0 0
    %5128 = vmatpush1.bf16.msra.mxu0 %v3697
    %5129 = vmatprep.subr.bf16.mxu0 0
    %5130 = vmatpush1.bf16.msra.mxu0 %v3698
    %5131 = vmatprep.subr.bf16.mxu0 0
    %5132 = vmatpush1.bf16.msra.mxu0 %v3699
    %5133 = vmatprep.subr.bf16.mxu0 0
    %5134 = vmatpush1.bf16.msra.mxu0 %v3700
    %5135 = vmatprep.subr.bf16.mxu0 0
    %5136 = vmatpush1.bf16.msra.mxu0 %v3701
    %5137 = vmatprep.subr.bf16.mxu0 0
    %5138 = vmatpush1.bf16.msra.mxu0 %v3702
    %5139 = vmatprep.subr.bf16.mxu0 0
    %5140 = vmatpush1.bf16.msra.mxu0 %v3703
    %5141 = vmatprep.subr.bf16.mxu0 0
    %5142 = vmatpush1.bf16.msra.mxu0 %v3704
    %5143 = vmatprep.subr.bf16.mxu0 0
    %5144 = vmatpush1.bf16.msra.mxu0 %v3705
    %5145 = vmatprep.subr.bf16.mxu0 0
    %5146 = vmatpush1.bf16.msra.mxu0 %v3706
    %5147 = vmatprep.subr.bf16.mxu0 0
    %5148 = vmatpush1.bf16.msra.mxu0 %v3707
    %5149 = vmatprep.subr.bf16.mxu0 0
    %5150 = vmatpush1.bf16.msra.mxu0 %v3708
    %5151 = vmatprep.subr.bf16.mxu0 0
    %5152 = vmatpush1.bf16.msra.mxu0 %v3709
    %5153 = vmatprep.subr.bf16.mxu0 0
    %5154 = vmatpush1.bf16.msra.mxu0 %v3710
    %5155 = vmatprep.mubr.bf16.mxu0 %v1257
    %5156 = vmatmul.mubr.bf16.gmra.mrb[0].mxu0 %v1255
    %v5157 = vpop.f32.mrb[0].mxu0
    %v5158 = vadd.f32 %v5118, %v5157
    %v5159 = vpop.f32.mrb[0].mxu0
    %v5160 = vpop.f32.mrb[0].mxu0
    %v5161 = vpop.f32.mrb[0].mxu0
    %5162 = vdwg.mxu0
    %5163 = vmatprep.subr.bf16.mxu0 0
    %5164 = vmatpush1.bf16.msra.mxu0 %v3711
    %5165 = vmatprep.subr.bf16.mxu0 0
    %5166 = vmatpush1.bf16.msra.mxu0 %v3712
    %5167 = vmatprep.subr.bf16.mxu0 0
    %5168 = vmatpush1.bf16.msra.mxu0 %v3713
    %5169 = vmatprep.subr.bf16.mxu0 0
    %5170 = vmatpush1.bf16.msra.mxu0 %v3714
    %5171 = vmatprep.subr.bf16.mxu0 0
    %5172 = vmatpush1.bf16.msra.mxu0 %v3715
    %5173 = vmatprep.subr.bf16.mxu0 0
    %5174 = vmatpush1.bf16.msra.mxu0 %v3716
    %5175 = vmatprep.subr.bf16.mxu0 0
    %5176 = vmatpush1.bf16.msra.mxu0 %v3717
    %5177 = vmatprep.subr.bf16.mxu0 0
    %5178 = vmatpush1.bf16.msra.mxu0 %v3718
    %5179 = vmatprep.subr.bf16.mxu0 0
    %5180 = vmatpush1.bf16.msra.mxu0 %v3719
    %5181 = vmatprep.subr.bf16.mxu0 0
    %5182 = vmatpush1.bf16.msra.mxu0 %v3720
    %5183 = vmatprep.subr.bf16.mxu0 0
    %5184 = vmatpush1.bf16.msra.mxu0 %v3721
    %5185 = vmatprep.subr.bf16.mxu0 0
    %5186 = vmatpush1.bf16.msra.mxu0 %v3722
    %5187 = vmatprep.subr.bf16.mxu0 0
    %5188 = vmatpush1.bf16.msra.mxu0 %v3723
    %5189 = vmatprep.subr.bf16.mxu0 0
    %5190 = vmatpush1.bf16.msra.mxu0 %v3724
    %5191 = vmatprep.subr.bf16.mxu0 0
    %5192 = vmatpush1.bf16.msra.mxu0 %v3725
    %5193 = vmatprep.subr.bf16.mxu0 0
    %5194 = vmatpush1.bf16.msra.mxu0 %v3726
    %5195 = vmatprep.mubr.bf16.mxu0 %v1295
    %5196 = vmatmul.mubr.bf16.gmra.mrb[0].mxu0 %v1281
    %v5197 = vpop.f32.mrb[0].mxu0
    %v5198 = vadd.f32 %v5158, %v5197
    %v5199 = vpop.f32.mrb[0].mxu0
    %v5200 = vpop.f32.mrb[0].mxu0
    %v5201 = vpop.f32.mrb[0].mxu0
    %5202 = vdwg.mxu0
    %5203 = vmatprep.subr.bf16.mxu0 0
    %5204 = vmatpush1.bf16.msra.mxu0 %v3727
    %5205 = vmatprep.subr.bf16.mxu0 0
    %5206 = vmatpush1.bf16.msra.mxu0 %v3728
    %5207 = vmatprep.subr.bf16.mxu0 0
    %5208 = vmatpush1.bf16.msra.mxu0 %v3729
    %5209 = vmatprep.subr.bf16.mxu0 0
    %5210 = vmatpush1.bf16.msra.mxu0 %v3730
    %5211 = vmatprep.subr.bf16.mxu0 0
    %5212 = vmatpush1.bf16.msra.mxu0 %v3731
    %5213 = vmatprep.subr.bf16.mxu0 0
    %5214 = vmatpush1.bf16.msra.mxu0 %v3732
    %5215 = vmatprep.subr.bf16.mxu0 0
    %5216 = vmatpush1.bf16.msra.mxu0 %v3733
    %5217 = vmatprep.subr.bf16.mxu0 0
    %5218 = vmatpush1.bf16.msra.mxu0 %v3734
    %5219 = vmatprep.subr.bf16.mxu0 0
    %5220 = vmatpush1.bf16.msra.mxu0 %v3735
    %5221 = vmatprep.subr.bf16.mxu0 0
    %5222 = vmatpush1.bf16.msra.mxu0 %v3736
    %5223 = vmatprep.subr.bf16.mxu0 0
    %5224 = vmatpush1.bf16.msra.mxu0 %v3737
    %5225 = vmatprep.subr.bf16.mxu0 0
    %5226 = vmatpush1.bf16.msra.mxu0 %v3738
    %5227 = vmatprep.subr.bf16.mxu0 0
    %5228 = vmatpush1.bf16.msra.mxu0 %v3739
    %5229 = vmatprep.subr.bf16.mxu0 0
    %5230 = vmatpush1.bf16.msra.mxu0 %v3740
    %5231 = vmatprep.subr.bf16.mxu0 0
    %5232 = vmatpush1.bf16.msra.mxu0 %v3741
    %5233 = vmatprep.subr.bf16.mxu0 0
    %5234 = vmatpush1.bf16.msra.mxu0 %v3742
    %5235 = vmatprep.mubr.bf16.mxu0 %v1305
    %5236 = vmatmul.mubr.bf16.gmra.mrb[0].mxu0 %v1303
    %v5237 = vpop.f32.mrb[0].mxu0
    %v5238 = vadd.f32 %v5198, %v5237
    %v5239 = vpop.f32.mrb[0].mxu0
    %v5240 = vpop.f32.mrb[0].mxu0
    %v5241 = vpop.f32.mrb[0].mxu0
    %5242 = vdwg.mxu0
    %5243 = vmatprep.subr.bf16.mxu0 0
    %5244 = vmatpush1.bf16.msra.mxu0 %v3743
    %5245 = vmatprep.subr.bf16.mxu0 0
    %5246 = vmatpush1.bf16.msra.mxu0 %v3744
    %5247 = vmatprep.subr.bf16.mxu0 0
    %5248 = vmatpush1.bf16.msra.mxu0 %v3745
    %5249 = vmatprep.subr.bf16.mxu0 0
    %5250 = vmatpush1.bf16.msra.mxu0 %v3746
    %5251 = vmatprep.subr.bf16.mxu0 0
    %5252 = vmatpush1.bf16.msra.mxu0 %v3747
    %5253 = vmatprep.subr.bf16.mxu0 0
    %5254 = vmatpush1.bf16.msra.mxu0 %v3748
    %5255 = vmatprep.subr.bf16.mxu0 0
    %5256 = vmatpush1.bf16.msra.mxu0 %v3749
    %5257 = vmatprep.subr.bf16.mxu0 0
    %5258 = vmatpush1.bf16.msra.mxu0 %v3750
    %5259 = vmatprep.subr.bf16.mxu0 0
    %5260 = vmatpush1.bf16.msra.mxu0 %v3751
    %5261 = vmatprep.subr.bf16.mxu0 0
    %5262 = vmatpush1.bf16.msra.mxu0 %v3752
    %5263 = vmatprep.subr.bf16.mxu0 0
    %5264 = vmatpush1.bf16.msra.mxu0 %v3753
    %5265 = vmatprep.subr.bf16.mxu0 0
    %5266 = vmatpush1.bf16.msra.mxu0 %v3754
    %5267 = vmatprep.subr.bf16.mxu0 0
    %5268 = vmatpush1.bf16.msra.mxu0 %v3755
    %5269 = vmatprep.subr.bf16.mxu0 0
    %5270 = vmatpush1.bf16.msra.mxu0 %v3756
    %5271 = vmatprep.subr.bf16.mxu0 0
    %5272 = vmatpush1.bf16.msra.mxu0 %v3757
    %5273 = vmatprep.subr.bf16.mxu0 0
    %5274 = vmatpush1.bf16.msra.mxu0 %v3758
    %5275 = vmatprep.mubr.bf16.mxu0 %v1302
    %5276 = vmatmul.mubr.bf16.gmra.mrb[0].mxu0 %v1288
    %v5277 = vpop.f32.mrb[0].mxu0
    %v5278 = vadd.f32 %v5238, %v5277
    %v5279 = vpop.f32.mrb[0].mxu0
    %v5280 = vpop.f32.mrb[0].mxu0
    %v5281 = vpop.f32.mrb[0].mxu0
    %5282 = vdwg.mxu0
    %5283 = vmatprep.subr.bf16.mxu0 0
    %5284 = vmatpush1.bf16.msra.mxu0 %v3759
    %5285 = vmatprep.subr.bf16.mxu0 0
    %5286 = vmatpush1.bf16.msra.mxu0 %v3760
    %5287 = vmatprep.subr.bf16.mxu0 0
    %5288 = vmatpush1.bf16.msra.mxu0 %v3761
    %5289 = vmatprep.subr.bf16.mxu0 0
    %5290 = vmatpush1.bf16.msra.mxu0 %v3762
    %5291 = vmatprep.subr.bf16.mxu0 0
    %5292 = vmatpush1.bf16.msra.mxu0 %v3763
    %5293 = vmatprep.subr.bf16.mxu0 0
    %5294 = vmatpush1.bf16.msra.mxu0 %v3764
    %5295 = vmatprep.subr.bf16.mxu0 0
    %5296 = vmatpush1.bf16.msra.mxu0 %v3765
    %5297 = vmatprep.subr.bf16.mxu0 0
    %5298 = vmatpush1.bf16.msra.mxu0 %v3766
    %5299 = vmatprep.subr.bf16.mxu0 0
    %5300 = vmatpush1.bf16.msra.mxu0 %v3767
    %5301 = vmatprep.subr.bf16.mxu0 0
    %5302 = vmatpush1.bf16.msra.mxu0 %v3768
    %5303 = vmatprep.subr.bf16.mxu0 0
    %5304 = vmatpush1.bf16.msra.mxu0 %v3769
    %5305 = vmatprep.subr.bf16.mxu0 0
    %5306 = vmatpush1.bf16.msra.mxu0 %v3770
    %5307 = vmatprep.subr.bf16.mxu0 0
    %5308 = vmatpush1.bf16.msra.mxu0 %v3771
    %5309 = vmatprep.subr.bf16.mxu0 0
    %5310 = vmatpush1.bf16.msra.mxu0 %v3772
    %5311 = vmatprep.subr.bf16.mxu0 0
    %5312 = vmatpush1.bf16.msra.mxu0 %v3773
    %5313 = vmatprep.subr.bf16.mxu0 0
    %5314 = vmatpush1.bf16.msra.mxu0 %v3774
    %5315 = vmatprep.mubr.bf16.mxu0 %v1306
    %5316 = vmatmul.mubr.bf16.gmra.mrb[0].mxu0 %v1304
    %v5317 = vpop.f32.mrb[0].mxu0
    %v5318 = vadd.f32 %v5278, %v5317
    %v5319 = vpop.f32.mrb[0].mxu0
    %v5320 = vpop.f32.mrb[0].mxu0
    %v5321 = vpop.f32.mrb[0].mxu0
    %5322 = vdwg.mxu0
    %5323 = vmatprep.subr.bf16.mxu0 0
    %5324 = vmatpush1.bf16.msra.mxu0 %v3775
    %5325 = vmatprep.subr.bf16.mxu0 0
    %5326 = vmatpush1.bf16.msra.mxu0 %v3776
    %5327 = vmatprep.subr.bf16.mxu0 0
    %5328 = vmatpush1.bf16.msra.mxu0 %v3777
    %5329 = vmatprep.subr.bf16.mxu0 0
    %5330 = vmatpush1.bf16.msra.mxu0 %v3778
    %5331 = vmatprep.subr.bf16.mxu0 0
    %5332 = vmatpush1.bf16.msra.mxu0 %v3779
    %5333 = vmatprep.subr.bf16.mxu0 0
    %5334 = vmatpush1.bf16.msra.mxu0 %v3780
    %5335 = vmatprep.subr.bf16.mxu0 0
    %5336 = vmatpush1.bf16.msra.mxu0 %v3781
    %5337 = vmatprep.subr.bf16.mxu0 0
    %5338 = vmatpush1.bf16.msra.mxu0 %v3782
    %5339 = vmatprep.subr.bf16.mxu0 0
    %5340 = vmatpush1.bf16.msra.mxu0 %v3783
    %5341 = vmatprep.subr.bf16.mxu0 0
    %5342 = vmatpush1.bf16.msra.mxu0 %v3784
    %5343 = vmatprep.subr.bf16.mxu0 0
    %5344 = vmatpush1.bf16.msra.mxu0 %v3785
    %5345 = vmatprep.subr.bf16.mxu0 0
    %5346 = vmatpush1.bf16.msra.mxu0 %v3786
    %5347 = vmatprep.subr.bf16.mxu0 0
    %5348 = vmatpush1.bf16.msra.mxu0 %v3787
    %5349 = vmatprep.subr.bf16.mxu0 0
    %5350 = vmatpush1.bf16.msra.mxu0 %v3788
    %5351 = vmatprep.subr.bf16.mxu0 0
    %5352 = vmatpush1.bf16.msra.mxu0 %v3789
    %5353 = vmatprep.subr.bf16.mxu0 0
    %5354 = vmatpush1.bf16.msra.mxu0 %v3790
    %5355 = vmatprep.mubr.bf16.mxu0 %v1344
    %5356 = vmatmul.mubr.bf16.gmra.mrb[0].mxu0 %v1330
    %v5357 = vpop.f32.mrb[0].mxu0
    %v5358 = vadd.f32 %v5318, %v5357
    %v5359 = vpop.f32.mrb[0].mxu0
    %v5360 = vpop.f32.mrb[0].mxu0
    %v5361 = vpop.f32.mrb[0].mxu0
    %5362 = vdwg.mxu0
    %5363 = vmatprep.subr.bf16.mxu0 0
    %5364 = vmatpush1.bf16.msra.mxu0 %v3791
    %5365 = vmatprep.subr.bf16.mxu0 0
    %5366 = vmatpush1.bf16.msra.mxu0 %v3792
    %5367 = vmatprep.subr.bf16.mxu0 0
    %5368 = vmatpush1.bf16.msra.mxu0 %v3793
    %5369 = vmatprep.subr.bf16.mxu0 0
    %5370 = vmatpush1.bf16.msra.mxu0 %v3794
    %5371 = vmatprep.subr.bf16.mxu0 0
    %5372 = vmatpush1.bf16.msra.mxu0 %v3795
    %5373 = vmatprep.subr.bf16.mxu0 0
    %5374 = vmatpush1.bf16.msra.mxu0 %v3796
    %5375 = vmatprep.subr.bf16.mxu0 0
    %5376 = vmatpush1.bf16.msra.mxu0 %v3797
    %5377 = vmatprep.subr.bf16.mxu0 0
    %5378 = vmatpush1.bf16.msra.mxu0 %v3798
    %5379 = vmatprep.subr.bf16.mxu0 0
    %5380 = vmatpush1.bf16.msra.mxu0 %v3799
    %5381 = vmatprep.subr.bf16.mxu0 0
    %5382 = vmatpush1.bf16.msra.mxu0 %v3800
    %5383 = vmatprep.subr.bf16.mxu0 0
    %5384 = vmatpush1.bf16.msra.mxu0 %v3801
    %5385 = vmatprep.subr.bf16.mxu0 0
    %5386 = vmatpush1.bf16.msra.mxu0 %v3802
    %5387 = vmatprep.subr.bf16.mxu0 0
    %5388 = vmatpush1.bf16.msra.mxu0 %v3803
    %5389 = vmatprep.subr.bf16.mxu0 0
    %5390 = vmatpush1.bf16.msra.mxu0 %v3804
    %5391 = vmatprep.subr.bf16.mxu0 0
    %5392 = vmatpush1.bf16.msra.mxu0 %v3805
    %5393 = vmatprep.subr.bf16.mxu0 0
    %5394 = vmatpush1.bf16.msra.mxu0 %v3806
    %5395 = vmatprep.mubr.bf16.mxu0 %v1354
    %5396 = vmatmul.mubr.bf16.gmra.mrb[0].mxu0 %v1352
    %v5397 = vpop.f32.mrb[0].mxu0
    %v5398 = vadd.f32 %v5358, %v5397
    %v5399 = vpop.f32.mrb[0].mxu0
    %v5400 = vpop.f32.mrb[0].mxu0
    %v5401 = vpop.f32.mrb[0].mxu0
    %5402 = vdwg.mxu0
    %5403 = vmatprep.subr.bf16.mxu0 0
    %5404 = vmatpush1.bf16.msra.mxu0 %v3807
    %5405 = vmatprep.subr.bf16.mxu0 0
    %5406 = vmatpush1.bf16.msra.mxu0 %v3808
    %5407 = vmatprep.subr.bf16.mxu0 0
    %5408 = vmatpush1.bf16.msra.mxu0 %v3809
    %5409 = vmatprep.subr.bf16.mxu0 0
    %5410 = vmatpush1.bf16.msra.mxu0 %v3810
    %5411 = vmatprep.subr.bf16.mxu0 0
    %5412 = vmatpush1.bf16.msra.mxu0 %v3811
    %5413 = vmatprep.subr.bf16.mxu0 0
    %5414 = vmatpush1.bf16.msra.mxu0 %v3812
    %5415 = vmatprep.subr.bf16.mxu0 0
    %5416 = vmatpush1.bf16.msra.mxu0 %v3813
    %5417 = vmatprep.subr.bf16.mxu0 0
    %5418 = vmatpush1.bf16.msra.mxu0 %v3814
    %5419 = vmatprep.subr.bf16.mxu0 0
    %5420 = vmatpush1.bf16.msra.mxu0 %v3815
    %5421 = vmatprep.subr.bf16.mxu0 0
    %5422 = vmatpush1.bf16.msra.mxu0 %v3816
    %5423 = vmatprep.subr.bf16.mxu0 0
    %5424 = vmatpush1.bf16.msra.mxu0 %v3817
    %5425 = vmatprep.subr.bf16.mxu0 0
    %5426 = vmatpush1.bf16.msra.mxu0 %v3818
    %5427 = vmatprep.subr.bf16.mxu0 0
    %5428 = vmatpush1.bf16.msra.mxu0 %v3819
    %5429 = vmatprep.subr.bf16.mxu0 0
    %5430 = vmatpush1.bf16.msra.mxu0 %v3820
    %5431 = vmatprep.subr.bf16.mxu0 0
    %5432 = vmatpush1.bf16.msra.mxu0 %v3821
    %5433 = vmatprep.subr.bf16.mxu0 0
    %5434 = vmatpush1.bf16.msra.mxu0 %v3822
    %5435 = vmatprep.mubr.bf16.mxu0 %v1351
    %5436 = vmatmul.mubr.bf16.gmra.mrb[0].mxu0 %v1337
    %v5437 = vpop.f32.mrb[0].mxu0
    %v5438 = vadd.f32 %v5398, %v5437
    %v5439 = vpop.f32.mrb[0].mxu0
    %v5440 = vpop.f32.mrb[0].mxu0
    %v5441 = vpop.f32.mrb[0].mxu0
    %5442 = vdwg.mxu0
    %5443 = vmatprep.subr.bf16.mxu0 0
    %5444 = vmatpush1.bf16.msra.mxu0 %v3823
    %5445 = vmatprep.subr.bf16.mxu0 0
    %5446 = vmatpush1.bf16.msra.mxu0 %v3824
    %5447 = vmatprep.subr.bf16.mxu0 0
    %5448 = vmatpush1.bf16.msra.mxu0 %v3825
    %5449 = vmatprep.subr.bf16.mxu0 0
    %5450 = vmatpush1.bf16.msra.mxu0 %v3826
    %5451 = vmatprep.subr.bf16.mxu0 0
    %5452 = vmatpush1.bf16.msra.mxu0 %v3827
    %5453 = vmatprep.subr.bf16.mxu0 0
    %5454 = vmatpush1.bf16.msra.mxu0 %v3828
    %5455 = vmatprep.subr.bf16.mxu0 0
    %5456 = vmatpush1.bf16.msra.mxu0 %v3829
    %5457 = vmatprep.subr.bf16.mxu0 0
    %5458 = vmatpush1.bf16.msra.mxu0 %v3830
    %5459 = vmatprep.subr.bf16.mxu0 0
    %5460 = vmatpush1.bf16.msra.mxu0 %v3831
    %5461 = vmatprep.subr.bf16.mxu0 0
    %5462 = vmatpush1.bf16.msra.mxu0 %v3832
    %5463 = vmatprep.subr.bf16.mxu0 0
    %5464 = vmatpush1.bf16.msra.mxu0 %v3833
    %5465 = vmatprep.subr.bf16.mxu0 0
    %5466 = vmatpush1.bf16.msra.mxu0 %v3834
    %5467 = vmatprep.subr.bf16.mxu0 0
    %5468 = vmatpush1.bf16.msra.mxu0 %v3835
    %5469 = vmatprep.subr.bf16.mxu0 0
    %5470 = vmatpush1.bf16.msra.mxu0 %v3836
    %5471 = vmatprep.subr.bf16.mxu0 0
    %5472 = vmatpush1.bf16.msra.mxu0 %v3837
    %5473 = vmatprep.subr.bf16.mxu0 0
    %5474 = vmatpush1.bf16.msra.mxu0 %v3838
    %5475 = vmatprep.mubr.bf16.mxu0 %v1355
    %5476 = vmatmul.mubr.bf16.gmra.mrb[0].mxu0 %v1353
    %v5477 = vpop.f32.mrb[0].mxu0
    %v5478 = vadd.f32 %v5438, %v5477
    %v5479 = vpop.f32.mrb[0].mxu0
    %v5480 = vpop.f32.mrb[0].mxu0
    %v5481 = vpop.f32.mrb[0].mxu0
    %5482 = vdwg.mxu0
    %5483 = vmatprep.subr.bf16.mxu0 0
    %5484 = vmatpush1.bf16.msra.mxu0 %v3839
    %5485 = vmatprep.subr.bf16.mxu0 0
    %5486 = vmatpush1.bf16.msra.mxu0 %v3840
    %5487 = vmatprep.subr.bf16.mxu0 0
    %5488 = vmatpush1.bf16.msra.mxu0 %v3841
    %5489 = vmatprep.subr.bf16.mxu0 0
    %5490 = vmatpush1.bf16.msra.mxu0 %v3842
    %5491 = vmatprep.subr.bf16.mxu0 0
    %5492 = vmatpush1.bf16.msra.mxu0 %v3843
    %5493 = vmatprep.subr.bf16.mxu0 0
    %5494 = vmatpush1.bf16.msra.mxu0 %v3844
    %5495 = vmatprep.subr.bf16.mxu0 0
    %5496 = vmatpush1.bf16.msra.mxu0 %v3845
    %5497 = vmatprep.subr.bf16.mxu0 0
    %5498 = vmatpush1.bf16.msra.mxu0 %v3846
    %5499 = vmatprep.subr.bf16.mxu0 0
    %5500 = vmatpush1.bf16.msra.mxu0 %v3847
    %5501 = vmatprep.subr.bf16.mxu0 0
    %5502 = vmatpush1.bf16.msra.mxu0 %v3848
    %5503 = vmatprep.subr.bf16.mxu0 0
    %5504 = vmatpush1.bf16.msra.mxu0 %v3849
    %5505 = vmatprep.subr.bf16.mxu0 0
    %5506 = vmatpush1.bf16.msra.mxu0 %v3850
    %5507 = vmatprep.subr.bf16.mxu0 0
    %5508 = vmatpush1.bf16.msra.mxu0 %v3851
    %5509 = vmatprep.subr.bf16.mxu0 0
    %5510 = vmatpush1.bf16.msra.mxu0 %v3852
    %5511 = vmatprep.subr.bf16.mxu0 0
    %5512 = vmatpush1.bf16.msra.mxu0 %v3853
    %5513 = vmatprep.subr.bf16.mxu0 0
    %5514 = vmatpush1.bf16.msra.mxu0 %v3854
    %5515 = vmatprep.mubr.bf16.mxu0 %v1392
    %5516 = vmatmul.mubr.bf16.gmra.mrb[0].mxu0 %v1378
    %v5517 = vpop.f32.mrb[0].mxu0
    %v5518 = vadd.f32 %v5478, %v5517
    %v5519 = vpop.f32.mrb[0].mxu0
    %v5520 = vpop.f32.mrb[0].mxu0
    %v5521 = vpop.f32.mrb[0].mxu0
    %5522 = vdwg.mxu0
    %5523 = vmatprep.subr.bf16.mxu0 0
    %5524 = vmatpush1.bf16.msra.mxu0 %v3855
    %5525 = vmatprep.subr.bf16.mxu0 0
    %5526 = vmatpush1.bf16.msra.mxu0 %v3856
    %5527 = vmatprep.subr.bf16.mxu0 0
    %5528 = vmatpush1.bf16.msra.mxu0 %v3857
    %5529 = vmatprep.subr.bf16.mxu0 0
    %5530 = vmatpush1.bf16.msra.mxu0 %v3858
    %5531 = vmatprep.subr.bf16.mxu0 0
    %5532 = vmatpush1.bf16.msra.mxu0 %v3859
    %5533 = vmatprep.subr.bf16.mxu0 0
    %5534 = vmatpush1.bf16.msra.mxu0 %v3860
    %5535 = vmatprep.subr.bf16.mxu0 0
    %5536 = vmatpush1.bf16.msra.mxu0 %v3861
    %5537 = vmatprep.subr.bf16.mxu0 0
    %5538 = vmatpush1.bf16.msra.mxu0 %v3862
    %5539 = vmatprep.subr.bf16.mxu0 0
    %5540 = vmatpush1.bf16.msra.mxu0 %v3863
    %5541 = vmatprep.subr.bf16.mxu0 0
    %5542 = vmatpush1.bf16.msra.mxu0 %v3864
    %5543 = vmatprep.subr.bf16.mxu0 0
    %5544 = vmatpush1.bf16.msra.mxu0 %v3865
    %5545 = vmatprep.subr.bf16.mxu0 0
    %5546 = vmatpush1.bf16.msra.mxu0 %v3866
    %5547 = vmatprep.subr.bf16.mxu0 0
    %5548 = vmatpush1.bf16.msra.mxu0 %v3867
    %5549 = vmatprep.subr.bf16.mxu0 0
    %5550 = vmatpush1.bf16.msra.mxu0 %v3868
    %5551 = vmatprep.subr.bf16.mxu0 0
    %5552 = vmatpush1.bf16.msra.mxu0 %v3869
    %5553 = vmatprep.subr.bf16.mxu0 0
    %5554 = vmatpush1.bf16.msra.mxu0 %v3870
    %5555 = vmatprep.mubr.bf16.mxu0 %v1394
    %5556 = vmatmul.mubr.bf16.gmra.mrb[0].mxu0 %v1393
    %v5557 = vpop.f32.mrb[0].mxu0
    %v5558 = vadd.f32 %v5518, %v5557
    %v5559 = vpop.f32.mrb[0].mxu0
    %v5560 = vpop.f32.mrb[0].mxu0
    %v5561 = vpop.f32.mrb[0].mxu0
    %5562 = vdwg.mxu0
    %5563 = vmatprep.subr.bf16.mxu0 0
    %5564 = vmatpush1.bf16.msra.mxu0 %v3871
    %5565 = vmatprep.subr.bf16.mxu0 0
    %5566 = vmatpush1.bf16.msra.mxu0 %v3872
    %5567 = vmatprep.subr.bf16.mxu0 0
    %5568 = vmatpush1.bf16.msra.mxu0 %v3873
    %5569 = vmatprep.subr.bf16.mxu0 0
    %5570 = vmatpush1.bf16.msra.mxu0 %v3874
    %5571 = vmatprep.subr.bf16.mxu0 0
    %5572 = vmatpush1.bf16.msra.mxu0 0
    %5573 = vmatprep.subr.bf16.mxu0 0
    %5574 = vmatpush1.bf16.msra.mxu0 0
    %5575 = vmatprep.subr.bf16.mxu0 0
    %5576 = vmatpush1.bf16.msra.mxu0 0
    %5577 = vmatprep.subr.bf16.mxu0 0
    %5578 = vmatpush1.bf16.msra.mxu0 0
    %5579 = vmatprep.subr.bf16.mxu0 0
    %5580 = vmatpush1.bf16.msra.mxu0 0
    %5581 = vmatprep.subr.bf16.mxu0 0
    %5582 = vmatpush1.bf16.msra.mxu0 0
    %5583 = vmatprep.subr.bf16.mxu0 0
    %5584 = vmatpush1.bf16.msra.mxu0 0
    %5585 = vmatprep.subr.bf16.mxu0 0
    %5586 = vmatpush1.bf16.msra.mxu0 0
    %5587 = vmatprep.subr.bf16.mxu0 0
    %5588 = vmatpush1.bf16.msra.mxu0 0
    %5589 = vmatprep.subr.bf16.mxu0 0
    %5590 = vmatpush1.bf16.msra.mxu0 0
    %5591 = vmatprep.subr.bf16.mxu0 0
    %5592 = vmatpush1.bf16.msra.mxu0 0
    %5593 = vmatprep.subr.bf16.mxu0 0
    %5594 = vmatpush1.bf16.msra.mxu0 0
    %5595 = vmatprep.mubr.bf16.mxu0 0
    %5596 = vmatmul.mubr.bf16.gmra.mrb[0].mxu0 %v4361
    %v5597 = vpop.f32.mrb[0].mxu0
    %v5598 = vadd.f32 %v5558, %v5597
    %v5599 = vpop.f32.mrb[0].mxu0
    %v5600 = vpop.f32.mrb[0].mxu0
    %v5601 = vpop.f32.mrb[0].mxu0
    %5602 = vdwg.mxu0
    %v5603 = vmax.f32 %v5598, 0.0
    %v5604 = vld [vmem:[%s3] sm:$0xff]
    %v5605 = vld [vmem:[%s3 + $0x8] sm:$0xff]
    %v5606 = vld [vmem:[%s3 + $0x10] sm:$0xff]
    %v5607 = vld [vmem:[%s3 + $0x18] sm:$0xff]
    %v5608 = vld [vmem:[%s3 + $0x20] sm:$0xff]
    %v5609 = vld [vmem:[%s3 + $0x28] sm:$0xff]
    %v5610 = vld [vmem:[%s3 + $0x30] sm:$0xff]
    %v5611 = vld [vmem:[%s3 + $0x38] sm:$0xff]
    %v5612 = vld [vmem:[%s3 + $0x40] sm:$0xff]
    %v5613 = vld [vmem:[%s3 + $0x48] sm:$0xff]
    %v5614 = vld [vmem:[%s3 + $0x50] sm:$0xff]
    %v5615 = vld [vmem:[%s3 + $0x58] sm:$0xff]
    %v5616 = vld [vmem:[%s3 + $0x60] sm:$0xff]
    %v5617 = vld [vmem:[%s3 + $0x68] sm:$0xff]
    %v5618 = vld [vmem:[%s3 + $0x70] sm:$0xff]
    %v5619 = vld [vmem:[%s3 + $0x78] sm:$0xff]
    %v5620 = vld [vmem:[%s4] sm:$0x1]
    %v5622 = vlaneseq
    %v5623 = vshrl.u32 %v5622, 7
    %v5624 = vsub.s32 0, %v5623
    %v5625 = vrot.slane %v5620, %v5624
    %5627 = vmatprep.subr.mxu0 0.0
    %5628 = vmatpush1.msra.mxu0 %v5604
    %5629 = vmatprep.subr.mxu0 0.0
    %5630 = vmatpush1.msra.mxu0 %v5605
    %5631 = vmatprep.subr.mxu0 0.0
    %5632 = vmatpush1.msra.mxu0 %v5606
    %5633 = vmatprep.subr.mxu0 0.0
    %5634 = vmatpush1.msra.mxu0 %v5607
    %5635 = vmatprep.subr.mxu0 0.0
    %5636 = vmatpush1.msra.mxu0 %v5608
    %5637 = vmatprep.subr.mxu0 0.0
    %5638 = vmatpush1.msra.mxu0 %v5609
    %5639 = vmatprep.subr.mxu0 0.0
    %5640 = vmatpush1.msra.mxu0 %v5610
    %5641 = vmatprep.subr.mxu0 0.0
    %5642 = vmatpush1.msra.mxu0 %v5611
    %5643 = vmatprep.subr.mxu0 0.0
    %5644 = vmatpush1.msra.mxu0 %v5612
    %5645 = vmatprep.subr.mxu0 0.0
    %5646 = vmatpush1.msra.mxu0 %v5613
    %5647 = vmatprep.subr.mxu0 0.0
    %5648 = vmatpush1.msra.mxu0 %v5614
    %5649 = vmatprep.subr.mxu0 0.0
    %5650 = vmatpush1.msra.mxu0 %v5615
    %5651 = vmatprep.subr.mxu0 0.0
    %5652 = vmatpush1.msra.mxu0 %v5616
    %5653 = vmatprep.subr.mxu0 0.0
    %5654 = vmatpush1.msra.mxu0 %v5617
    %5655 = vmatprep.subr.mxu0 0.0
    %5656 = vmatpush1.msra.mxu0 %v5618
    %5657 = vmatprep.subr.mxu0 0.0
    %5658 = vmatpush1.msra.mxu0 %v5619
    %5659 = vmatprep.subr.mxu0 0.0
    %5660 = vmatpush1.msra.mxu0 0.0
    %5661 = vmatprep.subr.mxu0 0.0
    %5662 = vmatpush1.msra.mxu0 0.0
    %5663 = vmatprep.subr.mxu0 0.0
    %5664 = vmatpush1.msra.mxu0 0.0
    %5665 = vmatprep.subr.mxu0 0.0
    %5666 = vmatpush1.msra.mxu0 0.0
    %5667 = vmatprep.subr.mxu0 0.0
    %5668 = vmatpush1.msra.mxu0 0.0
    %5669 = vmatprep.subr.mxu0 0.0
    %5670 = vmatpush1.msra.mxu0 0.0
    %5671 = vmatprep.subr.mxu0 0.0
    %5672 = vmatpush1.msra.mxu0 0.0
    %5673 = vmatprep.subr.mxu0 0.0
    %5674 = vmatpush1.msra.mxu0 0.0
    %5675 = vmatprep.subr.mxu0 0.0
    %5676 = vmatpush1.msra.mxu0 0.0
    %5677 = vmatprep.subr.mxu0 0.0
    %5678 = vmatpush1.msra.mxu0 0.0
    %5679 = vmatprep.subr.mxu0 0.0
    %5680 = vmatpush1.msra.mxu0 0.0
    %5681 = vmatprep.subr.mxu0 0.0
    %5682 = vmatpush1.msra.mxu0 0.0
    %5683 = vmatprep.subr.mxu0 0.0
    %5684 = vmatpush1.msra.mxu0 0.0
    %5685 = vmatprep.subr.mxu0 0.0
    %5686 = vmatpush1.msra.mxu0 0.0
    %5687 = vmatprep.subr.mxu0 0.0
    %5688 = vmatpush1.msra.mxu0 0.0
    %5689 = vmatprep.subr.mxu0 0.0
    %5690 = vmatpush1.msra.mxu0 0.0
    %5691 = vmatprep.mubr.f32.mxu0 0.0
    %5692 = vmatmul.mubr.f32.gmra.mrb[0].mxu0 %v5603
    %v5693 = vpop.f32.mrb[0].mxu0
    %v5694 = vadd.f32 %v5625, %v5693
    %v5695 = vpop.f32.mrb[0].mxu0
    %5696 = vdwg.mxu0
    %vm5697 = vcmask 41984
    %5698 = vst.msk [vmem:[#allocation2] sm:$0x3] %vm5697, %v5694
    // Predicated region
    $region22: #{dqn_forward.3} parent=1 // pred_check
      _
    $region23: #{dqn_forward.3} parent=1 // pred_check_branch
      %5700 = sbr.rel (0) target = $region25
    $region24: #{dqn_forward.3} parent=1 // pred_region
      %s5702 = ssub.s32 32, 32
      %5703 = vsyncadd [#allocation3], %s5702
      %s5705 = sshll.u32 [#allocation2], 4
      %s5706 = int_to_ptr.vmem [resolvable:$true] %s5705
      %5708 = dma.vmem_to_hbm [thread:$0]  %s5706, 32, %s5, [#allocation3]
    $region25: #{dqn_forward.3} parent=1 // pred_fallthru
      _
    // Predicated region
    $region26: #{dqn_forward.3} parent=1 // pred_check
      _
    $region27: #{dqn_forward.3} parent=1 // pred_check_branch
      %5710 = sbr.rel (0) target = $region29
    $region28: #{dqn_forward.3} parent=1 // pred_region
      %5711 = dma.done [#allocation3], 32
    $region29: #{dqn_forward.3} parent=1 // pred_fallthru
      _
    %5712 = vsyncpa [#allocation3], 1

</llo_original>
